<compile_context>
chip_gen: v6e
topology: v6e:2x2x1
jax: 0.10.0
libtpu: 0.0.40
codegen_flags: <defaults>
</compile_context>

<pallas_src>
import jax
import jax.numpy as jnp
from jax.experimental import pallas as pl
from jax.experimental.pallas import tpu as pltpu


# ----------------------------------------------------------------------------
# Fused kernel: L LSTM layers over the full sequence + output projection.
# ----------------------------------------------------------------------------
def fused_lstm_kernel(x_ref, wih_ref, whh_ref, b_ref, h0_ref, c0_ref,
                      perm_ref, wout_ref, bout_ref,
                      logits_ref, hN_ref, cN_ref,
                      seq_tm, gin):
    T, B, H = x_ref.shape
    L = wih_ref.shape[0]

    for l in range(L):
        # ---- Input projection for the WHOLE sequence (off the serial path):
        #      [T*B, H] @ [H, 4H] + bias -> gin [T*B, 4H] (f32 accumulation).
        if l == 0:
            x_flat = x_ref[...].reshape(T * B, H)
        else:
            x_flat = seq_tm[...].reshape(T * B, H)
        gin[...] = (
            jnp.dot(x_flat.astype(jnp.bfloat16), wih_ref[l],
                    preferred_element_type=jnp.float32)
            + b_ref[l])

        h = h0_ref[l].astype(jnp.float32)   # [B, H]
        c = c0_ref[l].astype(jnp.float32)   # [B, H]

        # ---- Serial recurrence, fully unrolled (T is static). Only one
        #      [B,H]@[H,4H] matmul + elementwise per step on the critical path.
        for t in range(T):
            gates = gin[pl.ds(t * B, B), :] + jnp.dot(
                h.astype(jnp.bfloat16), whh_ref[l],
                preferred_element_type=jnp.float32)           # [B, 4H]
            i_g = jax.nn.sigmoid(gates[:, 0 * H:1 * H])
            f_g = jax.nn.sigmoid(gates[:, 1 * H:2 * H])
            g_g = jnp.tanh(gates[:, 2 * H:3 * H])
            o_g = jax.nn.sigmoid(gates[:, 3 * H:4 * H])
            c = f_g * c + i_g * g_g
            h = o_g * jnp.tanh(c)
            seq_tm[t] = h                                     # full [B,H] slab

        # Final states written once per layer (not every timestep).
        hN_ref[l] = h
        cN_ref[l] = c

    # ---- Output head, fused. Reorder time-major rows (t*B+b) into batch-first
    #      rows (b*T+t) with an exact 0/1 permutation matmul (f32, MXU), then
    #      logits = hid_bf @ W_out^T + b_out.
    hid_tm = seq_tm[...].reshape(T * B, H)
    hid_bf = jnp.dot(perm_ref[...], hid_tm,
                     preferred_element_type=jnp.float32)      # [B*T, H]
    # TODO(synk): for large vocab sizes, tile this projection over V
    # (BlockSpec over the lane dim) instead of one full-block matmul.
    logits_ref[...] = (
        jnp.dot(hid_bf.astype(jnp.bfloat16), wout_ref[...],
                preferred_element_type=jnp.float32)
        + bout_ref[...])


def fused_forward(emb_tm, w_ih_t, w_hh_t, bias, h0, c0, perm, w_out_t, b_out):
    """emb_tm: [T, B, H] time-major embeddings. Returns (logits [B*T,V], hN, cN)."""
    T, B, H = emb_tm.shape
    L = w_ih_t.shape[0]
    H4 = w_ih_t.shape[2]
    V = w_out_t.shape[1]

    out_shapes = (
        jax.ShapeDtypeStruct((B * T, V), jnp.float32),
        jax.ShapeDtypeStruct((L, B, H), jnp.float32),
        jax.ShapeDtypeStruct((L, B, H), jnp.float32),
    )
    grid_spec = pltpu.PrefetchScalarGridSpec(
        num_scalar_prefetch=0,
        grid=(1,),
        in_specs=[
            pl.BlockSpec((T, B, H), lambda i: (0, 0, 0)),      # embeddings
            pl.BlockSpec((L, H, H4), lambda i: (0, 0, 0)),     # W_ih^T (bf16)
            pl.BlockSpec((L, H, H4), lambda i: (0, 0, 0)),     # W_hh^T (bf16)
            pl.BlockSpec((L, 1, H4), lambda i: (0, 0, 0)),     # bias
            pl.BlockSpec((L, B, H), lambda i: (0, 0, 0)),      # h0
            pl.BlockSpec((L, B, H), lambda i: (0, 0, 0)),      # c0
            pl.BlockSpec((B * T, T * B), lambda i: (0, 0)),    # row permutation
            pl.BlockSpec((H, V), lambda i: (0, 0)),            # W_out^T (bf16)
            pl.BlockSpec((1, V), lambda i: (0, 0)),            # b_out
        ],
        out_specs=[
            pl.BlockSpec((B * T, V), lambda i: (0, 0)),        # logits
            pl.BlockSpec((L, B, H), lambda i: (0, 0, 0)),      # h final
            pl.BlockSpec((L, B, H), lambda i: (0, 0, 0)),      # c final
        ],
        scratch_shapes=[
            pltpu.VMEM((T, B, H), jnp.float32),     # per-layer output sequence
            pltpu.VMEM((T * B, H4), jnp.float32),   # precomputed input-gate terms
        ],
    )
    return pl.pallas_call(
        fused_lstm_kernel,
        out_shape=out_shapes,
        grid_spec=grid_spec,
        compiler_params=pltpu.CompilerParams(
            dimension_semantics=("arbitrary",)),
    )(emb_tm, w_ih_t, w_hh_t, bias, h0, c0, perm, w_out_t, b_out)


# ----------------------------------------------------------------------------
# Parameter init (deterministic, mirrors the PyTorch module shapes / init)
# ----------------------------------------------------------------------------
def init_params(key, vocab_size, hidden_size, num_layers, init_scale=0.1):
    H, V, L = hidden_size, vocab_size, num_layers
    keys = jax.random.split(key, 3 + 4 * L)
    k = 1.0 / jnp.sqrt(H)

    params = {}
    # nn.Embedding(vocab_size, hidden_size), uniform(-init_scale, init_scale)
    params["emb"] = jax.random.uniform(
        keys[0], (V, H), jnp.float32, -init_scale, init_scale)

    # nn.LSTM(H, H, L): weight_ih_l{k} [4H,H], weight_hh_l{k} [4H,H], biases [4H].
    w_ih_t, w_hh_t, b = [], [], []
    for l in range(L):
        kw = keys[3 + 4 * l: 3 + 4 * (l + 1)]
        w_ih = jax.random.uniform(kw[0], (4 * H, H), jnp.float32, -k, k)
        w_hh = jax.random.uniform(kw[1], (4 * H, H), jnp.float32, -k, k)
        b_ih = jax.random.uniform(kw[2], (4 * H,), jnp.float32, -k, k)
        b_hh = jax.random.uniform(kw[3], (4 * H,), jnp.float32, -k, k)
        w_ih_t.append(w_ih.T)                        # [H, 4H]
        w_hh_t.append(w_hh.T)                        # [H, 4H]
        b.append((b_ih + b_hh).reshape(1, 4 * H))    # [1, 4H]
    # bf16 weights for the MXU; biases / states stay f32.
    params["w_ih_t"] = jnp.stack(w_ih_t).astype(jnp.bfloat16)   # [L, H, 4H]
    params["w_hh_t"] = jnp.stack(w_hh_t).astype(jnp.bfloat16)   # [L, H, 4H]
    params["b"] = jnp.stack(b)                                   # [L, 1, 4H] f32

    # nn.Linear(H, V): weight [V,H] uniform(-init_scale,init_scale), bias U(-k,k).
    w_out = jax.random.uniform(keys[1], (V, H), jnp.float32,
                               -init_scale, init_scale)
    params["w_out_t"] = w_out.T.astype(jnp.bfloat16)             # [H, V]
    params["b_out"] = jax.random.uniform(keys[2], (1, V), jnp.float32, -k, k)
    return params


# ----------------------------------------------------------------------------
# Full forward pass (mirrors LSTM.forward, eval mode -> no dropout)
# ----------------------------------------------------------------------------
@jax.jit
def lstm_forward(x_tokens, hidden, params):
    h0, c0 = hidden                                  # each [L, B, H]
    B, T = x_tokens.shape

    # Embedding lookup gathered directly time-major (only the tiny int token
    # matrix is transposed -> no [T,B,H] activation transpose in the wrapper).
    emb_tm = jnp.take(params["emb"], x_tokens.T, axis=0)         # [T, B, H]

    # Constant 0/1 row-permutation matrix: time-major row (t*B+b) -> batch-first
    # row (b*T+t). Shapes are static, so this folds to a compile-time constant.
    q = jnp.arange(B * T)
    src = (q % T) * B + (q // T)
    perm = (src[:, None] == jnp.arange(T * B)[None, :]).astype(jnp.float32)

    logits, hN, cN = fused_forward(
        emb_tm, params["w_ih_t"], params["w_hh_t"], params["b"],
        h0, c0, perm, params["w_out_t"], params["b_out"])
    return logits, (hN, cN)


if __name__ == "__main__":
    vocab_size = 256
    hidden_size = 128
    num_layers = 2
    batch = 8
    seq_len = 8

    key = jax.random.PRNGKey(0)
    pkey, xkey = jax.random.split(key)
    params = init_params(pkey, vocab_size, hidden_size, num_layers)

    x_tokens = jax.random.randint(
        xkey, (batch, seq_len), 0, vocab_size, dtype=jnp.int32)

    # init_hidden(batch_size)
    h0 = jnp.zeros((num_layers, batch, hidden_size), jnp.float32)
    c0 = jnp.zeros((num_layers, batch, hidden_size), jnp.float32)

    logits, (hN, cN) = lstm_forward(x_tokens, (h0, c0), params)
    jax.block_until_ready((logits, hN, cN))

    assert logits.shape == (batch * seq_len, vocab_size)
    assert hN.shape == (num_layers, batch, hidden_size)
    assert cN.shape == (num_layers, batch, hidden_size)
    assert bool(jnp.all(jnp.isfinite(logits)))
    print("KERNEL_OK")
</pallas_src>

<mosaic_0001>
module attributes {stable_mosaic.version = 11 : i64} {
  func.func @fused_lstm_kernel(%arg0: i32, %arg1: memref<8x8x128xf32, #tpu.memory_space<vmem>>, %arg2: memref<2x128x512xbf16, #tpu.memory_space<vmem>>, %arg3: memref<2x128x512xbf16, #tpu.memory_space<vmem>>, %arg4: memref<2x1x512xf32, #tpu.memory_space<vmem>>, %arg5: memref<2x8x128xf32, #tpu.memory_space<vmem>>, %arg6: memref<2x8x128xf32, #tpu.memory_space<vmem>>, %arg7: memref<64x64xf32, #tpu.memory_space<vmem>>, %arg8: memref<128x256xbf16, #tpu.memory_space<vmem>>, %arg9: memref<1x256xf32, #tpu.memory_space<vmem>>, %arg10: memref<64x256xf32, #tpu.memory_space<vmem>>, %arg11: memref<2x8x128xf32, #tpu.memory_space<vmem>>, %arg12: memref<2x8x128xf32, #tpu.memory_space<vmem>>, %arg13: memref<8x8x128xf32, #tpu.memory_space<vmem>>, %arg14: memref<64x512xf32, #tpu.memory_space<vmem>>) attributes {dimension_semantics = [#tpu.dimension_semantics<arbitrary>], iteration_bounds = array<i64: 1>, scalar_prefetch = 0 : i64, scratch_operands = 2 : i64, tpu.core_type = #tpu.core_type<tc>, window_params = [{pipeline_mode = #tpu.pipeline_mode<synchronous>, transform_indices = @transform_0, window_bounds = array<i64: 8, 8, 128>}, {pipeline_mode = #tpu.pipeline_mode<synchronous>, transform_indices = @transform_1, window_bounds = array<i64: 2, 128, 512>}, {pipeline_mode = #tpu.pipeline_mode<synchronous>, transform_indices = @transform_2, window_bounds = array<i64: 2, 128, 512>}, {pipeline_mode = #tpu.pipeline_mode<synchronous>, transform_indices = @transform_3, window_bounds = array<i64: 2, 1, 512>}, {pipeline_mode = #tpu.pipeline_mode<synchronous>, transform_indices = @transform_4, window_bounds = array<i64: 2, 8, 128>}, {pipeline_mode = #tpu.pipeline_mode<synchronous>, transform_indices = @transform_5, window_bounds = array<i64: 2, 8, 128>}, {pipeline_mode = #tpu.pipeline_mode<synchronous>, transform_indices = @transform_6, window_bounds = array<i64: 64, 64>}, {pipeline_mode = #tpu.pipeline_mode<synchronous>, transform_indices = @transform_7, window_bounds = array<i64: 128, 256>}, {pipeline_mode = #tpu.pipeline_mode<synchronous>, transform_indices = @transform_8, window_bounds = array<i64: 1, 256>}, {pipeline_mode = #tpu.pipeline_mode<synchronous>, transform_indices = @transform_9, window_bounds = array<i64: 64, 256>}, {pipeline_mode = #tpu.pipeline_mode<synchronous>, transform_indices = @transform_10, window_bounds = array<i64: 2, 8, 128>}, {pipeline_mode = #tpu.pipeline_mode<synchronous>, transform_indices = @transform_11, window_bounds = array<i64: 2, 8, 128>}]} {
    %c0 = arith.constant 0 : index
    %c0_0 = arith.constant 0 : index
    %c0_1 = arith.constant 0 : index
    %0 = vector.load %arg1[%c0, %c0_0, %c0_1] : memref<8x8x128xf32, #tpu.memory_space<vmem>>, vector<8x8x128xf32>
    %1 = vector.shape_cast %0 : vector<8x8x128xf32> to vector<64x128xf32>
    %2 = arith.truncf %1 : vector<64x128xf32> to vector<64x128xbf16>
    %c0_2 = arith.constant 0 : index
    %c0_3 = arith.constant 0 : index
    %c0_4 = arith.constant 0 : index
    %3 = vector.load %arg2[%c0_2, %c0_3, %c0_4] : memref<2x128x512xbf16, #tpu.memory_space<vmem>>, vector<1x128x512xbf16>
    %4 = vector.shape_cast %3 : vector<1x128x512xbf16> to vector<128x512xbf16>
    %cst = arith.constant dense<0.000000e+00> : vector<64x512xf32>
    %5 = tpu.matmul %2, %4, %cst {dimension_numbers = #tpu.dot_dimension_numbers<[1], [0], [0], [1], [0, 0, 1, 1], [], []>} : vector<64x128xbf16>, vector<128x512xbf16>, vector<64x512xf32> -> vector<64x512xf32>
    %c0_5 = arith.constant 0 : index
    %c0_6 = arith.constant 0 : index
    %c0_7 = arith.constant 0 : index
    %6 = vector.load %arg4[%c0_5, %c0_6, %c0_7] : memref<2x1x512xf32, #tpu.memory_space<vmem>>, vector<1x1x512xf32>
    %7 = vector.shape_cast %6 : vector<1x1x512xf32> to vector<1x512xf32>
    %8 = vector.broadcast %7 : vector<1x512xf32> to vector<64x512xf32>
    %9 = arith.addf %5, %8 : vector<64x512xf32>
    %c0_8 = arith.constant 0 : index
    %c0_9 = arith.constant 0 : index
    %10 = vector.load %arg14[%c0_8, %c0_9] : memref<64x512xf32, #tpu.memory_space<vmem>>, vector<64x512xf32>
    tpu.vector_store %arg14[%c0_8, %c0_9], %9 {strides = array<i32>} : memref<64x512xf32, #tpu.memory_space<vmem>>, vector<64x512xf32>,
    %c0_10 = arith.constant 0 : index
    %c0_11 = arith.constant 0 : index
    %c0_12 = arith.constant 0 : index
    %11 = vector.load %arg5[%c0_10, %c0_11, %c0_12] : memref<2x8x128xf32, #tpu.memory_space<vmem>>, vector<1x8x128xf32>
    %12 = vector.shape_cast %11 : vector<1x8x128xf32> to vector<8x128xf32>
    %c0_13 = arith.constant 0 : index
    %c0_14 = arith.constant 0 : index
    %c0_15 = arith.constant 0 : index
    %13 = vector.load %arg6[%c0_13, %c0_14, %c0_15] : memref<2x8x128xf32, #tpu.memory_space<vmem>>, vector<1x8x128xf32>
    %14 = vector.shape_cast %13 : vector<1x8x128xf32> to vector<8x128xf32>
    %c0_16 = arith.constant 0 : index
    %c0_17 = arith.constant 0 : index
    %15 = vector.load %arg14[%c0_16, %c0_17] : memref<64x512xf32, #tpu.memory_space<vmem>>, vector<8x512xf32>
    %16 = arith.truncf %12 : vector<8x128xf32> to vector<8x128xbf16>
    %c0_18 = arith.constant 0 : index
    %c0_19 = arith.constant 0 : index
    %c0_20 = arith.constant 0 : index
    %17 = vector.load %arg3[%c0_18, %c0_19, %c0_20] : memref<2x128x512xbf16, #tpu.memory_space<vmem>>, vector<1x128x512xbf16>
    %18 = vector.shape_cast %17 : vector<1x128x512xbf16> to vector<128x512xbf16>
    %cst_21 = arith.constant dense<0.000000e+00> : vector<8x512xf32>
    %19 = tpu.matmul %16, %18, %cst_21 {dimension_numbers = #tpu.dot_dimension_numbers<[1], [0], [0], [1], [0, 0, 1, 1], [], []>} : vector<8x128xbf16>, vector<128x512xbf16>, vector<8x512xf32> -> vector<8x512xf32>
    %20 = arith.addf %15, %19 : vector<8x512xf32>
    %21 = vector.extract_strided_slice %20 {offsets = [0, 0], sizes = [8, 128], strides = [1, 1]} : vector<8x512xf32> to vector<8x128xf32>
    %22 = arith.negf %21 : vector<8x128xf32>
    %23 = math.exp %22 : vector<8x128xf32>
    %cst_22 = arith.constant 1.000000e+00 : f32
    %24 = vector.broadcast %cst_22 : f32 to vector<8x128xf32>
    %25 = arith.addf %24, %23 : vector<8x128xf32>
    %26 = arith.divf %24, %25 : vector<8x128xf32>
    %27 = vector.extract_strided_slice %20 {offsets = [0, 128], sizes = [8, 128], strides = [1, 1]} : vector<8x512xf32> to vector<8x128xf32>
    %28 = arith.negf %27 : vector<8x128xf32>
    %29 = math.exp %28 : vector<8x128xf32>
    %cst_23 = arith.constant 1.000000e+00 : f32
    %30 = vector.broadcast %cst_23 : f32 to vector<8x128xf32>
    %31 = arith.addf %30, %29 : vector<8x128xf32>
    %32 = arith.divf %30, %31 : vector<8x128xf32>
    %33 = vector.extract_strided_slice %20 {offsets = [0, 256], sizes = [8, 128], strides = [1, 1]} : vector<8x512xf32> to vector<8x128xf32>
    %34 = math.tanh %33 : vector<8x128xf32>
    %35 = vector.extract_strided_slice %20 {offsets = [0, 384], sizes = [8, 128], strides = [1, 1]} : vector<8x512xf32> to vector<8x128xf32>
    %36 = arith.negf %35 : vector<8x128xf32>
    %37 = math.exp %36 : vector<8x128xf32>
    %cst_24 = arith.constant 1.000000e+00 : f32
    %38 = vector.broadcast %cst_24 : f32 to vector<8x128xf32>
    %39 = arith.addf %38, %37 : vector<8x128xf32>
    %40 = arith.divf %38, %39 : vector<8x128xf32>
    %41 = arith.mulf %32, %14 : vector<8x128xf32>
    %42 = arith.mulf %26, %34 : vector<8x128xf32>
    %43 = arith.addf %41, %42 : vector<8x128xf32>
    %44 = math.tanh %43 : vector<8x128xf32>
    %45 = arith.mulf %40, %44 : vector<8x128xf32>
    %c0_25 = arith.constant 0 : index
    %c0_26 = arith.constant 0 : index
    %c0_27 = arith.constant 0 : index
    %46 = vector.load %arg13[%c0_25, %c0_26, %c0_27] : memref<8x8x128xf32, #tpu.memory_space<vmem>>, vector<1x8x128xf32>
    %47 = vector.shape_cast %46 : vector<1x8x128xf32> to vector<8x128xf32>
    %48 = vector.shape_cast %45 : vector<8x128xf32> to vector<1x8x128xf32>
    tpu.vector_store %arg13[%c0_25, %c0_26, %c0_27], %48 {strides = array<i32>} : memref<8x8x128xf32, #tpu.memory_space<vmem>>, vector<1x8x128xf32>,
    %c8 = arith.constant 8 : index
    %c0_28 = arith.constant 0 : index
    %49 = vector.load %arg14[%c8, %c0_28] : memref<64x512xf32, #tpu.memory_space<vmem>>, vector<8x512xf32>
    %50 = arith.truncf %45 : vector<8x128xf32> to vector<8x128xbf16>
    %c0_29 = arith.constant 0 : index
    %c0_30 = arith.constant 0 : index
    %c0_31 = arith.constant 0 : index
    %51 = vector.load %arg3[%c0_29, %c0_30, %c0_31] : memref<2x128x512xbf16, #tpu.memory_space<vmem>>, vector<1x128x512xbf16>
    %52 = vector.shape_cast %51 : vector<1x128x512xbf16> to vector<128x512xbf16>
    %cst_32 = arith.constant dense<0.000000e+00> : vector<8x512xf32>
    %53 = tpu.matmul %50, %52, %cst_32 {dimension_numbers = #tpu.dot_dimension_numbers<[1], [0], [0], [1], [0, 0, 1, 1], [], []>} : vector<8x128xbf16>, vector<128x512xbf16>, vector<8x512xf32> -> vector<8x512xf32>
    %54 = arith.addf %49, %53 : vector<8x512xf32>
    %55 = vector.extract_strided_slice %54 {offsets = [0, 0], sizes = [8, 128], strides = [1, 1]} : vector<8x512xf32> to vector<8x128xf32>
    %56 = arith.negf %55 : vector<8x128xf32>
    %57 = math.exp %56 : vector<8x128xf32>
    %cst_33 = arith.constant 1.000000e+00 : f32
    %58 = vector.broadcast %cst_33 : f32 to vector<8x128xf32>
    %59 = arith.addf %58, %57 : vector<8x128xf32>
    %60 = arith.divf %58, %59 : vector<8x128xf32>
    %61 = vector.extract_strided_slice %54 {offsets = [0, 128], sizes = [8, 128], strides = [1, 1]} : vector<8x512xf32> to vector<8x128xf32>
    %62 = arith.negf %61 : vector<8x128xf32>
    %63 = math.exp %62 : vector<8x128xf32>
    %cst_34 = arith.constant 1.000000e+00 : f32
    %64 = vector.broadcast %cst_34 : f32 to vector<8x128xf32>
    %65 = arith.addf %64, %63 : vector<8x128xf32>
    %66 = arith.divf %64, %65 : vector<8x128xf32>
    %67 = vector.extract_strided_slice %54 {offsets = [0, 256], sizes = [8, 128], strides = [1, 1]} : vector<8x512xf32> to vector<8x128xf32>
    %68 = math.tanh %67 : vector<8x128xf32>
    %69 = vector.extract_strided_slice %54 {offsets = [0, 384], sizes = [8, 128], strides = [1, 1]} : vector<8x512xf32> to vector<8x128xf32>
    %70 = arith.negf %69 : vector<8x128xf32>
    %71 = math.exp %70 : vector<8x128xf32>
    %cst_35 = arith.constant 1.000000e+00 : f32
    %72 = vector.broadcast %cst_35 : f32 to vector<8x128xf32>
    %73 = arith.addf %72, %71 : vector<8x128xf32>
    %74 = arith.divf %72, %73 : vector<8x128xf32>
    %75 = arith.mulf %66, %43 : vector<8x128xf32>
    %76 = arith.mulf %60, %68 : vector<8x128xf32>
    %77 = arith.addf %75, %76 : vector<8x128xf32>
    %78 = math.tanh %77 : vector<8x128xf32>
    %79 = arith.mulf %74, %78 : vector<8x128xf32>
    %c1 = arith.constant 1 : index
    %c0_36 = arith.constant 0 : index
    %c0_37 = arith.constant 0 : index
    %80 = vector.load %arg13[%c1, %c0_36, %c0_37] : memref<8x8x128xf32, #tpu.memory_space<vmem>>, vector<1x8x128xf32>
    %81 = vector.shape_cast %80 : vector<1x8x128xf32> to vector<8x128xf32>
    %82 = vector.shape_cast %79 : vector<8x128xf32> to vector<1x8x128xf32>
    tpu.vector_store %arg13[%c1, %c0_36, %c0_37], %82 {strides = array<i32>} : memref<8x8x128xf32, #tpu.memory_space<vmem>>, vector<1x8x128xf32>,
    %c16 = arith.constant 16 : index
    %c0_38 = arith.constant 0 : index
    %83 = vector.load %arg14[%c16, %c0_38] : memref<64x512xf32, #tpu.memory_space<vmem>>, vector<8x512xf32>
    %84 = arith.truncf %79 : vector<8x128xf32> to vector<8x128xbf16>
    %c0_39 = arith.constant 0 : index
    %c0_40 = arith.constant 0 : index
    %c0_41 = arith.constant 0 : index
    %85 = vector.load %arg3[%c0_39, %c0_40, %c0_41] : memref<2x128x512xbf16, #tpu.memory_space<vmem>>, vector<1x128x512xbf16>
    %86 = vector.shape_cast %85 : vector<1x128x512xbf16> to vector<128x512xbf16>
    %cst_42 = arith.constant dense<0.000000e+00> : vector<8x512xf32>
    %87 = tpu.matmul %84, %86, %cst_42 {dimension_numbers = #tpu.dot_dimension_numbers<[1], [0], [0], [1], [0, 0, 1, 1], [], []>} : vector<8x128xbf16>, vector<128x512xbf16>, vector<8x512xf32> -> vector<8x512xf32>
    %88 = arith.addf %83, %87 : vector<8x512xf32>
    %89 = vector.extract_strided_slice %88 {offsets = [0, 0], sizes = [8, 128], strides = [1, 1]} : vector<8x512xf32> to vector<8x128xf32>
    %90 = arith.negf %89 : vector<8x128xf32>
    %91 = math.exp %90 : vector<8x128xf32>
    %cst_43 = arith.constant 1.000000e+00 : f32
    %92 = vector.broadcast %cst_43 : f32 to vector<8x128xf32>
    %93 = arith.addf %92, %91 : vector<8x128xf32>
    %94 = arith.divf %92, %93 : vector<8x128xf32>
    %95 = vector.extract_strided_slice %88 {offsets = [0, 128], sizes = [8, 128], strides = [1, 1]} : vector<8x512xf32> to vector<8x128xf32>
    %96 = arith.negf %95 : vector<8x128xf32>
    %97 = math.exp %96 : vector<8x128xf32>
    %cst_44 = arith.constant 1.000000e+00 : f32
    %98 = vector.broadcast %cst_44 : f32 to vector<8x128xf32>
    %99 = arith.addf %98, %97 : vector<8x128xf32>
    %100 = arith.divf %98, %99 : vector<8x128xf32>
    %101 = vector.extract_strided_slice %88 {offsets = [0, 256], sizes = [8, 128], strides = [1, 1]} : vector<8x512xf32> to vector<8x128xf32>
    %102 = math.tanh %101 : vector<8x128xf32>
    %103 = vector.extract_strided_slice %88 {offsets = [0, 384], sizes = [8, 128], strides = [1, 1]} : vector<8x512xf32> to vector<8x128xf32>
    %104 = arith.negf %103 : vector<8x128xf32>
    %105 = math.exp %104 : vector<8x128xf32>
    %cst_45 = arith.constant 1.000000e+00 : f32
    %106 = vector.broadcast %cst_45 : f32 to vector<8x128xf32>
    %107 = arith.addf %106, %105 : vector<8x128xf32>
    %108 = arith.divf %106, %107 : vector<8x128xf32>
    %109 = arith.mulf %100, %77 : vector<8x128xf32>
    %110 = arith.mulf %94, %102 : vector<8x128xf32>
    %111 = arith.addf %109, %110 : vector<8x128xf32>
    %112 = math.tanh %111 : vector<8x128xf32>
    %113 = arith.mulf %108, %112 : vector<8x128xf32>
    %c2 = arith.constant 2 : index
    %c0_46 = arith.constant 0 : index
    %c0_47 = arith.constant 0 : index
    %114 = vector.load %arg13[%c2, %c0_46, %c0_47] : memref<8x8x128xf32, #tpu.memory_space<vmem>>, vector<1x8x128xf32>
    %115 = vector.shape_cast %114 : vector<1x8x128xf32> to vector<8x128xf32>
    %116 = vector.shape_cast %113 : vector<8x128xf32> to vector<1x8x128xf32>
    tpu.vector_store %arg13[%c2, %c0_46, %c0_47], %116 {strides = array<i32>} : memref<8x8x128xf32, #tpu.memory_space<vmem>>, vector<1x8x128xf32>,
    %c24 = arith.constant 24 : index
    %c0_48 = arith.constant 0 : index
    %117 = vector.load %arg14[%c24, %c0_48] : memref<64x512xf32, #tpu.memory_space<vmem>>, vector<8x512xf32>
    %118 = arith.truncf %113 : vector<8x128xf32> to vector<8x128xbf16>
    %c0_49 = arith.constant 0 : index
    %c0_50 = arith.constant 0 : index
    %c0_51 = arith.constant 0 : index
    %119 = vector.load %arg3[%c0_49, %c0_50, %c0_51] : memref<2x128x512xbf16, #tpu.memory_space<vmem>>, vector<1x128x512xbf16>
    %120 = vector.shape_cast %119 : vector<1x128x512xbf16> to vector<128x512xbf16>
    %cst_52 = arith.constant dense<0.000000e+00> : vector<8x512xf32>
    %121 = tpu.matmul %118, %120, %cst_52 {dimension_numbers = #tpu.dot_dimension_numbers<[1], [0], [0], [1], [0, 0, 1, 1], [], []>} : vector<8x128xbf16>, vector<128x512xbf16>, vector<8x512xf32> -> vector<8x512xf32>
    %122 = arith.addf %117, %121 : vector<8x512xf32>
    %123 = vector.extract_strided_slice %122 {offsets = [0, 0], sizes = [8, 128], strides = [1, 1]} : vector<8x512xf32> to vector<8x128xf32>
    %124 = arith.negf %123 : vector<8x128xf32>
    %125 = math.exp %124 : vector<8x128xf32>
    %cst_53 = arith.constant 1.000000e+00 : f32
    %126 = vector.broadcast %cst_53 : f32 to vector<8x128xf32>
    %127 = arith.addf %126, %125 : vector<8x128xf32>
    %128 = arith.divf %126, %127 : vector<8x128xf32>
    %129 = vector.extract_strided_slice %122 {offsets = [0, 128], sizes = [8, 128], strides = [1, 1]} : vector<8x512xf32> to vector<8x128xf32>
    %130 = arith.negf %129 : vector<8x128xf32>
    %131 = math.exp %130 : vector<8x128xf32>
    %cst_54 = arith.constant 1.000000e+00 : f32
    %132 = vector.broadcast %cst_54 : f32 to vector<8x128xf32>
    %133 = arith.addf %132, %131 : vector<8x128xf32>
    %134 = arith.divf %132, %133 : vector<8x128xf32>
    %135 = vector.extract_strided_slice %122 {offsets = [0, 256], sizes = [8, 128], strides = [1, 1]} : vector<8x512xf32> to vector<8x128xf32>
    %136 = math.tanh %135 : vector<8x128xf32>
    %137 = vector.extract_strided_slice %122 {offsets = [0, 384], sizes = [8, 128], strides = [1, 1]} : vector<8x512xf32> to vector<8x128xf32>
    %138 = arith.negf %137 : vector<8x128xf32>
    %139 = math.exp %138 : vector<8x128xf32>
    %cst_55 = arith.constant 1.000000e+00 : f32
    %140 = vector.broadcast %cst_55 : f32 to vector<8x128xf32>
    %141 = arith.addf %140, %139 : vector<8x128xf32>
    %142 = arith.divf %140, %141 : vector<8x128xf32>
    %143 = arith.mulf %134, %111 : vector<8x128xf32>
    %144 = arith.mulf %128, %136 : vector<8x128xf32>
    %145 = arith.addf %143, %144 : vector<8x128xf32>
    %146 = math.tanh %145 : vector<8x128xf32>
    %147 = arith.mulf %142, %146 : vector<8x128xf32>
    %c3 = arith.constant 3 : index
    %c0_56 = arith.constant 0 : index
    %c0_57 = arith.constant 0 : index
    %148 = vector.load %arg13[%c3, %c0_56, %c0_57] : memref<8x8x128xf32, #tpu.memory_space<vmem>>, vector<1x8x128xf32>
    %149 = vector.shape_cast %148 : vector<1x8x128xf32> to vector<8x128xf32>
    %150 = vector.shape_cast %147 : vector<8x128xf32> to vector<1x8x128xf32>
    tpu.vector_store %arg13[%c3, %c0_56, %c0_57], %150 {strides = array<i32>} : memref<8x8x128xf32, #tpu.memory_space<vmem>>, vector<1x8x128xf32>,
    %c32 = arith.constant 32 : index
    %c0_58 = arith.constant 0 : index
    %151 = vector.load %arg14[%c32, %c0_58] : memref<64x512xf32, #tpu.memory_space<vmem>>, vector<8x512xf32>
    %152 = arith.truncf %147 : vector<8x128xf32> to vector<8x128xbf16>
    %c0_59 = arith.constant 0 : index
    %c0_60 = arith.constant 0 : index
    %c0_61 = arith.constant 0 : index
    %153 = vector.load %arg3[%c0_59, %c0_60, %c0_61] : memref<2x128x512xbf16, #tpu.memory_space<vmem>>, vector<1x128x512xbf16>
    %154 = vector.shape_cast %153 : vector<1x128x512xbf16> to vector<128x512xbf16>
    %cst_62 = arith.constant dense<0.000000e+00> : vector<8x512xf32>
    %155 = tpu.matmul %152, %154, %cst_62 {dimension_numbers = #tpu.dot_dimension_numbers<[1], [0], [0], [1], [0, 0, 1, 1], [], []>} : vector<8x128xbf16>, vector<128x512xbf16>, vector<8x512xf32> -> vector<8x512xf32>
    %156 = arith.addf %151, %155 : vector<8x512xf32>
    %157 = vector.extract_strided_slice %156 {offsets = [0, 0], sizes = [8, 128], strides = [1, 1]} : vector<8x512xf32> to vector<8x128xf32>
    %158 = arith.negf %157 : vector<8x128xf32>
    %159 = math.exp %158 : vector<8x128xf32>
    %cst_63 = arith.constant 1.000000e+00 : f32
    %160 = vector.broadcast %cst_63 : f32 to vector<8x128xf32>
    %161 = arith.addf %160, %159 : vector<8x128xf32>
    %162 = arith.divf %160, %161 : vector<8x128xf32>
    %163 = vector.extract_strided_slice %156 {offsets = [0, 128], sizes = [8, 128], strides = [1, 1]} : vector<8x512xf32> to vector<8x128xf32>
    %164 = arith.negf %163 : vector<8x128xf32>
    %165 = math.exp %164 : vector<8x128xf32>
    %cst_64 = arith.constant 1.000000e+00 : f32
    %166 = vector.broadcast %cst_64 : f32 to vector<8x128xf32>
    %167 = arith.addf %166, %165 : vector<8x128xf32>
    %168 = arith.divf %166, %167 : vector<8x128xf32>
    %169 = vector.extract_strided_slice %156 {offsets = [0, 256], sizes = [8, 128], strides = [1, 1]} : vector<8x512xf32> to vector<8x128xf32>
    %170 = math.tanh %169 : vector<8x128xf32>
    %171 = vector.extract_strided_slice %156 {offsets = [0, 384], sizes = [8, 128], strides = [1, 1]} : vector<8x512xf32> to vector<8x128xf32>
    %172 = arith.negf %171 : vector<8x128xf32>
    %173 = math.exp %172 : vector<8x128xf32>
    %cst_65 = arith.constant 1.000000e+00 : f32
    %174 = vector.broadcast %cst_65 : f32 to vector<8x128xf32>
    %175 = arith.addf %174, %173 : vector<8x128xf32>
    %176 = arith.divf %174, %175 : vector<8x128xf32>
    %177 = arith.mulf %168, %145 : vector<8x128xf32>
    %178 = arith.mulf %162, %170 : vector<8x128xf32>
    %179 = arith.addf %177, %178 : vector<8x128xf32>
    %180 = math.tanh %179 : vector<8x128xf32>
    %181 = arith.mulf %176, %180 : vector<8x128xf32>
    %c4 = arith.constant 4 : index
    %c0_66 = arith.constant 0 : index
    %c0_67 = arith.constant 0 : index
    %182 = vector.load %arg13[%c4, %c0_66, %c0_67] : memref<8x8x128xf32, #tpu.memory_space<vmem>>, vector<1x8x128xf32>
    %183 = vector.shape_cast %182 : vector<1x8x128xf32> to vector<8x128xf32>
    %184 = vector.shape_cast %181 : vector<8x128xf32> to vector<1x8x128xf32>
    tpu.vector_store %arg13[%c4, %c0_66, %c0_67], %184 {strides = array<i32>} : memref<8x8x128xf32, #tpu.memory_space<vmem>>, vector<1x8x128xf32>,
    %c40 = arith.constant 40 : index
    %c0_68 = arith.constant 0 : index
    %185 = vector.load %arg14[%c40, %c0_68] : memref<64x512xf32, #tpu.memory_space<vmem>>, vector<8x512xf32>
    %186 = arith.truncf %181 : vector<8x128xf32> to vector<8x128xbf16>
    %c0_69 = arith.constant 0 : index
    %c0_70 = arith.constant 0 : index
    %c0_71 = arith.constant 0 : index
    %187 = vector.load %arg3[%c0_69, %c0_70, %c0_71] : memref<2x128x512xbf16, #tpu.memory_space<vmem>>, vector<1x128x512xbf16>
    %188 = vector.shape_cast %187 : vector<1x128x512xbf16> to vector<128x512xbf16>
    %cst_72 = arith.constant dense<0.000000e+00> : vector<8x512xf32>
    %189 = tpu.matmul %186, %188, %cst_72 {dimension_numbers = #tpu.dot_dimension_numbers<[1], [0], [0], [1], [0, 0, 1, 1], [], []>} : vector<8x128xbf16>, vector<128x512xbf16>, vector<8x512xf32> -> vector<8x512xf32>
    %190 = arith.addf %185, %189 : vector<8x512xf32>
    %191 = vector.extract_strided_slice %190 {offsets = [0, 0], sizes = [8, 128], strides = [1, 1]} : vector<8x512xf32> to vector<8x128xf32>
    %192 = arith.negf %191 : vector<8x128xf32>
    %193 = math.exp %192 : vector<8x128xf32>
    %cst_73 = arith.constant 1.000000e+00 : f32
    %194 = vector.broadcast %cst_73 : f32 to vector<8x128xf32>
    %195 = arith.addf %194, %193 : vector<8x128xf32>
    %196 = arith.divf %194, %195 : vector<8x128xf32>
    %197 = vector.extract_strided_slice %190 {offsets = [0, 128], sizes = [8, 128], strides = [1, 1]} : vector<8x512xf32> to vector<8x128xf32>
    %198 = arith.negf %197 : vector<8x128xf32>
    %199 = math.exp %198 : vector<8x128xf32>
    %cst_74 = arith.constant 1.000000e+00 : f32
    %200 = vector.broadcast %cst_74 : f32 to vector<8x128xf32>
    %201 = arith.addf %200, %199 : vector<8x128xf32>
    %202 = arith.divf %200, %201 : vector<8x128xf32>
    %203 = vector.extract_strided_slice %190 {offsets = [0, 256], sizes = [8, 128], strides = [1, 1]} : vector<8x512xf32> to vector<8x128xf32>
    %204 = math.tanh %203 : vector<8x128xf32>
    %205 = vector.extract_strided_slice %190 {offsets = [0, 384], sizes = [8, 128], strides = [1, 1]} : vector<8x512xf32> to vector<8x128xf32>
    %206 = arith.negf %205 : vector<8x128xf32>
    %207 = math.exp %206 : vector<8x128xf32>
    %cst_75 = arith.constant 1.000000e+00 : f32
    %208 = vector.broadcast %cst_75 : f32 to vector<8x128xf32>
    %209 = arith.addf %208, %207 : vector<8x128xf32>
    %210 = arith.divf %208, %209 : vector<8x128xf32>
    %211 = arith.mulf %202, %179 : vector<8x128xf32>
    %212 = arith.mulf %196, %204 : vector<8x128xf32>
    %213 = arith.addf %211, %212 : vector<8x128xf32>
    %214 = math.tanh %213 : vector<8x128xf32>
    %215 = arith.mulf %210, %214 : vector<8x128xf32>
    %c5 = arith.constant 5 : index
    %c0_76 = arith.constant 0 : index
    %c0_77 = arith.constant 0 : index
    %216 = vector.load %arg13[%c5, %c0_76, %c0_77] : memref<8x8x128xf32, #tpu.memory_space<vmem>>, vector<1x8x128xf32>
    %217 = vector.shape_cast %216 : vector<1x8x128xf32> to vector<8x128xf32>
    %218 = vector.shape_cast %215 : vector<8x128xf32> to vector<1x8x128xf32>
    tpu.vector_store %arg13[%c5, %c0_76, %c0_77], %218 {strides = array<i32>} : memref<8x8x128xf32, #tpu.memory_space<vmem>>, vector<1x8x128xf32>,
    %c48 = arith.constant 48 : index
    %c0_78 = arith.constant 0 : index
    %219 = vector.load %arg14[%c48, %c0_78] : memref<64x512xf32, #tpu.memory_space<vmem>>, vector<8x512xf32>
    %220 = arith.truncf %215 : vector<8x128xf32> to vector<8x128xbf16>
    %c0_79 = arith.constant 0 : index
    %c0_80 = arith.constant 0 : index
    %c0_81 = arith.constant 0 : index
    %221 = vector.load %arg3[%c0_79, %c0_80, %c0_81] : memref<2x128x512xbf16, #tpu.memory_space<vmem>>, vector<1x128x512xbf16>
    %222 = vector.shape_cast %221 : vector<1x128x512xbf16> to vector<128x512xbf16>
    %cst_82 = arith.constant dense<0.000000e+00> : vector<8x512xf32>
    %223 = tpu.matmul %220, %222, %cst_82 {dimension_numbers = #tpu.dot_dimension_numbers<[1], [0], [0], [1], [0, 0, 1, 1], [], []>} : vector<8x128xbf16>, vector<128x512xbf16>, vector<8x512xf32> -> vector<8x512xf32>
    %224 = arith.addf %219, %223 : vector<8x512xf32>
    %225 = vector.extract_strided_slice %224 {offsets = [0, 0], sizes = [8, 128], strides = [1, 1]} : vector<8x512xf32> to vector<8x128xf32>
    %226 = arith.negf %225 : vector<8x128xf32>
    %227 = math.exp %226 : vector<8x128xf32>
    %cst_83 = arith.constant 1.000000e+00 : f32
    %228 = vector.broadcast %cst_83 : f32 to vector<8x128xf32>
    %229 = arith.addf %228, %227 : vector<8x128xf32>
    %230 = arith.divf %228, %229 : vector<8x128xf32>
    %231 = vector.extract_strided_slice %224 {offsets = [0, 128], sizes = [8, 128], strides = [1, 1]} : vector<8x512xf32> to vector<8x128xf32>
    %232 = arith.negf %231 : vector<8x128xf32>
    %233 = math.exp %232 : vector<8x128xf32>
    %cst_84 = arith.constant 1.000000e+00 : f32
    %234 = vector.broadcast %cst_84 : f32 to vector<8x128xf32>
    %235 = arith.addf %234, %233 : vector<8x128xf32>
    %236 = arith.divf %234, %235 : vector<8x128xf32>
    %237 = vector.extract_strided_slice %224 {offsets = [0, 256], sizes = [8, 128], strides = [1, 1]} : vector<8x512xf32> to vector<8x128xf32>
    %238 = math.tanh %237 : vector<8x128xf32>
    %239 = vector.extract_strided_slice %224 {offsets = [0, 384], sizes = [8, 128], strides = [1, 1]} : vector<8x512xf32> to vector<8x128xf32>
    %240 = arith.negf %239 : vector<8x128xf32>
    %241 = math.exp %240 : vector<8x128xf32>
    %cst_85 = arith.constant 1.000000e+00 : f32
    %242 = vector.broadcast %cst_85 : f32 to vector<8x128xf32>
    %243 = arith.addf %242, %241 : vector<8x128xf32>
    %244 = arith.divf %242, %243 : vector<8x128xf32>
    %245 = arith.mulf %236, %213 : vector<8x128xf32>
    %246 = arith.mulf %230, %238 : vector<8x128xf32>
    %247 = arith.addf %245, %246 : vector<8x128xf32>
    %248 = math.tanh %247 : vector<8x128xf32>
    %249 = arith.mulf %244, %248 : vector<8x128xf32>
    %c6 = arith.constant 6 : index
    %c0_86 = arith.constant 0 : index
    %c0_87 = arith.constant 0 : index
    %250 = vector.load %arg13[%c6, %c0_86, %c0_87] : memref<8x8x128xf32, #tpu.memory_space<vmem>>, vector<1x8x128xf32>
    %251 = vector.shape_cast %250 : vector<1x8x128xf32> to vector<8x128xf32>
    %252 = vector.shape_cast %249 : vector<8x128xf32> to vector<1x8x128xf32>
    tpu.vector_store %arg13[%c6, %c0_86, %c0_87], %252 {strides = array<i32>} : memref<8x8x128xf32, #tpu.memory_space<vmem>>, vector<1x8x128xf32>,
    %c56 = arith.constant 56 : index
    %c0_88 = arith.constant 0 : index
    %253 = vector.load %arg14[%c56, %c0_88] : memref<64x512xf32, #tpu.memory_space<vmem>>, vector<8x512xf32>
    %254 = arith.truncf %249 : vector<8x128xf32> to vector<8x128xbf16>
    %c0_89 = arith.constant 0 : index
    %c0_90 = arith.constant 0 : index
    %c0_91 = arith.constant 0 : index
    %255 = vector.load %arg3[%c0_89, %c0_90, %c0_91] : memref<2x128x512xbf16, #tpu.memory_space<vmem>>, vector<1x128x512xbf16>
    %256 = vector.shape_cast %255 : vector<1x128x512xbf16> to vector<128x512xbf16>
    %cst_92 = arith.constant dense<0.000000e+00> : vector<8x512xf32>
    %257 = tpu.matmul %254, %256, %cst_92 {dimension_numbers = #tpu.dot_dimension_numbers<[1], [0], [0], [1], [0, 0, 1, 1], [], []>} : vector<8x128xbf16>, vector<128x512xbf16>, vector<8x512xf32> -> vector<8x512xf32>
    %258 = arith.addf %253, %257 : vector<8x512xf32>
    %259 = vector.extract_strided_slice %258 {offsets = [0, 0], sizes = [8, 128], strides = [1, 1]} : vector<8x512xf32> to vector<8x128xf32>
    %260 = arith.negf %259 : vector<8x128xf32>
    %261 = math.exp %260 : vector<8x128xf32>
    %cst_93 = arith.constant 1.000000e+00 : f32
    %262 = vector.broadcast %cst_93 : f32 to vector<8x128xf32>
    %263 = arith.addf %262, %261 : vector<8x128xf32>
    %264 = arith.divf %262, %263 : vector<8x128xf32>
    %265 = vector.extract_strided_slice %258 {offsets = [0, 128], sizes = [8, 128], strides = [1, 1]} : vector<8x512xf32> to vector<8x128xf32>
    %266 = arith.negf %265 : vector<8x128xf32>
    %267 = math.exp %266 : vector<8x128xf32>
    %cst_94 = arith.constant 1.000000e+00 : f32
    %268 = vector.broadcast %cst_94 : f32 to vector<8x128xf32>
    %269 = arith.addf %268, %267 : vector<8x128xf32>
    %270 = arith.divf %268, %269 : vector<8x128xf32>
    %271 = vector.extract_strided_slice %258 {offsets = [0, 256], sizes = [8, 128], strides = [1, 1]} : vector<8x512xf32> to vector<8x128xf32>
    %272 = math.tanh %271 : vector<8x128xf32>
    %273 = vector.extract_strided_slice %258 {offsets = [0, 384], sizes = [8, 128], strides = [1, 1]} : vector<8x512xf32> to vector<8x128xf32>
    %274 = arith.negf %273 : vector<8x128xf32>
    %275 = math.exp %274 : vector<8x128xf32>
    %cst_95 = arith.constant 1.000000e+00 : f32
    %276 = vector.broadcast %cst_95 : f32 to vector<8x128xf32>
    %277 = arith.addf %276, %275 : vector<8x128xf32>
    %278 = arith.divf %276, %277 : vector<8x128xf32>
    %279 = arith.mulf %270, %247 : vector<8x128xf32>
    %280 = arith.mulf %264, %272 : vector<8x128xf32>
    %281 = arith.addf %279, %280 : vector<8x128xf32>
    %282 = math.tanh %281 : vector<8x128xf32>
    %283 = arith.mulf %278, %282 : vector<8x128xf32>
    %c7 = arith.constant 7 : index
    %c0_96 = arith.constant 0 : index
    %c0_97 = arith.constant 0 : index
    %284 = vector.load %arg13[%c7, %c0_96, %c0_97] : memref<8x8x128xf32, #tpu.memory_space<vmem>>, vector<1x8x128xf32>
    %285 = vector.shape_cast %284 : vector<1x8x128xf32> to vector<8x128xf32>
    %286 = vector.shape_cast %283 : vector<8x128xf32> to vector<1x8x128xf32>
    tpu.vector_store %arg13[%c7, %c0_96, %c0_97], %286 {strides = array<i32>} : memref<8x8x128xf32, #tpu.memory_space<vmem>>, vector<1x8x128xf32>,
    %c0_98 = arith.constant 0 : index
    %c0_99 = arith.constant 0 : index
    %c0_100 = arith.constant 0 : index
    %287 = vector.load %arg11[%c0_98, %c0_99, %c0_100] : memref<2x8x128xf32, #tpu.memory_space<vmem>>, vector<1x8x128xf32>
    %288 = vector.shape_cast %287 : vector<1x8x128xf32> to vector<8x128xf32>
    %289 = vector.shape_cast %283 : vector<8x128xf32> to vector<1x8x128xf32>
    tpu.vector_store %arg11[%c0_98, %c0_99, %c0_100], %289 {strides = array<i32>} : memref<2x8x128xf32, #tpu.memory_space<vmem>>, vector<1x8x128xf32>,
    %c0_101 = arith.constant 0 : index
    %c0_102 = arith.constant 0 : index
    %c0_103 = arith.constant 0 : index
    %290 = vector.load %arg12[%c0_101, %c0_102, %c0_103] : memref<2x8x128xf32, #tpu.memory_space<vmem>>, vector<1x8x128xf32>
    %291 = vector.shape_cast %290 : vector<1x8x128xf32> to vector<8x128xf32>
    %292 = vector.shape_cast %281 : vector<8x128xf32> to vector<1x8x128xf32>
    tpu.vector_store %arg12[%c0_101, %c0_102, %c0_103], %292 {strides = array<i32>} : memref<2x8x128xf32, #tpu.memory_space<vmem>>, vector<1x8x128xf32>,
    %c0_104 = arith.constant 0 : index
    %c0_105 = arith.constant 0 : index
    %c0_106 = arith.constant 0 : index
    %293 = vector.load %arg13[%c0_104, %c0_105, %c0_106] : memref<8x8x128xf32, #tpu.memory_space<vmem>>, vector<8x8x128xf32>
    %294 = vector.shape_cast %293 : vector<8x8x128xf32> to vector<64x128xf32>
    %295 = arith.truncf %294 : vector<64x128xf32> to vector<64x128xbf16>
    %c1_107 = arith.constant 1 : index
    %c0_108 = arith.constant 0 : index
    %c0_109 = arith.constant 0 : index
    %296 = vector.load %arg2[%c1_107, %c0_108, %c0_109] : memref<2x128x512xbf16, #tpu.memory_space<vmem>>, vector<1x128x512xbf16>
    %297 = vector.shape_cast %296 : vector<1x128x512xbf16> to vector<128x512xbf16>
    %cst_110 = arith.constant dense<0.000000e+00> : vector<64x512xf32>
    %298 = tpu.matmul %295, %297, %cst_110 {dimension_numbers = #tpu.dot_dimension_numbers<[1], [0], [0], [1], [0, 0, 1, 1], [], []>} : vector<64x128xbf16>, vector<128x512xbf16>, vector<64x512xf32> -> vector<64x512xf32>
    %c1_111 = arith.constant 1 : index
    %c0_112 = arith.constant 0 : index
    %c0_113 = arith.constant 0 : index
    %299 = vector.load %arg4[%c1_111, %c0_112, %c0_113] : memref<2x1x512xf32, #tpu.memory_space<vmem>>, vector<1x1x512xf32>
    %300 = vector.shape_cast %299 : vector<1x1x512xf32> to vector<1x512xf32>
    %301 = vector.broadcast %300 : vector<1x512xf32> to vector<64x512xf32>
    %302 = arith.addf %298, %301 : vector<64x512xf32>
    %c0_114 = arith.constant 0 : index
    %c0_115 = arith.constant 0 : index
    %303 = vector.load %arg14[%c0_114, %c0_115] : memref<64x512xf32, #tpu.memory_space<vmem>>, vector<64x512xf32>
    tpu.vector_store %arg14[%c0_114, %c0_115], %302 {strides = array<i32>} : memref<64x512xf32, #tpu.memory_space<vmem>>, vector<64x512xf32>,
    %c1_116 = arith.constant 1 : index
    %c0_117 = arith.constant 0 : index
    %c0_118 = arith.constant 0 : index
    %304 = vector.load %arg5[%c1_116, %c0_117, %c0_118] : memref<2x8x128xf32, #tpu.memory_space<vmem>>, vector<1x8x128xf32>
    %305 = vector.shape_cast %304 : vector<1x8x128xf32> to vector<8x128xf32>
    %c1_119 = arith.constant 1 : index
    %c0_120 = arith.constant 0 : index
    %c0_121 = arith.constant 0 : index
    %306 = vector.load %arg6[%c1_119, %c0_120, %c0_121] : memref<2x8x128xf32, #tpu.memory_space<vmem>>, vector<1x8x128xf32>
    %307 = vector.shape_cast %306 : vector<1x8x128xf32> to vector<8x128xf32>
    %c0_122 = arith.constant 0 : index
    %c0_123 = arith.constant 0 : index
    %308 = vector.load %arg14[%c0_122, %c0_123] : memref<64x512xf32, #tpu.memory_space<vmem>>, vector<8x512xf32>
    %309 = arith.truncf %305 : vector<8x128xf32> to vector<8x128xbf16>
    %c1_124 = arith.constant 1 : index
    %c0_125 = arith.constant 0 : index
    %c0_126 = arith.constant 0 : index
    %310 = vector.load %arg3[%c1_124, %c0_125, %c0_126] : memref<2x128x512xbf16, #tpu.memory_space<vmem>>, vector<1x128x512xbf16>
    %311 = vector.shape_cast %310 : vector<1x128x512xbf16> to vector<128x512xbf16>
    %cst_127 = arith.constant dense<0.000000e+00> : vector<8x512xf32>
    %312 = tpu.matmul %309, %311, %cst_127 {dimension_numbers = #tpu.dot_dimension_numbers<[1], [0], [0], [1], [0, 0, 1, 1], [], []>} : vector<8x128xbf16>, vector<128x512xbf16>, vector<8x512xf32> -> vector<8x512xf32>
    %313 = arith.addf %308, %312 : vector<8x512xf32>
    %314 = vector.extract_strided_slice %313 {offsets = [0, 0], sizes = [8, 128], strides = [1, 1]} : vector<8x512xf32> to vector<8x128xf32>
    %315 = arith.negf %314 : vector<8x128xf32>
    %316 = math.exp %315 : vector<8x128xf32>
    %cst_128 = arith.constant 1.000000e+00 : f32
    %317 = vector.broadcast %cst_128 : f32 to vector<8x128xf32>
    %318 = arith.addf %317, %316 : vector<8x128xf32>
    %319 = arith.divf %317, %318 : vector<8x128xf32>
    %320 = vector.extract_strided_slice %313 {offsets = [0, 128], sizes = [8, 128], strides = [1, 1]} : vector<8x512xf32> to vector<8x128xf32>
    %321 = arith.negf %320 : vector<8x128xf32>
    %322 = math.exp %321 : vector<8x128xf32>
    %cst_129 = arith.constant 1.000000e+00 : f32
    %323 = vector.broadcast %cst_129 : f32 to vector<8x128xf32>
    %324 = arith.addf %323, %322 : vector<8x128xf32>
    %325 = arith.divf %323, %324 : vector<8x128xf32>
    %326 = vector.extract_strided_slice %313 {offsets = [0, 256], sizes = [8, 128], strides = [1, 1]} : vector<8x512xf32> to vector<8x128xf32>
    %327 = math.tanh %326 : vector<8x128xf32>
    %328 = vector.extract_strided_slice %313 {offsets = [0, 384], sizes = [8, 128], strides = [1, 1]} : vector<8x512xf32> to vector<8x128xf32>
    %329 = arith.negf %328 : vector<8x128xf32>
    %330 = math.exp %329 : vector<8x128xf32>
    %cst_130 = arith.constant 1.000000e+00 : f32
    %331 = vector.broadcast %cst_130 : f32 to vector<8x128xf32>
    %332 = arith.addf %331, %330 : vector<8x128xf32>
    %333 = arith.divf %331, %332 : vector<8x128xf32>
    %334 = arith.mulf %325, %307 : vector<8x128xf32>
    %335 = arith.mulf %319, %327 : vector<8x128xf32>
    %336 = arith.addf %334, %335 : vector<8x128xf32>
    %337 = math.tanh %336 : vector<8x128xf32>
    %338 = arith.mulf %333, %337 : vector<8x128xf32>
    %c0_131 = arith.constant 0 : index
    %c0_132 = arith.constant 0 : index
    %c0_133 = arith.constant 0 : index
    %339 = vector.load %arg13[%c0_131, %c0_132, %c0_133] : memref<8x8x128xf32, #tpu.memory_space<vmem>>, vector<1x8x128xf32>
    %340 = vector.shape_cast %339 : vector<1x8x128xf32> to vector<8x128xf32>
    %341 = vector.shape_cast %338 : vector<8x128xf32> to vector<1x8x128xf32>
    tpu.vector_store %arg13[%c0_131, %c0_132, %c0_133], %341 {strides = array<i32>} : memref<8x8x128xf32, #tpu.memory_space<vmem>>, vector<1x8x128xf32>,
    %c8_134 = arith.constant 8 : index
    %c0_135 = arith.constant 0 : index
    %342 = vector.load %arg14[%c8_134, %c0_135] : memref<64x512xf32, #tpu.memory_space<vmem>>, vector<8x512xf32>
    %343 = arith.truncf %338 : vector<8x128xf32> to vector<8x128xbf16>
    %c1_136 = arith.constant 1 : index
    %c0_137 = arith.constant 0 : index
    %c0_138 = arith.constant 0 : index
    %344 = vector.load %arg3[%c1_136, %c0_137, %c0_138] : memref<2x128x512xbf16, #tpu.memory_space<vmem>>, vector<1x128x512xbf16>
    %345 = vector.shape_cast %344 : vector<1x128x512xbf16> to vector<128x512xbf16>
    %cst_139 = arith.constant dense<0.000000e+00> : vector<8x512xf32>
    %346 = tpu.matmul %343, %345, %cst_139 {dimension_numbers = #tpu.dot_dimension_numbers<[1], [0], [0], [1], [0, 0, 1, 1], [], []>} : vector<8x128xbf16>, vector<128x512xbf16>, vector<8x512xf32> -> vector<8x512xf32>
    %347 = arith.addf %342, %346 : vector<8x512xf32>
    %348 = vector.extract_strided_slice %347 {offsets = [0, 0], sizes = [8, 128], strides = [1, 1]} : vector<8x512xf32> to vector<8x128xf32>
    %349 = arith.negf %348 : vector<8x128xf32>
    %350 = math.exp %349 : vector<8x128xf32>
    %cst_140 = arith.constant 1.000000e+00 : f32
    %351 = vector.broadcast %cst_140 : f32 to vector<8x128xf32>
    %352 = arith.addf %351, %350 : vector<8x128xf32>
    %353 = arith.divf %351, %352 : vector<8x128xf32>
    %354 = vector.extract_strided_slice %347 {offsets = [0, 128], sizes = [8, 128], strides = [1, 1]} : vector<8x512xf32> to vector<8x128xf32>
    %355 = arith.negf %354 : vector<8x128xf32>
    %356 = math.exp %355 : vector<8x128xf32>
    %cst_141 = arith.constant 1.000000e+00 : f32
    %357 = vector.broadcast %cst_141 : f32 to vector<8x128xf32>
    %358 = arith.addf %357, %356 : vector<8x128xf32>
    %359 = arith.divf %357, %358 : vector<8x128xf32>
    %360 = vector.extract_strided_slice %347 {offsets = [0, 256], sizes = [8, 128], strides = [1, 1]} : vector<8x512xf32> to vector<8x128xf32>
    %361 = math.tanh %360 : vector<8x128xf32>
    %362 = vector.extract_strided_slice %347 {offsets = [0, 384], sizes = [8, 128], strides = [1, 1]} : vector<8x512xf32> to vector<8x128xf32>
    %363 = arith.negf %362 : vector<8x128xf32>
    %364 = math.exp %363 : vector<8x128xf32>
    %cst_142 = arith.constant 1.000000e+00 : f32
    %365 = vector.broadcast %cst_142 : f32 to vector<8x128xf32>
    %366 = arith.addf %365, %364 : vector<8x128xf32>
    %367 = arith.divf %365, %366 : vector<8x128xf32>
    %368 = arith.mulf %359, %336 : vector<8x128xf32>
    %369 = arith.mulf %353, %361 : vector<8x128xf32>
    %370 = arith.addf %368, %369 : vector<8x128xf32>
    %371 = math.tanh %370 : vector<8x128xf32>
    %372 = arith.mulf %367, %371 : vector<8x128xf32>
    %c1_143 = arith.constant 1 : index
    %c0_144 = arith.constant 0 : index
    %c0_145 = arith.constant 0 : index
    %373 = vector.load %arg13[%c1_143, %c0_144, %c0_145] : memref<8x8x128xf32, #tpu.memory_space<vmem>>, vector<1x8x128xf32>
    %374 = vector.shape_cast %373 : vector<1x8x128xf32> to vector<8x128xf32>
    %375 = vector.shape_cast %372 : vector<8x128xf32> to vector<1x8x128xf32>
    tpu.vector_store %arg13[%c1_143, %c0_144, %c0_145], %375 {strides = array<i32>} : memref<8x8x128xf32, #tpu.memory_space<vmem>>, vector<1x8x128xf32>,
    %c16_146 = arith.constant 16 : index
    %c0_147 = arith.constant 0 : index
    %376 = vector.load %arg14[%c16_146, %c0_147] : memref<64x512xf32, #tpu.memory_space<vmem>>, vector<8x512xf32>
    %377 = arith.truncf %372 : vector<8x128xf32> to vector<8x128xbf16>
    %c1_148 = arith.constant 1 : index
    %c0_149 = arith.constant 0 : index
    %c0_150 = arith.constant 0 : index
    %378 = vector.load %arg3[%c1_148, %c0_149, %c0_150] : memref<2x128x512xbf16, #tpu.memory_space<vmem>>, vector<1x128x512xbf16>
    %379 = vector.shape_cast %378 : vector<1x128x512xbf16> to vector<128x512xbf16>
    %cst_151 = arith.constant dense<0.000000e+00> : vector<8x512xf32>
    %380 = tpu.matmul %377, %379, %cst_151 {dimension_numbers = #tpu.dot_dimension_numbers<[1], [0], [0], [1], [0, 0, 1, 1], [], []>} : vector<8x128xbf16>, vector<128x512xbf16>, vector<8x512xf32> -> vector<8x512xf32>
    %381 = arith.addf %376, %380 : vector<8x512xf32>
    %382 = vector.extract_strided_slice %381 {offsets = [0, 0], sizes = [8, 128], strides = [1, 1]} : vector<8x512xf32> to vector<8x128xf32>
    %383 = arith.negf %382 : vector<8x128xf32>
    %384 = math.exp %383 : vector<8x128xf32>
    %cst_152 = arith.constant 1.000000e+00 : f32
    %385 = vector.broadcast %cst_152 : f32 to vector<8x128xf32>
    %386 = arith.addf %385, %384 : vector<8x128xf32>
    %387 = arith.divf %385, %386 : vector<8x128xf32>
    %388 = vector.extract_strided_slice %381 {offsets = [0, 128], sizes = [8, 128], strides = [1, 1]} : vector<8x512xf32> to vector<8x128xf32>
    %389 = arith.negf %388 : vector<8x128xf32>
    %390 = math.exp %389 : vector<8x128xf32>
    %cst_153 = arith.constant 1.000000e+00 : f32
    %391 = vector.broadcast %cst_153 : f32 to vector<8x128xf32>
    %392 = arith.addf %391, %390 : vector<8x128xf32>
    %393 = arith.divf %391, %392 : vector<8x128xf32>
    %394 = vector.extract_strided_slice %381 {offsets = [0, 256], sizes = [8, 128], strides = [1, 1]} : vector<8x512xf32> to vector<8x128xf32>
    %395 = math.tanh %394 : vector<8x128xf32>
    %396 = vector.extract_strided_slice %381 {offsets = [0, 384], sizes = [8, 128], strides = [1, 1]} : vector<8x512xf32> to vector<8x128xf32>
    %397 = arith.negf %396 : vector<8x128xf32>
    %398 = math.exp %397 : vector<8x128xf32>
    %cst_154 = arith.constant 1.000000e+00 : f32
    %399 = vector.broadcast %cst_154 : f32 to vector<8x128xf32>
    %400 = arith.addf %399, %398 : vector<8x128xf32>
    %401 = arith.divf %399, %400 : vector<8x128xf32>
    %402 = arith.mulf %393, %370 : vector<8x128xf32>
    %403 = arith.mulf %387, %395 : vector<8x128xf32>
    %404 = arith.addf %402, %403 : vector<8x128xf32>
    %405 = math.tanh %404 : vector<8x128xf32>
    %406 = arith.mulf %401, %405 : vector<8x128xf32>
    %c2_155 = arith.constant 2 : index
    %c0_156 = arith.constant 0 : index
    %c0_157 = arith.constant 0 : index
    %407 = vector.load %arg13[%c2_155, %c0_156, %c0_157] : memref<8x8x128xf32, #tpu.memory_space<vmem>>, vector<1x8x128xf32>
    %408 = vector.shape_cast %407 : vector<1x8x128xf32> to vector<8x128xf32>
    %409 = vector.shape_cast %406 : vector<8x128xf32> to vector<1x8x128xf32>
    tpu.vector_store %arg13[%c2_155, %c0_156, %c0_157], %409 {strides = array<i32>} : memref<8x8x128xf32, #tpu.memory_space<vmem>>, vector<1x8x128xf32>,
    %c24_158 = arith.constant 24 : index
    %c0_159 = arith.constant 0 : index
    %410 = vector.load %arg14[%c24_158, %c0_159] : memref<64x512xf32, #tpu.memory_space<vmem>>, vector<8x512xf32>
    %411 = arith.truncf %406 : vector<8x128xf32> to vector<8x128xbf16>
    %c1_160 = arith.constant 1 : index
    %c0_161 = arith.constant 0 : index
    %c0_162 = arith.constant 0 : index
    %412 = vector.load %arg3[%c1_160, %c0_161, %c0_162] : memref<2x128x512xbf16, #tpu.memory_space<vmem>>, vector<1x128x512xbf16>
    %413 = vector.shape_cast %412 : vector<1x128x512xbf16> to vector<128x512xbf16>
    %cst_163 = arith.constant dense<0.000000e+00> : vector<8x512xf32>
    %414 = tpu.matmul %411, %413, %cst_163 {dimension_numbers = #tpu.dot_dimension_numbers<[1], [0], [0], [1], [0, 0, 1, 1], [], []>} : vector<8x128xbf16>, vector<128x512xbf16>, vector<8x512xf32> -> vector<8x512xf32>
    %415 = arith.addf %410, %414 : vector<8x512xf32>
    %416 = vector.extract_strided_slice %415 {offsets = [0, 0], sizes = [8, 128], strides = [1, 1]} : vector<8x512xf32> to vector<8x128xf32>
    %417 = arith.negf %416 : vector<8x128xf32>
    %418 = math.exp %417 : vector<8x128xf32>
    %cst_164 = arith.constant 1.000000e+00 : f32
    %419 = vector.broadcast %cst_164 : f32 to vector<8x128xf32>
    %420 = arith.addf %419, %418 : vector<8x128xf32>
    %421 = arith.divf %419, %420 : vector<8x128xf32>
    %422 = vector.extract_strided_slice %415 {offsets = [0, 128], sizes = [8, 128], strides = [1, 1]} : vector<8x512xf32> to vector<8x128xf32>
    %423 = arith.negf %422 : vector<8x128xf32>
    %424 = math.exp %423 : vector<8x128xf32>
    %cst_165 = arith.constant 1.000000e+00 : f32
    %425 = vector.broadcast %cst_165 : f32 to vector<8x128xf32>
    %426 = arith.addf %425, %424 : vector<8x128xf32>
    %427 = arith.divf %425, %426 : vector<8x128xf32>
    %428 = vector.extract_strided_slice %415 {offsets = [0, 256], sizes = [8, 128], strides = [1, 1]} : vector<8x512xf32> to vector<8x128xf32>
    %429 = math.tanh %428 : vector<8x128xf32>
    %430 = vector.extract_strided_slice %415 {offsets = [0, 384], sizes = [8, 128], strides = [1, 1]} : vector<8x512xf32> to vector<8x128xf32>
    %431 = arith.negf %430 : vector<8x128xf32>
    %432 = math.exp %431 : vector<8x128xf32>
    %cst_166 = arith.constant 1.000000e+00 : f32
    %433 = vector.broadcast %cst_166 : f32 to vector<8x128xf32>
    %434 = arith.addf %433, %432 : vector<8x128xf32>
    %435 = arith.divf %433, %434 : vector<8x128xf32>
    %436 = arith.mulf %427, %404 : vector<8x128xf32>
    %437 = arith.mulf %421, %429 : vector<8x128xf32>
    %438 = arith.addf %436, %437 : vector<8x128xf32>
    %439 = math.tanh %438 : vector<8x128xf32>
    %440 = arith.mulf %435, %439 : vector<8x128xf32>
    %c3_167 = arith.constant 3 : index
    %c0_168 = arith.constant 0 : index
    %c0_169 = arith.constant 0 : index
    %441 = vector.load %arg13[%c3_167, %c0_168, %c0_169] : memref<8x8x128xf32, #tpu.memory_space<vmem>>, vector<1x8x128xf32>
    %442 = vector.shape_cast %441 : vector<1x8x128xf32> to vector<8x128xf32>
    %443 = vector.shape_cast %440 : vector<8x128xf32> to vector<1x8x128xf32>
    tpu.vector_store %arg13[%c3_167, %c0_168, %c0_169], %443 {strides = array<i32>} : memref<8x8x128xf32, #tpu.memory_space<vmem>>, vector<1x8x128xf32>,
    %c32_170 = arith.constant 32 : index
    %c0_171 = arith.constant 0 : index
    %444 = vector.load %arg14[%c32_170, %c0_171] : memref<64x512xf32, #tpu.memory_space<vmem>>, vector<8x512xf32>
    %445 = arith.truncf %440 : vector<8x128xf32> to vector<8x128xbf16>
    %c1_172 = arith.constant 1 : index
    %c0_173 = arith.constant 0 : index
    %c0_174 = arith.constant 0 : index
    %446 = vector.load %arg3[%c1_172, %c0_173, %c0_174] : memref<2x128x512xbf16, #tpu.memory_space<vmem>>, vector<1x128x512xbf16>
    %447 = vector.shape_cast %446 : vector<1x128x512xbf16> to vector<128x512xbf16>
    %cst_175 = arith.constant dense<0.000000e+00> : vector<8x512xf32>
    %448 = tpu.matmul %445, %447, %cst_175 {dimension_numbers = #tpu.dot_dimension_numbers<[1], [0], [0], [1], [0, 0, 1, 1], [], []>} : vector<8x128xbf16>, vector<128x512xbf16>, vector<8x512xf32> -> vector<8x512xf32>
    %449 = arith.addf %444, %448 : vector<8x512xf32>
    %450 = vector.extract_strided_slice %449 {offsets = [0, 0], sizes = [8, 128], strides = [1, 1]} : vector<8x512xf32> to vector<8x128xf32>
    %451 = arith.negf %450 : vector<8x128xf32>
    %452 = math.exp %451 : vector<8x128xf32>
    %cst_176 = arith.constant 1.000000e+00 : f32
    %453 = vector.broadcast %cst_176 : f32 to vector<8x128xf32>
    %454 = arith.addf %453, %452 : vector<8x128xf32>
    %455 = arith.divf %453, %454 : vector<8x128xf32>
    %456 = vector.extract_strided_slice %449 {offsets = [0, 128], sizes = [8, 128], strides = [1, 1]} : vector<8x512xf32> to vector<8x128xf32>
    %457 = arith.negf %456 : vector<8x128xf32>
    %458 = math.exp %457 : vector<8x128xf32>
    %cst_177 = arith.constant 1.000000e+00 : f32
    %459 = vector.broadcast %cst_177 : f32 to vector<8x128xf32>
    %460 = arith.addf %459, %458 : vector<8x128xf32>
    %461 = arith.divf %459, %460 : vector<8x128xf32>
    %462 = vector.extract_strided_slice %449 {offsets = [0, 256], sizes = [8, 128], strides = [1, 1]} : vector<8x512xf32> to vector<8x128xf32>
    %463 = math.tanh %462 : vector<8x128xf32>
    %464 = vector.extract_strided_slice %449 {offsets = [0, 384], sizes = [8, 128], strides = [1, 1]} : vector<8x512xf32> to vector<8x128xf32>
    %465 = arith.negf %464 : vector<8x128xf32>
    %466 = math.exp %465 : vector<8x128xf32>
    %cst_178 = arith.constant 1.000000e+00 : f32
    %467 = vector.broadcast %cst_178 : f32 to vector<8x128xf32>
    %468 = arith.addf %467, %466 : vector<8x128xf32>
    %469 = arith.divf %467, %468 : vector<8x128xf32>
    %470 = arith.mulf %461, %438 : vector<8x128xf32>
    %471 = arith.mulf %455, %463 : vector<8x128xf32>
    %472 = arith.addf %470, %471 : vector<8x128xf32>
    %473 = math.tanh %472 : vector<8x128xf32>
    %474 = arith.mulf %469, %473 : vector<8x128xf32>
    %c4_179 = arith.constant 4 : index
    %c0_180 = arith.constant 0 : index
    %c0_181 = arith.constant 0 : index
    %475 = vector.load %arg13[%c4_179, %c0_180, %c0_181] : memref<8x8x128xf32, #tpu.memory_space<vmem>>, vector<1x8x128xf32>
    %476 = vector.shape_cast %475 : vector<1x8x128xf32> to vector<8x128xf32>
    %477 = vector.shape_cast %474 : vector<8x128xf32> to vector<1x8x128xf32>
    tpu.vector_store %arg13[%c4_179, %c0_180, %c0_181], %477 {strides = array<i32>} : memref<8x8x128xf32, #tpu.memory_space<vmem>>, vector<1x8x128xf32>,
    %c40_182 = arith.constant 40 : index
    %c0_183 = arith.constant 0 : index
    %478 = vector.load %arg14[%c40_182, %c0_183] : memref<64x512xf32, #tpu.memory_space<vmem>>, vector<8x512xf32>
    %479 = arith.truncf %474 : vector<8x128xf32> to vector<8x128xbf16>
    %c1_184 = arith.constant 1 : index
    %c0_185 = arith.constant 0 : index
    %c0_186 = arith.constant 0 : index
    %480 = vector.load %arg3[%c1_184, %c0_185, %c0_186] : memref<2x128x512xbf16, #tpu.memory_space<vmem>>, vector<1x128x512xbf16>
    %481 = vector.shape_cast %480 : vector<1x128x512xbf16> to vector<128x512xbf16>
    %cst_187 = arith.constant dense<0.000000e+00> : vector<8x512xf32>
    %482 = tpu.matmul %479, %481, %cst_187 {dimension_numbers = #tpu.dot_dimension_numbers<[1], [0], [0], [1], [0, 0, 1, 1], [], []>} : vector<8x128xbf16>, vector<128x512xbf16>, vector<8x512xf32> -> vector<8x512xf32>
    %483 = arith.addf %478, %482 : vector<8x512xf32>
    %484 = vector.extract_strided_slice %483 {offsets = [0, 0], sizes = [8, 128], strides = [1, 1]} : vector<8x512xf32> to vector<8x128xf32>
    %485 = arith.negf %484 : vector<8x128xf32>
    %486 = math.exp %485 : vector<8x128xf32>
    %cst_188 = arith.constant 1.000000e+00 : f32
    %487 = vector.broadcast %cst_188 : f32 to vector<8x128xf32>
    %488 = arith.addf %487, %486 : vector<8x128xf32>
    %489 = arith.divf %487, %488 : vector<8x128xf32>
    %490 = vector.extract_strided_slice %483 {offsets = [0, 128], sizes = [8, 128], strides = [1, 1]} : vector<8x512xf32> to vector<8x128xf32>
    %491 = arith.negf %490 : vector<8x128xf32>
    %492 = math.exp %491 : vector<8x128xf32>
    %cst_189 = arith.constant 1.000000e+00 : f32
    %493 = vector.broadcast %cst_189 : f32 to vector<8x128xf32>
    %494 = arith.addf %493, %492 : vector<8x128xf32>
    %495 = arith.divf %493, %494 : vector<8x128xf32>
    %496 = vector.extract_strided_slice %483 {offsets = [0, 256], sizes = [8, 128], strides = [1, 1]} : vector<8x512xf32> to vector<8x128xf32>
    %497 = math.tanh %496 : vector<8x128xf32>
    %498 = vector.extract_strided_slice %483 {offsets = [0, 384], sizes = [8, 128], strides = [1, 1]} : vector<8x512xf32> to vector<8x128xf32>
    %499 = arith.negf %498 : vector<8x128xf32>
    %500 = math.exp %499 : vector<8x128xf32>
    %cst_190 = arith.constant 1.000000e+00 : f32
    %501 = vector.broadcast %cst_190 : f32 to vector<8x128xf32>
    %502 = arith.addf %501, %500 : vector<8x128xf32>
    %503 = arith.divf %501, %502 : vector<8x128xf32>
    %504 = arith.mulf %495, %472 : vector<8x128xf32>
    %505 = arith.mulf %489, %497 : vector<8x128xf32>
    %506 = arith.addf %504, %505 : vector<8x128xf32>
    %507 = math.tanh %506 : vector<8x128xf32>
    %508 = arith.mulf %503, %507 : vector<8x128xf32>
    %c5_191 = arith.constant 5 : index
    %c0_192 = arith.constant 0 : index
    %c0_193 = arith.constant 0 : index
    %509 = vector.load %arg13[%c5_191, %c0_192, %c0_193] : memref<8x8x128xf32, #tpu.memory_space<vmem>>, vector<1x8x128xf32>
    %510 = vector.shape_cast %509 : vector<1x8x128xf32> to vector<8x128xf32>
    %511 = vector.shape_cast %508 : vector<8x128xf32> to vector<1x8x128xf32>
    tpu.vector_store %arg13[%c5_191, %c0_192, %c0_193], %511 {strides = array<i32>} : memref<8x8x128xf32, #tpu.memory_space<vmem>>, vector<1x8x128xf32>,
    %c48_194 = arith.constant 48 : index
    %c0_195 = arith.constant 0 : index
    %512 = vector.load %arg14[%c48_194, %c0_195] : memref<64x512xf32, #tpu.memory_space<vmem>>, vector<8x512xf32>
    %513 = arith.truncf %508 : vector<8x128xf32> to vector<8x128xbf16>
    %c1_196 = arith.constant 1 : index
    %c0_197 = arith.constant 0 : index
    %c0_198 = arith.constant 0 : index
    %514 = vector.load %arg3[%c1_196, %c0_197, %c0_198] : memref<2x128x512xbf16, #tpu.memory_space<vmem>>, vector<1x128x512xbf16>
    %515 = vector.shape_cast %514 : vector<1x128x512xbf16> to vector<128x512xbf16>
    %cst_199 = arith.constant dense<0.000000e+00> : vector<8x512xf32>
    %516 = tpu.matmul %513, %515, %cst_199 {dimension_numbers = #tpu.dot_dimension_numbers<[1], [0], [0], [1], [0, 0, 1, 1], [], []>} : vector<8x128xbf16>, vector<128x512xbf16>, vector<8x512xf32> -> vector<8x512xf32>
    %517 = arith.addf %512, %516 : vector<8x512xf32>
    %518 = vector.extract_strided_slice %517 {offsets = [0, 0], sizes = [8, 128], strides = [1, 1]} : vector<8x512xf32> to vector<8x128xf32>
    %519 = arith.negf %518 : vector<8x128xf32>
    %520 = math.exp %519 : vector<8x128xf32>
    %cst_200 = arith.constant 1.000000e+00 : f32
    %521 = vector.broadcast %cst_200 : f32 to vector<8x128xf32>
    %522 = arith.addf %521, %520 : vector<8x128xf32>
    %523 = arith.divf %521, %522 : vector<8x128xf32>
    %524 = vector.extract_strided_slice %517 {offsets = [0, 128], sizes = [8, 128], strides = [1, 1]} : vector<8x512xf32> to vector<8x128xf32>
    %525 = arith.negf %524 : vector<8x128xf32>
    %526 = math.exp %525 : vector<8x128xf32>
    %cst_201 = arith.constant 1.000000e+00 : f32
    %527 = vector.broadcast %cst_201 : f32 to vector<8x128xf32>
    %528 = arith.addf %527, %526 : vector<8x128xf32>
    %529 = arith.divf %527, %528 : vector<8x128xf32>
    %530 = vector.extract_strided_slice %517 {offsets = [0, 256], sizes = [8, 128], strides = [1, 1]} : vector<8x512xf32> to vector<8x128xf32>
    %531 = math.tanh %530 : vector<8x128xf32>
    %532 = vector.extract_strided_slice %517 {offsets = [0, 384], sizes = [8, 128], strides = [1, 1]} : vector<8x512xf32> to vector<8x128xf32>
    %533 = arith.negf %532 : vector<8x128xf32>
    %534 = math.exp %533 : vector<8x128xf32>
    %cst_202 = arith.constant 1.000000e+00 : f32
    %535 = vector.broadcast %cst_202 : f32 to vector<8x128xf32>
    %536 = arith.addf %535, %534 : vector<8x128xf32>
    %537 = arith.divf %535, %536 : vector<8x128xf32>
    %538 = arith.mulf %529, %506 : vector<8x128xf32>
    %539 = arith.mulf %523, %531 : vector<8x128xf32>
    %540 = arith.addf %538, %539 : vector<8x128xf32>
    %541 = math.tanh %540 : vector<8x128xf32>
    %542 = arith.mulf %537, %541 : vector<8x128xf32>
    %c6_203 = arith.constant 6 : index
    %c0_204 = arith.constant 0 : index
    %c0_205 = arith.constant 0 : index
    %543 = vector.load %arg13[%c6_203, %c0_204, %c0_205] : memref<8x8x128xf32, #tpu.memory_space<vmem>>, vector<1x8x128xf32>
    %544 = vector.shape_cast %543 : vector<1x8x128xf32> to vector<8x128xf32>
    %545 = vector.shape_cast %542 : vector<8x128xf32> to vector<1x8x128xf32>
    tpu.vector_store %arg13[%c6_203, %c0_204, %c0_205], %545 {strides = array<i32>} : memref<8x8x128xf32, #tpu.memory_space<vmem>>, vector<1x8x128xf32>,
    %c56_206 = arith.constant 56 : index
    %c0_207 = arith.constant 0 : index
    %546 = vector.load %arg14[%c56_206, %c0_207] : memref<64x512xf32, #tpu.memory_space<vmem>>, vector<8x512xf32>
    %547 = arith.truncf %542 : vector<8x128xf32> to vector<8x128xbf16>
    %c1_208 = arith.constant 1 : index
    %c0_209 = arith.constant 0 : index
    %c0_210 = arith.constant 0 : index
    %548 = vector.load %arg3[%c1_208, %c0_209, %c0_210] : memref<2x128x512xbf16, #tpu.memory_space<vmem>>, vector<1x128x512xbf16>
    %549 = vector.shape_cast %548 : vector<1x128x512xbf16> to vector<128x512xbf16>
    %cst_211 = arith.constant dense<0.000000e+00> : vector<8x512xf32>
    %550 = tpu.matmul %547, %549, %cst_211 {dimension_numbers = #tpu.dot_dimension_numbers<[1], [0], [0], [1], [0, 0, 1, 1], [], []>} : vector<8x128xbf16>, vector<128x512xbf16>, vector<8x512xf32> -> vector<8x512xf32>
    %551 = arith.addf %546, %550 : vector<8x512xf32>
    %552 = vector.extract_strided_slice %551 {offsets = [0, 0], sizes = [8, 128], strides = [1, 1]} : vector<8x512xf32> to vector<8x128xf32>
    %553 = arith.negf %552 : vector<8x128xf32>
    %554 = math.exp %553 : vector<8x128xf32>
    %cst_212 = arith.constant 1.000000e+00 : f32
    %555 = vector.broadcast %cst_212 : f32 to vector<8x128xf32>
    %556 = arith.addf %555, %554 : vector<8x128xf32>
    %557 = arith.divf %555, %556 : vector<8x128xf32>
    %558 = vector.extract_strided_slice %551 {offsets = [0, 128], sizes = [8, 128], strides = [1, 1]} : vector<8x512xf32> to vector<8x128xf32>
    %559 = arith.negf %558 : vector<8x128xf32>
    %560 = math.exp %559 : vector<8x128xf32>
    %cst_213 = arith.constant 1.000000e+00 : f32
    %561 = vector.broadcast %cst_213 : f32 to vector<8x128xf32>
    %562 = arith.addf %561, %560 : vector<8x128xf32>
    %563 = arith.divf %561, %562 : vector<8x128xf32>
    %564 = vector.extract_strided_slice %551 {offsets = [0, 256], sizes = [8, 128], strides = [1, 1]} : vector<8x512xf32> to vector<8x128xf32>
    %565 = math.tanh %564 : vector<8x128xf32>
    %566 = vector.extract_strided_slice %551 {offsets = [0, 384], sizes = [8, 128], strides = [1, 1]} : vector<8x512xf32> to vector<8x128xf32>
    %567 = arith.negf %566 : vector<8x128xf32>
    %568 = math.exp %567 : vector<8x128xf32>
    %cst_214 = arith.constant 1.000000e+00 : f32
    %569 = vector.broadcast %cst_214 : f32 to vector<8x128xf32>
    %570 = arith.addf %569, %568 : vector<8x128xf32>
    %571 = arith.divf %569, %570 : vector<8x128xf32>
    %572 = arith.mulf %563, %540 : vector<8x128xf32>
    %573 = arith.mulf %557, %565 : vector<8x128xf32>
    %574 = arith.addf %572, %573 : vector<8x128xf32>
    %575 = math.tanh %574 : vector<8x128xf32>
    %576 = arith.mulf %571, %575 : vector<8x128xf32>
    %c7_215 = arith.constant 7 : index
    %c0_216 = arith.constant 0 : index
    %c0_217 = arith.constant 0 : index
    %577 = vector.load %arg13[%c7_215, %c0_216, %c0_217] : memref<8x8x128xf32, #tpu.memory_space<vmem>>, vector<1x8x128xf32>
    %578 = vector.shape_cast %577 : vector<1x8x128xf32> to vector<8x128xf32>
    %579 = vector.shape_cast %576 : vector<8x128xf32> to vector<1x8x128xf32>
    tpu.vector_store %arg13[%c7_215, %c0_216, %c0_217], %579 {strides = array<i32>} : memref<8x8x128xf32, #tpu.memory_space<vmem>>, vector<1x8x128xf32>,
    %c1_218 = arith.constant 1 : index
    %c0_219 = arith.constant 0 : index
    %c0_220 = arith.constant 0 : index
    %580 = vector.load %arg11[%c1_218, %c0_219, %c0_220] : memref<2x8x128xf32, #tpu.memory_space<vmem>>, vector<1x8x128xf32>
    %581 = vector.shape_cast %580 : vector<1x8x128xf32> to vector<8x128xf32>
    %582 = vector.shape_cast %576 : vector<8x128xf32> to vector<1x8x128xf32>
    tpu.vector_store %arg11[%c1_218, %c0_219, %c0_220], %582 {strides = array<i32>} : memref<2x8x128xf32, #tpu.memory_space<vmem>>, vector<1x8x128xf32>,
    %c1_221 = arith.constant 1 : index
    %c0_222 = arith.constant 0 : index
    %c0_223 = arith.constant 0 : index
    %583 = vector.load %arg12[%c1_221, %c0_222, %c0_223] : memref<2x8x128xf32, #tpu.memory_space<vmem>>, vector<1x8x128xf32>
    %584 = vector.shape_cast %583 : vector<1x8x128xf32> to vector<8x128xf32>
    %585 = vector.shape_cast %574 : vector<8x128xf32> to vector<1x8x128xf32>
    tpu.vector_store %arg12[%c1_221, %c0_222, %c0_223], %585 {strides = array<i32>} : memref<2x8x128xf32, #tpu.memory_space<vmem>>, vector<1x8x128xf32>,
    %c0_224 = arith.constant 0 : index
    %c0_225 = arith.constant 0 : index
    %c0_226 = arith.constant 0 : index
    %586 = vector.load %arg13[%c0_224, %c0_225, %c0_226] : memref<8x8x128xf32, #tpu.memory_space<vmem>>, vector<8x8x128xf32>
    %587 = vector.shape_cast %586 : vector<8x8x128xf32> to vector<64x128xf32>
    %c0_227 = arith.constant 0 : index
    %c0_228 = arith.constant 0 : index
    %588 = vector.load %arg7[%c0_227, %c0_228] : memref<64x64xf32, #tpu.memory_space<vmem>>, vector<64x64xf32>
    %cst_229 = arith.constant dense<0.000000e+00> : vector<64x128xf32>
    %589 = tpu.matmul %588, %587, %cst_229 {dimension_numbers = #tpu.dot_dimension_numbers<[1], [0], [0], [1], [0, 0, 1, 1], [], []>} : vector<64x64xf32>, vector<64x128xf32>, vector<64x128xf32> -> vector<64x128xf32>
    %590 = arith.truncf %589 : vector<64x128xf32> to vector<64x128xbf16>
    %c0_230 = arith.constant 0 : index
    %c0_231 = arith.constant 0 : index
    %591 = vector.load %arg8[%c0_230, %c0_231] : memref<128x256xbf16, #tpu.memory_space<vmem>>, vector<128x256xbf16>
    %cst_232 = arith.constant dense<0.000000e+00> : vector<64x256xf32>
    %592 = tpu.matmul %590, %591, %cst_232 {dimension_numbers = #tpu.dot_dimension_numbers<[1], [0], [0], [1], [0, 0, 1, 1], [], []>} : vector<64x128xbf16>, vector<128x256xbf16>, vector<64x256xf32> -> vector<64x256xf32>
    %c0_233 = arith.constant 0 : index
    %c0_234 = arith.constant 0 : index
    %593 = vector.load %arg9[%c0_233, %c0_234] : memref<1x256xf32, #tpu.memory_space<vmem>>, vector<1x256xf32>
    %594 = vector.broadcast %593 : vector<1x256xf32> to vector<64x256xf32>
    %595 = arith.addf %592, %594 : vector<64x256xf32>
    %c0_235 = arith.constant 0 : index
    %c0_236 = arith.constant 0 : index
    %596 = vector.load %arg10[%c0_235, %c0_236] : memref<64x256xf32, #tpu.memory_space<vmem>>, vector<64x256xf32>
    tpu.vector_store %arg10[%c0_235, %c0_236], %595 {strides = array<i32>} : memref<64x256xf32, #tpu.memory_space<vmem>>, vector<64x256xf32>,
    return
  }
  func.func @transform_0(%arg0: i32) -> (i32, i32, i32) {
    %c0_i32 = arith.constant 0 : i32
    %c0_i32_0 = arith.constant 0 : i32
    %c0_i32_1 = arith.constant 0 : i32
    %c0_i32_2 = arith.constant 0 : i32
    return %c0_i32, %c0_i32_0, %c0_i32_1 : i32, i32, i32
  }
  func.func @transform_1(%arg0: i32) -> (i32, i32, i32) {
    %c0_i32 = arith.constant 0 : i32
    %c0_i32_0 = arith.constant 0 : i32
    %c0_i32_1 = arith.constant 0 : i32
    %c0_i32_2 = arith.constant 0 : i32
    return %c0_i32, %c0_i32_0, %c0_i32_1 : i32, i32, i32
  }
  func.func @transform_2(%arg0: i32) -> (i32, i32, i32) {
    %c0_i32 = arith.constant 0 : i32
    %c0_i32_0 = arith.constant 0 : i32
    %c0_i32_1 = arith.constant 0 : i32
    %c0_i32_2 = arith.constant 0 : i32
    return %c0_i32, %c0_i32_0, %c0_i32_1 : i32, i32, i32
  }
  func.func @transform_3(%arg0: i32) -> (i32, i32, i32) {
    %c0_i32 = arith.constant 0 : i32
    %c0_i32_0 = arith.constant 0 : i32
    %c0_i32_1 = arith.constant 0 : i32
    %c0_i32_2 = arith.constant 0 : i32
    return %c0_i32, %c0_i32_0, %c0_i32_1 : i32, i32, i32
  }
  func.func @transform_4(%arg0: i32) -> (i32, i32, i32) {
    %c0_i32 = arith.constant 0 : i32
    %c0_i32_0 = arith.constant 0 : i32
    %c0_i32_1 = arith.constant 0 : i32
    %c0_i32_2 = arith.constant 0 : i32
    return %c0_i32, %c0_i32_0, %c0_i32_1 : i32, i32, i32
  }
  func.func @transform_5(%arg0: i32) -> (i32, i32, i32) {
    %c0_i32 = arith.constant 0 : i32
    %c0_i32_0 = arith.constant 0 : i32
    %c0_i32_1 = arith.constant 0 : i32
    %c0_i32_2 = arith.constant 0 : i32
    return %c0_i32, %c0_i32_0, %c0_i32_1 : i32, i32, i32
  }
  func.func @transform_6(%arg0: i32) -> (i32, i32) {
    %c0_i32 = arith.constant 0 : i32
    %c0_i32_0 = arith.constant 0 : i32
    %c0_i32_1 = arith.constant 0 : i32
    return %c0_i32, %c0_i32_0 : i32, i32
  }
  func.func @transform_7(%arg0: i32) -> (i32, i32) {
    %c0_i32 = arith.constant 0 : i32
    %c0_i32_0 = arith.constant 0 : i32
    %c0_i32_1 = arith.constant 0 : i32
    return %c0_i32, %c0_i32_0 : i32, i32
  }
  func.func @transform_8(%arg0: i32) -> (i32, i32) {
    %c0_i32 = arith.constant 0 : i32
    %c0_i32_0 = arith.constant 0 : i32
    %c0_i32_1 = arith.constant 0 : i32
    return %c0_i32, %c0_i32_0 : i32, i32
  }
  func.func @transform_9(%arg0: i32) -> (i32, i32) {
    %c0_i32 = arith.constant 0 : i32
    %c0_i32_0 = arith.constant 0 : i32
    %c0_i32_1 = arith.constant 0 : i32
    return %c0_i32, %c0_i32_0 : i32, i32
  }
  func.func @transform_10(%arg0: i32) -> (i32, i32, i32) {
    %c0_i32 = arith.constant 0 : i32
    %c0_i32_0 = arith.constant 0 : i32
    %c0_i32_1 = arith.constant 0 : i32
    %c0_i32_2 = arith.constant 0 : i32
    return %c0_i32, %c0_i32_0, %c0_i32_1 : i32, i32, i32
  }
  func.func @transform_11(%arg0: i32) -> (i32, i32, i32) {
    %c0_i32 = arith.constant 0 : i32
    %c0_i32_0 = arith.constant 0 : i32
    %c0_i32_1 = arith.constant 0 : i32
    %c0_i32_2 = arith.constant 0 : i32
    return %c0_i32, %c0_i32_0, %c0_i32_1 : i32, i32, i32
  }
}

</mosaic_0001>

<llo_original>
// kernel: lstm_forward.1
$region0: #{lstm_forward.1}
  #allocation0 [shape = 'u32[]', space=smem, size = 0x4, offset = 0x4, fixed_abs, tag = 'smem constant byte address 0x4 - core index']
  #allocation1 [shape = 'u32[144,128]{1,0:T(1,128)}', space=vmem, size = 0x12000, scoped, tag = 'internal scratch']
  #allocation2 [shape = 'f32[8,8,128]{2,1,0:T(8,128)}', space=vmem, size = 0x8000, scoped, tag = 'scratch operand']
  #allocation3 [shape = 'f32[64,512]{1,0:T(8,128)}', space=vmem, size = 0x20000, scoped, tag = 'scratch operand']
  %s0 = inlined_call_operand.vmem [shape: f32[8,8,128], index: 0, kind: input, shape index: {}]
  %s1 = inlined_call_operand.vmem [shape: bf16[2,128,512], index: 1, kind: input, shape index: {}]
  %s2 = inlined_call_operand.hbm [shape: bf16[2,128,512], index: 2, kind: input, shape index: {}]
  %s3 = inlined_call_operand.vmem [shape: f32[2,1,512], index: 3, kind: input, shape index: {}]
  %s4 = inlined_call_operand.vmem [shape: f32[2,8,128], index: 4, kind: input, shape index: {}]
  %s5 = inlined_call_operand.vmem [shape: f32[2,8,128], index: 5, kind: input, shape index: {}]
  %s6 = inlined_call_operand.vmem [shape: f32[64,64], index: 6, kind: input, shape index: {}]
  %s7 = inlined_call_operand.vmem [shape: bf16[128,256], index: 7, kind: input, shape index: {}]
  %s8 = inlined_call_operand.vmem [shape: f32[1,256], index: 8, kind: input, shape index: {}]
  %s9 = inlined_call_operand.hbm [shape: f32[64,256], index: 9, kind: output, shape index: {0}]
  %s10 = inlined_call_operand.hbm [shape: f32[2,8,128], index: 10, kind: output, shape index: {1}]
  %s11 = inlined_call_operand.hbm [shape: f32[2,8,128], index: 11, kind: output, shape index: {2}]
  %12 = xla_tuple %s9, %s10, %s11
  %s13 = sld [smem:[#allocation0]]
  $region66: #{lstm_forward.1} parent=0
    _
  %s15 = ssub.s32 1, %s13
  %s16 = scalar_select 0, %s15, %s13
  $region1: #{lstm_forward.1} parent=0
    #allocation4 [shape = 'u8[262144]{0}', space=vmem, size = 0x40000, scoped, tag = 'input window, operand 2, single buffered']
    #allocation5 [shape = 's32[1]{0}', space=sflag, size = 0x4, scoped, tag = 'scoped memory for lstm_forward.1']
    #allocation6 [shape = 's32[1]{0}', space=sflag, size = 0x4, scoped, tag = 'scoped memory for lstm_forward.1']
    #allocation7 [shape = 'u8[65536]{0}', space=vmem, size = 0x10000, scoped, tag = 'output window, operand 0, single buffered']
    #allocation8 [shape = 'u8[8192]{0}', space=vmem, size = 0x2000, scoped, tag = 'output window, operand 1, single buffered']
    #allocation9 [shape = 's32[1]{0}', space=sflag, size = 0x4, scoped, tag = 'scoped memory for lstm_forward.1']
    #allocation10 [shape = 'u8[8192]{0}', space=vmem, size = 0x2000, scoped, tag = 'output window, operand 2, single buffered']
    %17 = vsyncpa [#allocation5], 0
    %18 = vsyncpa [#allocation6], 0
    %19 = vsyncpa [#allocation9], 0
    // Predicated region
    $region2: #{lstm_forward.1} parent=1 // pred_check
      _
    $region3: #{lstm_forward.1} parent=1 // pred_check_branch
      %21 = sbr.rel (0) target = $region5
    $region4: #{lstm_forward.1} parent=1 // pred_region
      _
    $region5: #{lstm_forward.1} parent=1 // pred_fallthru
      _
    // Predicated region
    $region6: #{lstm_forward.1} parent=1 // pred_check
      _
    $region7: #{lstm_forward.1} parent=1 // pred_check_branch
      %23 = sbr.rel (0) target = $region9
    $region8: #{lstm_forward.1} parent=1 // pred_region
      _
    $region9: #{lstm_forward.1} parent=1 // pred_fallthru
      _
    // Predicated region
    $region10: #{lstm_forward.1} parent=1 // pred_check
      _
    $region11: #{lstm_forward.1} parent=1 // pred_check_branch
      %25 = sbr.rel (0) target = $region13
    $region12: #{lstm_forward.1} parent=1 // pred_region
      %s27 = ssub.s32 8192, 8192
      %28 = vsyncadd [#allocation5], %s27
      %s29 = sshll.u32 [#allocation4], 4
      %s30 = int_to_ptr.vmem [resolvable:$true] %s29
      %35 = dma.hbm_to_vmem [thread:$0]  %s2, 8192, %s30, [#allocation5], 256, 256, 16
    $region13: #{lstm_forward.1} parent=1 // pred_fallthru
      _
    // Predicated region
    $region14: #{lstm_forward.1} parent=1 // pred_check
      _
    $region15: #{lstm_forward.1} parent=1 // pred_check_branch
      %37 = sbr.rel (0) target = $region17
    $region16: #{lstm_forward.1} parent=1 // pred_region
      _
    $region17: #{lstm_forward.1} parent=1 // pred_fallthru
      _
    // Predicated region
    $region18: #{lstm_forward.1} parent=1 // pred_check
      _
    $region19: #{lstm_forward.1} parent=1 // pred_check_branch
      %39 = sbr.rel (0) target = $region21
    $region20: #{lstm_forward.1} parent=1 // pred_region
      _
    $region21: #{lstm_forward.1} parent=1 // pred_fallthru
      _
    // Predicated region
    $region22: #{lstm_forward.1} parent=1 // pred_check
      _
    $region23: #{lstm_forward.1} parent=1 // pred_check_branch
      %41 = sbr.rel (0) target = $region25
    $region24: #{lstm_forward.1} parent=1 // pred_region
      _
    $region25: #{lstm_forward.1} parent=1 // pred_fallthru
      _
    // Predicated region
    $region26: #{lstm_forward.1} parent=1 // pred_check
      _
    $region27: #{lstm_forward.1} parent=1 // pred_check_branch
      %43 = sbr.rel (0) target = $region29
    $region28: #{lstm_forward.1} parent=1 // pred_region
      _
    $region29: #{lstm_forward.1} parent=1 // pred_fallthru
      _
    // Predicated region
    $region30: #{lstm_forward.1} parent=1 // pred_check
      _
    $region31: #{lstm_forward.1} parent=1 // pred_check_branch
      %45 = sbr.rel (0) target = $region33
    $region32: #{lstm_forward.1} parent=1 // pred_region
      _
    $region33: #{lstm_forward.1} parent=1 // pred_fallthru
      _
    // Predicated region
    $region34: #{lstm_forward.1} parent=1 // pred_check
      _
    $region35: #{lstm_forward.1} parent=1 // pred_check_branch
      %47 = sbr.rel (0) target = $region37
    $region36: #{lstm_forward.1} parent=1 // pred_region
      _
    $region37: #{lstm_forward.1} parent=1 // pred_fallthru
      _
    // Predicated region
    $region38: #{lstm_forward.1} parent=1 // pred_check
      _
    $region39: #{lstm_forward.1} parent=1 // pred_check_branch
      %49 = sbr.rel (0) target = $region41
    $region40: #{lstm_forward.1} parent=1 // pred_region
      %50 = dma.done [#allocation5], 8192
    $region41: #{lstm_forward.1} parent=1 // pred_fallthru
      _
    %v52 = vld [vmem:[%s0] sm:$0xff]
    %v53 = vld [vmem:[%s0 + $0x8] sm:$0xff]
    %v54 = vld [vmem:[%s0 + $0x10] sm:$0xff]
    %v55 = vld [vmem:[%s0 + $0x18] sm:$0xff]
    %v56 = vld [vmem:[%s0 + $0x20] sm:$0xff]
    %v57 = vld [vmem:[%s0 + $0x28] sm:$0xff]
    %v58 = vld [vmem:[%s0 + $0x30] sm:$0xff]
    %v59 = vld [vmem:[%s0 + $0x38] sm:$0xff]
    %v60 = vpack.c.bf16 %v53, %v52
    %v61 = vpack.c.bf16 %v55, %v54
    %v62 = vpack.c.bf16 %v57, %v56
    %v63 = vpack.c.bf16 %v59, %v58
    %v64 = vld [vmem:[%s1] sm:$0xff]
    %v65 = vld [vmem:[%s1 + $0x8] sm:$0xff]
    %v66 = vld [vmem:[%s1 + $0x10] sm:$0xff]
    %v67 = vld [vmem:[%s1 + $0x18] sm:$0xff]
    %v68 = vld [vmem:[%s1 + $0x20] sm:$0xff]
    %v69 = vld [vmem:[%s1 + $0x28] sm:$0xff]
    %v70 = vld [vmem:[%s1 + $0x30] sm:$0xff]
    %v71 = vld [vmem:[%s1 + $0x38] sm:$0xff]
    %v72 = vld [vmem:[%s1 + $0x40] sm:$0xff]
    %v73 = vld [vmem:[%s1 + $0x48] sm:$0xff]
    %v74 = vld [vmem:[%s1 + $0x50] sm:$0xff]
    %v75 = vld [vmem:[%s1 + $0x58] sm:$0xff]
    %v76 = vld [vmem:[%s1 + $0x60] sm:$0xff]
    %v77 = vld [vmem:[%s1 + $0x68] sm:$0xff]
    %v78 = vld [vmem:[%s1 + $0x70] sm:$0xff]
    %v79 = vld [vmem:[%s1 + $0x78] sm:$0xff]
    %v80 = vld [vmem:[%s1 + $0x80] sm:$0xff]
    %v81 = vld [vmem:[%s1 + $0x88] sm:$0xff]
    %v82 = vld [vmem:[%s1 + $0x90] sm:$0xff]
    %v83 = vld [vmem:[%s1 + $0x98] sm:$0xff]
    %v84 = vld [vmem:[%s1 + $0xa0] sm:$0xff]
    %v85 = vld [vmem:[%s1 + $0xa8] sm:$0xff]
    %v86 = vld [vmem:[%s1 + $0xb0] sm:$0xff]
    %v87 = vld [vmem:[%s1 + $0xb8] sm:$0xff]
    %v88 = vld [vmem:[%s1 + $0xc0] sm:$0xff]
    %v89 = vld [vmem:[%s1 + $0xc8] sm:$0xff]
    %v90 = vld [vmem:[%s1 + $0xd0] sm:$0xff]
    %v91 = vld [vmem:[%s1 + $0xd8] sm:$0xff]
    %v92 = vld [vmem:[%s1 + $0xe0] sm:$0xff]
    %v93 = vld [vmem:[%s1 + $0xe8] sm:$0xff]
    %v94 = vld [vmem:[%s1 + $0xf0] sm:$0xff]
    %v95 = vld [vmem:[%s1 + $0xf8] sm:$0xff]
    %v96 = vld [vmem:[%s3] sm:$0xf]
    %v98 = vlaneseq
    %v99 = vshrl.u32 %v98, 7
    %v100 = vsub.s32 0, %v99
    %v101 = vrot.slane %v96, %v100
    %v102 = vlaneseq
    %v103 = vshrl.u32 %v102, 7
    %v104 = vsub.s32 1, %v103
    %v105 = vrot.slane %v96, %v104
    %v106 = vlaneseq
    %v107 = vshrl.u32 %v106, 7
    %v108 = vsub.s32 2, %v107
    %v109 = vrot.slane %v96, %v108
    %v110 = vlaneseq
    %v111 = vshrl.u32 %v110, 7
    %v112 = vsub.s32 3, %v111
    %v113 = vrot.slane %v96, %v112
    %v150 = vunpack.c.l.b16 %v64
    %v151 = vunpack.c.h.b16 %v64
    %v152 = vunpack.c.l.b16 %v65
    %v153 = vunpack.c.h.b16 %v65
    %v154 = vunpack.c.l.b16 %v66
    %v155 = vunpack.c.h.b16 %v66
    %v156 = vunpack.c.l.b16 %v67
    %v157 = vunpack.c.h.b16 %v67
    %v158 = vunpack.c.l.b16 %v68
    %v159 = vunpack.c.h.b16 %v68
    %v160 = vunpack.c.l.b16 %v69
    %v161 = vunpack.c.h.b16 %v69
    %v162 = vunpack.c.l.b16 %v70
    %v163 = vunpack.c.h.b16 %v70
    %v164 = vunpack.c.l.b16 %v71
    %v165 = vunpack.c.h.b16 %v71
    %v166 = vunpack.c.l.b16 %v72
    %v167 = vunpack.c.h.b16 %v72
    %v168 = vunpack.c.l.b16 %v73
    %v169 = vunpack.c.h.b16 %v73
    %v170 = vunpack.c.l.b16 %v74
    %v171 = vunpack.c.h.b16 %v74
    %v172 = vunpack.c.l.b16 %v75
    %v173 = vunpack.c.h.b16 %v75
    %v174 = vunpack.c.l.b16 %v76
    %v175 = vunpack.c.h.b16 %v76
    %v176 = vunpack.c.l.b16 %v77
    %v177 = vunpack.c.h.b16 %v77
    %v178 = vunpack.c.l.b16 %v78
    %v179 = vunpack.c.h.b16 %v78
    %v180 = vunpack.c.l.b16 %v79
    %v181 = vunpack.c.h.b16 %v79
    %v182 = vunpack.c.l.b16 %v80
    %v183 = vunpack.c.h.b16 %v80
    %v184 = vunpack.c.l.b16 %v81
    %v185 = vunpack.c.h.b16 %v81
    %v186 = vunpack.c.l.b16 %v82
    %v187 = vunpack.c.h.b16 %v82
    %v188 = vunpack.c.l.b16 %v83
    %v189 = vunpack.c.h.b16 %v83
    %v190 = vunpack.c.l.b16 %v84
    %v191 = vunpack.c.h.b16 %v84
    %v192 = vunpack.c.l.b16 %v85
    %v193 = vunpack.c.h.b16 %v85
    %v194 = vunpack.c.l.b16 %v86
    %v195 = vunpack.c.h.b16 %v86
    %v196 = vunpack.c.l.b16 %v87
    %v197 = vunpack.c.h.b16 %v87
    %v198 = vunpack.c.l.b16 %v88
    %v199 = vunpack.c.h.b16 %v88
    %v200 = vunpack.c.l.b16 %v89
    %v201 = vunpack.c.h.b16 %v89
    %v202 = vunpack.c.l.b16 %v90
    %v203 = vunpack.c.h.b16 %v90
    %v204 = vunpack.c.l.b16 %v91
    %v205 = vunpack.c.h.b16 %v91
    %v206 = vunpack.c.l.b16 %v92
    %v207 = vunpack.c.h.b16 %v92
    %v208 = vunpack.c.l.b16 %v93
    %v209 = vunpack.c.h.b16 %v93
    %v210 = vunpack.c.l.b16 %v94
    %v211 = vunpack.c.h.b16 %v94
    %v212 = vunpack.c.l.b16 %v95
    %v213 = vunpack.c.h.b16 %v95
    %v214 = vpack.c.b16 %v154, %v150
    %v215 = vpack.c.b16 %v155, %v151
    %v216 = vpack.c.b16 %v156, %v152
    %v217 = vpack.c.b16 %v157, %v153
    %v218 = vpack.c.b16 %v162, %v158
    %v219 = vpack.c.b16 %v163, %v159
    %v220 = vpack.c.b16 %v164, %v160
    %v221 = vpack.c.b16 %v165, %v161
    %v222 = vpack.c.b16 %v170, %v166
    %v223 = vpack.c.b16 %v171, %v167
    %v224 = vpack.c.b16 %v172, %v168
    %v225 = vpack.c.b16 %v173, %v169
    %v226 = vpack.c.b16 %v178, %v174
    %v227 = vpack.c.b16 %v179, %v175
    %v228 = vpack.c.b16 %v180, %v176
    %v229 = vpack.c.b16 %v181, %v177
    %v230 = vpack.c.b16 %v186, %v182
    %v231 = vpack.c.b16 %v187, %v183
    %v232 = vpack.c.b16 %v188, %v184
    %v233 = vpack.c.b16 %v189, %v185
    %v234 = vpack.c.b16 %v194, %v190
    %v235 = vpack.c.b16 %v195, %v191
    %v236 = vpack.c.b16 %v196, %v192
    %v237 = vpack.c.b16 %v197, %v193
    %v238 = vpack.c.b16 %v202, %v198
    %v239 = vpack.c.b16 %v203, %v199
    %v240 = vpack.c.b16 %v204, %v200
    %v241 = vpack.c.b16 %v205, %v201
    %v242 = vpack.c.b16 %v210, %v206
    %v243 = vpack.c.b16 %v211, %v207
    %v244 = vpack.c.b16 %v212, %v208
    %v245 = vpack.c.b16 %v213, %v209
    %278 = vmatprep.subr.bf16.mxu0 %v243
    %279 = vmatpush1.bf16.msra.mxu0 %v242
    %280 = vmatprep.subr.bf16.mxu0 %v239
    %281 = vmatpush1.bf16.msra.mxu0 %v238
    %282 = vmatprep.subr.bf16.mxu0 %v235
    %283 = vmatpush1.bf16.msra.mxu0 %v234
    %284 = vmatprep.subr.bf16.mxu0 %v231
    %285 = vmatpush1.bf16.msra.mxu0 %v230
    %286 = vmatprep.subr.bf16.mxu0 %v227
    %287 = vmatpush1.bf16.msra.mxu0 %v226
    %288 = vmatprep.subr.bf16.mxu0 %v223
    %289 = vmatpush1.bf16.msra.mxu0 %v222
    %290 = vmatprep.subr.bf16.mxu0 %v219
    %291 = vmatpush1.bf16.msra.mxu0 %v218
    %292 = vmatprep.subr.bf16.mxu0 %v215
    %293 = vmatpush1.bf16.msra.mxu0 %v214
    %294 = vmatprep.subr.bf16.mxu0 0
    %295 = vmatpush2.bf16.msra.mxu0 0
    %296 = vmatprep.subr.bf16.mxu0 0
    %297 = vmatpush2.bf16.msra.mxu0 0
    %298 = vmatprep.subr.bf16.mxu0 0
    %299 = vmatpush2.bf16.msra.mxu0 0
    %300 = vmatprep.subr.bf16.mxu0 0
    %301 = vmatpush2.bf16.msra.mxu0 0
    %302 = vmatprep.subr.bf16.mxu0 0
    %303 = vmatpush2.bf16.msra.mxu0 0
    %304 = vmatprep.subr.bf16.mxu0 0
    %305 = vmatpush2.bf16.msra.mxu0 0
    %306 = vmatprep.subr.bf16.mxu0 0
    %307 = vmatpush2.bf16.msra.mxu0 0
    %308 = vmatprep.subr.bf16.mxu0 0
    %309 = vmatpush2.bf16.msra.mxu0 0
    %310 = vmatprep.mubr.bf16.mxu0 0
    %311 = vmatmul.mubr.bf16.gmra.mxu0 %v60
    %v312 = vpop.f32.mrf.mxu0
    %v313 = vadd.f32 %v101, %v312
    %v314 = vpop.f32.mrf.mxu0
    %v315 = vadd.f32 %v105, %v314
    %v316 = vpop.f32.mrf.mxu0
    %v317 = vadd.f32 %v101, %v316
    %v318 = vpop.f32.mrf.mxu0
    %v319 = vadd.f32 %v105, %v318
    %320 = vmatprep.mubr.bf16.mxu0 0
    %321 = vmatmul.mubr.bf16.gmra.mxu0 %v61
    %v322 = vpop.f32.mrf.mxu0
    %v323 = vadd.f32 %v101, %v322
    %v324 = vpop.f32.mrf.mxu0
    %v325 = vadd.f32 %v105, %v324
    %v326 = vpop.f32.mrf.mxu0
    %v327 = vadd.f32 %v101, %v326
    %v328 = vpop.f32.mrf.mxu0
    %v329 = vadd.f32 %v105, %v328
    %330 = vmatprep.mubr.bf16.mxu0 0
    %331 = vmatmul.mubr.bf16.gmra.mxu0 %v62
    %v332 = vpop.f32.mrf.mxu0
    %v333 = vadd.f32 %v101, %v332
    %v334 = vpop.f32.mrf.mxu0
    %v335 = vadd.f32 %v105, %v334
    %v336 = vpop.f32.mrf.mxu0
    %v337 = vadd.f32 %v101, %v336
    %v338 = vpop.f32.mrf.mxu0
    %v339 = vadd.f32 %v105, %v338
    %340 = vmatprep.mubr.bf16.mxu0 0
    %341 = vmatmul.mubr.bf16.gmra.mxu0 %v63
    %v342 = vpop.f32.mrf.mxu0
    %v343 = vadd.f32 %v101, %v342
    %v344 = vpop.f32.mrf.mxu0
    %v345 = vadd.f32 %v105, %v344
    %v346 = vpop.f32.mrf.mxu0
    %v347 = vadd.f32 %v101, %v346
    %v348 = vpop.f32.mrf.mxu0
    %v349 = vadd.f32 %v105, %v348
    %350 = vdwg.mxu0
    %351 = vmatprep.subr.bf16.mxu0 %v245
    %352 = vmatpush1.bf16.msra.mxu0 %v244
    %353 = vmatprep.subr.bf16.mxu0 %v241
    %354 = vmatpush1.bf16.msra.mxu0 %v240
    %355 = vmatprep.subr.bf16.mxu0 %v237
    %356 = vmatpush1.bf16.msra.mxu0 %v236
    %357 = vmatprep.subr.bf16.mxu0 %v233
    %358 = vmatpush1.bf16.msra.mxu0 %v232
    %359 = vmatprep.subr.bf16.mxu0 %v229
    %360 = vmatpush1.bf16.msra.mxu0 %v228
    %361 = vmatprep.subr.bf16.mxu0 %v225
    %362 = vmatpush1.bf16.msra.mxu0 %v224
    %363 = vmatprep.subr.bf16.mxu0 %v221
    %364 = vmatpush1.bf16.msra.mxu0 %v220
    %365 = vmatprep.subr.bf16.mxu0 %v217
    %366 = vmatpush1.bf16.msra.mxu0 %v216
    %367 = vmatprep.subr.bf16.mxu0 0
    %368 = vmatpush2.bf16.msra.mxu0 0
    %369 = vmatprep.subr.bf16.mxu0 0
    %370 = vmatpush2.bf16.msra.mxu0 0
    %371 = vmatprep.subr.bf16.mxu0 0
    %372 = vmatpush2.bf16.msra.mxu0 0
    %373 = vmatprep.subr.bf16.mxu0 0
    %374 = vmatpush2.bf16.msra.mxu0 0
    %375 = vmatprep.subr.bf16.mxu0 0
    %376 = vmatpush2.bf16.msra.mxu0 0
    %377 = vmatprep.subr.bf16.mxu0 0
    %378 = vmatpush2.bf16.msra.mxu0 0
    %379 = vmatprep.subr.bf16.mxu0 0
    %380 = vmatpush2.bf16.msra.mxu0 0
    %381 = vmatprep.subr.bf16.mxu0 0
    %382 = vmatpush2.bf16.msra.mxu0 0
    %383 = vmatprep.mubr.bf16.mxu0 0
    %384 = vmatmul.mubr.bf16.gmra.mxu0 %v60
    %v385 = vpop.f32.mrf.mxu0
    %v386 = vadd.f32 %v109, %v385
    %v387 = vpop.f32.mrf.mxu0
    %v388 = vadd.f32 %v113, %v387
    %v389 = vpop.f32.mrf.mxu0
    %v390 = vadd.f32 %v109, %v389
    %v391 = vpop.f32.mrf.mxu0
    %v392 = vadd.f32 %v113, %v391
    %393 = vmatprep.mubr.bf16.mxu0 0
    %394 = vmatmul.mubr.bf16.gmra.mxu0 %v61
    %v395 = vpop.f32.mrf.mxu0
    %v396 = vadd.f32 %v109, %v395
    %v397 = vpop.f32.mrf.mxu0
    %v398 = vadd.f32 %v113, %v397
    %v399 = vpop.f32.mrf.mxu0
    %v400 = vadd.f32 %v109, %v399
    %v401 = vpop.f32.mrf.mxu0
    %v402 = vadd.f32 %v113, %v401
    %403 = vmatprep.mubr.bf16.mxu0 0
    %404 = vmatmul.mubr.bf16.gmra.mxu0 %v62
    %v405 = vpop.f32.mrf.mxu0
    %v406 = vadd.f32 %v109, %v405
    %v407 = vpop.f32.mrf.mxu0
    %v408 = vadd.f32 %v113, %v407
    %v409 = vpop.f32.mrf.mxu0
    %v410 = vadd.f32 %v109, %v409
    %v411 = vpop.f32.mrf.mxu0
    %v412 = vadd.f32 %v113, %v411
    %413 = vmatprep.mubr.bf16.mxu0 0
    %414 = vmatmul.mubr.bf16.gmra.mxu0 %v63
    %v415 = vpop.f32.mrf.mxu0
    %v416 = vadd.f32 %v109, %v415
    %v417 = vpop.f32.mrf.mxu0
    %v418 = vadd.f32 %v113, %v417
    %v419 = vpop.f32.mrf.mxu0
    %v420 = vadd.f32 %v109, %v419
    %v421 = vpop.f32.mrf.mxu0
    %v422 = vadd.f32 %v113, %v421
    %423 = vdwg.mxu0
    %424 = vst [vmem:[#allocation3] sm:$0xff] %v313
    %425 = vst [vmem:[#allocation3 + $0x8] sm:$0xff] %v315
    %426 = vst [vmem:[#allocation3 + $0x10] sm:$0xff] %v386
    %427 = vst [vmem:[#allocation3 + $0x18] sm:$0xff] %v388
    %428 = vst [vmem:[#allocation3 + $0x20] sm:$0xff] %v317
    %429 = vst [vmem:[#allocation3 + $0x28] sm:$0xff] %v319
    %430 = vst [vmem:[#allocation3 + $0x30] sm:$0xff] %v390
    %431 = vst [vmem:[#allocation3 + $0x38] sm:$0xff] %v392
    %432 = vst [vmem:[#allocation3 + $0x40] sm:$0xff] %v323
    %433 = vst [vmem:[#allocation3 + $0x48] sm:$0xff] %v325
    %434 = vst [vmem:[#allocation3 + $0x50] sm:$0xff] %v396
    %435 = vst [vmem:[#allocation3 + $0x58] sm:$0xff] %v398
    %436 = vst [vmem:[#allocation3 + $0x60] sm:$0xff] %v327
    %437 = vst [vmem:[#allocation3 + $0x68] sm:$0xff] %v329
    %438 = vst [vmem:[#allocation3 + $0x70] sm:$0xff] %v400
    %439 = vst [vmem:[#allocation3 + $0x78] sm:$0xff] %v402
    %440 = vst [vmem:[#allocation3 + $0x80] sm:$0xff] %v333
    %441 = vst [vmem:[#allocation3 + $0x88] sm:$0xff] %v335
    %442 = vst [vmem:[#allocation3 + $0x90] sm:$0xff] %v406
    %443 = vst [vmem:[#allocation3 + $0x98] sm:$0xff] %v408
    %444 = vst [vmem:[#allocation3 + $0xa0] sm:$0xff] %v337
    %445 = vst [vmem:[#allocation3 + $0xa8] sm:$0xff] %v339
    %446 = vst [vmem:[#allocation3 + $0xb0] sm:$0xff] %v410
    %447 = vst [vmem:[#allocation3 + $0xb8] sm:$0xff] %v412
    %448 = vst [vmem:[#allocation3 + $0xc0] sm:$0xff] %v343
    %449 = vst [vmem:[#allocation3 + $0xc8] sm:$0xff] %v345
    %450 = vst [vmem:[#allocation3 + $0xd0] sm:$0xff] %v416
    %451 = vst [vmem:[#allocation3 + $0xd8] sm:$0xff] %v418
    %452 = vst [vmem:[#allocation3 + $0xe0] sm:$0xff] %v347
    %453 = vst [vmem:[#allocation3 + $0xe8] sm:$0xff] %v349
    %454 = vst [vmem:[#allocation3 + $0xf0] sm:$0xff] %v420
    %455 = vst [vmem:[#allocation3 + $0xf8] sm:$0xff] %v422
    %v456 = vld [vmem:[%s4] sm:$0xff]
    %v457 = vld [vmem:[%s5] sm:$0xff]
    %v458 = vld [vmem:[#allocation3] sm:$0xff]
    %v459 = vld [vmem:[#allocation3 + $0x8] sm:$0xff]
    %v460 = vld [vmem:[#allocation3 + $0x10] sm:$0xff]
    %v461 = vld [vmem:[#allocation3 + $0x18] sm:$0xff]
    %v462 = vpack.c.bf16 %v456, %v456
    %v463 = vld [vmem:[#allocation4] sm:$0xff]
    %v464 = vld [vmem:[#allocation4 + $0x8] sm:$0xff]
    %v465 = vld [vmem:[#allocation4 + $0x10] sm:$0xff]
    %v466 = vld [vmem:[#allocation4 + $0x18] sm:$0xff]
    %v467 = vld [vmem:[#allocation4 + $0x20] sm:$0xff]
    %v468 = vld [vmem:[#allocation4 + $0x28] sm:$0xff]
    %v469 = vld [vmem:[#allocation4 + $0x30] sm:$0xff]
    %v470 = vld [vmem:[#allocation4 + $0x38] sm:$0xff]
    %v471 = vld [vmem:[#allocation4 + $0x40] sm:$0xff]
    %v472 = vld [vmem:[#allocation4 + $0x48] sm:$0xff]
    %v473 = vld [vmem:[#allocation4 + $0x50] sm:$0xff]
    %v474 = vld [vmem:[#allocation4 + $0x58] sm:$0xff]
    %v475 = vld [vmem:[#allocation4 + $0x60] sm:$0xff]
    %v476 = vld [vmem:[#allocation4 + $0x68] sm:$0xff]
    %v477 = vld [vmem:[#allocation4 + $0x70] sm:$0xff]
    %v478 = vld [vmem:[#allocation4 + $0x78] sm:$0xff]
    %v479 = vld [vmem:[#allocation4 + $0x80] sm:$0xff]
    %v480 = vld [vmem:[#allocation4 + $0x88] sm:$0xff]
    %v481 = vld [vmem:[#allocation4 + $0x90] sm:$0xff]
    %v482 = vld [vmem:[#allocation4 + $0x98] sm:$0xff]
    %v483 = vld [vmem:[#allocation4 + $0xa0] sm:$0xff]
    %v484 = vld [vmem:[#allocation4 + $0xa8] sm:$0xff]
    %v485 = vld [vmem:[#allocation4 + $0xb0] sm:$0xff]
    %v486 = vld [vmem:[#allocation4 + $0xb8] sm:$0xff]
    %v487 = vld [vmem:[#allocation4 + $0xc0] sm:$0xff]
    %v488 = vld [vmem:[#allocation4 + $0xc8] sm:$0xff]
    %v489 = vld [vmem:[#allocation4 + $0xd0] sm:$0xff]
    %v490 = vld [vmem:[#allocation4 + $0xd8] sm:$0xff]
    %v491 = vld [vmem:[#allocation4 + $0xe0] sm:$0xff]
    %v492 = vld [vmem:[#allocation4 + $0xe8] sm:$0xff]
    %v493 = vld [vmem:[#allocation4 + $0xf0] sm:$0xff]
    %v494 = vld [vmem:[#allocation4 + $0xf8] sm:$0xff]
    %v527 = vunpack.c.l.b16 %v463
    %v528 = vunpack.c.h.b16 %v463
    %v529 = vunpack.c.l.b16 %v464
    %v530 = vunpack.c.h.b16 %v464
    %v531 = vunpack.c.l.b16 %v465
    %v532 = vunpack.c.h.b16 %v465
    %v533 = vunpack.c.l.b16 %v466
    %v534 = vunpack.c.h.b16 %v466
    %v535 = vunpack.c.l.b16 %v467
    %v536 = vunpack.c.h.b16 %v467
    %v537 = vunpack.c.l.b16 %v468
    %v538 = vunpack.c.h.b16 %v468
    %v539 = vunpack.c.l.b16 %v469
    %v540 = vunpack.c.h.b16 %v469
    %v541 = vunpack.c.l.b16 %v470
    %v542 = vunpack.c.h.b16 %v470
    %v543 = vunpack.c.l.b16 %v471
    %v544 = vunpack.c.h.b16 %v471
    %v545 = vunpack.c.l.b16 %v472
    %v546 = vunpack.c.h.b16 %v472
    %v547 = vunpack.c.l.b16 %v473
    %v548 = vunpack.c.h.b16 %v473
    %v549 = vunpack.c.l.b16 %v474
    %v550 = vunpack.c.h.b16 %v474
    %v551 = vunpack.c.l.b16 %v475
    %v552 = vunpack.c.h.b16 %v475
    %v553 = vunpack.c.l.b16 %v476
    %v554 = vunpack.c.h.b16 %v476
    %v555 = vunpack.c.l.b16 %v477
    %v556 = vunpack.c.h.b16 %v477
    %v557 = vunpack.c.l.b16 %v478
    %v558 = vunpack.c.h.b16 %v478
    %v559 = vunpack.c.l.b16 %v479
    %v560 = vunpack.c.h.b16 %v479
    %v561 = vunpack.c.l.b16 %v480
    %v562 = vunpack.c.h.b16 %v480
    %v563 = vunpack.c.l.b16 %v481
    %v564 = vunpack.c.h.b16 %v481
    %v565 = vunpack.c.l.b16 %v482
    %v566 = vunpack.c.h.b16 %v482
    %v567 = vunpack.c.l.b16 %v483
    %v568 = vunpack.c.h.b16 %v483
    %v569 = vunpack.c.l.b16 %v484
    %v570 = vunpack.c.h.b16 %v484
    %v571 = vunpack.c.l.b16 %v485
    %v572 = vunpack.c.h.b16 %v485
    %v573 = vunpack.c.l.b16 %v486
    %v574 = vunpack.c.h.b16 %v486
    %v575 = vunpack.c.l.b16 %v487
    %v576 = vunpack.c.h.b16 %v487
    %v577 = vunpack.c.l.b16 %v488
    %v578 = vunpack.c.h.b16 %v488
    %v579 = vunpack.c.l.b16 %v489
    %v580 = vunpack.c.h.b16 %v489
    %v581 = vunpack.c.l.b16 %v490
    %v582 = vunpack.c.h.b16 %v490
    %v583 = vunpack.c.l.b16 %v491
    %v584 = vunpack.c.h.b16 %v491
    %v585 = vunpack.c.l.b16 %v492
    %v586 = vunpack.c.h.b16 %v492
    %v587 = vunpack.c.l.b16 %v493
    %v588 = vunpack.c.h.b16 %v493
    %v589 = vunpack.c.l.b16 %v494
    %v590 = vunpack.c.h.b16 %v494
    %v591 = vpack.c.b16 %v531, %v527
    %v592 = vpack.c.b16 %v532, %v528
    %v593 = vpack.c.b16 %v533, %v529
    %v594 = vpack.c.b16 %v534, %v530
    %v595 = vpack.c.b16 %v539, %v535
    %v596 = vpack.c.b16 %v540, %v536
    %v597 = vpack.c.b16 %v541, %v537
    %v598 = vpack.c.b16 %v542, %v538
    %v599 = vpack.c.b16 %v547, %v543
    %v600 = vpack.c.b16 %v548, %v544
    %v601 = vpack.c.b16 %v549, %v545
    %v602 = vpack.c.b16 %v550, %v546
    %v603 = vpack.c.b16 %v555, %v551
    %v604 = vpack.c.b16 %v556, %v552
    %v605 = vpack.c.b16 %v557, %v553
    %v606 = vpack.c.b16 %v558, %v554
    %v607 = vpack.c.b16 %v563, %v559
    %v608 = vpack.c.b16 %v564, %v560
    %v609 = vpack.c.b16 %v565, %v561
    %v610 = vpack.c.b16 %v566, %v562
    %v611 = vpack.c.b16 %v571, %v567
    %v612 = vpack.c.b16 %v572, %v568
    %v613 = vpack.c.b16 %v573, %v569
    %v614 = vpack.c.b16 %v574, %v570
    %v615 = vpack.c.b16 %v579, %v575
    %v616 = vpack.c.b16 %v580, %v576
    %v617 = vpack.c.b16 %v581, %v577
    %v618 = vpack.c.b16 %v582, %v578
    %v619 = vpack.c.b16 %v587, %v583
    %v620 = vpack.c.b16 %v588, %v584
    %v621 = vpack.c.b16 %v589, %v585
    %v622 = vpack.c.b16 %v590, %v586
    %655 = vmatprep.subr.bf16.mxu0 %v620
    %656 = vmatpush1.bf16.msra.mxu0 %v619
    %657 = vmatprep.subr.bf16.mxu0 %v616
    %658 = vmatpush1.bf16.msra.mxu0 %v615
    %659 = vmatprep.subr.bf16.mxu0 %v612
    %660 = vmatpush1.bf16.msra.mxu0 %v611
    %661 = vmatprep.subr.bf16.mxu0 %v608
    %662 = vmatpush1.bf16.msra.mxu0 %v607
    %663 = vmatprep.subr.bf16.mxu0 %v604
    %664 = vmatpush1.bf16.msra.mxu0 %v603
    %665 = vmatprep.subr.bf16.mxu0 %v600
    %666 = vmatpush1.bf16.msra.mxu0 %v599
    %667 = vmatprep.subr.bf16.mxu0 %v596
    %668 = vmatpush1.bf16.msra.mxu0 %v595
    %669 = vmatprep.subr.bf16.mxu0 %v592
    %670 = vmatpush1.bf16.msra.mxu0 %v591
    %671 = vmatprep.subr.bf16.mxu0 0
    %672 = vmatpush2.bf16.msra.mxu0 0
    %673 = vmatprep.subr.bf16.mxu0 0
    %674 = vmatpush2.bf16.msra.mxu0 0
    %675 = vmatprep.subr.bf16.mxu0 0
    %676 = vmatpush2.bf16.msra.mxu0 0
    %677 = vmatprep.subr.bf16.mxu0 0
    %678 = vmatpush2.bf16.msra.mxu0 0
    %679 = vmatprep.subr.bf16.mxu0 0
    %680 = vmatpush2.bf16.msra.mxu0 0
    %681 = vmatprep.subr.bf16.mxu0 0
    %682 = vmatpush2.bf16.msra.mxu0 0
    %683 = vmatprep.subr.bf16.mxu0 0
    %684 = vmatpush2.bf16.msra.mxu0 0
    %685 = vmatprep.subr.bf16.mxu0 0
    %686 = vmatpush2.bf16.msra.mxu0 0
    %687 = vmatprep.mubr.bf16.mxu0 0
    %688 = vmatmul.mubr.bf16.gmra.mxu0 %v462
    %v689 = vpop.f32.mrf.mxu0
    %v690 = vadd.f32 0.0, %v689
    %v691 = vpop.f32.mrf.mxu0
    %v692 = vadd.f32 0.0, %v691
    %v693 = vpop.f32.mrf.mxu0
    %v694 = vpop.f32.mrf.mxu0
    %695 = vdwg.mxu0
    %696 = vmatprep.subr.bf16.mxu0 %v622
    %697 = vmatpush1.bf16.msra.mxu0 %v621
    %698 = vmatprep.subr.bf16.mxu0 %v618
    %699 = vmatpush1.bf16.msra.mxu0 %v617
    %700 = vmatprep.subr.bf16.mxu0 %v614
    %701 = vmatpush1.bf16.msra.mxu0 %v613
    %702 = vmatprep.subr.bf16.mxu0 %v610
    %703 = vmatpush1.bf16.msra.mxu0 %v609
    %704 = vmatprep.subr.bf16.mxu0 %v606
    %705 = vmatpush1.bf16.msra.mxu0 %v605
    %706 = vmatprep.subr.bf16.mxu0 %v602
    %707 = vmatpush1.bf16.msra.mxu0 %v601
    %708 = vmatprep.subr.bf16.mxu0 %v598
    %709 = vmatpush1.bf16.msra.mxu0 %v597
    %710 = vmatprep.subr.bf16.mxu0 %v594
    %711 = vmatpush1.bf16.msra.mxu0 %v593
    %712 = vmatprep.subr.bf16.mxu0 0
    %713 = vmatpush2.bf16.msra.mxu0 0
    %714 = vmatprep.subr.bf16.mxu0 0
    %715 = vmatpush2.bf16.msra.mxu0 0
    %716 = vmatprep.subr.bf16.mxu0 0
    %717 = vmatpush2.bf16.msra.mxu0 0
    %718 = vmatprep.subr.bf16.mxu0 0
    %719 = vmatpush2.bf16.msra.mxu0 0
    %720 = vmatprep.subr.bf16.mxu0 0
    %721 = vmatpush2.bf16.msra.mxu0 0
    %722 = vmatprep.subr.bf16.mxu0 0
    %723 = vmatpush2.bf16.msra.mxu0 0
    %724 = vmatprep.subr.bf16.mxu0 0
    %725 = vmatpush2.bf16.msra.mxu0 0
    %726 = vmatprep.subr.bf16.mxu0 0
    %727 = vmatpush2.bf16.msra.mxu0 0
    %728 = vmatprep.mubr.bf16.mxu0 0
    %729 = vmatmul.mubr.bf16.gmra.mxu0 %v462
    %v730 = vpop.f32.mrf.mxu0
    %v731 = vadd.f32 0.0, %v730
    %v732 = vpop.f32.mrf.mxu0
    %v733 = vadd.f32 0.0, %v732
    %v734 = vpop.f32.mrf.mxu0
    %v735 = vpop.f32.mrf.mxu0
    %736 = vdwg.mxu0
    %v737 = vadd.f32 %v458, %v690
    %v738 = vadd.f32 %v459, %v692
    %v739 = vadd.f32 %v460, %v731
    %v740 = vadd.f32 %v461, %v733
    %v741 = vxor.u32 %v737, 2147483648
    %v742 = vmul.f32 %v741, 1.442695
    %v743 = vpow.pop %v742
    %v744 = vadd.f32 %v743, 1.0
    %v745 = vrcp.pop %v744
    %v746 = vmul.f32 1.0, %v745
    %v747 = vxor.u32 %v738, 2147483648
    %v748 = vmul.f32 %v747, 1.442695
    %v749 = vpow.pop %v748
    %v750 = vadd.f32 %v749, 1.0
    %v751 = vrcp.pop %v750
    %v752 = vmul.f32 1.0, %v751
    %v753 = vtanh.pop %v739
    %v754 = vxor.u32 %v740, 2147483648
    %v755 = vmul.f32 %v754, 1.442695
    %v756 = vpow.pop %v755
    %v757 = vadd.f32 %v756, 1.0
    %v758 = vrcp.pop %v757
    %v759 = vmul.f32 1.0, %v758
    %v760 = vmul.f32 %v752, %v457
    %v761 = vmul.f32 %v746, %v753
    %v762 = vadd.f32 %v760, %v761
    %v763 = vtanh.pop %v762
    %v764 = vmul.f32 %v759, %v763
    %765 = vst [vmem:[#allocation2] sm:$0xff] %v764
    %v766 = vld [vmem:[#allocation3 + $0x20] sm:$0xff]
    %v767 = vld [vmem:[#allocation3 + $0x28] sm:$0xff]
    %v768 = vld [vmem:[#allocation3 + $0x30] sm:$0xff]
    %v769 = vld [vmem:[#allocation3 + $0x38] sm:$0xff]
    %v770 = vpack.c.bf16 %v764, %v764
    %v771 = vld [vmem:[#allocation4] sm:$0xff]
    %v772 = vld [vmem:[#allocation4 + $0x8] sm:$0xff]
    %v773 = vld [vmem:[#allocation4 + $0x10] sm:$0xff]
    %v774 = vld [vmem:[#allocation4 + $0x18] sm:$0xff]
    %v775 = vld [vmem:[#allocation4 + $0x20] sm:$0xff]
    %v776 = vld [vmem:[#allocation4 + $0x28] sm:$0xff]
    %v777 = vld [vmem:[#allocation4 + $0x30] sm:$0xff]
    %v778 = vld [vmem:[#allocation4 + $0x38] sm:$0xff]
    %v779 = vld [vmem:[#allocation4 + $0x40] sm:$0xff]
    %v780 = vld [vmem:[#allocation4 + $0x48] sm:$0xff]
    %v781 = vld [vmem:[#allocation4 + $0x50] sm:$0xff]
    %v782 = vld [vmem:[#allocation4 + $0x58] sm:$0xff]
    %v783 = vld [vmem:[#allocation4 + $0x60] sm:$0xff]
    %v784 = vld [vmem:[#allocation4 + $0x68] sm:$0xff]
    %v785 = vld [vmem:[#allocation4 + $0x70] sm:$0xff]
    %v786 = vld [vmem:[#allocation4 + $0x78] sm:$0xff]
    %v787 = vld [vmem:[#allocation4 + $0x80] sm:$0xff]
    %v788 = vld [vmem:[#allocation4 + $0x88] sm:$0xff]
    %v789 = vld [vmem:[#allocation4 + $0x90] sm:$0xff]
    %v790 = vld [vmem:[#allocation4 + $0x98] sm:$0xff]
    %v791 = vld [vmem:[#allocation4 + $0xa0] sm:$0xff]
    %v792 = vld [vmem:[#allocation4 + $0xa8] sm:$0xff]
    %v793 = vld [vmem:[#allocation4 + $0xb0] sm:$0xff]
    %v794 = vld [vmem:[#allocation4 + $0xb8] sm:$0xff]
    %v795 = vld [vmem:[#allocation4 + $0xc0] sm:$0xff]
    %v796 = vld [vmem:[#allocation4 + $0xc8] sm:$0xff]
    %v797 = vld [vmem:[#allocation4 + $0xd0] sm:$0xff]
    %v798 = vld [vmem:[#allocation4 + $0xd8] sm:$0xff]
    %v799 = vld [vmem:[#allocation4 + $0xe0] sm:$0xff]
    %v800 = vld [vmem:[#allocation4 + $0xe8] sm:$0xff]
    %v801 = vld [vmem:[#allocation4 + $0xf0] sm:$0xff]
    %v802 = vld [vmem:[#allocation4 + $0xf8] sm:$0xff]
    %v835 = vunpack.c.l.b16 %v771
    %v836 = vunpack.c.h.b16 %v771
    %v837 = vunpack.c.l.b16 %v772
    %v838 = vunpack.c.h.b16 %v772
    %v839 = vunpack.c.l.b16 %v773
    %v840 = vunpack.c.h.b16 %v773
    %v841 = vunpack.c.l.b16 %v774
    %v842 = vunpack.c.h.b16 %v774
    %v843 = vunpack.c.l.b16 %v775
    %v844 = vunpack.c.h.b16 %v775
    %v845 = vunpack.c.l.b16 %v776
    %v846 = vunpack.c.h.b16 %v776
    %v847 = vunpack.c.l.b16 %v777
    %v848 = vunpack.c.h.b16 %v777
    %v849 = vunpack.c.l.b16 %v778
    %v850 = vunpack.c.h.b16 %v778
    %v851 = vunpack.c.l.b16 %v779
    %v852 = vunpack.c.h.b16 %v779
    %v853 = vunpack.c.l.b16 %v780
    %v854 = vunpack.c.h.b16 %v780
    %v855 = vunpack.c.l.b16 %v781
    %v856 = vunpack.c.h.b16 %v781
    %v857 = vunpack.c.l.b16 %v782
    %v858 = vunpack.c.h.b16 %v782
    %v859 = vunpack.c.l.b16 %v783
    %v860 = vunpack.c.h.b16 %v783
    %v861 = vunpack.c.l.b16 %v784
    %v862 = vunpack.c.h.b16 %v784
    %v863 = vunpack.c.l.b16 %v785
    %v864 = vunpack.c.h.b16 %v785
    %v865 = vunpack.c.l.b16 %v786
    %v866 = vunpack.c.h.b16 %v786
    %v867 = vunpack.c.l.b16 %v787
    %v868 = vunpack.c.h.b16 %v787
    %v869 = vunpack.c.l.b16 %v788
    %v870 = vunpack.c.h.b16 %v788
    %v871 = vunpack.c.l.b16 %v789
    %v872 = vunpack.c.h.b16 %v789
    %v873 = vunpack.c.l.b16 %v790
    %v874 = vunpack.c.h.b16 %v790
    %v875 = vunpack.c.l.b16 %v791
    %v876 = vunpack.c.h.b16 %v791
    %v877 = vunpack.c.l.b16 %v792
    %v878 = vunpack.c.h.b16 %v792
    %v879 = vunpack.c.l.b16 %v793
    %v880 = vunpack.c.h.b16 %v793
    %v881 = vunpack.c.l.b16 %v794
    %v882 = vunpack.c.h.b16 %v794
    %v883 = vunpack.c.l.b16 %v795
    %v884 = vunpack.c.h.b16 %v795
    %v885 = vunpack.c.l.b16 %v796
    %v886 = vunpack.c.h.b16 %v796
    %v887 = vunpack.c.l.b16 %v797
    %v888 = vunpack.c.h.b16 %v797
    %v889 = vunpack.c.l.b16 %v798
    %v890 = vunpack.c.h.b16 %v798
    %v891 = vunpack.c.l.b16 %v799
    %v892 = vunpack.c.h.b16 %v799
    %v893 = vunpack.c.l.b16 %v800
    %v894 = vunpack.c.h.b16 %v800
    %v895 = vunpack.c.l.b16 %v801
    %v896 = vunpack.c.h.b16 %v801
    %v897 = vunpack.c.l.b16 %v802
    %v898 = vunpack.c.h.b16 %v802
    %v899 = vpack.c.b16 %v839, %v835
    %v900 = vpack.c.b16 %v840, %v836
    %v901 = vpack.c.b16 %v841, %v837
    %v902 = vpack.c.b16 %v842, %v838
    %v903 = vpack.c.b16 %v847, %v843
    %v904 = vpack.c.b16 %v848, %v844
    %v905 = vpack.c.b16 %v849, %v845
    %v906 = vpack.c.b16 %v850, %v846
    %v907 = vpack.c.b16 %v855, %v851
    %v908 = vpack.c.b16 %v856, %v852
    %v909 = vpack.c.b16 %v857, %v853
    %v910 = vpack.c.b16 %v858, %v854
    %v911 = vpack.c.b16 %v863, %v859
    %v912 = vpack.c.b16 %v864, %v860
    %v913 = vpack.c.b16 %v865, %v861
    %v914 = vpack.c.b16 %v866, %v862
    %v915 = vpack.c.b16 %v871, %v867
    %v916 = vpack.c.b16 %v872, %v868
    %v917 = vpack.c.b16 %v873, %v869
    %v918 = vpack.c.b16 %v874, %v870
    %v919 = vpack.c.b16 %v879, %v875
    %v920 = vpack.c.b16 %v880, %v876
    %v921 = vpack.c.b16 %v881, %v877
    %v922 = vpack.c.b16 %v882, %v878
    %v923 = vpack.c.b16 %v887, %v883
    %v924 = vpack.c.b16 %v888, %v884
    %v925 = vpack.c.b16 %v889, %v885
    %v926 = vpack.c.b16 %v890, %v886
    %v927 = vpack.c.b16 %v895, %v891
    %v928 = vpack.c.b16 %v896, %v892
    %v929 = vpack.c.b16 %v897, %v893
    %v930 = vpack.c.b16 %v898, %v894
    %963 = vmatprep.subr.bf16.mxu0 %v928
    %964 = vmatpush1.bf16.msra.mxu0 %v927
    %965 = vmatprep.subr.bf16.mxu0 %v924
    %966 = vmatpush1.bf16.msra.mxu0 %v923
    %967 = vmatprep.subr.bf16.mxu0 %v920
    %968 = vmatpush1.bf16.msra.mxu0 %v919
    %969 = vmatprep.subr.bf16.mxu0 %v916
    %970 = vmatpush1.bf16.msra.mxu0 %v915
    %971 = vmatprep.subr.bf16.mxu0 %v912
    %972 = vmatpush1.bf16.msra.mxu0 %v911
    %973 = vmatprep.subr.bf16.mxu0 %v908
    %974 = vmatpush1.bf16.msra.mxu0 %v907
    %975 = vmatprep.subr.bf16.mxu0 %v904
    %976 = vmatpush1.bf16.msra.mxu0 %v903
    %977 = vmatprep.subr.bf16.mxu0 %v900
    %978 = vmatpush1.bf16.msra.mxu0 %v899
    %979 = vmatprep.subr.bf16.mxu0 0
    %980 = vmatpush2.bf16.msra.mxu0 0
    %981 = vmatprep.subr.bf16.mxu0 0
    %982 = vmatpush2.bf16.msra.mxu0 0
    %983 = vmatprep.subr.bf16.mxu0 0
    %984 = vmatpush2.bf16.msra.mxu0 0
    %985 = vmatprep.subr.bf16.mxu0 0
    %986 = vmatpush2.bf16.msra.mxu0 0
    %987 = vmatprep.subr.bf16.mxu0 0
    %988 = vmatpush2.bf16.msra.mxu0 0
    %989 = vmatprep.subr.bf16.mxu0 0
    %990 = vmatpush2.bf16.msra.mxu0 0
    %991 = vmatprep.subr.bf16.mxu0 0
    %992 = vmatpush2.bf16.msra.mxu0 0
    %993 = vmatprep.subr.bf16.mxu0 0
    %994 = vmatpush2.bf16.msra.mxu0 0
    %995 = vmatprep.mubr.bf16.mxu0 0
    %996 = vmatmul.mubr.bf16.gmra.mxu0 %v770
    %v997 = vpop.f32.mrf.mxu0
    %v998 = vadd.f32 0.0, %v997
    %v999 = vpop.f32.mrf.mxu0
    %v1000 = vadd.f32 0.0, %v999
    %v1001 = vpop.f32.mrf.mxu0
    %v1002 = vpop.f32.mrf.mxu0
    %1003 = vdwg.mxu0
    %1004 = vmatprep.subr.bf16.mxu0 %v930
    %1005 = vmatpush1.bf16.msra.mxu0 %v929
    %1006 = vmatprep.subr.bf16.mxu0 %v926
    %1007 = vmatpush1.bf16.msra.mxu0 %v925
    %1008 = vmatprep.subr.bf16.mxu0 %v922
    %1009 = vmatpush1.bf16.msra.mxu0 %v921
    %1010 = vmatprep.subr.bf16.mxu0 %v918
    %1011 = vmatpush1.bf16.msra.mxu0 %v917
    %1012 = vmatprep.subr.bf16.mxu0 %v914
    %1013 = vmatpush1.bf16.msra.mxu0 %v913
    %1014 = vmatprep.subr.bf16.mxu0 %v910
    %1015 = vmatpush1.bf16.msra.mxu0 %v909
    %1016 = vmatprep.subr.bf16.mxu0 %v906
    %1017 = vmatpush1.bf16.msra.mxu0 %v905
    %1018 = vmatprep.subr.bf16.mxu0 %v902
    %1019 = vmatpush1.bf16.msra.mxu0 %v901
    %1020 = vmatprep.subr.bf16.mxu0 0
    %1021 = vmatpush2.bf16.msra.mxu0 0
    %1022 = vmatprep.subr.bf16.mxu0 0
    %1023 = vmatpush2.bf16.msra.mxu0 0
    %1024 = vmatprep.subr.bf16.mxu0 0
    %1025 = vmatpush2.bf16.msra.mxu0 0
    %1026 = vmatprep.subr.bf16.mxu0 0
    %1027 = vmatpush2.bf16.msra.mxu0 0
    %1028 = vmatprep.subr.bf16.mxu0 0
    %1029 = vmatpush2.bf16.msra.mxu0 0
    %1030 = vmatprep.subr.bf16.mxu0 0
    %1031 = vmatpush2.bf16.msra.mxu0 0
    %1032 = vmatprep.subr.bf16.mxu0 0
    %1033 = vmatpush2.bf16.msra.mxu0 0
    %1034 = vmatprep.subr.bf16.mxu0 0
    %1035 = vmatpush2.bf16.msra.mxu0 0
    %1036 = vmatprep.mubr.bf16.mxu0 0
    %1037 = vmatmul.mubr.bf16.gmra.mxu0 %v770
    %v1038 = vpop.f32.mrf.mxu0
    %v1039 = vadd.f32 0.0, %v1038
    %v1040 = vpop.f32.mrf.mxu0
    %v1041 = vadd.f32 0.0, %v1040
    %v1042 = vpop.f32.mrf.mxu0
    %v1043 = vpop.f32.mrf.mxu0
    %1044 = vdwg.mxu0
    %v1045 = vadd.f32 %v766, %v998
    %v1046 = vadd.f32 %v767, %v1000
    %v1047 = vadd.f32 %v768, %v1039
    %v1048 = vadd.f32 %v769, %v1041
    %v1049 = vxor.u32 %v1045, 2147483648
    %v1050 = vmul.f32 %v1049, 1.442695
    %v1051 = vpow.pop %v1050
    %v1052 = vadd.f32 %v1051, 1.0
    %v1053 = vrcp.pop %v1052
    %v1054 = vmul.f32 1.0, %v1053
    %v1055 = vxor.u32 %v1046, 2147483648
    %v1056 = vmul.f32 %v1055, 1.442695
    %v1057 = vpow.pop %v1056
    %v1058 = vadd.f32 %v1057, 1.0
    %v1059 = vrcp.pop %v1058
    %v1060 = vmul.f32 1.0, %v1059
    %v1061 = vtanh.pop %v1047
    %v1062 = vxor.u32 %v1048, 2147483648
    %v1063 = vmul.f32 %v1062, 1.442695
    %v1064 = vpow.pop %v1063
    %v1065 = vadd.f32 %v1064, 1.0
    %v1066 = vrcp.pop %v1065
    %v1067 = vmul.f32 1.0, %v1066
    %v1068 = vmul.f32 %v1060, %v762
    %v1069 = vmul.f32 %v1054, %v1061
    %v1070 = vadd.f32 %v1068, %v1069
    %v1071 = vtanh.pop %v1070
    %v1072 = vmul.f32 %v1067, %v1071
    %s1073 = scalar_lea.vmem [#allocation2], 8
    %1074 = vst [vmem:[%s1073] sm:$0xff] %v1072
    %v1075 = vld [vmem:[#allocation3 + $0x40] sm:$0xff]
    %v1076 = vld [vmem:[#allocation3 + $0x48] sm:$0xff]
    %v1077 = vld [vmem:[#allocation3 + $0x50] sm:$0xff]
    %v1078 = vld [vmem:[#allocation3 + $0x58] sm:$0xff]
    %v1079 = vpack.c.bf16 %v1072, %v1072
    %v1080 = vld [vmem:[#allocation4] sm:$0xff]
    %v1081 = vld [vmem:[#allocation4 + $0x8] sm:$0xff]
    %v1082 = vld [vmem:[#allocation4 + $0x10] sm:$0xff]
    %v1083 = vld [vmem:[#allocation4 + $0x18] sm:$0xff]
    %v1084 = vld [vmem:[#allocation4 + $0x20] sm:$0xff]
    %v1085 = vld [vmem:[#allocation4 + $0x28] sm:$0xff]
    %v1086 = vld [vmem:[#allocation4 + $0x30] sm:$0xff]
    %v1087 = vld [vmem:[#allocation4 + $0x38] sm:$0xff]
    %v1088 = vld [vmem:[#allocation4 + $0x40] sm:$0xff]
    %v1089 = vld [vmem:[#allocation4 + $0x48] sm:$0xff]
    %v1090 = vld [vmem:[#allocation4 + $0x50] sm:$0xff]
    %v1091 = vld [vmem:[#allocation4 + $0x58] sm:$0xff]
    %v1092 = vld [vmem:[#allocation4 + $0x60] sm:$0xff]
    %v1093 = vld [vmem:[#allocation4 + $0x68] sm:$0xff]
    %v1094 = vld [vmem:[#allocation4 + $0x70] sm:$0xff]
    %v1095 = vld [vmem:[#allocation4 + $0x78] sm:$0xff]
    %v1096 = vld [vmem:[#allocation4 + $0x80] sm:$0xff]
    %v1097 = vld [vmem:[#allocation4 + $0x88] sm:$0xff]
    %v1098 = vld [vmem:[#allocation4 + $0x90] sm:$0xff]
    %v1099 = vld [vmem:[#allocation4 + $0x98] sm:$0xff]
    %v1100 = vld [vmem:[#allocation4 + $0xa0] sm:$0xff]
    %v1101 = vld [vmem:[#allocation4 + $0xa8] sm:$0xff]
    %v1102 = vld [vmem:[#allocation4 + $0xb0] sm:$0xff]
    %v1103 = vld [vmem:[#allocation4 + $0xb8] sm:$0xff]
    %v1104 = vld [vmem:[#allocation4 + $0xc0] sm:$0xff]
    %v1105 = vld [vmem:[#allocation4 + $0xc8] sm:$0xff]
    %v1106 = vld [vmem:[#allocation4 + $0xd0] sm:$0xff]
    %v1107 = vld [vmem:[#allocation4 + $0xd8] sm:$0xff]
    %v1108 = vld [vmem:[#allocation4 + $0xe0] sm:$0xff]
    %v1109 = vld [vmem:[#allocation4 + $0xe8] sm:$0xff]
    %v1110 = vld [vmem:[#allocation4 + $0xf0] sm:$0xff]
    %v1111 = vld [vmem:[#allocation4 + $0xf8] sm:$0xff]
    %v1144 = vunpack.c.l.b16 %v1080
    %v1145 = vunpack.c.h.b16 %v1080
    %v1146 = vunpack.c.l.b16 %v1081
    %v1147 = vunpack.c.h.b16 %v1081
    %v1148 = vunpack.c.l.b16 %v1082
    %v1149 = vunpack.c.h.b16 %v1082
    %v1150 = vunpack.c.l.b16 %v1083
    %v1151 = vunpack.c.h.b16 %v1083
    %v1152 = vunpack.c.l.b16 %v1084
    %v1153 = vunpack.c.h.b16 %v1084
    %v1154 = vunpack.c.l.b16 %v1085
    %v1155 = vunpack.c.h.b16 %v1085
    %v1156 = vunpack.c.l.b16 %v1086
    %v1157 = vunpack.c.h.b16 %v1086
    %v1158 = vunpack.c.l.b16 %v1087
    %v1159 = vunpack.c.h.b16 %v1087
    %v1160 = vunpack.c.l.b16 %v1088
    %v1161 = vunpack.c.h.b16 %v1088
    %v1162 = vunpack.c.l.b16 %v1089
    %v1163 = vunpack.c.h.b16 %v1089
    %v1164 = vunpack.c.l.b16 %v1090
    %v1165 = vunpack.c.h.b16 %v1090
    %v1166 = vunpack.c.l.b16 %v1091
    %v1167 = vunpack.c.h.b16 %v1091
    %v1168 = vunpack.c.l.b16 %v1092
    %v1169 = vunpack.c.h.b16 %v1092
    %v1170 = vunpack.c.l.b16 %v1093
    %v1171 = vunpack.c.h.b16 %v1093
    %v1172 = vunpack.c.l.b16 %v1094
    %v1173 = vunpack.c.h.b16 %v1094
    %v1174 = vunpack.c.l.b16 %v1095
    %v1175 = vunpack.c.h.b16 %v1095
    %v1176 = vunpack.c.l.b16 %v1096
    %v1177 = vunpack.c.h.b16 %v1096
    %v1178 = vunpack.c.l.b16 %v1097
    %v1179 = vunpack.c.h.b16 %v1097
    %v1180 = vunpack.c.l.b16 %v1098
    %v1181 = vunpack.c.h.b16 %v1098
    %v1182 = vunpack.c.l.b16 %v1099
    %v1183 = vunpack.c.h.b16 %v1099
    %v1184 = vunpack.c.l.b16 %v1100
    %v1185 = vunpack.c.h.b16 %v1100
    %v1186 = vunpack.c.l.b16 %v1101
    %v1187 = vunpack.c.h.b16 %v1101
    %v1188 = vunpack.c.l.b16 %v1102
    %v1189 = vunpack.c.h.b16 %v1102
    %v1190 = vunpack.c.l.b16 %v1103
    %v1191 = vunpack.c.h.b16 %v1103
    %v1192 = vunpack.c.l.b16 %v1104
    %v1193 = vunpack.c.h.b16 %v1104
    %v1194 = vunpack.c.l.b16 %v1105
    %v1195 = vunpack.c.h.b16 %v1105
    %v1196 = vunpack.c.l.b16 %v1106
    %v1197 = vunpack.c.h.b16 %v1106
    %v1198 = vunpack.c.l.b16 %v1107
    %v1199 = vunpack.c.h.b16 %v1107
    %v1200 = vunpack.c.l.b16 %v1108
    %v1201 = vunpack.c.h.b16 %v1108
    %v1202 = vunpack.c.l.b16 %v1109
    %v1203 = vunpack.c.h.b16 %v1109
    %v1204 = vunpack.c.l.b16 %v1110
    %v1205 = vunpack.c.h.b16 %v1110
    %v1206 = vunpack.c.l.b16 %v1111
    %v1207 = vunpack.c.h.b16 %v1111
    %v1208 = vpack.c.b16 %v1148, %v1144
    %v1209 = vpack.c.b16 %v1149, %v1145
    %v1210 = vpack.c.b16 %v1150, %v1146
    %v1211 = vpack.c.b16 %v1151, %v1147
    %v1212 = vpack.c.b16 %v1156, %v1152
    %v1213 = vpack.c.b16 %v1157, %v1153
    %v1214 = vpack.c.b16 %v1158, %v1154
    %v1215 = vpack.c.b16 %v1159, %v1155
    %v1216 = vpack.c.b16 %v1164, %v1160
    %v1217 = vpack.c.b16 %v1165, %v1161
    %v1218 = vpack.c.b16 %v1166, %v1162
    %v1219 = vpack.c.b16 %v1167, %v1163
    %v1220 = vpack.c.b16 %v1172, %v1168
    %v1221 = vpack.c.b16 %v1173, %v1169
    %v1222 = vpack.c.b16 %v1174, %v1170
    %v1223 = vpack.c.b16 %v1175, %v1171
    %v1224 = vpack.c.b16 %v1180, %v1176
    %v1225 = vpack.c.b16 %v1181, %v1177
    %v1226 = vpack.c.b16 %v1182, %v1178
    %v1227 = vpack.c.b16 %v1183, %v1179
    %v1228 = vpack.c.b16 %v1188, %v1184
    %v1229 = vpack.c.b16 %v1189, %v1185
    %v1230 = vpack.c.b16 %v1190, %v1186
    %v1231 = vpack.c.b16 %v1191, %v1187
    %v1232 = vpack.c.b16 %v1196, %v1192
    %v1233 = vpack.c.b16 %v1197, %v1193
    %v1234 = vpack.c.b16 %v1198, %v1194
    %v1235 = vpack.c.b16 %v1199, %v1195
    %v1236 = vpack.c.b16 %v1204, %v1200
    %v1237 = vpack.c.b16 %v1205, %v1201
    %v1238 = vpack.c.b16 %v1206, %v1202
    %v1239 = vpack.c.b16 %v1207, %v1203
    %1272 = vmatprep.subr.bf16.mxu0 %v1237
    %1273 = vmatpush1.bf16.msra.mxu0 %v1236
    %1274 = vmatprep.subr.bf16.mxu0 %v1233
    %1275 = vmatpush1.bf16.msra.mxu0 %v1232
    %1276 = vmatprep.subr.bf16.mxu0 %v1229
    %1277 = vmatpush1.bf16.msra.mxu0 %v1228
    %1278 = vmatprep.subr.bf16.mxu0 %v1225
    %1279 = vmatpush1.bf16.msra.mxu0 %v1224
    %1280 = vmatprep.subr.bf16.mxu0 %v1221
    %1281 = vmatpush1.bf16.msra.mxu0 %v1220
    %1282 = vmatprep.subr.bf16.mxu0 %v1217
    %1283 = vmatpush1.bf16.msra.mxu0 %v1216
    %1284 = vmatprep.subr.bf16.mxu0 %v1213
    %1285 = vmatpush1.bf16.msra.mxu0 %v1212
    %1286 = vmatprep.subr.bf16.mxu0 %v1209
    %1287 = vmatpush1.bf16.msra.mxu0 %v1208
    %1288 = vmatprep.subr.bf16.mxu0 0
    %1289 = vmatpush2.bf16.msra.mxu0 0
    %1290 = vmatprep.subr.bf16.mxu0 0
    %1291 = vmatpush2.bf16.msra.mxu0 0
    %1292 = vmatprep.subr.bf16.mxu0 0
    %1293 = vmatpush2.bf16.msra.mxu0 0
    %1294 = vmatprep.subr.bf16.mxu0 0
    %1295 = vmatpush2.bf16.msra.mxu0 0
    %1296 = vmatprep.subr.bf16.mxu0 0
    %1297 = vmatpush2.bf16.msra.mxu0 0
    %1298 = vmatprep.subr.bf16.mxu0 0
    %1299 = vmatpush2.bf16.msra.mxu0 0
    %1300 = vmatprep.subr.bf16.mxu0 0
    %1301 = vmatpush2.bf16.msra.mxu0 0
    %1302 = vmatprep.subr.bf16.mxu0 0
    %1303 = vmatpush2.bf16.msra.mxu0 0
    %1304 = vmatprep.mubr.bf16.mxu0 0
    %1305 = vmatmul.mubr.bf16.gmra.mxu0 %v1079
    %v1306 = vpop.f32.mrf.mxu0
    %v1307 = vadd.f32 0.0, %v1306
    %v1308 = vpop.f32.mrf.mxu0
    %v1309 = vadd.f32 0.0, %v1308
    %v1310 = vpop.f32.mrf.mxu0
    %v1311 = vpop.f32.mrf.mxu0
    %1312 = vdwg.mxu0
    %1313 = vmatprep.subr.bf16.mxu0 %v1239
    %1314 = vmatpush1.bf16.msra.mxu0 %v1238
    %1315 = vmatprep.subr.bf16.mxu0 %v1235
    %1316 = vmatpush1.bf16.msra.mxu0 %v1234
    %1317 = vmatprep.subr.bf16.mxu0 %v1231
    %1318 = vmatpush1.bf16.msra.mxu0 %v1230
    %1319 = vmatprep.subr.bf16.mxu0 %v1227
    %1320 = vmatpush1.bf16.msra.mxu0 %v1226
    %1321 = vmatprep.subr.bf16.mxu0 %v1223
    %1322 = vmatpush1.bf16.msra.mxu0 %v1222
    %1323 = vmatprep.subr.bf16.mxu0 %v1219
    %1324 = vmatpush1.bf16.msra.mxu0 %v1218
    %1325 = vmatprep.subr.bf16.mxu0 %v1215
    %1326 = vmatpush1.bf16.msra.mxu0 %v1214
    %1327 = vmatprep.subr.bf16.mxu0 %v1211
    %1328 = vmatpush1.bf16.msra.mxu0 %v1210
    %1329 = vmatprep.subr.bf16.mxu0 0
    %1330 = vmatpush2.bf16.msra.mxu0 0
    %1331 = vmatprep.subr.bf16.mxu0 0
    %1332 = vmatpush2.bf16.msra.mxu0 0
    %1333 = vmatprep.subr.bf16.mxu0 0
    %1334 = vmatpush2.bf16.msra.mxu0 0
    %1335 = vmatprep.subr.bf16.mxu0 0
    %1336 = vmatpush2.bf16.msra.mxu0 0
    %1337 = vmatprep.subr.bf16.mxu0 0
    %1338 = vmatpush2.bf16.msra.mxu0 0
    %1339 = vmatprep.subr.bf16.mxu0 0
    %1340 = vmatpush2.bf16.msra.mxu0 0
    %1341 = vmatprep.subr.bf16.mxu0 0
    %1342 = vmatpush2.bf16.msra.mxu0 0
    %1343 = vmatprep.subr.bf16.mxu0 0
    %1344 = vmatpush2.bf16.msra.mxu0 0
    %1345 = vmatprep.mubr.bf16.mxu0 0
    %1346 = vmatmul.mubr.bf16.gmra.mxu0 %v1079
    %v1347 = vpop.f32.mrf.mxu0
    %v1348 = vadd.f32 0.0, %v1347
    %v1349 = vpop.f32.mrf.mxu0
    %v1350 = vadd.f32 0.0, %v1349
    %v1351 = vpop.f32.mrf.mxu0
    %v1352 = vpop.f32.mrf.mxu0
    %1353 = vdwg.mxu0
    %v1354 = vadd.f32 %v1075, %v1307
    %v1355 = vadd.f32 %v1076, %v1309
    %v1356 = vadd.f32 %v1077, %v1348
    %v1357 = vadd.f32 %v1078, %v1350
    %v1358 = vxor.u32 %v1354, 2147483648
    %v1359 = vmul.f32 %v1358, 1.442695
    %v1360 = vpow.pop %v1359
    %v1361 = vadd.f32 %v1360, 1.0
    %v1362 = vrcp.pop %v1361
    %v1363 = vmul.f32 1.0, %v1362
    %v1364 = vxor.u32 %v1355, 2147483648
    %v1365 = vmul.f32 %v1364, 1.442695
    %v1366 = vpow.pop %v1365
    %v1367 = vadd.f32 %v1366, 1.0
    %v1368 = vrcp.pop %v1367
    %v1369 = vmul.f32 1.0, %v1368
    %v1370 = vtanh.pop %v1356
    %v1371 = vxor.u32 %v1357, 2147483648
    %v1372 = vmul.f32 %v1371, 1.442695
    %v1373 = vpow.pop %v1372
    %v1374 = vadd.f32 %v1373, 1.0
    %v1375 = vrcp.pop %v1374
    %v1376 = vmul.f32 1.0, %v1375
    %v1377 = vmul.f32 %v1369, %v1070
    %v1378 = vmul.f32 %v1363, %v1370
    %v1379 = vadd.f32 %v1377, %v1378
    %v1380 = vtanh.pop %v1379
    %v1381 = vmul.f32 %v1376, %v1380
    %s1382 = scalar_lea.vmem [#allocation2], 16
    %1383 = vst [vmem:[%s1382] sm:$0xff] %v1381
    %v1384 = vld [vmem:[#allocation3 + $0x60] sm:$0xff]
    %v1385 = vld [vmem:[#allocation3 + $0x68] sm:$0xff]
    %v1386 = vld [vmem:[#allocation3 + $0x70] sm:$0xff]
    %v1387 = vld [vmem:[#allocation3 + $0x78] sm:$0xff]
    %v1388 = vpack.c.bf16 %v1381, %v1381
    %v1389 = vld [vmem:[#allocation4] sm:$0xff]
    %v1390 = vld [vmem:[#allocation4 + $0x8] sm:$0xff]
    %v1391 = vld [vmem:[#allocation4 + $0x10] sm:$0xff]
    %v1392 = vld [vmem:[#allocation4 + $0x18] sm:$0xff]
    %v1393 = vld [vmem:[#allocation4 + $0x20] sm:$0xff]
    %v1394 = vld [vmem:[#allocation4 + $0x28] sm:$0xff]
    %v1395 = vld [vmem:[#allocation4 + $0x30] sm:$0xff]
    %v1396 = vld [vmem:[#allocation4 + $0x38] sm:$0xff]
    %v1397 = vld [vmem:[#allocation4 + $0x40] sm:$0xff]
    %v1398 = vld [vmem:[#allocation4 + $0x48] sm:$0xff]
    %v1399 = vld [vmem:[#allocation4 + $0x50] sm:$0xff]
    %v1400 = vld [vmem:[#allocation4 + $0x58] sm:$0xff]
    %v1401 = vld [vmem:[#allocation4 + $0x60] sm:$0xff]
    %v1402 = vld [vmem:[#allocation4 + $0x68] sm:$0xff]
    %v1403 = vld [vmem:[#allocation4 + $0x70] sm:$0xff]
    %v1404 = vld [vmem:[#allocation4 + $0x78] sm:$0xff]
    %v1405 = vld [vmem:[#allocation4 + $0x80] sm:$0xff]
    %v1406 = vld [vmem:[#allocation4 + $0x88] sm:$0xff]
    %v1407 = vld [vmem:[#allocation4 + $0x90] sm:$0xff]
    %v1408 = vld [vmem:[#allocation4 + $0x98] sm:$0xff]
    %v1409 = vld [vmem:[#allocation4 + $0xa0] sm:$0xff]
    %v1410 = vld [vmem:[#allocation4 + $0xa8] sm:$0xff]
    %v1411 = vld [vmem:[#allocation4 + $0xb0] sm:$0xff]
    %v1412 = vld [vmem:[#allocation4 + $0xb8] sm:$0xff]
    %v1413 = vld [vmem:[#allocation4 + $0xc0] sm:$0xff]
    %v1414 = vld [vmem:[#allocation4 + $0xc8] sm:$0xff]
    %v1415 = vld [vmem:[#allocation4 + $0xd0] sm:$0xff]
    %v1416 = vld [vmem:[#allocation4 + $0xd8] sm:$0xff]
    %v1417 = vld [vmem:[#allocation4 + $0xe0] sm:$0xff]
    %v1418 = vld [vmem:[#allocation4 + $0xe8] sm:$0xff]
    %v1419 = vld [vmem:[#allocation4 + $0xf0] sm:$0xff]
    %v1420 = vld [vmem:[#allocation4 + $0xf8] sm:$0xff]
    %v1453 = vunpack.c.l.b16 %v1389
    %v1454 = vunpack.c.h.b16 %v1389
    %v1455 = vunpack.c.l.b16 %v1390
    %v1456 = vunpack.c.h.b16 %v1390
    %v1457 = vunpack.c.l.b16 %v1391
    %v1458 = vunpack.c.h.b16 %v1391
    %v1459 = vunpack.c.l.b16 %v1392
    %v1460 = vunpack.c.h.b16 %v1392
    %v1461 = vunpack.c.l.b16 %v1393
    %v1462 = vunpack.c.h.b16 %v1393
    %v1463 = vunpack.c.l.b16 %v1394
    %v1464 = vunpack.c.h.b16 %v1394
    %v1465 = vunpack.c.l.b16 %v1395
    %v1466 = vunpack.c.h.b16 %v1395
    %v1467 = vunpack.c.l.b16 %v1396
    %v1468 = vunpack.c.h.b16 %v1396
    %v1469 = vunpack.c.l.b16 %v1397
    %v1470 = vunpack.c.h.b16 %v1397
    %v1471 = vunpack.c.l.b16 %v1398
    %v1472 = vunpack.c.h.b16 %v1398
    %v1473 = vunpack.c.l.b16 %v1399
    %v1474 = vunpack.c.h.b16 %v1399
    %v1475 = vunpack.c.l.b16 %v1400
    %v1476 = vunpack.c.h.b16 %v1400
    %v1477 = vunpack.c.l.b16 %v1401
    %v1478 = vunpack.c.h.b16 %v1401
    %v1479 = vunpack.c.l.b16 %v1402
    %v1480 = vunpack.c.h.b16 %v1402
    %v1481 = vunpack.c.l.b16 %v1403
    %v1482 = vunpack.c.h.b16 %v1403
    %v1483 = vunpack.c.l.b16 %v1404
    %v1484 = vunpack.c.h.b16 %v1404
    %v1485 = vunpack.c.l.b16 %v1405
    %v1486 = vunpack.c.h.b16 %v1405
    %v1487 = vunpack.c.l.b16 %v1406
    %v1488 = vunpack.c.h.b16 %v1406
    %v1489 = vunpack.c.l.b16 %v1407
    %v1490 = vunpack.c.h.b16 %v1407
    %v1491 = vunpack.c.l.b16 %v1408
    %v1492 = vunpack.c.h.b16 %v1408
    %v1493 = vunpack.c.l.b16 %v1409
    %v1494 = vunpack.c.h.b16 %v1409
    %v1495 = vunpack.c.l.b16 %v1410
    %v1496 = vunpack.c.h.b16 %v1410
    %v1497 = vunpack.c.l.b16 %v1411
    %v1498 = vunpack.c.h.b16 %v1411
    %v1499 = vunpack.c.l.b16 %v1412
    %v1500 = vunpack.c.h.b16 %v1412
    %v1501 = vunpack.c.l.b16 %v1413
    %v1502 = vunpack.c.h.b16 %v1413
    %v1503 = vunpack.c.l.b16 %v1414
    %v1504 = vunpack.c.h.b16 %v1414
    %v1505 = vunpack.c.l.b16 %v1415
    %v1506 = vunpack.c.h.b16 %v1415
    %v1507 = vunpack.c.l.b16 %v1416
    %v1508 = vunpack.c.h.b16 %v1416
    %v1509 = vunpack.c.l.b16 %v1417
    %v1510 = vunpack.c.h.b16 %v1417
    %v1511 = vunpack.c.l.b16 %v1418
    %v1512 = vunpack.c.h.b16 %v1418
    %v1513 = vunpack.c.l.b16 %v1419
    %v1514 = vunpack.c.h.b16 %v1419
    %v1515 = vunpack.c.l.b16 %v1420
    %v1516 = vunpack.c.h.b16 %v1420
    %v1517 = vpack.c.b16 %v1457, %v1453
    %v1518 = vpack.c.b16 %v1458, %v1454
    %v1519 = vpack.c.b16 %v1459, %v1455
    %v1520 = vpack.c.b16 %v1460, %v1456
    %v1521 = vpack.c.b16 %v1465, %v1461
    %v1522 = vpack.c.b16 %v1466, %v1462
    %v1523 = vpack.c.b16 %v1467, %v1463
    %v1524 = vpack.c.b16 %v1468, %v1464
    %v1525 = vpack.c.b16 %v1473, %v1469
    %v1526 = vpack.c.b16 %v1474, %v1470
    %v1527 = vpack.c.b16 %v1475, %v1471
    %v1528 = vpack.c.b16 %v1476, %v1472
    %v1529 = vpack.c.b16 %v1481, %v1477
    %v1530 = vpack.c.b16 %v1482, %v1478
    %v1531 = vpack.c.b16 %v1483, %v1479
    %v1532 = vpack.c.b16 %v1484, %v1480
    %v1533 = vpack.c.b16 %v1489, %v1485
    %v1534 = vpack.c.b16 %v1490, %v1486
    %v1535 = vpack.c.b16 %v1491, %v1487
    %v1536 = vpack.c.b16 %v1492, %v1488
    %v1537 = vpack.c.b16 %v1497, %v1493
    %v1538 = vpack.c.b16 %v1498, %v1494
    %v1539 = vpack.c.b16 %v1499, %v1495
    %v1540 = vpack.c.b16 %v1500, %v1496
    %v1541 = vpack.c.b16 %v1505, %v1501
    %v1542 = vpack.c.b16 %v1506, %v1502
    %v1543 = vpack.c.b16 %v1507, %v1503
    %v1544 = vpack.c.b16 %v1508, %v1504
    %v1545 = vpack.c.b16 %v1513, %v1509
    %v1546 = vpack.c.b16 %v1514, %v1510
    %v1547 = vpack.c.b16 %v1515, %v1511
    %v1548 = vpack.c.b16 %v1516, %v1512
    %1581 = vmatprep.subr.bf16.mxu0 %v1546
    %1582 = vmatpush1.bf16.msra.mxu0 %v1545
    %1583 = vmatprep.subr.bf16.mxu0 %v1542
    %1584 = vmatpush1.bf16.msra.mxu0 %v1541
    %1585 = vmatprep.subr.bf16.mxu0 %v1538
    %1586 = vmatpush1.bf16.msra.mxu0 %v1537
    %1587 = vmatprep.subr.bf16.mxu0 %v1534
    %1588 = vmatpush1.bf16.msra.mxu0 %v1533
    %1589 = vmatprep.subr.bf16.mxu0 %v1530
    %1590 = vmatpush1.bf16.msra.mxu0 %v1529
    %1591 = vmatprep.subr.bf16.mxu0 %v1526
    %1592 = vmatpush1.bf16.msra.mxu0 %v1525
    %1593 = vmatprep.subr.bf16.mxu0 %v1522
    %1594 = vmatpush1.bf16.msra.mxu0 %v1521
    %1595 = vmatprep.subr.bf16.mxu0 %v1518
    %1596 = vmatpush1.bf16.msra.mxu0 %v1517
    %1597 = vmatprep.subr.bf16.mxu0 0
    %1598 = vmatpush2.bf16.msra.mxu0 0
    %1599 = vmatprep.subr.bf16.mxu0 0
    %1600 = vmatpush2.bf16.msra.mxu0 0
    %1601 = vmatprep.subr.bf16.mxu0 0
    %1602 = vmatpush2.bf16.msra.mxu0 0
    %1603 = vmatprep.subr.bf16.mxu0 0
    %1604 = vmatpush2.bf16.msra.mxu0 0
    %1605 = vmatprep.subr.bf16.mxu0 0
    %1606 = vmatpush2.bf16.msra.mxu0 0
    %1607 = vmatprep.subr.bf16.mxu0 0
    %1608 = vmatpush2.bf16.msra.mxu0 0
    %1609 = vmatprep.subr.bf16.mxu0 0
    %1610 = vmatpush2.bf16.msra.mxu0 0
    %1611 = vmatprep.subr.bf16.mxu0 0
    %1612 = vmatpush2.bf16.msra.mxu0 0
    %1613 = vmatprep.mubr.bf16.mxu0 0
    %1614 = vmatmul.mubr.bf16.gmra.mxu0 %v1388
    %v1615 = vpop.f32.mrf.mxu0
    %v1616 = vadd.f32 0.0, %v1615
    %v1617 = vpop.f32.mrf.mxu0
    %v1618 = vadd.f32 0.0, %v1617
    %v1619 = vpop.f32.mrf.mxu0
    %v1620 = vpop.f32.mrf.mxu0
    %1621 = vdwg.mxu0
    %1622 = vmatprep.subr.bf16.mxu0 %v1548
    %1623 = vmatpush1.bf16.msra.mxu0 %v1547
    %1624 = vmatprep.subr.bf16.mxu0 %v1544
    %1625 = vmatpush1.bf16.msra.mxu0 %v1543
    %1626 = vmatprep.subr.bf16.mxu0 %v1540
    %1627 = vmatpush1.bf16.msra.mxu0 %v1539
    %1628 = vmatprep.subr.bf16.mxu0 %v1536
    %1629 = vmatpush1.bf16.msra.mxu0 %v1535
    %1630 = vmatprep.subr.bf16.mxu0 %v1532
    %1631 = vmatpush1.bf16.msra.mxu0 %v1531
    %1632 = vmatprep.subr.bf16.mxu0 %v1528
    %1633 = vmatpush1.bf16.msra.mxu0 %v1527
    %1634 = vmatprep.subr.bf16.mxu0 %v1524
    %1635 = vmatpush1.bf16.msra.mxu0 %v1523
    %1636 = vmatprep.subr.bf16.mxu0 %v1520
    %1637 = vmatpush1.bf16.msra.mxu0 %v1519
    %1638 = vmatprep.subr.bf16.mxu0 0
    %1639 = vmatpush2.bf16.msra.mxu0 0
    %1640 = vmatprep.subr.bf16.mxu0 0
    %1641 = vmatpush2.bf16.msra.mxu0 0
    %1642 = vmatprep.subr.bf16.mxu0 0
    %1643 = vmatpush2.bf16.msra.mxu0 0
    %1644 = vmatprep.subr.bf16.mxu0 0
    %1645 = vmatpush2.bf16.msra.mxu0 0
    %1646 = vmatprep.subr.bf16.mxu0 0
    %1647 = vmatpush2.bf16.msra.mxu0 0
    %1648 = vmatprep.subr.bf16.mxu0 0
    %1649 = vmatpush2.bf16.msra.mxu0 0
    %1650 = vmatprep.subr.bf16.mxu0 0
    %1651 = vmatpush2.bf16.msra.mxu0 0
    %1652 = vmatprep.subr.bf16.mxu0 0
    %1653 = vmatpush2.bf16.msra.mxu0 0
    %1654 = vmatprep.mubr.bf16.mxu0 0
    %1655 = vmatmul.mubr.bf16.gmra.mxu0 %v1388
    %v1656 = vpop.f32.mrf.mxu0
    %v1657 = vadd.f32 0.0, %v1656
    %v1658 = vpop.f32.mrf.mxu0
    %v1659 = vadd.f32 0.0, %v1658
    %v1660 = vpop.f32.mrf.mxu0
    %v1661 = vpop.f32.mrf.mxu0
    %1662 = vdwg.mxu0
    %v1663 = vadd.f32 %v1384, %v1616
    %v1664 = vadd.f32 %v1385, %v1618
    %v1665 = vadd.f32 %v1386, %v1657
    %v1666 = vadd.f32 %v1387, %v1659
    %v1667 = vxor.u32 %v1663, 2147483648
    %v1668 = vmul.f32 %v1667, 1.442695
    %v1669 = vpow.pop %v1668
    %v1670 = vadd.f32 %v1669, 1.0
    %v1671 = vrcp.pop %v1670
    %v1672 = vmul.f32 1.0, %v1671
    %v1673 = vxor.u32 %v1664, 2147483648
    %v1674 = vmul.f32 %v1673, 1.442695
    %v1675 = vpow.pop %v1674
    %v1676 = vadd.f32 %v1675, 1.0
    %v1677 = vrcp.pop %v1676
    %v1678 = vmul.f32 1.0, %v1677
    %v1679 = vtanh.pop %v1665
    %v1680 = vxor.u32 %v1666, 2147483648
    %v1681 = vmul.f32 %v1680, 1.442695
    %v1682 = vpow.pop %v1681
    %v1683 = vadd.f32 %v1682, 1.0
    %v1684 = vrcp.pop %v1683
    %v1685 = vmul.f32 1.0, %v1684
    %v1686 = vmul.f32 %v1678, %v1379
    %v1687 = vmul.f32 %v1672, %v1679
    %v1688 = vadd.f32 %v1686, %v1687
    %v1689 = vtanh.pop %v1688
    %v1690 = vmul.f32 %v1685, %v1689
    %s1691 = scalar_lea.vmem [#allocation2], 24
    %1692 = vst [vmem:[%s1691] sm:$0xff] %v1690
    %v1693 = vld [vmem:[#allocation3 + $0x80] sm:$0xff]
    %v1694 = vld [vmem:[#allocation3 + $0x88] sm:$0xff]
    %v1695 = vld [vmem:[#allocation3 + $0x90] sm:$0xff]
    %v1696 = vld [vmem:[#allocation3 + $0x98] sm:$0xff]
    %v1697 = vpack.c.bf16 %v1690, %v1690
    %v1698 = vld [vmem:[#allocation4] sm:$0xff]
    %v1699 = vld [vmem:[#allocation4 + $0x8] sm:$0xff]
    %v1700 = vld [vmem:[#allocation4 + $0x10] sm:$0xff]
    %v1701 = vld [vmem:[#allocation4 + $0x18] sm:$0xff]
    %v1702 = vld [vmem:[#allocation4 + $0x20] sm:$0xff]
    %v1703 = vld [vmem:[#allocation4 + $0x28] sm:$0xff]
    %v1704 = vld [vmem:[#allocation4 + $0x30] sm:$0xff]
    %v1705 = vld [vmem:[#allocation4 + $0x38] sm:$0xff]
    %v1706 = vld [vmem:[#allocation4 + $0x40] sm:$0xff]
    %v1707 = vld [vmem:[#allocation4 + $0x48] sm:$0xff]
    %v1708 = vld [vmem:[#allocation4 + $0x50] sm:$0xff]
    %v1709 = vld [vmem:[#allocation4 + $0x58] sm:$0xff]
    %v1710 = vld [vmem:[#allocation4 + $0x60] sm:$0xff]
    %v1711 = vld [vmem:[#allocation4 + $0x68] sm:$0xff]
    %v1712 = vld [vmem:[#allocation4 + $0x70] sm:$0xff]
    %v1713 = vld [vmem:[#allocation4 + $0x78] sm:$0xff]
    %v1714 = vld [vmem:[#allocation4 + $0x80] sm:$0xff]
    %v1715 = vld [vmem:[#allocation4 + $0x88] sm:$0xff]
    %v1716 = vld [vmem:[#allocation4 + $0x90] sm:$0xff]
    %v1717 = vld [vmem:[#allocation4 + $0x98] sm:$0xff]
    %v1718 = vld [vmem:[#allocation4 + $0xa0] sm:$0xff]
    %v1719 = vld [vmem:[#allocation4 + $0xa8] sm:$0xff]
    %v1720 = vld [vmem:[#allocation4 + $0xb0] sm:$0xff]
    %v1721 = vld [vmem:[#allocation4 + $0xb8] sm:$0xff]
    %v1722 = vld [vmem:[#allocation4 + $0xc0] sm:$0xff]
    %v1723 = vld [vmem:[#allocation4 + $0xc8] sm:$0xff]
    %v1724 = vld [vmem:[#allocation4 + $0xd0] sm:$0xff]
    %v1725 = vld [vmem:[#allocation4 + $0xd8] sm:$0xff]
    %v1726 = vld [vmem:[#allocation4 + $0xe0] sm:$0xff]
    %v1727 = vld [vmem:[#allocation4 + $0xe8] sm:$0xff]
    %v1728 = vld [vmem:[#allocation4 + $0xf0] sm:$0xff]
    %v1729 = vld [vmem:[#allocation4 + $0xf8] sm:$0xff]
    %v1762 = vunpack.c.l.b16 %v1698
    %v1763 = vunpack.c.h.b16 %v1698
    %v1764 = vunpack.c.l.b16 %v1699
    %v1765 = vunpack.c.h.b16 %v1699
    %v1766 = vunpack.c.l.b16 %v1700
    %v1767 = vunpack.c.h.b16 %v1700
    %v1768 = vunpack.c.l.b16 %v1701
    %v1769 = vunpack.c.h.b16 %v1701
    %v1770 = vunpack.c.l.b16 %v1702
    %v1771 = vunpack.c.h.b16 %v1702
    %v1772 = vunpack.c.l.b16 %v1703
    %v1773 = vunpack.c.h.b16 %v1703
    %v1774 = vunpack.c.l.b16 %v1704
    %v1775 = vunpack.c.h.b16 %v1704
    %v1776 = vunpack.c.l.b16 %v1705
    %v1777 = vunpack.c.h.b16 %v1705
    %v1778 = vunpack.c.l.b16 %v1706
    %v1779 = vunpack.c.h.b16 %v1706
    %v1780 = vunpack.c.l.b16 %v1707
    %v1781 = vunpack.c.h.b16 %v1707
    %v1782 = vunpack.c.l.b16 %v1708
    %v1783 = vunpack.c.h.b16 %v1708
    %v1784 = vunpack.c.l.b16 %v1709
    %v1785 = vunpack.c.h.b16 %v1709
    %v1786 = vunpack.c.l.b16 %v1710
    %v1787 = vunpack.c.h.b16 %v1710
    %v1788 = vunpack.c.l.b16 %v1711
    %v1789 = vunpack.c.h.b16 %v1711
    %v1790 = vunpack.c.l.b16 %v1712
    %v1791 = vunpack.c.h.b16 %v1712
    %v1792 = vunpack.c.l.b16 %v1713
    %v1793 = vunpack.c.h.b16 %v1713
    %v1794 = vunpack.c.l.b16 %v1714
    %v1795 = vunpack.c.h.b16 %v1714
    %v1796 = vunpack.c.l.b16 %v1715
    %v1797 = vunpack.c.h.b16 %v1715
    %v1798 = vunpack.c.l.b16 %v1716
    %v1799 = vunpack.c.h.b16 %v1716
    %v1800 = vunpack.c.l.b16 %v1717
    %v1801 = vunpack.c.h.b16 %v1717
    %v1802 = vunpack.c.l.b16 %v1718
    %v1803 = vunpack.c.h.b16 %v1718
    %v1804 = vunpack.c.l.b16 %v1719
    %v1805 = vunpack.c.h.b16 %v1719
    %v1806 = vunpack.c.l.b16 %v1720
    %v1807 = vunpack.c.h.b16 %v1720
    %v1808 = vunpack.c.l.b16 %v1721
    %v1809 = vunpack.c.h.b16 %v1721
    %v1810 = vunpack.c.l.b16 %v1722
    %v1811 = vunpack.c.h.b16 %v1722
    %v1812 = vunpack.c.l.b16 %v1723
    %v1813 = vunpack.c.h.b16 %v1723
    %v1814 = vunpack.c.l.b16 %v1724
    %v1815 = vunpack.c.h.b16 %v1724
    %v1816 = vunpack.c.l.b16 %v1725
    %v1817 = vunpack.c.h.b16 %v1725
    %v1818 = vunpack.c.l.b16 %v1726
    %v1819 = vunpack.c.h.b16 %v1726
    %v1820 = vunpack.c.l.b16 %v1727
    %v1821 = vunpack.c.h.b16 %v1727
    %v1822 = vunpack.c.l.b16 %v1728
    %v1823 = vunpack.c.h.b16 %v1728
    %v1824 = vunpack.c.l.b16 %v1729
    %v1825 = vunpack.c.h.b16 %v1729
    %v1826 = vpack.c.b16 %v1766, %v1762
    %v1827 = vpack.c.b16 %v1767, %v1763
    %v1828 = vpack.c.b16 %v1768, %v1764
    %v1829 = vpack.c.b16 %v1769, %v1765
    %v1830 = vpack.c.b16 %v1774, %v1770
    %v1831 = vpack.c.b16 %v1775, %v1771
    %v1832 = vpack.c.b16 %v1776, %v1772
    %v1833 = vpack.c.b16 %v1777, %v1773
    %v1834 = vpack.c.b16 %v1782, %v1778
    %v1835 = vpack.c.b16 %v1783, %v1779
    %v1836 = vpack.c.b16 %v1784, %v1780
    %v1837 = vpack.c.b16 %v1785, %v1781
    %v1838 = vpack.c.b16 %v1790, %v1786
    %v1839 = vpack.c.b16 %v1791, %v1787
    %v1840 = vpack.c.b16 %v1792, %v1788
    %v1841 = vpack.c.b16 %v1793, %v1789
    %v1842 = vpack.c.b16 %v1798, %v1794
    %v1843 = vpack.c.b16 %v1799, %v1795
    %v1844 = vpack.c.b16 %v1800, %v1796
    %v1845 = vpack.c.b16 %v1801, %v1797
    %v1846 = vpack.c.b16 %v1806, %v1802
    %v1847 = vpack.c.b16 %v1807, %v1803
    %v1848 = vpack.c.b16 %v1808, %v1804
    %v1849 = vpack.c.b16 %v1809, %v1805
    %v1850 = vpack.c.b16 %v1814, %v1810
    %v1851 = vpack.c.b16 %v1815, %v1811
    %v1852 = vpack.c.b16 %v1816, %v1812
    %v1853 = vpack.c.b16 %v1817, %v1813
    %v1854 = vpack.c.b16 %v1822, %v1818
    %v1855 = vpack.c.b16 %v1823, %v1819
    %v1856 = vpack.c.b16 %v1824, %v1820
    %v1857 = vpack.c.b16 %v1825, %v1821
    %1890 = vmatprep.subr.bf16.mxu0 %v1855
    %1891 = vmatpush1.bf16.msra.mxu0 %v1854
    %1892 = vmatprep.subr.bf16.mxu0 %v1851
    %1893 = vmatpush1.bf16.msra.mxu0 %v1850
    %1894 = vmatprep.subr.bf16.mxu0 %v1847
    %1895 = vmatpush1.bf16.msra.mxu0 %v1846
    %1896 = vmatprep.subr.bf16.mxu0 %v1843
    %1897 = vmatpush1.bf16.msra.mxu0 %v1842
    %1898 = vmatprep.subr.bf16.mxu0 %v1839
    %1899 = vmatpush1.bf16.msra.mxu0 %v1838
    %1900 = vmatprep.subr.bf16.mxu0 %v1835
    %1901 = vmatpush1.bf16.msra.mxu0 %v1834
    %1902 = vmatprep.subr.bf16.mxu0 %v1831
    %1903 = vmatpush1.bf16.msra.mxu0 %v1830
    %1904 = vmatprep.subr.bf16.mxu0 %v1827
    %1905 = vmatpush1.bf16.msra.mxu0 %v1826
    %1906 = vmatprep.subr.bf16.mxu0 0
    %1907 = vmatpush2.bf16.msra.mxu0 0
    %1908 = vmatprep.subr.bf16.mxu0 0
    %1909 = vmatpush2.bf16.msra.mxu0 0
    %1910 = vmatprep.subr.bf16.mxu0 0
    %1911 = vmatpush2.bf16.msra.mxu0 0
    %1912 = vmatprep.subr.bf16.mxu0 0
    %1913 = vmatpush2.bf16.msra.mxu0 0
    %1914 = vmatprep.subr.bf16.mxu0 0
    %1915 = vmatpush2.bf16.msra.mxu0 0
    %1916 = vmatprep.subr.bf16.mxu0 0
    %1917 = vmatpush2.bf16.msra.mxu0 0
    %1918 = vmatprep.subr.bf16.mxu0 0
    %1919 = vmatpush2.bf16.msra.mxu0 0
    %1920 = vmatprep.subr.bf16.mxu0 0
    %1921 = vmatpush2.bf16.msra.mxu0 0
    %1922 = vmatprep.mubr.bf16.mxu0 0
    %1923 = vmatmul.mubr.bf16.gmra.mxu0 %v1697
    %v1924 = vpop.f32.mrf.mxu0
    %v1925 = vadd.f32 0.0, %v1924
    %v1926 = vpop.f32.mrf.mxu0
    %v1927 = vadd.f32 0.0, %v1926
    %v1928 = vpop.f32.mrf.mxu0
    %v1929 = vpop.f32.mrf.mxu0
    %1930 = vdwg.mxu0
    %1931 = vmatprep.subr.bf16.mxu0 %v1857
    %1932 = vmatpush1.bf16.msra.mxu0 %v1856
    %1933 = vmatprep.subr.bf16.mxu0 %v1853
    %1934 = vmatpush1.bf16.msra.mxu0 %v1852
    %1935 = vmatprep.subr.bf16.mxu0 %v1849
    %1936 = vmatpush1.bf16.msra.mxu0 %v1848
    %1937 = vmatprep.subr.bf16.mxu0 %v1845
    %1938 = vmatpush1.bf16.msra.mxu0 %v1844
    %1939 = vmatprep.subr.bf16.mxu0 %v1841
    %1940 = vmatpush1.bf16.msra.mxu0 %v1840
    %1941 = vmatprep.subr.bf16.mxu0 %v1837
    %1942 = vmatpush1.bf16.msra.mxu0 %v1836
    %1943 = vmatprep.subr.bf16.mxu0 %v1833
    %1944 = vmatpush1.bf16.msra.mxu0 %v1832
    %1945 = vmatprep.subr.bf16.mxu0 %v1829
    %1946 = vmatpush1.bf16.msra.mxu0 %v1828
    %1947 = vmatprep.subr.bf16.mxu0 0
    %1948 = vmatpush2.bf16.msra.mxu0 0
    %1949 = vmatprep.subr.bf16.mxu0 0
    %1950 = vmatpush2.bf16.msra.mxu0 0
    %1951 = vmatprep.subr.bf16.mxu0 0
    %1952 = vmatpush2.bf16.msra.mxu0 0
    %1953 = vmatprep.subr.bf16.mxu0 0
    %1954 = vmatpush2.bf16.msra.mxu0 0
    %1955 = vmatprep.subr.bf16.mxu0 0
    %1956 = vmatpush2.bf16.msra.mxu0 0
    %1957 = vmatprep.subr.bf16.mxu0 0
    %1958 = vmatpush2.bf16.msra.mxu0 0
    %1959 = vmatprep.subr.bf16.mxu0 0
    %1960 = vmatpush2.bf16.msra.mxu0 0
    %1961 = vmatprep.subr.bf16.mxu0 0
    %1962 = vmatpush2.bf16.msra.mxu0 0
    %1963 = vmatprep.mubr.bf16.mxu0 0
    %1964 = vmatmul.mubr.bf16.gmra.mxu0 %v1697
    %v1965 = vpop.f32.mrf.mxu0
    %v1966 = vadd.f32 0.0, %v1965
    %v1967 = vpop.f32.mrf.mxu0
    %v1968 = vadd.f32 0.0, %v1967
    %v1969 = vpop.f32.mrf.mxu0
    %v1970 = vpop.f32.mrf.mxu0
    %1971 = vdwg.mxu0
    %v1972 = vadd.f32 %v1693, %v1925
    %v1973 = vadd.f32 %v1694, %v1927
    %v1974 = vadd.f32 %v1695, %v1966
    %v1975 = vadd.f32 %v1696, %v1968
    %v1976 = vxor.u32 %v1972, 2147483648
    %v1977 = vmul.f32 %v1976, 1.442695
    %v1978 = vpow.pop %v1977
    %v1979 = vadd.f32 %v1978, 1.0
    %v1980 = vrcp.pop %v1979
    %v1981 = vmul.f32 1.0, %v1980
    %v1982 = vxor.u32 %v1973, 2147483648
    %v1983 = vmul.f32 %v1982, 1.442695
    %v1984 = vpow.pop %v1983
    %v1985 = vadd.f32 %v1984, 1.0
    %v1986 = vrcp.pop %v1985
    %v1987 = vmul.f32 1.0, %v1986
    %v1988 = vtanh.pop %v1974
    %v1989 = vxor.u32 %v1975, 2147483648
    %v1990 = vmul.f32 %v1989, 1.442695
    %v1991 = vpow.pop %v1990
    %v1992 = vadd.f32 %v1991, 1.0
    %v1993 = vrcp.pop %v1992
    %v1994 = vmul.f32 1.0, %v1993
    %v1995 = vmul.f32 %v1987, %v1688
    %v1996 = vmul.f32 %v1981, %v1988
    %v1997 = vadd.f32 %v1995, %v1996
    %v1998 = vtanh.pop %v1997
    %v1999 = vmul.f32 %v1994, %v1998
    %s2000 = scalar_lea.vmem [#allocation2], 32
    %2001 = vst [vmem:[%s2000] sm:$0xff] %v1999
    %v2002 = vld [vmem:[#allocation3 + $0xa0] sm:$0xff]
    %v2003 = vld [vmem:[#allocation3 + $0xa8] sm:$0xff]
    %v2004 = vld [vmem:[#allocation3 + $0xb0] sm:$0xff]
    %v2005 = vld [vmem:[#allocation3 + $0xb8] sm:$0xff]
    %v2006 = vpack.c.bf16 %v1999, %v1999
    %v2007 = vld [vmem:[#allocation4] sm:$0xff]
    %v2008 = vld [vmem:[#allocation4 + $0x8] sm:$0xff]
    %v2009 = vld [vmem:[#allocation4 + $0x10] sm:$0xff]
    %v2010 = vld [vmem:[#allocation4 + $0x18] sm:$0xff]
    %v2011 = vld [vmem:[#allocation4 + $0x20] sm:$0xff]
    %v2012 = vld [vmem:[#allocation4 + $0x28] sm:$0xff]
    %v2013 = vld [vmem:[#allocation4 + $0x30] sm:$0xff]
    %v2014 = vld [vmem:[#allocation4 + $0x38] sm:$0xff]
    %v2015 = vld [vmem:[#allocation4 + $0x40] sm:$0xff]
    %v2016 = vld [vmem:[#allocation4 + $0x48] sm:$0xff]
    %v2017 = vld [vmem:[#allocation4 + $0x50] sm:$0xff]
    %v2018 = vld [vmem:[#allocation4 + $0x58] sm:$0xff]
    %v2019 = vld [vmem:[#allocation4 + $0x60] sm:$0xff]
    %v2020 = vld [vmem:[#allocation4 + $0x68] sm:$0xff]
    %v2021 = vld [vmem:[#allocation4 + $0x70] sm:$0xff]
    %v2022 = vld [vmem:[#allocation4 + $0x78] sm:$0xff]
    %v2023 = vld [vmem:[#allocation4 + $0x80] sm:$0xff]
    %v2024 = vld [vmem:[#allocation4 + $0x88] sm:$0xff]
    %v2025 = vld [vmem:[#allocation4 + $0x90] sm:$0xff]
    %v2026 = vld [vmem:[#allocation4 + $0x98] sm:$0xff]
    %v2027 = vld [vmem:[#allocation4 + $0xa0] sm:$0xff]
    %v2028 = vld [vmem:[#allocation4 + $0xa8] sm:$0xff]
    %v2029 = vld [vmem:[#allocation4 + $0xb0] sm:$0xff]
    %v2030 = vld [vmem:[#allocation4 + $0xb8] sm:$0xff]
    %v2031 = vld [vmem:[#allocation4 + $0xc0] sm:$0xff]
    %v2032 = vld [vmem:[#allocation4 + $0xc8] sm:$0xff]
    %v2033 = vld [vmem:[#allocation4 + $0xd0] sm:$0xff]
    %v2034 = vld [vmem:[#allocation4 + $0xd8] sm:$0xff]
    %v2035 = vld [vmem:[#allocation4 + $0xe0] sm:$0xff]
    %v2036 = vld [vmem:[#allocation4 + $0xe8] sm:$0xff]
    %v2037 = vld [vmem:[#allocation4 + $0xf0] sm:$0xff]
    %v2038 = vld [vmem:[#allocation4 + $0xf8] sm:$0xff]
    %v2071 = vunpack.c.l.b16 %v2007
    %v2072 = vunpack.c.h.b16 %v2007
    %v2073 = vunpack.c.l.b16 %v2008
    %v2074 = vunpack.c.h.b16 %v2008
    %v2075 = vunpack.c.l.b16 %v2009
    %v2076 = vunpack.c.h.b16 %v2009
    %v2077 = vunpack.c.l.b16 %v2010
    %v2078 = vunpack.c.h.b16 %v2010
    %v2079 = vunpack.c.l.b16 %v2011
    %v2080 = vunpack.c.h.b16 %v2011
    %v2081 = vunpack.c.l.b16 %v2012
    %v2082 = vunpack.c.h.b16 %v2012
    %v2083 = vunpack.c.l.b16 %v2013
    %v2084 = vunpack.c.h.b16 %v2013
    %v2085 = vunpack.c.l.b16 %v2014
    %v2086 = vunpack.c.h.b16 %v2014
    %v2087 = vunpack.c.l.b16 %v2015
    %v2088 = vunpack.c.h.b16 %v2015
    %v2089 = vunpack.c.l.b16 %v2016
    %v2090 = vunpack.c.h.b16 %v2016
    %v2091 = vunpack.c.l.b16 %v2017
    %v2092 = vunpack.c.h.b16 %v2017
    %v2093 = vunpack.c.l.b16 %v2018
    %v2094 = vunpack.c.h.b16 %v2018
    %v2095 = vunpack.c.l.b16 %v2019
    %v2096 = vunpack.c.h.b16 %v2019
    %v2097 = vunpack.c.l.b16 %v2020
    %v2098 = vunpack.c.h.b16 %v2020
    %v2099 = vunpack.c.l.b16 %v2021
    %v2100 = vunpack.c.h.b16 %v2021
    %v2101 = vunpack.c.l.b16 %v2022
    %v2102 = vunpack.c.h.b16 %v2022
    %v2103 = vunpack.c.l.b16 %v2023
    %v2104 = vunpack.c.h.b16 %v2023
    %v2105 = vunpack.c.l.b16 %v2024
    %v2106 = vunpack.c.h.b16 %v2024
    %v2107 = vunpack.c.l.b16 %v2025
    %v2108 = vunpack.c.h.b16 %v2025
    %v2109 = vunpack.c.l.b16 %v2026
    %v2110 = vunpack.c.h.b16 %v2026
    %v2111 = vunpack.c.l.b16 %v2027
    %v2112 = vunpack.c.h.b16 %v2027
    %v2113 = vunpack.c.l.b16 %v2028
    %v2114 = vunpack.c.h.b16 %v2028
    %v2115 = vunpack.c.l.b16 %v2029
    %v2116 = vunpack.c.h.b16 %v2029
    %v2117 = vunpack.c.l.b16 %v2030
    %v2118 = vunpack.c.h.b16 %v2030
    %v2119 = vunpack.c.l.b16 %v2031
    %v2120 = vunpack.c.h.b16 %v2031
    %v2121 = vunpack.c.l.b16 %v2032
    %v2122 = vunpack.c.h.b16 %v2032
    %v2123 = vunpack.c.l.b16 %v2033
    %v2124 = vunpack.c.h.b16 %v2033
    %v2125 = vunpack.c.l.b16 %v2034
    %v2126 = vunpack.c.h.b16 %v2034
    %v2127 = vunpack.c.l.b16 %v2035
    %v2128 = vunpack.c.h.b16 %v2035
    %v2129 = vunpack.c.l.b16 %v2036
    %v2130 = vunpack.c.h.b16 %v2036
    %v2131 = vunpack.c.l.b16 %v2037
    %v2132 = vunpack.c.h.b16 %v2037
    %v2133 = vunpack.c.l.b16 %v2038
    %v2134 = vunpack.c.h.b16 %v2038
    %v2135 = vpack.c.b16 %v2075, %v2071
    %v2136 = vpack.c.b16 %v2076, %v2072
    %v2137 = vpack.c.b16 %v2077, %v2073
    %v2138 = vpack.c.b16 %v2078, %v2074
    %v2139 = vpack.c.b16 %v2083, %v2079
    %v2140 = vpack.c.b16 %v2084, %v2080
    %v2141 = vpack.c.b16 %v2085, %v2081
    %v2142 = vpack.c.b16 %v2086, %v2082
    %v2143 = vpack.c.b16 %v2091, %v2087
    %v2144 = vpack.c.b16 %v2092, %v2088
    %v2145 = vpack.c.b16 %v2093, %v2089
    %v2146 = vpack.c.b16 %v2094, %v2090
    %v2147 = vpack.c.b16 %v2099, %v2095
    %v2148 = vpack.c.b16 %v2100, %v2096
    %v2149 = vpack.c.b16 %v2101, %v2097
    %v2150 = vpack.c.b16 %v2102, %v2098
    %v2151 = vpack.c.b16 %v2107, %v2103
    %v2152 = vpack.c.b16 %v2108, %v2104
    %v2153 = vpack.c.b16 %v2109, %v2105
    %v2154 = vpack.c.b16 %v2110, %v2106
    %v2155 = vpack.c.b16 %v2115, %v2111
    %v2156 = vpack.c.b16 %v2116, %v2112
    %v2157 = vpack.c.b16 %v2117, %v2113
    %v2158 = vpack.c.b16 %v2118, %v2114
    %v2159 = vpack.c.b16 %v2123, %v2119
    %v2160 = vpack.c.b16 %v2124, %v2120
    %v2161 = vpack.c.b16 %v2125, %v2121
    %v2162 = vpack.c.b16 %v2126, %v2122
    %v2163 = vpack.c.b16 %v2131, %v2127
    %v2164 = vpack.c.b16 %v2132, %v2128
    %v2165 = vpack.c.b16 %v2133, %v2129
    %v2166 = vpack.c.b16 %v2134, %v2130
    %2199 = vmatprep.subr.bf16.mxu0 %v2164
    %2200 = vmatpush1.bf16.msra.mxu0 %v2163
    %2201 = vmatprep.subr.bf16.mxu0 %v2160
    %2202 = vmatpush1.bf16.msra.mxu0 %v2159
    %2203 = vmatprep.subr.bf16.mxu0 %v2156
    %2204 = vmatpush1.bf16.msra.mxu0 %v2155
    %2205 = vmatprep.subr.bf16.mxu0 %v2152
    %2206 = vmatpush1.bf16.msra.mxu0 %v2151
    %2207 = vmatprep.subr.bf16.mxu0 %v2148
    %2208 = vmatpush1.bf16.msra.mxu0 %v2147
    %2209 = vmatprep.subr.bf16.mxu0 %v2144
    %2210 = vmatpush1.bf16.msra.mxu0 %v2143
    %2211 = vmatprep.subr.bf16.mxu0 %v2140
    %2212 = vmatpush1.bf16.msra.mxu0 %v2139
    %2213 = vmatprep.subr.bf16.mxu0 %v2136
    %2214 = vmatpush1.bf16.msra.mxu0 %v2135
    %2215 = vmatprep.subr.bf16.mxu0 0
    %2216 = vmatpush2.bf16.msra.mxu0 0
    %2217 = vmatprep.subr.bf16.mxu0 0
    %2218 = vmatpush2.bf16.msra.mxu0 0
    %2219 = vmatprep.subr.bf16.mxu0 0
    %2220 = vmatpush2.bf16.msra.mxu0 0
    %2221 = vmatprep.subr.bf16.mxu0 0
    %2222 = vmatpush2.bf16.msra.mxu0 0
    %2223 = vmatprep.subr.bf16.mxu0 0
    %2224 = vmatpush2.bf16.msra.mxu0 0
    %2225 = vmatprep.subr.bf16.mxu0 0
    %2226 = vmatpush2.bf16.msra.mxu0 0
    %2227 = vmatprep.subr.bf16.mxu0 0
    %2228 = vmatpush2.bf16.msra.mxu0 0
    %2229 = vmatprep.subr.bf16.mxu0 0
    %2230 = vmatpush2.bf16.msra.mxu0 0
    %2231 = vmatprep.mubr.bf16.mxu0 0
    %2232 = vmatmul.mubr.bf16.gmra.mxu0 %v2006
    %v2233 = vpop.f32.mrf.mxu0
    %v2234 = vadd.f32 0.0, %v2233
    %v2235 = vpop.f32.mrf.mxu0
    %v2236 = vadd.f32 0.0, %v2235
    %v2237 = vpop.f32.mrf.mxu0
    %v2238 = vpop.f32.mrf.mxu0
    %2239 = vdwg.mxu0
    %2240 = vmatprep.subr.bf16.mxu0 %v2166
    %2241 = vmatpush1.bf16.msra.mxu0 %v2165
    %2242 = vmatprep.subr.bf16.mxu0 %v2162
    %2243 = vmatpush1.bf16.msra.mxu0 %v2161
    %2244 = vmatprep.subr.bf16.mxu0 %v2158
    %2245 = vmatpush1.bf16.msra.mxu0 %v2157
    %2246 = vmatprep.subr.bf16.mxu0 %v2154
    %2247 = vmatpush1.bf16.msra.mxu0 %v2153
    %2248 = vmatprep.subr.bf16.mxu0 %v2150
    %2249 = vmatpush1.bf16.msra.mxu0 %v2149
    %2250 = vmatprep.subr.bf16.mxu0 %v2146
    %2251 = vmatpush1.bf16.msra.mxu0 %v2145
    %2252 = vmatprep.subr.bf16.mxu0 %v2142
    %2253 = vmatpush1.bf16.msra.mxu0 %v2141
    %2254 = vmatprep.subr.bf16.mxu0 %v2138
    %2255 = vmatpush1.bf16.msra.mxu0 %v2137
    %2256 = vmatprep.subr.bf16.mxu0 0
    %2257 = vmatpush2.bf16.msra.mxu0 0
    %2258 = vmatprep.subr.bf16.mxu0 0
    %2259 = vmatpush2.bf16.msra.mxu0 0
    %2260 = vmatprep.subr.bf16.mxu0 0
    %2261 = vmatpush2.bf16.msra.mxu0 0
    %2262 = vmatprep.subr.bf16.mxu0 0
    %2263 = vmatpush2.bf16.msra.mxu0 0
    %2264 = vmatprep.subr.bf16.mxu0 0
    %2265 = vmatpush2.bf16.msra.mxu0 0
    %2266 = vmatprep.subr.bf16.mxu0 0
    %2267 = vmatpush2.bf16.msra.mxu0 0
    %2268 = vmatprep.subr.bf16.mxu0 0
    %2269 = vmatpush2.bf16.msra.mxu0 0
    %2270 = vmatprep.subr.bf16.mxu0 0
    %2271 = vmatpush2.bf16.msra.mxu0 0
    %2272 = vmatprep.mubr.bf16.mxu0 0
    %2273 = vmatmul.mubr.bf16.gmra.mxu0 %v2006
    %v2274 = vpop.f32.mrf.mxu0
    %v2275 = vadd.f32 0.0, %v2274
    %v2276 = vpop.f32.mrf.mxu0
    %v2277 = vadd.f32 0.0, %v2276
    %v2278 = vpop.f32.mrf.mxu0
    %v2279 = vpop.f32.mrf.mxu0
    %2280 = vdwg.mxu0
    %v2281 = vadd.f32 %v2002, %v2234
    %v2282 = vadd.f32 %v2003, %v2236
    %v2283 = vadd.f32 %v2004, %v2275
    %v2284 = vadd.f32 %v2005, %v2277
    %v2285 = vxor.u32 %v2281, 2147483648
    %v2286 = vmul.f32 %v2285, 1.442695
    %v2287 = vpow.pop %v2286
    %v2288 = vadd.f32 %v2287, 1.0
    %v2289 = vrcp.pop %v2288
    %v2290 = vmul.f32 1.0, %v2289
    %v2291 = vxor.u32 %v2282, 2147483648
    %v2292 = vmul.f32 %v2291, 1.442695
    %v2293 = vpow.pop %v2292
    %v2294 = vadd.f32 %v2293, 1.0
    %v2295 = vrcp.pop %v2294
    %v2296 = vmul.f32 1.0, %v2295
    %v2297 = vtanh.pop %v2283
    %v2298 = vxor.u32 %v2284, 2147483648
    %v2299 = vmul.f32 %v2298, 1.442695
    %v2300 = vpow.pop %v2299
    %v2301 = vadd.f32 %v2300, 1.0
    %v2302 = vrcp.pop %v2301
    %v2303 = vmul.f32 1.0, %v2302
    %v2304 = vmul.f32 %v2296, %v1997
    %v2305 = vmul.f32 %v2290, %v2297
    %v2306 = vadd.f32 %v2304, %v2305
    %v2307 = vtanh.pop %v2306
    %v2308 = vmul.f32 %v2303, %v2307
    %s2309 = scalar_lea.vmem [#allocation2], 40
    %2310 = vst [vmem:[%s2309] sm:$0xff] %v2308
    %v2311 = vld [vmem:[#allocation3 + $0xc0] sm:$0xff]
    %v2312 = vld [vmem:[#allocation3 + $0xc8] sm:$0xff]
    %v2313 = vld [vmem:[#allocation3 + $0xd0] sm:$0xff]
    %v2314 = vld [vmem:[#allocation3 + $0xd8] sm:$0xff]
    %v2315 = vpack.c.bf16 %v2308, %v2308
    %v2316 = vld [vmem:[#allocation4] sm:$0xff]
    %v2317 = vld [vmem:[#allocation4 + $0x8] sm:$0xff]
    %v2318 = vld [vmem:[#allocation4 + $0x10] sm:$0xff]
    %v2319 = vld [vmem:[#allocation4 + $0x18] sm:$0xff]
    %v2320 = vld [vmem:[#allocation4 + $0x20] sm:$0xff]
    %v2321 = vld [vmem:[#allocation4 + $0x28] sm:$0xff]
    %v2322 = vld [vmem:[#allocation4 + $0x30] sm:$0xff]
    %v2323 = vld [vmem:[#allocation4 + $0x38] sm:$0xff]
    %v2324 = vld [vmem:[#allocation4 + $0x40] sm:$0xff]
    %v2325 = vld [vmem:[#allocation4 + $0x48] sm:$0xff]
    %v2326 = vld [vmem:[#allocation4 + $0x50] sm:$0xff]
    %v2327 = vld [vmem:[#allocation4 + $0x58] sm:$0xff]
    %v2328 = vld [vmem:[#allocation4 + $0x60] sm:$0xff]
    %v2329 = vld [vmem:[#allocation4 + $0x68] sm:$0xff]
    %v2330 = vld [vmem:[#allocation4 + $0x70] sm:$0xff]
    %v2331 = vld [vmem:[#allocation4 + $0x78] sm:$0xff]
    %v2332 = vld [vmem:[#allocation4 + $0x80] sm:$0xff]
    %v2333 = vld [vmem:[#allocation4 + $0x88] sm:$0xff]
    %v2334 = vld [vmem:[#allocation4 + $0x90] sm:$0xff]
    %v2335 = vld [vmem:[#allocation4 + $0x98] sm:$0xff]
    %v2336 = vld [vmem:[#allocation4 + $0xa0] sm:$0xff]
    %v2337 = vld [vmem:[#allocation4 + $0xa8] sm:$0xff]
    %v2338 = vld [vmem:[#allocation4 + $0xb0] sm:$0xff]
    %v2339 = vld [vmem:[#allocation4 + $0xb8] sm:$0xff]
    %v2340 = vld [vmem:[#allocation4 + $0xc0] sm:$0xff]
    %v2341 = vld [vmem:[#allocation4 + $0xc8] sm:$0xff]
    %v2342 = vld [vmem:[#allocation4 + $0xd0] sm:$0xff]
    %v2343 = vld [vmem:[#allocation4 + $0xd8] sm:$0xff]
    %v2344 = vld [vmem:[#allocation4 + $0xe0] sm:$0xff]
    %v2345 = vld [vmem:[#allocation4 + $0xe8] sm:$0xff]
    %v2346 = vld [vmem:[#allocation4 + $0xf0] sm:$0xff]
    %v2347 = vld [vmem:[#allocation4 + $0xf8] sm:$0xff]
    %v2380 = vunpack.c.l.b16 %v2316
    %v2381 = vunpack.c.h.b16 %v2316
    %v2382 = vunpack.c.l.b16 %v2317
    %v2383 = vunpack.c.h.b16 %v2317
    %v2384 = vunpack.c.l.b16 %v2318
    %v2385 = vunpack.c.h.b16 %v2318
    %v2386 = vunpack.c.l.b16 %v2319
    %v2387 = vunpack.c.h.b16 %v2319
    %v2388 = vunpack.c.l.b16 %v2320
    %v2389 = vunpack.c.h.b16 %v2320
    %v2390 = vunpack.c.l.b16 %v2321
    %v2391 = vunpack.c.h.b16 %v2321
    %v2392 = vunpack.c.l.b16 %v2322
    %v2393 = vunpack.c.h.b16 %v2322
    %v2394 = vunpack.c.l.b16 %v2323
    %v2395 = vunpack.c.h.b16 %v2323
    %v2396 = vunpack.c.l.b16 %v2324
    %v2397 = vunpack.c.h.b16 %v2324
    %v2398 = vunpack.c.l.b16 %v2325
    %v2399 = vunpack.c.h.b16 %v2325
    %v2400 = vunpack.c.l.b16 %v2326
    %v2401 = vunpack.c.h.b16 %v2326
    %v2402 = vunpack.c.l.b16 %v2327
    %v2403 = vunpack.c.h.b16 %v2327
    %v2404 = vunpack.c.l.b16 %v2328
    %v2405 = vunpack.c.h.b16 %v2328
    %v2406 = vunpack.c.l.b16 %v2329
    %v2407 = vunpack.c.h.b16 %v2329
    %v2408 = vunpack.c.l.b16 %v2330
    %v2409 = vunpack.c.h.b16 %v2330
    %v2410 = vunpack.c.l.b16 %v2331
    %v2411 = vunpack.c.h.b16 %v2331
    %v2412 = vunpack.c.l.b16 %v2332
    %v2413 = vunpack.c.h.b16 %v2332
    %v2414 = vunpack.c.l.b16 %v2333
    %v2415 = vunpack.c.h.b16 %v2333
    %v2416 = vunpack.c.l.b16 %v2334
    %v2417 = vunpack.c.h.b16 %v2334
    %v2418 = vunpack.c.l.b16 %v2335
    %v2419 = vunpack.c.h.b16 %v2335
    %v2420 = vunpack.c.l.b16 %v2336
    %v2421 = vunpack.c.h.b16 %v2336
    %v2422 = vunpack.c.l.b16 %v2337
    %v2423 = vunpack.c.h.b16 %v2337
    %v2424 = vunpack.c.l.b16 %v2338
    %v2425 = vunpack.c.h.b16 %v2338
    %v2426 = vunpack.c.l.b16 %v2339
    %v2427 = vunpack.c.h.b16 %v2339
    %v2428 = vunpack.c.l.b16 %v2340
    %v2429 = vunpack.c.h.b16 %v2340
    %v2430 = vunpack.c.l.b16 %v2341
    %v2431 = vunpack.c.h.b16 %v2341
    %v2432 = vunpack.c.l.b16 %v2342
    %v2433 = vunpack.c.h.b16 %v2342
    %v2434 = vunpack.c.l.b16 %v2343
    %v2435 = vunpack.c.h.b16 %v2343
    %v2436 = vunpack.c.l.b16 %v2344
    %v2437 = vunpack.c.h.b16 %v2344
    %v2438 = vunpack.c.l.b16 %v2345
    %v2439 = vunpack.c.h.b16 %v2345
    %v2440 = vunpack.c.l.b16 %v2346
    %v2441 = vunpack.c.h.b16 %v2346
    %v2442 = vunpack.c.l.b16 %v2347
    %v2443 = vunpack.c.h.b16 %v2347
    %v2444 = vpack.c.b16 %v2384, %v2380
    %v2445 = vpack.c.b16 %v2385, %v2381
    %v2446 = vpack.c.b16 %v2386, %v2382
    %v2447 = vpack.c.b16 %v2387, %v2383
    %v2448 = vpack.c.b16 %v2392, %v2388
    %v2449 = vpack.c.b16 %v2393, %v2389
    %v2450 = vpack.c.b16 %v2394, %v2390
    %v2451 = vpack.c.b16 %v2395, %v2391
    %v2452 = vpack.c.b16 %v2400, %v2396
    %v2453 = vpack.c.b16 %v2401, %v2397
    %v2454 = vpack.c.b16 %v2402, %v2398
    %v2455 = vpack.c.b16 %v2403, %v2399
    %v2456 = vpack.c.b16 %v2408, %v2404
    %v2457 = vpack.c.b16 %v2409, %v2405
    %v2458 = vpack.c.b16 %v2410, %v2406
    %v2459 = vpack.c.b16 %v2411, %v2407
    %v2460 = vpack.c.b16 %v2416, %v2412
    %v2461 = vpack.c.b16 %v2417, %v2413
    %v2462 = vpack.c.b16 %v2418, %v2414
    %v2463 = vpack.c.b16 %v2419, %v2415
    %v2464 = vpack.c.b16 %v2424, %v2420
    %v2465 = vpack.c.b16 %v2425, %v2421
    %v2466 = vpack.c.b16 %v2426, %v2422
    %v2467 = vpack.c.b16 %v2427, %v2423
    %v2468 = vpack.c.b16 %v2432, %v2428
    %v2469 = vpack.c.b16 %v2433, %v2429
    %v2470 = vpack.c.b16 %v2434, %v2430
    %v2471 = vpack.c.b16 %v2435, %v2431
    %v2472 = vpack.c.b16 %v2440, %v2436
    %v2473 = vpack.c.b16 %v2441, %v2437
    %v2474 = vpack.c.b16 %v2442, %v2438
    %v2475 = vpack.c.b16 %v2443, %v2439
    %2508 = vmatprep.subr.bf16.mxu0 %v2473
    %2509 = vmatpush1.bf16.msra.mxu0 %v2472
    %2510 = vmatprep.subr.bf16.mxu0 %v2469
    %2511 = vmatpush1.bf16.msra.mxu0 %v2468
    %2512 = vmatprep.subr.bf16.mxu0 %v2465
    %2513 = vmatpush1.bf16.msra.mxu0 %v2464
    %2514 = vmatprep.subr.bf16.mxu0 %v2461
    %2515 = vmatpush1.bf16.msra.mxu0 %v2460
    %2516 = vmatprep.subr.bf16.mxu0 %v2457
    %2517 = vmatpush1.bf16.msra.mxu0 %v2456
    %2518 = vmatprep.subr.bf16.mxu0 %v2453
    %2519 = vmatpush1.bf16.msra.mxu0 %v2452
    %2520 = vmatprep.subr.bf16.mxu0 %v2449
    %2521 = vmatpush1.bf16.msra.mxu0 %v2448
    %2522 = vmatprep.subr.bf16.mxu0 %v2445
    %2523 = vmatpush1.bf16.msra.mxu0 %v2444
    %2524 = vmatprep.subr.bf16.mxu0 0
    %2525 = vmatpush2.bf16.msra.mxu0 0
    %2526 = vmatprep.subr.bf16.mxu0 0
    %2527 = vmatpush2.bf16.msra.mxu0 0
    %2528 = vmatprep.subr.bf16.mxu0 0
    %2529 = vmatpush2.bf16.msra.mxu0 0
    %2530 = vmatprep.subr.bf16.mxu0 0
    %2531 = vmatpush2.bf16.msra.mxu0 0
    %2532 = vmatprep.subr.bf16.mxu0 0
    %2533 = vmatpush2.bf16.msra.mxu0 0
    %2534 = vmatprep.subr.bf16.mxu0 0
    %2535 = vmatpush2.bf16.msra.mxu0 0
    %2536 = vmatprep.subr.bf16.mxu0 0
    %2537 = vmatpush2.bf16.msra.mxu0 0
    %2538 = vmatprep.subr.bf16.mxu0 0
    %2539 = vmatpush2.bf16.msra.mxu0 0
    %2540 = vmatprep.mubr.bf16.mxu0 0
    %2541 = vmatmul.mubr.bf16.gmra.mxu0 %v2315
    %v2542 = vpop.f32.mrf.mxu0
    %v2543 = vadd.f32 0.0, %v2542
    %v2544 = vpop.f32.mrf.mxu0
    %v2545 = vadd.f32 0.0, %v2544
    %v2546 = vpop.f32.mrf.mxu0
    %v2547 = vpop.f32.mrf.mxu0
    %2548 = vdwg.mxu0
    %2549 = vmatprep.subr.bf16.mxu0 %v2475
    %2550 = vmatpush1.bf16.msra.mxu0 %v2474
    %2551 = vmatprep.subr.bf16.mxu0 %v2471
    %2552 = vmatpush1.bf16.msra.mxu0 %v2470
    %2553 = vmatprep.subr.bf16.mxu0 %v2467
    %2554 = vmatpush1.bf16.msra.mxu0 %v2466
    %2555 = vmatprep.subr.bf16.mxu0 %v2463
    %2556 = vmatpush1.bf16.msra.mxu0 %v2462
    %2557 = vmatprep.subr.bf16.mxu0 %v2459
    %2558 = vmatpush1.bf16.msra.mxu0 %v2458
    %2559 = vmatprep.subr.bf16.mxu0 %v2455
    %2560 = vmatpush1.bf16.msra.mxu0 %v2454
    %2561 = vmatprep.subr.bf16.mxu0 %v2451
    %2562 = vmatpush1.bf16.msra.mxu0 %v2450
    %2563 = vmatprep.subr.bf16.mxu0 %v2447
    %2564 = vmatpush1.bf16.msra.mxu0 %v2446
    %2565 = vmatprep.subr.bf16.mxu0 0
    %2566 = vmatpush2.bf16.msra.mxu0 0
    %2567 = vmatprep.subr.bf16.mxu0 0
    %2568 = vmatpush2.bf16.msra.mxu0 0
    %2569 = vmatprep.subr.bf16.mxu0 0
    %2570 = vmatpush2.bf16.msra.mxu0 0
    %2571 = vmatprep.subr.bf16.mxu0 0
    %2572 = vmatpush2.bf16.msra.mxu0 0
    %2573 = vmatprep.subr.bf16.mxu0 0
    %2574 = vmatpush2.bf16.msra.mxu0 0
    %2575 = vmatprep.subr.bf16.mxu0 0
    %2576 = vmatpush2.bf16.msra.mxu0 0
    %2577 = vmatprep.subr.bf16.mxu0 0
    %2578 = vmatpush2.bf16.msra.mxu0 0
    %2579 = vmatprep.subr.bf16.mxu0 0
    %2580 = vmatpush2.bf16.msra.mxu0 0
    %2581 = vmatprep.mubr.bf16.mxu0 0
    %2582 = vmatmul.mubr.bf16.gmra.mxu0 %v2315
    %v2583 = vpop.f32.mrf.mxu0
    %v2584 = vadd.f32 0.0, %v2583
    %v2585 = vpop.f32.mrf.mxu0
    %v2586 = vadd.f32 0.0, %v2585
    %v2587 = vpop.f32.mrf.mxu0
    %v2588 = vpop.f32.mrf.mxu0
    %2589 = vdwg.mxu0
    %v2590 = vadd.f32 %v2311, %v2543
    %v2591 = vadd.f32 %v2312, %v2545
    %v2592 = vadd.f32 %v2313, %v2584
    %v2593 = vadd.f32 %v2314, %v2586
    %v2594 = vxor.u32 %v2590, 2147483648
    %v2595 = vmul.f32 %v2594, 1.442695
    %v2596 = vpow.pop %v2595
    %v2597 = vadd.f32 %v2596, 1.0
    %v2598 = vrcp.pop %v2597
    %v2599 = vmul.f32 1.0, %v2598
    %v2600 = vxor.u32 %v2591, 2147483648
    %v2601 = vmul.f32 %v2600, 1.442695
    %v2602 = vpow.pop %v2601
    %v2603 = vadd.f32 %v2602, 1.0
    %v2604 = vrcp.pop %v2603
    %v2605 = vmul.f32 1.0, %v2604
    %v2606 = vtanh.pop %v2592
    %v2607 = vxor.u32 %v2593, 2147483648
    %v2608 = vmul.f32 %v2607, 1.442695
    %v2609 = vpow.pop %v2608
    %v2610 = vadd.f32 %v2609, 1.0
    %v2611 = vrcp.pop %v2610
    %v2612 = vmul.f32 1.0, %v2611
    %v2613 = vmul.f32 %v2605, %v2306
    %v2614 = vmul.f32 %v2599, %v2606
    %v2615 = vadd.f32 %v2613, %v2614
    %v2616 = vtanh.pop %v2615
    %v2617 = vmul.f32 %v2612, %v2616
    %s2618 = scalar_lea.vmem [#allocation2], 48
    %2619 = vst [vmem:[%s2618] sm:$0xff] %v2617
    %v2620 = vld [vmem:[#allocation3 + $0xe0] sm:$0xff]
    %v2621 = vld [vmem:[#allocation3 + $0xe8] sm:$0xff]
    %v2622 = vld [vmem:[#allocation3 + $0xf0] sm:$0xff]
    %v2623 = vld [vmem:[#allocation3 + $0xf8] sm:$0xff]
    %v2624 = vpack.c.bf16 %v2617, %v2617
    %v2625 = vld [vmem:[#allocation4] sm:$0xff]
    %v2626 = vld [vmem:[#allocation4 + $0x8] sm:$0xff]
    %v2627 = vld [vmem:[#allocation4 + $0x10] sm:$0xff]
    %v2628 = vld [vmem:[#allocation4 + $0x18] sm:$0xff]
    %v2629 = vld [vmem:[#allocation4 + $0x20] sm:$0xff]
    %v2630 = vld [vmem:[#allocation4 + $0x28] sm:$0xff]
    %v2631 = vld [vmem:[#allocation4 + $0x30] sm:$0xff]
    %v2632 = vld [vmem:[#allocation4 + $0x38] sm:$0xff]
    %v2633 = vld [vmem:[#allocation4 + $0x40] sm:$0xff]
    %v2634 = vld [vmem:[#allocation4 + $0x48] sm:$0xff]
    %v2635 = vld [vmem:[#allocation4 + $0x50] sm:$0xff]
    %v2636 = vld [vmem:[#allocation4 + $0x58] sm:$0xff]
    %v2637 = vld [vmem:[#allocation4 + $0x60] sm:$0xff]
    %v2638 = vld [vmem:[#allocation4 + $0x68] sm:$0xff]
    %v2639 = vld [vmem:[#allocation4 + $0x70] sm:$0xff]
    %v2640 = vld [vmem:[#allocation4 + $0x78] sm:$0xff]
    %v2641 = vld [vmem:[#allocation4 + $0x80] sm:$0xff]
    %v2642 = vld [vmem:[#allocation4 + $0x88] sm:$0xff]
    %v2643 = vld [vmem:[#allocation4 + $0x90] sm:$0xff]
    %v2644 = vld [vmem:[#allocation4 + $0x98] sm:$0xff]
    %v2645 = vld [vmem:[#allocation4 + $0xa0] sm:$0xff]
    %v2646 = vld [vmem:[#allocation4 + $0xa8] sm:$0xff]
    %v2647 = vld [vmem:[#allocation4 + $0xb0] sm:$0xff]
    %v2648 = vld [vmem:[#allocation4 + $0xb8] sm:$0xff]
    %v2649 = vld [vmem:[#allocation4 + $0xc0] sm:$0xff]
    %v2650 = vld [vmem:[#allocation4 + $0xc8] sm:$0xff]
    %v2651 = vld [vmem:[#allocation4 + $0xd0] sm:$0xff]
    %v2652 = vld [vmem:[#allocation4 + $0xd8] sm:$0xff]
    %v2653 = vld [vmem:[#allocation4 + $0xe0] sm:$0xff]
    %v2654 = vld [vmem:[#allocation4 + $0xe8] sm:$0xff]
    %v2655 = vld [vmem:[#allocation4 + $0xf0] sm:$0xff]
    %v2656 = vld [vmem:[#allocation4 + $0xf8] sm:$0xff]
    %v2689 = vunpack.c.l.b16 %v2625
    %v2690 = vunpack.c.h.b16 %v2625
    %v2691 = vunpack.c.l.b16 %v2626
    %v2692 = vunpack.c.h.b16 %v2626
    %v2693 = vunpack.c.l.b16 %v2627
    %v2694 = vunpack.c.h.b16 %v2627
    %v2695 = vunpack.c.l.b16 %v2628
    %v2696 = vunpack.c.h.b16 %v2628
    %v2697 = vunpack.c.l.b16 %v2629
    %v2698 = vunpack.c.h.b16 %v2629
    %v2699 = vunpack.c.l.b16 %v2630
    %v2700 = vunpack.c.h.b16 %v2630
    %v2701 = vunpack.c.l.b16 %v2631
    %v2702 = vunpack.c.h.b16 %v2631
    %v2703 = vunpack.c.l.b16 %v2632
    %v2704 = vunpack.c.h.b16 %v2632
    %v2705 = vunpack.c.l.b16 %v2633
    %v2706 = vunpack.c.h.b16 %v2633
    %v2707 = vunpack.c.l.b16 %v2634
    %v2708 = vunpack.c.h.b16 %v2634
    %v2709 = vunpack.c.l.b16 %v2635
    %v2710 = vunpack.c.h.b16 %v2635
    %v2711 = vunpack.c.l.b16 %v2636
    %v2712 = vunpack.c.h.b16 %v2636
    %v2713 = vunpack.c.l.b16 %v2637
    %v2714 = vunpack.c.h.b16 %v2637
    %v2715 = vunpack.c.l.b16 %v2638
    %v2716 = vunpack.c.h.b16 %v2638
    %v2717 = vunpack.c.l.b16 %v2639
    %v2718 = vunpack.c.h.b16 %v2639
    %v2719 = vunpack.c.l.b16 %v2640
    %v2720 = vunpack.c.h.b16 %v2640
    %v2721 = vunpack.c.l.b16 %v2641
    %v2722 = vunpack.c.h.b16 %v2641
    %v2723 = vunpack.c.l.b16 %v2642
    %v2724 = vunpack.c.h.b16 %v2642
    %v2725 = vunpack.c.l.b16 %v2643
    %v2726 = vunpack.c.h.b16 %v2643
    %v2727 = vunpack.c.l.b16 %v2644
    %v2728 = vunpack.c.h.b16 %v2644
    %v2729 = vunpack.c.l.b16 %v2645
    %v2730 = vunpack.c.h.b16 %v2645
    %v2731 = vunpack.c.l.b16 %v2646
    %v2732 = vunpack.c.h.b16 %v2646
    %v2733 = vunpack.c.l.b16 %v2647
    %v2734 = vunpack.c.h.b16 %v2647
    %v2735 = vunpack.c.l.b16 %v2648
    %v2736 = vunpack.c.h.b16 %v2648
    %v2737 = vunpack.c.l.b16 %v2649
    %v2738 = vunpack.c.h.b16 %v2649
    %v2739 = vunpack.c.l.b16 %v2650
    %v2740 = vunpack.c.h.b16 %v2650
    %v2741 = vunpack.c.l.b16 %v2651
    %v2742 = vunpack.c.h.b16 %v2651
    %v2743 = vunpack.c.l.b16 %v2652
    %v2744 = vunpack.c.h.b16 %v2652
    %v2745 = vunpack.c.l.b16 %v2653
    %v2746 = vunpack.c.h.b16 %v2653
    %v2747 = vunpack.c.l.b16 %v2654
    %v2748 = vunpack.c.h.b16 %v2654
    %v2749 = vunpack.c.l.b16 %v2655
    %v2750 = vunpack.c.h.b16 %v2655
    %v2751 = vunpack.c.l.b16 %v2656
    %v2752 = vunpack.c.h.b16 %v2656
    %v2753 = vpack.c.b16 %v2693, %v2689
    %v2754 = vpack.c.b16 %v2694, %v2690
    %v2755 = vpack.c.b16 %v2695, %v2691
    %v2756 = vpack.c.b16 %v2696, %v2692
    %v2757 = vpack.c.b16 %v2701, %v2697
    %v2758 = vpack.c.b16 %v2702, %v2698
    %v2759 = vpack.c.b16 %v2703, %v2699
    %v2760 = vpack.c.b16 %v2704, %v2700
    %v2761 = vpack.c.b16 %v2709, %v2705
    %v2762 = vpack.c.b16 %v2710, %v2706
    %v2763 = vpack.c.b16 %v2711, %v2707
    %v2764 = vpack.c.b16 %v2712, %v2708
    %v2765 = vpack.c.b16 %v2717, %v2713
    %v2766 = vpack.c.b16 %v2718, %v2714
    %v2767 = vpack.c.b16 %v2719, %v2715
    %v2768 = vpack.c.b16 %v2720, %v2716
    %v2769 = vpack.c.b16 %v2725, %v2721
    %v2770 = vpack.c.b16 %v2726, %v2722
    %v2771 = vpack.c.b16 %v2727, %v2723
    %v2772 = vpack.c.b16 %v2728, %v2724
    %v2773 = vpack.c.b16 %v2733, %v2729
    %v2774 = vpack.c.b16 %v2734, %v2730
    %v2775 = vpack.c.b16 %v2735, %v2731
    %v2776 = vpack.c.b16 %v2736, %v2732
    %v2777 = vpack.c.b16 %v2741, %v2737
    %v2778 = vpack.c.b16 %v2742, %v2738
    %v2779 = vpack.c.b16 %v2743, %v2739
    %v2780 = vpack.c.b16 %v2744, %v2740
    %v2781 = vpack.c.b16 %v2749, %v2745
    %v2782 = vpack.c.b16 %v2750, %v2746
    %v2783 = vpack.c.b16 %v2751, %v2747
    %v2784 = vpack.c.b16 %v2752, %v2748
    %2817 = vmatprep.subr.bf16.mxu0 %v2782
    %2818 = vmatpush1.bf16.msra.mxu0 %v2781
    %2819 = vmatprep.subr.bf16.mxu0 %v2778
    %2820 = vmatpush1.bf16.msra.mxu0 %v2777
    %2821 = vmatprep.subr.bf16.mxu0 %v2774
    %2822 = vmatpush1.bf16.msra.mxu0 %v2773
    %2823 = vmatprep.subr.bf16.mxu0 %v2770
    %2824 = vmatpush1.bf16.msra.mxu0 %v2769
    %2825 = vmatprep.subr.bf16.mxu0 %v2766
    %2826 = vmatpush1.bf16.msra.mxu0 %v2765
    %2827 = vmatprep.subr.bf16.mxu0 %v2762
    %2828 = vmatpush1.bf16.msra.mxu0 %v2761
    %2829 = vmatprep.subr.bf16.mxu0 %v2758
    %2830 = vmatpush1.bf16.msra.mxu0 %v2757
    %2831 = vmatprep.subr.bf16.mxu0 %v2754
    %2832 = vmatpush1.bf16.msra.mxu0 %v2753
    %2833 = vmatprep.subr.bf16.mxu0 0
    %2834 = vmatpush2.bf16.msra.mxu0 0
    %2835 = vmatprep.subr.bf16.mxu0 0
    %2836 = vmatpush2.bf16.msra.mxu0 0
    %2837 = vmatprep.subr.bf16.mxu0 0
    %2838 = vmatpush2.bf16.msra.mxu0 0
    %2839 = vmatprep.subr.bf16.mxu0 0
    %2840 = vmatpush2.bf16.msra.mxu0 0
    %2841 = vmatprep.subr.bf16.mxu0 0
    %2842 = vmatpush2.bf16.msra.mxu0 0
    %2843 = vmatprep.subr.bf16.mxu0 0
    %2844 = vmatpush2.bf16.msra.mxu0 0
    %2845 = vmatprep.subr.bf16.mxu0 0
    %2846 = vmatpush2.bf16.msra.mxu0 0
    %2847 = vmatprep.subr.bf16.mxu0 0
    %2848 = vmatpush2.bf16.msra.mxu0 0
    %2849 = vmatprep.mubr.bf16.mxu0 0
    %2850 = vmatmul.mubr.bf16.gmra.mxu0 %v2624
    %v2851 = vpop.f32.mrf.mxu0
    %v2852 = vadd.f32 0.0, %v2851
    %v2853 = vpop.f32.mrf.mxu0
    %v2854 = vadd.f32 0.0, %v2853
    %v2855 = vpop.f32.mrf.mxu0
    %v2856 = vpop.f32.mrf.mxu0
    %2857 = vdwg.mxu0
    %2858 = vmatprep.subr.bf16.mxu0 %v2784
    %2859 = vmatpush1.bf16.msra.mxu0 %v2783
    %2860 = vmatprep.subr.bf16.mxu0 %v2780
    %2861 = vmatpush1.bf16.msra.mxu0 %v2779
    %2862 = vmatprep.subr.bf16.mxu0 %v2776
    %2863 = vmatpush1.bf16.msra.mxu0 %v2775
    %2864 = vmatprep.subr.bf16.mxu0 %v2772
    %2865 = vmatpush1.bf16.msra.mxu0 %v2771
    %2866 = vmatprep.subr.bf16.mxu0 %v2768
    %2867 = vmatpush1.bf16.msra.mxu0 %v2767
    %2868 = vmatprep.subr.bf16.mxu0 %v2764
    %2869 = vmatpush1.bf16.msra.mxu0 %v2763
    %2870 = vmatprep.subr.bf16.mxu0 %v2760
    %2871 = vmatpush1.bf16.msra.mxu0 %v2759
    %2872 = vmatprep.subr.bf16.mxu0 %v2756
    %2873 = vmatpush1.bf16.msra.mxu0 %v2755
    %2874 = vmatprep.subr.bf16.mxu0 0
    %2875 = vmatpush2.bf16.msra.mxu0 0
    %2876 = vmatprep.subr.bf16.mxu0 0
    %2877 = vmatpush2.bf16.msra.mxu0 0
    %2878 = vmatprep.subr.bf16.mxu0 0
    %2879 = vmatpush2.bf16.msra.mxu0 0
    %2880 = vmatprep.subr.bf16.mxu0 0
    %2881 = vmatpush2.bf16.msra.mxu0 0
    %2882 = vmatprep.subr.bf16.mxu0 0
    %2883 = vmatpush2.bf16.msra.mxu0 0
    %2884 = vmatprep.subr.bf16.mxu0 0
    %2885 = vmatpush2.bf16.msra.mxu0 0
    %2886 = vmatprep.subr.bf16.mxu0 0
    %2887 = vmatpush2.bf16.msra.mxu0 0
    %2888 = vmatprep.subr.bf16.mxu0 0
    %2889 = vmatpush2.bf16.msra.mxu0 0
    %2890 = vmatprep.mubr.bf16.mxu0 0
    %2891 = vmatmul.mubr.bf16.gmra.mxu0 %v2624
    %v2892 = vpop.f32.mrf.mxu0
    %v2893 = vadd.f32 0.0, %v2892
    %v2894 = vpop.f32.mrf.mxu0
    %v2895 = vadd.f32 0.0, %v2894
    %v2896 = vpop.f32.mrf.mxu0
    %v2897 = vpop.f32.mrf.mxu0
    %2898 = vdwg.mxu0
    %v2899 = vadd.f32 %v2620, %v2852
    %v2900 = vadd.f32 %v2621, %v2854
    %v2901 = vadd.f32 %v2622, %v2893
    %v2902 = vadd.f32 %v2623, %v2895
    %v2903 = vxor.u32 %v2899, 2147483648
    %v2904 = vmul.f32 %v2903, 1.442695
    %v2905 = vpow.pop %v2904
    %v2906 = vadd.f32 %v2905, 1.0
    %v2907 = vrcp.pop %v2906
    %v2908 = vmul.f32 1.0, %v2907
    %v2909 = vxor.u32 %v2900, 2147483648
    %v2910 = vmul.f32 %v2909, 1.442695
    %v2911 = vpow.pop %v2910
    %v2912 = vadd.f32 %v2911, 1.0
    %v2913 = vrcp.pop %v2912
    %v2914 = vmul.f32 1.0, %v2913
    %v2915 = vtanh.pop %v2901
    %v2916 = vxor.u32 %v2902, 2147483648
    %v2917 = vmul.f32 %v2916, 1.442695
    %v2918 = vpow.pop %v2917
    %v2919 = vadd.f32 %v2918, 1.0
    %v2920 = vrcp.pop %v2919
    %v2921 = vmul.f32 1.0, %v2920
    %v2922 = vmul.f32 %v2914, %v2615
    %v2923 = vmul.f32 %v2908, %v2915
    %v2924 = vadd.f32 %v2922, %v2923
    %v2925 = vtanh.pop %v2924
    %v2926 = vmul.f32 %v2921, %v2925
    %s2927 = scalar_lea.vmem [#allocation2], 56
    %2928 = vst [vmem:[%s2927] sm:$0xff] %v2926
    %2929 = vst [vmem:[#allocation8] sm:$0xff] %v2926
    %2930 = vst [vmem:[#allocation10] sm:$0xff] %v2924
    %v2931 = vld [vmem:[#allocation2] sm:$0xff]
    %v2932 = vld [vmem:[#allocation2 + $0x8] sm:$0xff]
    %v2933 = vld [vmem:[#allocation2 + $0x10] sm:$0xff]
    %v2934 = vld [vmem:[#allocation2 + $0x18] sm:$0xff]
    %v2935 = vld [vmem:[#allocation2 + $0x20] sm:$0xff]
    %v2936 = vld [vmem:[#allocation2 + $0x28] sm:$0xff]
    %v2937 = vld [vmem:[#allocation2 + $0x30] sm:$0xff]
    %v2938 = vld [vmem:[#allocation2 + $0x38] sm:$0xff]
    %v2939 = vpack.c.bf16 %v2932, %v2931
    %v2940 = vpack.c.bf16 %v2934, %v2933
    %v2941 = vpack.c.bf16 %v2936, %v2935
    %v2942 = vpack.c.bf16 %v2938, %v2937
    %s2943 = scalar_lea.vmem %s1, 256
    %v2944 = vld [vmem:[%s2943] sm:$0xff]
    %v2945 = vld [vmem:[%s2943 + $0x8] sm:$0xff]
    %v2946 = vld [vmem:[%s2943 + $0x10] sm:$0xff]
    %v2947 = vld [vmem:[%s2943 + $0x18] sm:$0xff]
    %v2948 = vld [vmem:[%s2943 + $0x20] sm:$0xff]
    %v2949 = vld [vmem:[%s2943 + $0x28] sm:$0xff]
    %v2950 = vld [vmem:[%s2943 + $0x30] sm:$0xff]
    %v2951 = vld [vmem:[%s2943 + $0x38] sm:$0xff]
    %v2952 = vld [vmem:[%s2943 + $0x40] sm:$0xff]
    %v2953 = vld [vmem:[%s2943 + $0x48] sm:$0xff]
    %v2954 = vld [vmem:[%s2943 + $0x50] sm:$0xff]
    %v2955 = vld [vmem:[%s2943 + $0x58] sm:$0xff]
    %v2956 = vld [vmem:[%s2943 + $0x60] sm:$0xff]
    %v2957 = vld [vmem:[%s2943 + $0x68] sm:$0xff]
    %v2958 = vld [vmem:[%s2943 + $0x70] sm:$0xff]
    %v2959 = vld [vmem:[%s2943 + $0x78] sm:$0xff]
    %v2960 = vld [vmem:[%s2943 + $0x80] sm:$0xff]
    %v2961 = vld [vmem:[%s2943 + $0x88] sm:$0xff]
    %v2962 = vld [vmem:[%s2943 + $0x90] sm:$0xff]
    %v2963 = vld [vmem:[%s2943 + $0x98] sm:$0xff]
    %v2964 = vld [vmem:[%s2943 + $0xa0] sm:$0xff]
    %v2965 = vld [vmem:[%s2943 + $0xa8] sm:$0xff]
    %v2966 = vld [vmem:[%s2943 + $0xb0] sm:$0xff]
    %v2967 = vld [vmem:[%s2943 + $0xb8] sm:$0xff]
    %v2968 = vld [vmem:[%s2943 + $0xc0] sm:$0xff]
    %v2969 = vld [vmem:[%s2943 + $0xc8] sm:$0xff]
    %v2970 = vld [vmem:[%s2943 + $0xd0] sm:$0xff]
    %v2971 = vld [vmem:[%s2943 + $0xd8] sm:$0xff]
    %v2972 = vld [vmem:[%s2943 + $0xe0] sm:$0xff]
    %v2973 = vld [vmem:[%s2943 + $0xe8] sm:$0xff]
    %v2974 = vld [vmem:[%s2943 + $0xf0] sm:$0xff]
    %v2975 = vld [vmem:[%s2943 + $0xf8] sm:$0xff]
    %s2976 = scalar_lea.vmem %s3, 4
    %v2977 = vld [vmem:[%s2976] sm:$0xf]
    %v2979 = vlaneseq
    %v2980 = vshrl.u32 %v2979, 7
    %v2981 = vsub.s32 0, %v2980
    %v2982 = vrot.slane %v2977, %v2981
    %v2983 = vlaneseq
    %v2984 = vshrl.u32 %v2983, 7
    %v2985 = vsub.s32 1, %v2984
    %v2986 = vrot.slane %v2977, %v2985
    %v2987 = vlaneseq
    %v2988 = vshrl.u32 %v2987, 7
    %v2989 = vsub.s32 2, %v2988
    %v2990 = vrot.slane %v2977, %v2989
    %v2991 = vlaneseq
    %v2992 = vshrl.u32 %v2991, 7
    %v2993 = vsub.s32 3, %v2992
    %v2994 = vrot.slane %v2977, %v2993
    %v3031 = vunpack.c.l.b16 %v2944
    %v3032 = vunpack.c.h.b16 %v2944
    %v3033 = vunpack.c.l.b16 %v2945
    %v3034 = vunpack.c.h.b16 %v2945
    %v3035 = vunpack.c.l.b16 %v2946
    %v3036 = vunpack.c.h.b16 %v2946
    %v3037 = vunpack.c.l.b16 %v2947
    %v3038 = vunpack.c.h.b16 %v2947
    %v3039 = vunpack.c.l.b16 %v2948
    %v3040 = vunpack.c.h.b16 %v2948
    %v3041 = vunpack.c.l.b16 %v2949
    %v3042 = vunpack.c.h.b16 %v2949
    %v3043 = vunpack.c.l.b16 %v2950
    %v3044 = vunpack.c.h.b16 %v2950
    %v3045 = vunpack.c.l.b16 %v2951
    %v3046 = vunpack.c.h.b16 %v2951
    %v3047 = vunpack.c.l.b16 %v2952
    %v3048 = vunpack.c.h.b16 %v2952
    %v3049 = vunpack.c.l.b16 %v2953
    %v3050 = vunpack.c.h.b16 %v2953
    %v3051 = vunpack.c.l.b16 %v2954
    %v3052 = vunpack.c.h.b16 %v2954
    %v3053 = vunpack.c.l.b16 %v2955
    %v3054 = vunpack.c.h.b16 %v2955
    %v3055 = vunpack.c.l.b16 %v2956
    %v3056 = vunpack.c.h.b16 %v2956
    %v3057 = vunpack.c.l.b16 %v2957
    %v3058 = vunpack.c.h.b16 %v2957
    %v3059 = vunpack.c.l.b16 %v2958
    %v3060 = vunpack.c.h.b16 %v2958
    %v3061 = vunpack.c.l.b16 %v2959
    %v3062 = vunpack.c.h.b16 %v2959
    %v3063 = vunpack.c.l.b16 %v2960
    %v3064 = vunpack.c.h.b16 %v2960
    %v3065 = vunpack.c.l.b16 %v2961
    %v3066 = vunpack.c.h.b16 %v2961
    %v3067 = vunpack.c.l.b16 %v2962
    %v3068 = vunpack.c.h.b16 %v2962
    %v3069 = vunpack.c.l.b16 %v2963
    %v3070 = vunpack.c.h.b16 %v2963
    %v3071 = vunpack.c.l.b16 %v2964
    %v3072 = vunpack.c.h.b16 %v2964
    %v3073 = vunpack.c.l.b16 %v2965
    %v3074 = vunpack.c.h.b16 %v2965
    %v3075 = vunpack.c.l.b16 %v2966
    %v3076 = vunpack.c.h.b16 %v2966
    %v3077 = vunpack.c.l.b16 %v2967
    %v3078 = vunpack.c.h.b16 %v2967
    %v3079 = vunpack.c.l.b16 %v2968
    %v3080 = vunpack.c.h.b16 %v2968
    %v3081 = vunpack.c.l.b16 %v2969
    %v3082 = vunpack.c.h.b16 %v2969
    %v3083 = vunpack.c.l.b16 %v2970
    %v3084 = vunpack.c.h.b16 %v2970
    %v3085 = vunpack.c.l.b16 %v2971
    %v3086 = vunpack.c.h.b16 %v2971
    %v3087 = vunpack.c.l.b16 %v2972
    %v3088 = vunpack.c.h.b16 %v2972
    %v3089 = vunpack.c.l.b16 %v2973
    %v3090 = vunpack.c.h.b16 %v2973
    %v3091 = vunpack.c.l.b16 %v2974
    %v3092 = vunpack.c.h.b16 %v2974
    %v3093 = vunpack.c.l.b16 %v2975
    %v3094 = vunpack.c.h.b16 %v2975
    %v3095 = vpack.c.b16 %v3035, %v3031
    %v3096 = vpack.c.b16 %v3036, %v3032
    %v3097 = vpack.c.b16 %v3037, %v3033
    %v3098 = vpack.c.b16 %v3038, %v3034
    %v3099 = vpack.c.b16 %v3043, %v3039
    %v3100 = vpack.c.b16 %v3044, %v3040
    %v3101 = vpack.c.b16 %v3045, %v3041
    %v3102 = vpack.c.b16 %v3046, %v3042
    %v3103 = vpack.c.b16 %v3051, %v3047
    %v3104 = vpack.c.b16 %v3052, %v3048
    %v3105 = vpack.c.b16 %v3053, %v3049
    %v3106 = vpack.c.b16 %v3054, %v3050
    %v3107 = vpack.c.b16 %v3059, %v3055
    %v3108 = vpack.c.b16 %v3060, %v3056
    %v3109 = vpack.c.b16 %v3061, %v3057
    %v3110 = vpack.c.b16 %v3062, %v3058
    %v3111 = vpack.c.b16 %v3067, %v3063
    %v3112 = vpack.c.b16 %v3068, %v3064
    %v3113 = vpack.c.b16 %v3069, %v3065
    %v3114 = vpack.c.b16 %v3070, %v3066
    %v3115 = vpack.c.b16 %v3075, %v3071
    %v3116 = vpack.c.b16 %v3076, %v3072
    %v3117 = vpack.c.b16 %v3077, %v3073
    %v3118 = vpack.c.b16 %v3078, %v3074
    %v3119 = vpack.c.b16 %v3083, %v3079
    %v3120 = vpack.c.b16 %v3084, %v3080
    %v3121 = vpack.c.b16 %v3085, %v3081
    %v3122 = vpack.c.b16 %v3086, %v3082
    %v3123 = vpack.c.b16 %v3091, %v3087
    %v3124 = vpack.c.b16 %v3092, %v3088
    %v3125 = vpack.c.b16 %v3093, %v3089
    %v3126 = vpack.c.b16 %v3094, %v3090
    %3159 = vmatprep.subr.bf16.mxu0 %v3124
    %3160 = vmatpush1.bf16.msra.mxu0 %v3123
    %3161 = vmatprep.subr.bf16.mxu0 %v3120
    %3162 = vmatpush1.bf16.msra.mxu0 %v3119
    %3163 = vmatprep.subr.bf16.mxu0 %v3116
    %3164 = vmatpush1.bf16.msra.mxu0 %v3115
    %3165 = vmatprep.subr.bf16.mxu0 %v3112
    %3166 = vmatpush1.bf16.msra.mxu0 %v3111
    %3167 = vmatprep.subr.bf16.mxu0 %v3108
    %3168 = vmatpush1.bf16.msra.mxu0 %v3107
    %3169 = vmatprep.subr.bf16.mxu0 %v3104
    %3170 = vmatpush1.bf16.msra.mxu0 %v3103
    %3171 = vmatprep.subr.bf16.mxu0 %v3100
    %3172 = vmatpush1.bf16.msra.mxu0 %v3099
    %3173 = vmatprep.subr.bf16.mxu0 %v3096
    %3174 = vmatpush1.bf16.msra.mxu0 %v3095
    %3175 = vmatprep.subr.bf16.mxu0 0
    %3176 = vmatpush2.bf16.msra.mxu0 0
    %3177 = vmatprep.subr.bf16.mxu0 0
    %3178 = vmatpush2.bf16.msra.mxu0 0
    %3179 = vmatprep.subr.bf16.mxu0 0
    %3180 = vmatpush2.bf16.msra.mxu0 0
    %3181 = vmatprep.subr.bf16.mxu0 0
    %3182 = vmatpush2.bf16.msra.mxu0 0
    %3183 = vmatprep.subr.bf16.mxu0 0
    %3184 = vmatpush2.bf16.msra.mxu0 0
    %3185 = vmatprep.subr.bf16.mxu0 0
    %3186 = vmatpush2.bf16.msra.mxu0 0
    %3187 = vmatprep.subr.bf16.mxu0 0
    %3188 = vmatpush2.bf16.msra.mxu0 0
    %3189 = vmatprep.subr.bf16.mxu0 0
    %3190 = vmatpush2.bf16.msra.mxu0 0
    %3191 = vmatprep.mubr.bf16.mxu0 0
    %3192 = vmatmul.mubr.bf16.gmra.mxu0 %v2939
    %v3193 = vpop.f32.mrf.mxu0
    %v3194 = vadd.f32 %v2982, %v3193
    %v3195 = vpop.f32.mrf.mxu0
    %v3196 = vadd.f32 %v2986, %v3195
    %v3197 = vpop.f32.mrf.mxu0
    %v3198 = vadd.f32 %v2982, %v3197
    %v3199 = vpop.f32.mrf.mxu0
    %v3200 = vadd.f32 %v2986, %v3199
    %3201 = vmatprep.mubr.bf16.mxu0 0
    %3202 = vmatmul.mubr.bf16.gmra.mxu0 %v2940
    %v3203 = vpop.f32.mrf.mxu0
    %v3204 = vadd.f32 %v2982, %v3203
    %v3205 = vpop.f32.mrf.mxu0
    %v3206 = vadd.f32 %v2986, %v3205
    %v3207 = vpop.f32.mrf.mxu0
    %v3208 = vadd.f32 %v2982, %v3207
    %v3209 = vpop.f32.mrf.mxu0
    %v3210 = vadd.f32 %v2986, %v3209
    %3211 = vmatprep.mubr.bf16.mxu0 0
    %3212 = vmatmul.mubr.bf16.gmra.mxu0 %v2941
    %v3213 = vpop.f32.mrf.mxu0
    %v3214 = vadd.f32 %v2982, %v3213
    %v3215 = vpop.f32.mrf.mxu0
    %v3216 = vadd.f32 %v2986, %v3215
    %v3217 = vpop.f32.mrf.mxu0
    %v3218 = vadd.f32 %v2982, %v3217
    %v3219 = vpop.f32.mrf.mxu0
    %v3220 = vadd.f32 %v2986, %v3219
    %3221 = vmatprep.mubr.bf16.mxu0 0
    %3222 = vmatmul.mubr.bf16.gmra.mxu0 %v2942
    %v3223 = vpop.f32.mrf.mxu0
    %v3224 = vadd.f32 %v2982, %v3223
    %v3225 = vpop.f32.mrf.mxu0
    %v3226 = vadd.f32 %v2986, %v3225
    %v3227 = vpop.f32.mrf.mxu0
    %v3228 = vadd.f32 %v2982, %v3227
    %v3229 = vpop.f32.mrf.mxu0
    %v3230 = vadd.f32 %v2986, %v3229
    %3231 = vdwg.mxu0
    %3232 = vmatprep.subr.bf16.mxu0 %v3126
    %3233 = vmatpush1.bf16.msra.mxu0 %v3125
    %3234 = vmatprep.subr.bf16.mxu0 %v3122
    %3235 = vmatpush1.bf16.msra.mxu0 %v3121
    %3236 = vmatprep.subr.bf16.mxu0 %v3118
    %3237 = vmatpush1.bf16.msra.mxu0 %v3117
    %3238 = vmatprep.subr.bf16.mxu0 %v3114
    %3239 = vmatpush1.bf16.msra.mxu0 %v3113
    %3240 = vmatprep.subr.bf16.mxu0 %v3110
    %3241 = vmatpush1.bf16.msra.mxu0 %v3109
    %3242 = vmatprep.subr.bf16.mxu0 %v3106
    %3243 = vmatpush1.bf16.msra.mxu0 %v3105
    %3244 = vmatprep.subr.bf16.mxu0 %v3102
    %3245 = vmatpush1.bf16.msra.mxu0 %v3101
    %3246 = vmatprep.subr.bf16.mxu0 %v3098
    %3247 = vmatpush1.bf16.msra.mxu0 %v3097
    %3248 = vmatprep.subr.bf16.mxu0 0
    %3249 = vmatpush2.bf16.msra.mxu0 0
    %3250 = vmatprep.subr.bf16.mxu0 0
    %3251 = vmatpush2.bf16.msra.mxu0 0
    %3252 = vmatprep.subr.bf16.mxu0 0
    %3253 = vmatpush2.bf16.msra.mxu0 0
    %3254 = vmatprep.subr.bf16.mxu0 0
    %3255 = vmatpush2.bf16.msra.mxu0 0
    %3256 = vmatprep.subr.bf16.mxu0 0
    %3257 = vmatpush2.bf16.msra.mxu0 0
    %3258 = vmatprep.subr.bf16.mxu0 0
    %3259 = vmatpush2.bf16.msra.mxu0 0
    %3260 = vmatprep.subr.bf16.mxu0 0
    %3261 = vmatpush2.bf16.msra.mxu0 0
    %3262 = vmatprep.subr.bf16.mxu0 0
    %3263 = vmatpush2.bf16.msra.mxu0 0
    %3264 = vmatprep.mubr.bf16.mxu0 0
    %3265 = vmatmul.mubr.bf16.gmra.mxu0 %v2939
    %v3266 = vpop.f32.mrf.mxu0
    %v3267 = vadd.f32 %v2990, %v3266
    %v3268 = vpop.f32.mrf.mxu0
    %v3269 = vadd.f32 %v2994, %v3268
    %v3270 = vpop.f32.mrf.mxu0
    %v3271 = vadd.f32 %v2990, %v3270
    %v3272 = vpop.f32.mrf.mxu0
    %v3273 = vadd.f32 %v2994, %v3272
    %3274 = vmatprep.mubr.bf16.mxu0 0
    %3275 = vmatmul.mubr.bf16.gmra.mxu0 %v2940
    %v3276 = vpop.f32.mrf.mxu0
    %v3277 = vadd.f32 %v2990, %v3276
    %v3278 = vpop.f32.mrf.mxu0
    %v3279 = vadd.f32 %v2994, %v3278
    %v3280 = vpop.f32.mrf.mxu0
    %v3281 = vadd.f32 %v2990, %v3280
    %v3282 = vpop.f32.mrf.mxu0
    %v3283 = vadd.f32 %v2994, %v3282
    %3284 = vmatprep.mubr.bf16.mxu0 0
    %3285 = vmatmul.mubr.bf16.gmra.mxu0 %v2941
    %v3286 = vpop.f32.mrf.mxu0
    %v3287 = vadd.f32 %v2990, %v3286
    %v3288 = vpop.f32.mrf.mxu0
    %v3289 = vadd.f32 %v2994, %v3288
    %v3290 = vpop.f32.mrf.mxu0
    %v3291 = vadd.f32 %v2990, %v3290
    %v3292 = vpop.f32.mrf.mxu0
    %v3293 = vadd.f32 %v2994, %v3292
    %3294 = vmatprep.mubr.bf16.mxu0 0
    %3295 = vmatmul.mubr.bf16.gmra.mxu0 %v2942
    %v3296 = vpop.f32.mrf.mxu0
    %v3297 = vadd.f32 %v2990, %v3296
    %v3298 = vpop.f32.mrf.mxu0
    %v3299 = vadd.f32 %v2994, %v3298
    %v3300 = vpop.f32.mrf.mxu0
    %v3301 = vadd.f32 %v2990, %v3300
    %v3302 = vpop.f32.mrf.mxu0
    %v3303 = vadd.f32 %v2994, %v3302
    %3304 = vdwg.mxu0
    %3305 = vst [vmem:[#allocation3] sm:$0xff] %v3194
    %3306 = vst [vmem:[#allocation3 + $0x8] sm:$0xff] %v3196
    %3307 = vst [vmem:[#allocation3 + $0x10] sm:$0xff] %v3267
    %3308 = vst [vmem:[#allocation3 + $0x18] sm:$0xff] %v3269
    %3309 = vst [vmem:[#allocation3 + $0x20] sm:$0xff] %v3198
    %3310 = vst [vmem:[#allocation3 + $0x28] sm:$0xff] %v3200
    %3311 = vst [vmem:[#allocation3 + $0x30] sm:$0xff] %v3271
    %3312 = vst [vmem:[#allocation3 + $0x38] sm:$0xff] %v3273
    %3313 = vst [vmem:[#allocation3 + $0x40] sm:$0xff] %v3204
    %3314 = vst [vmem:[#allocation3 + $0x48] sm:$0xff] %v3206
    %3315 = vst [vmem:[#allocation3 + $0x50] sm:$0xff] %v3277
    %3316 = vst [vmem:[#allocation3 + $0x58] sm:$0xff] %v3279
    %3317 = vst [vmem:[#allocation3 + $0x60] sm:$0xff] %v3208
    %3318 = vst [vmem:[#allocation3 + $0x68] sm:$0xff] %v3210
    %3319 = vst [vmem:[#allocation3 + $0x70] sm:$0xff] %v3281
    %3320 = vst [vmem:[#allocation3 + $0x78] sm:$0xff] %v3283
    %3321 = vst [vmem:[#allocation3 + $0x80] sm:$0xff] %v3214
    %3322 = vst [vmem:[#allocation3 + $0x88] sm:$0xff] %v3216
    %3323 = vst [vmem:[#allocation3 + $0x90] sm:$0xff] %v3287
    %3324 = vst [vmem:[#allocation3 + $0x98] sm:$0xff] %v3289
    %3325 = vst [vmem:[#allocation3 + $0xa0] sm:$0xff] %v3218
    %3326 = vst [vmem:[#allocation3 + $0xa8] sm:$0xff] %v3220
    %3327 = vst [vmem:[#allocation3 + $0xb0] sm:$0xff] %v3291
    %3328 = vst [vmem:[#allocation3 + $0xb8] sm:$0xff] %v3293
    %3329 = vst [vmem:[#allocation3 + $0xc0] sm:$0xff] %v3224
    %3330 = vst [vmem:[#allocation3 + $0xc8] sm:$0xff] %v3226
    %3331 = vst [vmem:[#allocation3 + $0xd0] sm:$0xff] %v3297
    %3332 = vst [vmem:[#allocation3 + $0xd8] sm:$0xff] %v3299
    %3333 = vst [vmem:[#allocation3 + $0xe0] sm:$0xff] %v3228
    %3334 = vst [vmem:[#allocation3 + $0xe8] sm:$0xff] %v3230
    %3335 = vst [vmem:[#allocation3 + $0xf0] sm:$0xff] %v3301
    %3336 = vst [vmem:[#allocation3 + $0xf8] sm:$0xff] %v3303
    %s3337 = scalar_lea.vmem %s4, 8
    %v3338 = vld [vmem:[%s3337] sm:$0xff]
    %s3339 = scalar_lea.vmem %s5, 8
    %v3340 = vld [vmem:[%s3339] sm:$0xff]
    %v3341 = vld [vmem:[#allocation3] sm:$0xff]
    %v3342 = vld [vmem:[#allocation3 + $0x8] sm:$0xff]
    %v3343 = vld [vmem:[#allocation3 + $0x10] sm:$0xff]
    %v3344 = vld [vmem:[#allocation3 + $0x18] sm:$0xff]
    %v3345 = vpack.c.bf16 %v3338, %v3338
    %s3346 = scalar_lea.vmem [#allocation4], 256
    %v3347 = vld [vmem:[%s3346] sm:$0xff]
    %v3348 = vld [vmem:[%s3346 + $0x8] sm:$0xff]
    %v3349 = vld [vmem:[%s3346 + $0x10] sm:$0xff]
    %v3350 = vld [vmem:[%s3346 + $0x18] sm:$0xff]
    %v3351 = vld [vmem:[%s3346 + $0x20] sm:$0xff]
    %v3352 = vld [vmem:[%s3346 + $0x28] sm:$0xff]
    %v3353 = vld [vmem:[%s3346 + $0x30] sm:$0xff]
    %v3354 = vld [vmem:[%s3346 + $0x38] sm:$0xff]
    %v3355 = vld [vmem:[%s3346 + $0x40] sm:$0xff]
    %v3356 = vld [vmem:[%s3346 + $0x48] sm:$0xff]
    %v3357 = vld [vmem:[%s3346 + $0x50] sm:$0xff]
    %v3358 = vld [vmem:[%s3346 + $0x58] sm:$0xff]
    %v3359 = vld [vmem:[%s3346 + $0x60] sm:$0xff]
    %v3360 = vld [vmem:[%s3346 + $0x68] sm:$0xff]
    %v3361 = vld [vmem:[%s3346 + $0x70] sm:$0xff]
    %v3362 = vld [vmem:[%s3346 + $0x78] sm:$0xff]
    %v3363 = vld [vmem:[%s3346 + $0x80] sm:$0xff]
    %v3364 = vld [vmem:[%s3346 + $0x88] sm:$0xff]
    %v3365 = vld [vmem:[%s3346 + $0x90] sm:$0xff]
    %v3366 = vld [vmem:[%s3346 + $0x98] sm:$0xff]
    %v3367 = vld [vmem:[%s3346 + $0xa0] sm:$0xff]
    %v3368 = vld [vmem:[%s3346 + $0xa8] sm:$0xff]
    %v3369 = vld [vmem:[%s3346 + $0xb0] sm:$0xff]
    %v3370 = vld [vmem:[%s3346 + $0xb8] sm:$0xff]
    %v3371 = vld [vmem:[%s3346 + $0xc0] sm:$0xff]
    %v3372 = vld [vmem:[%s3346 + $0xc8] sm:$0xff]
    %v3373 = vld [vmem:[%s3346 + $0xd0] sm:$0xff]
    %v3374 = vld [vmem:[%s3346 + $0xd8] sm:$0xff]
    %v3375 = vld [vmem:[%s3346 + $0xe0] sm:$0xff]
    %v3376 = vld [vmem:[%s3346 + $0xe8] sm:$0xff]
    %v3377 = vld [vmem:[%s3346 + $0xf0] sm:$0xff]
    %v3378 = vld [vmem:[%s3346 + $0xf8] sm:$0xff]
    %v3411 = vunpack.c.l.b16 %v3347
    %v3412 = vunpack.c.h.b16 %v3347
    %v3413 = vunpack.c.l.b16 %v3348
    %v3414 = vunpack.c.h.b16 %v3348
    %v3415 = vunpack.c.l.b16 %v3349
    %v3416 = vunpack.c.h.b16 %v3349
    %v3417 = vunpack.c.l.b16 %v3350
    %v3418 = vunpack.c.h.b16 %v3350
    %v3419 = vunpack.c.l.b16 %v3351
    %v3420 = vunpack.c.h.b16 %v3351
    %v3421 = vunpack.c.l.b16 %v3352
    %v3422 = vunpack.c.h.b16 %v3352
    %v3423 = vunpack.c.l.b16 %v3353
    %v3424 = vunpack.c.h.b16 %v3353
    %v3425 = vunpack.c.l.b16 %v3354
    %v3426 = vunpack.c.h.b16 %v3354
    %v3427 = vunpack.c.l.b16 %v3355
    %v3428 = vunpack.c.h.b16 %v3355
    %v3429 = vunpack.c.l.b16 %v3356
    %v3430 = vunpack.c.h.b16 %v3356
    %v3431 = vunpack.c.l.b16 %v3357
    %v3432 = vunpack.c.h.b16 %v3357
    %v3433 = vunpack.c.l.b16 %v3358
    %v3434 = vunpack.c.h.b16 %v3358
    %v3435 = vunpack.c.l.b16 %v3359
    %v3436 = vunpack.c.h.b16 %v3359
    %v3437 = vunpack.c.l.b16 %v3360
    %v3438 = vunpack.c.h.b16 %v3360
    %v3439 = vunpack.c.l.b16 %v3361
    %v3440 = vunpack.c.h.b16 %v3361
    %v3441 = vunpack.c.l.b16 %v3362
    %v3442 = vunpack.c.h.b16 %v3362
    %v3443 = vunpack.c.l.b16 %v3363
    %v3444 = vunpack.c.h.b16 %v3363
    %v3445 = vunpack.c.l.b16 %v3364
    %v3446 = vunpack.c.h.b16 %v3364
    %v3447 = vunpack.c.l.b16 %v3365
    %v3448 = vunpack.c.h.b16 %v3365
    %v3449 = vunpack.c.l.b16 %v3366
    %v3450 = vunpack.c.h.b16 %v3366
    %v3451 = vunpack.c.l.b16 %v3367
    %v3452 = vunpack.c.h.b16 %v3367
    %v3453 = vunpack.c.l.b16 %v3368
    %v3454 = vunpack.c.h.b16 %v3368
    %v3455 = vunpack.c.l.b16 %v3369
    %v3456 = vunpack.c.h.b16 %v3369
    %v3457 = vunpack.c.l.b16 %v3370
    %v3458 = vunpack.c.h.b16 %v3370
    %v3459 = vunpack.c.l.b16 %v3371
    %v3460 = vunpack.c.h.b16 %v3371
    %v3461 = vunpack.c.l.b16 %v3372
    %v3462 = vunpack.c.h.b16 %v3372
    %v3463 = vunpack.c.l.b16 %v3373
    %v3464 = vunpack.c.h.b16 %v3373
    %v3465 = vunpack.c.l.b16 %v3374
    %v3466 = vunpack.c.h.b16 %v3374
    %v3467 = vunpack.c.l.b16 %v3375
    %v3468 = vunpack.c.h.b16 %v3375
    %v3469 = vunpack.c.l.b16 %v3376
    %v3470 = vunpack.c.h.b16 %v3376
    %v3471 = vunpack.c.l.b16 %v3377
    %v3472 = vunpack.c.h.b16 %v3377
    %v3473 = vunpack.c.l.b16 %v3378
    %v3474 = vunpack.c.h.b16 %v3378
    %v3475 = vpack.c.b16 %v3415, %v3411
    %v3476 = vpack.c.b16 %v3416, %v3412
    %v3477 = vpack.c.b16 %v3417, %v3413
    %v3478 = vpack.c.b16 %v3418, %v3414
    %v3479 = vpack.c.b16 %v3423, %v3419
    %v3480 = vpack.c.b16 %v3424, %v3420
    %v3481 = vpack.c.b16 %v3425, %v3421
    %v3482 = vpack.c.b16 %v3426, %v3422
    %v3483 = vpack.c.b16 %v3431, %v3427
    %v3484 = vpack.c.b16 %v3432, %v3428
    %v3485 = vpack.c.b16 %v3433, %v3429
    %v3486 = vpack.c.b16 %v3434, %v3430
    %v3487 = vpack.c.b16 %v3439, %v3435
    %v3488 = vpack.c.b16 %v3440, %v3436
    %v3489 = vpack.c.b16 %v3441, %v3437
    %v3490 = vpack.c.b16 %v3442, %v3438
    %v3491 = vpack.c.b16 %v3447, %v3443
    %v3492 = vpack.c.b16 %v3448, %v3444
    %v3493 = vpack.c.b16 %v3449, %v3445
    %v3494 = vpack.c.b16 %v3450, %v3446
    %v3495 = vpack.c.b16 %v3455, %v3451
    %v3496 = vpack.c.b16 %v3456, %v3452
    %v3497 = vpack.c.b16 %v3457, %v3453
    %v3498 = vpack.c.b16 %v3458, %v3454
    %v3499 = vpack.c.b16 %v3463, %v3459
    %v3500 = vpack.c.b16 %v3464, %v3460
    %v3501 = vpack.c.b16 %v3465, %v3461
    %v3502 = vpack.c.b16 %v3466, %v3462
    %v3503 = vpack.c.b16 %v3471, %v3467
    %v3504 = vpack.c.b16 %v3472, %v3468
    %v3505 = vpack.c.b16 %v3473, %v3469
    %v3506 = vpack.c.b16 %v3474, %v3470
    %3539 = vmatprep.subr.bf16.mxu0 %v3504
    %3540 = vmatpush1.bf16.msra.mxu0 %v3503
    %3541 = vmatprep.subr.bf16.mxu0 %v3500
    %3542 = vmatpush1.bf16.msra.mxu0 %v3499
    %3543 = vmatprep.subr.bf16.mxu0 %v3496
    %3544 = vmatpush1.bf16.msra.mxu0 %v3495
    %3545 = vmatprep.subr.bf16.mxu0 %v3492
    %3546 = vmatpush1.bf16.msra.mxu0 %v3491
    %3547 = vmatprep.subr.bf16.mxu0 %v3488
    %3548 = vmatpush1.bf16.msra.mxu0 %v3487
    %3549 = vmatprep.subr.bf16.mxu0 %v3484
    %3550 = vmatpush1.bf16.msra.mxu0 %v3483
    %3551 = vmatprep.subr.bf16.mxu0 %v3480
    %3552 = vmatpush1.bf16.msra.mxu0 %v3479
    %3553 = vmatprep.subr.bf16.mxu0 %v3476
    %3554 = vmatpush1.bf16.msra.mxu0 %v3475
    %3555 = vmatprep.subr.bf16.mxu0 0
    %3556 = vmatpush2.bf16.msra.mxu0 0
    %3557 = vmatprep.subr.bf16.mxu0 0
    %3558 = vmatpush2.bf16.msra.mxu0 0
    %3559 = vmatprep.subr.bf16.mxu0 0
    %3560 = vmatpush2.bf16.msra.mxu0 0
    %3561 = vmatprep.subr.bf16.mxu0 0
    %3562 = vmatpush2.bf16.msra.mxu0 0
    %3563 = vmatprep.subr.bf16.mxu0 0
    %3564 = vmatpush2.bf16.msra.mxu0 0
    %3565 = vmatprep.subr.bf16.mxu0 0
    %3566 = vmatpush2.bf16.msra.mxu0 0
    %3567 = vmatprep.subr.bf16.mxu0 0
    %3568 = vmatpush2.bf16.msra.mxu0 0
    %3569 = vmatprep.subr.bf16.mxu0 0
    %3570 = vmatpush2.bf16.msra.mxu0 0
    %3571 = vmatprep.mubr.bf16.mxu0 0
    %3572 = vmatmul.mubr.bf16.gmra.mxu0 %v3345
    %v3573 = vpop.f32.mrf.mxu0
    %v3574 = vadd.f32 0.0, %v3573
    %v3575 = vpop.f32.mrf.mxu0
    %v3576 = vadd.f32 0.0, %v3575
    %v3577 = vpop.f32.mrf.mxu0
    %v3578 = vpop.f32.mrf.mxu0
    %3579 = vdwg.mxu0
    %3580 = vmatprep.subr.bf16.mxu0 %v3506
    %3581 = vmatpush1.bf16.msra.mxu0 %v3505
    %3582 = vmatprep.subr.bf16.mxu0 %v3502
    %3583 = vmatpush1.bf16.msra.mxu0 %v3501
    %3584 = vmatprep.subr.bf16.mxu0 %v3498
    %3585 = vmatpush1.bf16.msra.mxu0 %v3497
    %3586 = vmatprep.subr.bf16.mxu0 %v3494
    %3587 = vmatpush1.bf16.msra.mxu0 %v3493
    %3588 = vmatprep.subr.bf16.mxu0 %v3490
    %3589 = vmatpush1.bf16.msra.mxu0 %v3489
    %3590 = vmatprep.subr.bf16.mxu0 %v3486
    %3591 = vmatpush1.bf16.msra.mxu0 %v3485
    %3592 = vmatprep.subr.bf16.mxu0 %v3482
    %3593 = vmatpush1.bf16.msra.mxu0 %v3481
    %3594 = vmatprep.subr.bf16.mxu0 %v3478
    %3595 = vmatpush1.bf16.msra.mxu0 %v3477
    %3596 = vmatprep.subr.bf16.mxu0 0
    %3597 = vmatpush2.bf16.msra.mxu0 0
    %3598 = vmatprep.subr.bf16.mxu0 0
    %3599 = vmatpush2.bf16.msra.mxu0 0
    %3600 = vmatprep.subr.bf16.mxu0 0
    %3601 = vmatpush2.bf16.msra.mxu0 0
    %3602 = vmatprep.subr.bf16.mxu0 0
    %3603 = vmatpush2.bf16.msra.mxu0 0
    %3604 = vmatprep.subr.bf16.mxu0 0
    %3605 = vmatpush2.bf16.msra.mxu0 0
    %3606 = vmatprep.subr.bf16.mxu0 0
    %3607 = vmatpush2.bf16.msra.mxu0 0
    %3608 = vmatprep.subr.bf16.mxu0 0
    %3609 = vmatpush2.bf16.msra.mxu0 0
    %3610 = vmatprep.subr.bf16.mxu0 0
    %3611 = vmatpush2.bf16.msra.mxu0 0
    %3612 = vmatprep.mubr.bf16.mxu0 0
    %3613 = vmatmul.mubr.bf16.gmra.mxu0 %v3345
    %v3614 = vpop.f32.mrf.mxu0
    %v3615 = vadd.f32 0.0, %v3614
    %v3616 = vpop.f32.mrf.mxu0
    %v3617 = vadd.f32 0.0, %v3616
    %v3618 = vpop.f32.mrf.mxu0
    %v3619 = vpop.f32.mrf.mxu0
    %3620 = vdwg.mxu0
    %v3621 = vadd.f32 %v3341, %v3574
    %v3622 = vadd.f32 %v3342, %v3576
    %v3623 = vadd.f32 %v3343, %v3615
    %v3624 = vadd.f32 %v3344, %v3617
    %v3625 = vxor.u32 %v3621, 2147483648
    %v3626 = vmul.f32 %v3625, 1.442695
    %v3627 = vpow.pop %v3626
    %v3628 = vadd.f32 %v3627, 1.0
    %v3629 = vrcp.pop %v3628
    %v3630 = vmul.f32 1.0, %v3629
    %v3631 = vxor.u32 %v3622, 2147483648
    %v3632 = vmul.f32 %v3631, 1.442695
    %v3633 = vpow.pop %v3632
    %v3634 = vadd.f32 %v3633, 1.0
    %v3635 = vrcp.pop %v3634
    %v3636 = vmul.f32 1.0, %v3635
    %v3637 = vtanh.pop %v3623
    %v3638 = vxor.u32 %v3624, 2147483648
    %v3639 = vmul.f32 %v3638, 1.442695
    %v3640 = vpow.pop %v3639
    %v3641 = vadd.f32 %v3640, 1.0
    %v3642 = vrcp.pop %v3641
    %v3643 = vmul.f32 1.0, %v3642
    %v3644 = vmul.f32 %v3636, %v3340
    %v3645 = vmul.f32 %v3630, %v3637
    %v3646 = vadd.f32 %v3644, %v3645
    %v3647 = vtanh.pop %v3646
    %v3648 = vmul.f32 %v3643, %v3647
    %3649 = vst [vmem:[#allocation2] sm:$0xff] %v3648
    %v3650 = vld [vmem:[#allocation3 + $0x20] sm:$0xff]
    %v3651 = vld [vmem:[#allocation3 + $0x28] sm:$0xff]
    %v3652 = vld [vmem:[#allocation3 + $0x30] sm:$0xff]
    %v3653 = vld [vmem:[#allocation3 + $0x38] sm:$0xff]
    %v3654 = vpack.c.bf16 %v3648, %v3648
    %v3655 = vld [vmem:[%s3346] sm:$0xff]
    %v3656 = vld [vmem:[%s3346 + $0x8] sm:$0xff]
    %v3657 = vld [vmem:[%s3346 + $0x10] sm:$0xff]
    %v3658 = vld [vmem:[%s3346 + $0x18] sm:$0xff]
    %v3659 = vld [vmem:[%s3346 + $0x20] sm:$0xff]
    %v3660 = vld [vmem:[%s3346 + $0x28] sm:$0xff]
    %v3661 = vld [vmem:[%s3346 + $0x30] sm:$0xff]
    %v3662 = vld [vmem:[%s3346 + $0x38] sm:$0xff]
    %v3663 = vld [vmem:[%s3346 + $0x40] sm:$0xff]
    %v3664 = vld [vmem:[%s3346 + $0x48] sm:$0xff]
    %v3665 = vld [vmem:[%s3346 + $0x50] sm:$0xff]
    %v3666 = vld [vmem:[%s3346 + $0x58] sm:$0xff]
    %v3667 = vld [vmem:[%s3346 + $0x60] sm:$0xff]
    %v3668 = vld [vmem:[%s3346 + $0x68] sm:$0xff]
    %v3669 = vld [vmem:[%s3346 + $0x70] sm:$0xff]
    %v3670 = vld [vmem:[%s3346 + $0x78] sm:$0xff]
    %v3671 = vld [vmem:[%s3346 + $0x80] sm:$0xff]
    %v3672 = vld [vmem:[%s3346 + $0x88] sm:$0xff]
    %v3673 = vld [vmem:[%s3346 + $0x90] sm:$0xff]
    %v3674 = vld [vmem:[%s3346 + $0x98] sm:$0xff]
    %v3675 = vld [vmem:[%s3346 + $0xa0] sm:$0xff]
    %v3676 = vld [vmem:[%s3346 + $0xa8] sm:$0xff]
    %v3677 = vld [vmem:[%s3346 + $0xb0] sm:$0xff]
    %v3678 = vld [vmem:[%s3346 + $0xb8] sm:$0xff]
    %v3679 = vld [vmem:[%s3346 + $0xc0] sm:$0xff]
    %v3680 = vld [vmem:[%s3346 + $0xc8] sm:$0xff]
    %v3681 = vld [vmem:[%s3346 + $0xd0] sm:$0xff]
    %v3682 = vld [vmem:[%s3346 + $0xd8] sm:$0xff]
    %v3683 = vld [vmem:[%s3346 + $0xe0] sm:$0xff]
    %v3684 = vld [vmem:[%s3346 + $0xe8] sm:$0xff]
    %v3685 = vld [vmem:[%s3346 + $0xf0] sm:$0xff]
    %v3686 = vld [vmem:[%s3346 + $0xf8] sm:$0xff]
    %v3719 = vunpack.c.l.b16 %v3655
    %v3720 = vunpack.c.h.b16 %v3655
    %v3721 = vunpack.c.l.b16 %v3656
    %v3722 = vunpack.c.h.b16 %v3656
    %v3723 = vunpack.c.l.b16 %v3657
    %v3724 = vunpack.c.h.b16 %v3657
    %v3725 = vunpack.c.l.b16 %v3658
    %v3726 = vunpack.c.h.b16 %v3658
    %v3727 = vunpack.c.l.b16 %v3659
    %v3728 = vunpack.c.h.b16 %v3659
    %v3729 = vunpack.c.l.b16 %v3660
    %v3730 = vunpack.c.h.b16 %v3660
    %v3731 = vunpack.c.l.b16 %v3661
    %v3732 = vunpack.c.h.b16 %v3661
    %v3733 = vunpack.c.l.b16 %v3662
    %v3734 = vunpack.c.h.b16 %v3662
    %v3735 = vunpack.c.l.b16 %v3663
    %v3736 = vunpack.c.h.b16 %v3663
    %v3737 = vunpack.c.l.b16 %v3664
    %v3738 = vunpack.c.h.b16 %v3664
    %v3739 = vunpack.c.l.b16 %v3665
    %v3740 = vunpack.c.h.b16 %v3665
    %v3741 = vunpack.c.l.b16 %v3666
    %v3742 = vunpack.c.h.b16 %v3666
    %v3743 = vunpack.c.l.b16 %v3667
    %v3744 = vunpack.c.h.b16 %v3667
    %v3745 = vunpack.c.l.b16 %v3668
    %v3746 = vunpack.c.h.b16 %v3668
    %v3747 = vunpack.c.l.b16 %v3669
    %v3748 = vunpack.c.h.b16 %v3669
    %v3749 = vunpack.c.l.b16 %v3670
    %v3750 = vunpack.c.h.b16 %v3670
    %v3751 = vunpack.c.l.b16 %v3671
    %v3752 = vunpack.c.h.b16 %v3671
    %v3753 = vunpack.c.l.b16 %v3672
    %v3754 = vunpack.c.h.b16 %v3672
    %v3755 = vunpack.c.l.b16 %v3673
    %v3756 = vunpack.c.h.b16 %v3673
    %v3757 = vunpack.c.l.b16 %v3674
    %v3758 = vunpack.c.h.b16 %v3674
    %v3759 = vunpack.c.l.b16 %v3675
    %v3760 = vunpack.c.h.b16 %v3675
    %v3761 = vunpack.c.l.b16 %v3676
    %v3762 = vunpack.c.h.b16 %v3676
    %v3763 = vunpack.c.l.b16 %v3677
    %v3764 = vunpack.c.h.b16 %v3677
    %v3765 = vunpack.c.l.b16 %v3678
    %v3766 = vunpack.c.h.b16 %v3678
    %v3767 = vunpack.c.l.b16 %v3679
    %v3768 = vunpack.c.h.b16 %v3679
    %v3769 = vunpack.c.l.b16 %v3680
    %v3770 = vunpack.c.h.b16 %v3680
    %v3771 = vunpack.c.l.b16 %v3681
    %v3772 = vunpack.c.h.b16 %v3681
    %v3773 = vunpack.c.l.b16 %v3682
    %v3774 = vunpack.c.h.b16 %v3682
    %v3775 = vunpack.c.l.b16 %v3683
    %v3776 = vunpack.c.h.b16 %v3683
    %v3777 = vunpack.c.l.b16 %v3684
    %v3778 = vunpack.c.h.b16 %v3684
    %v3779 = vunpack.c.l.b16 %v3685
    %v3780 = vunpack.c.h.b16 %v3685
    %v3781 = vunpack.c.l.b16 %v3686
    %v3782 = vunpack.c.h.b16 %v3686
    %v3783 = vpack.c.b16 %v3723, %v3719
    %v3784 = vpack.c.b16 %v3724, %v3720
    %v3785 = vpack.c.b16 %v3725, %v3721
    %v3786 = vpack.c.b16 %v3726, %v3722
    %v3787 = vpack.c.b16 %v3731, %v3727
    %v3788 = vpack.c.b16 %v3732, %v3728
    %v3789 = vpack.c.b16 %v3733, %v3729
    %v3790 = vpack.c.b16 %v3734, %v3730
    %v3791 = vpack.c.b16 %v3739, %v3735
    %v3792 = vpack.c.b16 %v3740, %v3736
    %v3793 = vpack.c.b16 %v3741, %v3737
    %v3794 = vpack.c.b16 %v3742, %v3738
    %v3795 = vpack.c.b16 %v3747, %v3743
    %v3796 = vpack.c.b16 %v3748, %v3744
    %v3797 = vpack.c.b16 %v3749, %v3745
    %v3798 = vpack.c.b16 %v3750, %v3746
    %v3799 = vpack.c.b16 %v3755, %v3751
    %v3800 = vpack.c.b16 %v3756, %v3752
    %v3801 = vpack.c.b16 %v3757, %v3753
    %v3802 = vpack.c.b16 %v3758, %v3754
    %v3803 = vpack.c.b16 %v3763, %v3759
    %v3804 = vpack.c.b16 %v3764, %v3760
    %v3805 = vpack.c.b16 %v3765, %v3761
    %v3806 = vpack.c.b16 %v3766, %v3762
    %v3807 = vpack.c.b16 %v3771, %v3767
    %v3808 = vpack.c.b16 %v3772, %v3768
    %v3809 = vpack.c.b16 %v3773, %v3769
    %v3810 = vpack.c.b16 %v3774, %v3770
    %v3811 = vpack.c.b16 %v3779, %v3775
    %v3812 = vpack.c.b16 %v3780, %v3776
    %v3813 = vpack.c.b16 %v3781, %v3777
    %v3814 = vpack.c.b16 %v3782, %v3778
    %3847 = vmatprep.subr.bf16.mxu0 %v3812
    %3848 = vmatpush1.bf16.msra.mxu0 %v3811
    %3849 = vmatprep.subr.bf16.mxu0 %v3808
    %3850 = vmatpush1.bf16.msra.mxu0 %v3807
    %3851 = vmatprep.subr.bf16.mxu0 %v3804
    %3852 = vmatpush1.bf16.msra.mxu0 %v3803
    %3853 = vmatprep.subr.bf16.mxu0 %v3800
    %3854 = vmatpush1.bf16.msra.mxu0 %v3799
    %3855 = vmatprep.subr.bf16.mxu0 %v3796
    %3856 = vmatpush1.bf16.msra.mxu0 %v3795
    %3857 = vmatprep.subr.bf16.mxu0 %v3792
    %3858 = vmatpush1.bf16.msra.mxu0 %v3791
    %3859 = vmatprep.subr.bf16.mxu0 %v3788
    %3860 = vmatpush1.bf16.msra.mxu0 %v3787
    %3861 = vmatprep.subr.bf16.mxu0 %v3784
    %3862 = vmatpush1.bf16.msra.mxu0 %v3783
    %3863 = vmatprep.subr.bf16.mxu0 0
    %3864 = vmatpush2.bf16.msra.mxu0 0
    %3865 = vmatprep.subr.bf16.mxu0 0
    %3866 = vmatpush2.bf16.msra.mxu0 0
    %3867 = vmatprep.subr.bf16.mxu0 0
    %3868 = vmatpush2.bf16.msra.mxu0 0
    %3869 = vmatprep.subr.bf16.mxu0 0
    %3870 = vmatpush2.bf16.msra.mxu0 0
    %3871 = vmatprep.subr.bf16.mxu0 0
    %3872 = vmatpush2.bf16.msra.mxu0 0
    %3873 = vmatprep.subr.bf16.mxu0 0
    %3874 = vmatpush2.bf16.msra.mxu0 0
    %3875 = vmatprep.subr.bf16.mxu0 0
    %3876 = vmatpush2.bf16.msra.mxu0 0
    %3877 = vmatprep.subr.bf16.mxu0 0
    %3878 = vmatpush2.bf16.msra.mxu0 0
    %3879 = vmatprep.mubr.bf16.mxu0 0
    %3880 = vmatmul.mubr.bf16.gmra.mxu0 %v3654
    %v3881 = vpop.f32.mrf.mxu0
    %v3882 = vadd.f32 0.0, %v3881
    %v3883 = vpop.f32.mrf.mxu0
    %v3884 = vadd.f32 0.0, %v3883
    %v3885 = vpop.f32.mrf.mxu0
    %v3886 = vpop.f32.mrf.mxu0
    %3887 = vdwg.mxu0
    %3888 = vmatprep.subr.bf16.mxu0 %v3814
    %3889 = vmatpush1.bf16.msra.mxu0 %v3813
    %3890 = vmatprep.subr.bf16.mxu0 %v3810
    %3891 = vmatpush1.bf16.msra.mxu0 %v3809
    %3892 = vmatprep.subr.bf16.mxu0 %v3806
    %3893 = vmatpush1.bf16.msra.mxu0 %v3805
    %3894 = vmatprep.subr.bf16.mxu0 %v3802
    %3895 = vmatpush1.bf16.msra.mxu0 %v3801
    %3896 = vmatprep.subr.bf16.mxu0 %v3798
    %3897 = vmatpush1.bf16.msra.mxu0 %v3797
    %3898 = vmatprep.subr.bf16.mxu0 %v3794
    %3899 = vmatpush1.bf16.msra.mxu0 %v3793
    %3900 = vmatprep.subr.bf16.mxu0 %v3790
    %3901 = vmatpush1.bf16.msra.mxu0 %v3789
    %3902 = vmatprep.subr.bf16.mxu0 %v3786
    %3903 = vmatpush1.bf16.msra.mxu0 %v3785
    %3904 = vmatprep.subr.bf16.mxu0 0
    %3905 = vmatpush2.bf16.msra.mxu0 0
    %3906 = vmatprep.subr.bf16.mxu0 0
    %3907 = vmatpush2.bf16.msra.mxu0 0
    %3908 = vmatprep.subr.bf16.mxu0 0
    %3909 = vmatpush2.bf16.msra.mxu0 0
    %3910 = vmatprep.subr.bf16.mxu0 0
    %3911 = vmatpush2.bf16.msra.mxu0 0
    %3912 = vmatprep.subr.bf16.mxu0 0
    %3913 = vmatpush2.bf16.msra.mxu0 0
    %3914 = vmatprep.subr.bf16.mxu0 0
    %3915 = vmatpush2.bf16.msra.mxu0 0
    %3916 = vmatprep.subr.bf16.mxu0 0
    %3917 = vmatpush2.bf16.msra.mxu0 0
    %3918 = vmatprep.subr.bf16.mxu0 0
    %3919 = vmatpush2.bf16.msra.mxu0 0
    %3920 = vmatprep.mubr.bf16.mxu0 0
    %3921 = vmatmul.mubr.bf16.gmra.mxu0 %v3654
    %v3922 = vpop.f32.mrf.mxu0
    %v3923 = vadd.f32 0.0, %v3922
    %v3924 = vpop.f32.mrf.mxu0
    %v3925 = vadd.f32 0.0, %v3924
    %v3926 = vpop.f32.mrf.mxu0
    %v3927 = vpop.f32.mrf.mxu0
    %3928 = vdwg.mxu0
    %v3929 = vadd.f32 %v3650, %v3882
    %v3930 = vadd.f32 %v3651, %v3884
    %v3931 = vadd.f32 %v3652, %v3923
    %v3932 = vadd.f32 %v3653, %v3925
    %v3933 = vxor.u32 %v3929, 2147483648
    %v3934 = vmul.f32 %v3933, 1.442695
    %v3935 = vpow.pop %v3934
    %v3936 = vadd.f32 %v3935, 1.0
    %v3937 = vrcp.pop %v3936
    %v3938 = vmul.f32 1.0, %v3937
    %v3939 = vxor.u32 %v3930, 2147483648
    %v3940 = vmul.f32 %v3939, 1.442695
    %v3941 = vpow.pop %v3940
    %v3942 = vadd.f32 %v3941, 1.0
    %v3943 = vrcp.pop %v3942
    %v3944 = vmul.f32 1.0, %v3943
    %v3945 = vtanh.pop %v3931
    %v3946 = vxor.u32 %v3932, 2147483648
    %v3947 = vmul.f32 %v3946, 1.442695
    %v3948 = vpow.pop %v3947
    %v3949 = vadd.f32 %v3948, 1.0
    %v3950 = vrcp.pop %v3949
    %v3951 = vmul.f32 1.0, %v3950
    %v3952 = vmul.f32 %v3944, %v3646
    %v3953 = vmul.f32 %v3938, %v3945
    %v3954 = vadd.f32 %v3952, %v3953
    %v3955 = vtanh.pop %v3954
    %v3956 = vmul.f32 %v3951, %v3955
    %3957 = vst [vmem:[%s1073] sm:$0xff] %v3956
    %v3958 = vld [vmem:[#allocation3 + $0x40] sm:$0xff]
    %v3959 = vld [vmem:[#allocation3 + $0x48] sm:$0xff]
    %v3960 = vld [vmem:[#allocation3 + $0x50] sm:$0xff]
    %v3961 = vld [vmem:[#allocation3 + $0x58] sm:$0xff]
    %v3962 = vpack.c.bf16 %v3956, %v3956
    %v3963 = vld [vmem:[%s3346] sm:$0xff]
    %v3964 = vld [vmem:[%s3346 + $0x8] sm:$0xff]
    %v3965 = vld [vmem:[%s3346 + $0x10] sm:$0xff]
    %v3966 = vld [vmem:[%s3346 + $0x18] sm:$0xff]
    %v3967 = vld [vmem:[%s3346 + $0x20] sm:$0xff]
    %v3968 = vld [vmem:[%s3346 + $0x28] sm:$0xff]
    %v3969 = vld [vmem:[%s3346 + $0x30] sm:$0xff]
    %v3970 = vld [vmem:[%s3346 + $0x38] sm:$0xff]
    %v3971 = vld [vmem:[%s3346 + $0x40] sm:$0xff]
    %v3972 = vld [vmem:[%s3346 + $0x48] sm:$0xff]
    %v3973 = vld [vmem:[%s3346 + $0x50] sm:$0xff]
    %v3974 = vld [vmem:[%s3346 + $0x58] sm:$0xff]
    %v3975 = vld [vmem:[%s3346 + $0x60] sm:$0xff]
    %v3976 = vld [vmem:[%s3346 + $0x68] sm:$0xff]
    %v3977 = vld [vmem:[%s3346 + $0x70] sm:$0xff]
    %v3978 = vld [vmem:[%s3346 + $0x78] sm:$0xff]
    %v3979 = vld [vmem:[%s3346 + $0x80] sm:$0xff]
    %v3980 = vld [vmem:[%s3346 + $0x88] sm:$0xff]
    %v3981 = vld [vmem:[%s3346 + $0x90] sm:$0xff]
    %v3982 = vld [vmem:[%s3346 + $0x98] sm:$0xff]
    %v3983 = vld [vmem:[%s3346 + $0xa0] sm:$0xff]
    %v3984 = vld [vmem:[%s3346 + $0xa8] sm:$0xff]
    %v3985 = vld [vmem:[%s3346 + $0xb0] sm:$0xff]
    %v3986 = vld [vmem:[%s3346 + $0xb8] sm:$0xff]
    %v3987 = vld [vmem:[%s3346 + $0xc0] sm:$0xff]
    %v3988 = vld [vmem:[%s3346 + $0xc8] sm:$0xff]
    %v3989 = vld [vmem:[%s3346 + $0xd0] sm:$0xff]
    %v3990 = vld [vmem:[%s3346 + $0xd8] sm:$0xff]
    %v3991 = vld [vmem:[%s3346 + $0xe0] sm:$0xff]
    %v3992 = vld [vmem:[%s3346 + $0xe8] sm:$0xff]
    %v3993 = vld [vmem:[%s3346 + $0xf0] sm:$0xff]
    %v3994 = vld [vmem:[%s3346 + $0xf8] sm:$0xff]
    %v4027 = vunpack.c.l.b16 %v3963
    %v4028 = vunpack.c.h.b16 %v3963
    %v4029 = vunpack.c.l.b16 %v3964
    %v4030 = vunpack.c.h.b16 %v3964
    %v4031 = vunpack.c.l.b16 %v3965
    %v4032 = vunpack.c.h.b16 %v3965
    %v4033 = vunpack.c.l.b16 %v3966
    %v4034 = vunpack.c.h.b16 %v3966
    %v4035 = vunpack.c.l.b16 %v3967
    %v4036 = vunpack.c.h.b16 %v3967
    %v4037 = vunpack.c.l.b16 %v3968
    %v4038 = vunpack.c.h.b16 %v3968
    %v4039 = vunpack.c.l.b16 %v3969
    %v4040 = vunpack.c.h.b16 %v3969
    %v4041 = vunpack.c.l.b16 %v3970
    %v4042 = vunpack.c.h.b16 %v3970
    %v4043 = vunpack.c.l.b16 %v3971
    %v4044 = vunpack.c.h.b16 %v3971
    %v4045 = vunpack.c.l.b16 %v3972
    %v4046 = vunpack.c.h.b16 %v3972
    %v4047 = vunpack.c.l.b16 %v3973
    %v4048 = vunpack.c.h.b16 %v3973
    %v4049 = vunpack.c.l.b16 %v3974
    %v4050 = vunpack.c.h.b16 %v3974
    %v4051 = vunpack.c.l.b16 %v3975
    %v4052 = vunpack.c.h.b16 %v3975
    %v4053 = vunpack.c.l.b16 %v3976
    %v4054 = vunpack.c.h.b16 %v3976
    %v4055 = vunpack.c.l.b16 %v3977
    %v4056 = vunpack.c.h.b16 %v3977
    %v4057 = vunpack.c.l.b16 %v3978
    %v4058 = vunpack.c.h.b16 %v3978
    %v4059 = vunpack.c.l.b16 %v3979
    %v4060 = vunpack.c.h.b16 %v3979
    %v4061 = vunpack.c.l.b16 %v3980
    %v4062 = vunpack.c.h.b16 %v3980
    %v4063 = vunpack.c.l.b16 %v3981
    %v4064 = vunpack.c.h.b16 %v3981
    %v4065 = vunpack.c.l.b16 %v3982
    %v4066 = vunpack.c.h.b16 %v3982
    %v4067 = vunpack.c.l.b16 %v3983
    %v4068 = vunpack.c.h.b16 %v3983
    %v4069 = vunpack.c.l.b16 %v3984
    %v4070 = vunpack.c.h.b16 %v3984
    %v4071 = vunpack.c.l.b16 %v3985
    %v4072 = vunpack.c.h.b16 %v3985
    %v4073 = vunpack.c.l.b16 %v3986
    %v4074 = vunpack.c.h.b16 %v3986
    %v4075 = vunpack.c.l.b16 %v3987
    %v4076 = vunpack.c.h.b16 %v3987
    %v4077 = vunpack.c.l.b16 %v3988
    %v4078 = vunpack.c.h.b16 %v3988
    %v4079 = vunpack.c.l.b16 %v3989
    %v4080 = vunpack.c.h.b16 %v3989
    %v4081 = vunpack.c.l.b16 %v3990
    %v4082 = vunpack.c.h.b16 %v3990
    %v4083 = vunpack.c.l.b16 %v3991
    %v4084 = vunpack.c.h.b16 %v3991
    %v4085 = vunpack.c.l.b16 %v3992
    %v4086 = vunpack.c.h.b16 %v3992
    %v4087 = vunpack.c.l.b16 %v3993
    %v4088 = vunpack.c.h.b16 %v3993
    %v4089 = vunpack.c.l.b16 %v3994
    %v4090 = vunpack.c.h.b16 %v3994
    %v4091 = vpack.c.b16 %v4031, %v4027
    %v4092 = vpack.c.b16 %v4032, %v4028
    %v4093 = vpack.c.b16 %v4033, %v4029
    %v4094 = vpack.c.b16 %v4034, %v4030
    %v4095 = vpack.c.b16 %v4039, %v4035
    %v4096 = vpack.c.b16 %v4040, %v4036
    %v4097 = vpack.c.b16 %v4041, %v4037
    %v4098 = vpack.c.b16 %v4042, %v4038
    %v4099 = vpack.c.b16 %v4047, %v4043
    %v4100 = vpack.c.b16 %v4048, %v4044
    %v4101 = vpack.c.b16 %v4049, %v4045
    %v4102 = vpack.c.b16 %v4050, %v4046
    %v4103 = vpack.c.b16 %v4055, %v4051
    %v4104 = vpack.c.b16 %v4056, %v4052
    %v4105 = vpack.c.b16 %v4057, %v4053
    %v4106 = vpack.c.b16 %v4058, %v4054
    %v4107 = vpack.c.b16 %v4063, %v4059
    %v4108 = vpack.c.b16 %v4064, %v4060
    %v4109 = vpack.c.b16 %v4065, %v4061
    %v4110 = vpack.c.b16 %v4066, %v4062
    %v4111 = vpack.c.b16 %v4071, %v4067
    %v4112 = vpack.c.b16 %v4072, %v4068
    %v4113 = vpack.c.b16 %v4073, %v4069
    %v4114 = vpack.c.b16 %v4074, %v4070
    %v4115 = vpack.c.b16 %v4079, %v4075
    %v4116 = vpack.c.b16 %v4080, %v4076
    %v4117 = vpack.c.b16 %v4081, %v4077
    %v4118 = vpack.c.b16 %v4082, %v4078
    %v4119 = vpack.c.b16 %v4087, %v4083
    %v4120 = vpack.c.b16 %v4088, %v4084
    %v4121 = vpack.c.b16 %v4089, %v4085
    %v4122 = vpack.c.b16 %v4090, %v4086
    %4155 = vmatprep.subr.bf16.mxu0 %v4120
    %4156 = vmatpush1.bf16.msra.mxu0 %v4119
    %4157 = vmatprep.subr.bf16.mxu0 %v4116
    %4158 = vmatpush1.bf16.msra.mxu0 %v4115
    %4159 = vmatprep.subr.bf16.mxu0 %v4112
    %4160 = vmatpush1.bf16.msra.mxu0 %v4111
    %4161 = vmatprep.subr.bf16.mxu0 %v4108
    %4162 = vmatpush1.bf16.msra.mxu0 %v4107
    %4163 = vmatprep.subr.bf16.mxu0 %v4104
    %4164 = vmatpush1.bf16.msra.mxu0 %v4103
    %4165 = vmatprep.subr.bf16.mxu0 %v4100
    %4166 = vmatpush1.bf16.msra.mxu0 %v4099
    %4167 = vmatprep.subr.bf16.mxu0 %v4096
    %4168 = vmatpush1.bf16.msra.mxu0 %v4095
    %4169 = vmatprep.subr.bf16.mxu0 %v4092
    %4170 = vmatpush1.bf16.msra.mxu0 %v4091
    %4171 = vmatprep.subr.bf16.mxu0 0
    %4172 = vmatpush2.bf16.msra.mxu0 0
    %4173 = vmatprep.subr.bf16.mxu0 0
    %4174 = vmatpush2.bf16.msra.mxu0 0
    %4175 = vmatprep.subr.bf16.mxu0 0
    %4176 = vmatpush2.bf16.msra.mxu0 0
    %4177 = vmatprep.subr.bf16.mxu0 0
    %4178 = vmatpush2.bf16.msra.mxu0 0
    %4179 = vmatprep.subr.bf16.mxu0 0
    %4180 = vmatpush2.bf16.msra.mxu0 0
    %4181 = vmatprep.subr.bf16.mxu0 0
    %4182 = vmatpush2.bf16.msra.mxu0 0
    %4183 = vmatprep.subr.bf16.mxu0 0
    %4184 = vmatpush2.bf16.msra.mxu0 0
    %4185 = vmatprep.subr.bf16.mxu0 0
    %4186 = vmatpush2.bf16.msra.mxu0 0
    %4187 = vmatprep.mubr.bf16.mxu0 0
    %4188 = vmatmul.mubr.bf16.gmra.mxu0 %v3962
    %v4189 = vpop.f32.mrf.mxu0
    %v4190 = vadd.f32 0.0, %v4189
    %v4191 = vpop.f32.mrf.mxu0
    %v4192 = vadd.f32 0.0, %v4191
    %v4193 = vpop.f32.mrf.mxu0
    %v4194 = vpop.f32.mrf.mxu0
    %4195 = vdwg.mxu0
    %4196 = vmatprep.subr.bf16.mxu0 %v4122
    %4197 = vmatpush1.bf16.msra.mxu0 %v4121
    %4198 = vmatprep.subr.bf16.mxu0 %v4118
    %4199 = vmatpush1.bf16.msra.mxu0 %v4117
    %4200 = vmatprep.subr.bf16.mxu0 %v4114
    %4201 = vmatpush1.bf16.msra.mxu0 %v4113
    %4202 = vmatprep.subr.bf16.mxu0 %v4110
    %4203 = vmatpush1.bf16.msra.mxu0 %v4109
    %4204 = vmatprep.subr.bf16.mxu0 %v4106
    %4205 = vmatpush1.bf16.msra.mxu0 %v4105
    %4206 = vmatprep.subr.bf16.mxu0 %v4102
    %4207 = vmatpush1.bf16.msra.mxu0 %v4101
    %4208 = vmatprep.subr.bf16.mxu0 %v4098
    %4209 = vmatpush1.bf16.msra.mxu0 %v4097
    %4210 = vmatprep.subr.bf16.mxu0 %v4094
    %4211 = vmatpush1.bf16.msra.mxu0 %v4093
    %4212 = vmatprep.subr.bf16.mxu0 0
    %4213 = vmatpush2.bf16.msra.mxu0 0
    %4214 = vmatprep.subr.bf16.mxu0 0
    %4215 = vmatpush2.bf16.msra.mxu0 0
    %4216 = vmatprep.subr.bf16.mxu0 0
    %4217 = vmatpush2.bf16.msra.mxu0 0
    %4218 = vmatprep.subr.bf16.mxu0 0
    %4219 = vmatpush2.bf16.msra.mxu0 0
    %4220 = vmatprep.subr.bf16.mxu0 0
    %4221 = vmatpush2.bf16.msra.mxu0 0
    %4222 = vmatprep.subr.bf16.mxu0 0
    %4223 = vmatpush2.bf16.msra.mxu0 0
    %4224 = vmatprep.subr.bf16.mxu0 0
    %4225 = vmatpush2.bf16.msra.mxu0 0
    %4226 = vmatprep.subr.bf16.mxu0 0
    %4227 = vmatpush2.bf16.msra.mxu0 0
    %4228 = vmatprep.mubr.bf16.mxu0 0
    %4229 = vmatmul.mubr.bf16.gmra.mxu0 %v3962
    %v4230 = vpop.f32.mrf.mxu0
    %v4231 = vadd.f32 0.0, %v4230
    %v4232 = vpop.f32.mrf.mxu0
    %v4233 = vadd.f32 0.0, %v4232
    %v4234 = vpop.f32.mrf.mxu0
    %v4235 = vpop.f32.mrf.mxu0
    %4236 = vdwg.mxu0
    %v4237 = vadd.f32 %v3958, %v4190
    %v4238 = vadd.f32 %v3959, %v4192
    %v4239 = vadd.f32 %v3960, %v4231
    %v4240 = vadd.f32 %v3961, %v4233
    %v4241 = vxor.u32 %v4237, 2147483648
    %v4242 = vmul.f32 %v4241, 1.442695
    %v4243 = vpow.pop %v4242
    %v4244 = vadd.f32 %v4243, 1.0
    %v4245 = vrcp.pop %v4244
    %v4246 = vmul.f32 1.0, %v4245
    %v4247 = vxor.u32 %v4238, 2147483648
    %v4248 = vmul.f32 %v4247, 1.442695
    %v4249 = vpow.pop %v4248
    %v4250 = vadd.f32 %v4249, 1.0
    %v4251 = vrcp.pop %v4250
    %v4252 = vmul.f32 1.0, %v4251
    %v4253 = vtanh.pop %v4239
    %v4254 = vxor.u32 %v4240, 2147483648
    %v4255 = vmul.f32 %v4254, 1.442695
    %v4256 = vpow.pop %v4255
    %v4257 = vadd.f32 %v4256, 1.0
    %v4258 = vrcp.pop %v4257
    %v4259 = vmul.f32 1.0, %v4258
    %v4260 = vmul.f32 %v4252, %v3954
    %v4261 = vmul.f32 %v4246, %v4253
    %v4262 = vadd.f32 %v4260, %v4261
    %v4263 = vtanh.pop %v4262
    %v4264 = vmul.f32 %v4259, %v4263
    %4265 = vst [vmem:[%s1382] sm:$0xff] %v4264
    %v4266 = vld [vmem:[#allocation3 + $0x60] sm:$0xff]
    %v4267 = vld [vmem:[#allocation3 + $0x68] sm:$0xff]
    %v4268 = vld [vmem:[#allocation3 + $0x70] sm:$0xff]
    %v4269 = vld [vmem:[#allocation3 + $0x78] sm:$0xff]
    %v4270 = vpack.c.bf16 %v4264, %v4264
    %v4271 = vld [vmem:[%s3346] sm:$0xff]
    %v4272 = vld [vmem:[%s3346 + $0x8] sm:$0xff]
    %v4273 = vld [vmem:[%s3346 + $0x10] sm:$0xff]
    %v4274 = vld [vmem:[%s3346 + $0x18] sm:$0xff]
    %v4275 = vld [vmem:[%s3346 + $0x20] sm:$0xff]
    %v4276 = vld [vmem:[%s3346 + $0x28] sm:$0xff]
    %v4277 = vld [vmem:[%s3346 + $0x30] sm:$0xff]
    %v4278 = vld [vmem:[%s3346 + $0x38] sm:$0xff]
    %v4279 = vld [vmem:[%s3346 + $0x40] sm:$0xff]
    %v4280 = vld [vmem:[%s3346 + $0x48] sm:$0xff]
    %v4281 = vld [vmem:[%s3346 + $0x50] sm:$0xff]
    %v4282 = vld [vmem:[%s3346 + $0x58] sm:$0xff]
    %v4283 = vld [vmem:[%s3346 + $0x60] sm:$0xff]
    %v4284 = vld [vmem:[%s3346 + $0x68] sm:$0xff]
    %v4285 = vld [vmem:[%s3346 + $0x70] sm:$0xff]
    %v4286 = vld [vmem:[%s3346 + $0x78] sm:$0xff]
    %v4287 = vld [vmem:[%s3346 + $0x80] sm:$0xff]
    %v4288 = vld [vmem:[%s3346 + $0x88] sm:$0xff]
    %v4289 = vld [vmem:[%s3346 + $0x90] sm:$0xff]
    %v4290 = vld [vmem:[%s3346 + $0x98] sm:$0xff]
    %v4291 = vld [vmem:[%s3346 + $0xa0] sm:$0xff]
    %v4292 = vld [vmem:[%s3346 + $0xa8] sm:$0xff]
    %v4293 = vld [vmem:[%s3346 + $0xb0] sm:$0xff]
    %v4294 = vld [vmem:[%s3346 + $0xb8] sm:$0xff]
    %v4295 = vld [vmem:[%s3346 + $0xc0] sm:$0xff]
    %v4296 = vld [vmem:[%s3346 + $0xc8] sm:$0xff]
    %v4297 = vld [vmem:[%s3346 + $0xd0] sm:$0xff]
    %v4298 = vld [vmem:[%s3346 + $0xd8] sm:$0xff]
    %v4299 = vld [vmem:[%s3346 + $0xe0] sm:$0xff]
    %v4300 = vld [vmem:[%s3346 + $0xe8] sm:$0xff]
    %v4301 = vld [vmem:[%s3346 + $0xf0] sm:$0xff]
    %v4302 = vld [vmem:[%s3346 + $0xf8] sm:$0xff]
    %v4335 = vunpack.c.l.b16 %v4271
    %v4336 = vunpack.c.h.b16 %v4271
    %v4337 = vunpack.c.l.b16 %v4272
    %v4338 = vunpack.c.h.b16 %v4272
    %v4339 = vunpack.c.l.b16 %v4273
    %v4340 = vunpack.c.h.b16 %v4273
    %v4341 = vunpack.c.l.b16 %v4274
    %v4342 = vunpack.c.h.b16 %v4274
    %v4343 = vunpack.c.l.b16 %v4275
    %v4344 = vunpack.c.h.b16 %v4275
    %v4345 = vunpack.c.l.b16 %v4276
    %v4346 = vunpack.c.h.b16 %v4276
    %v4347 = vunpack.c.l.b16 %v4277
    %v4348 = vunpack.c.h.b16 %v4277
    %v4349 = vunpack.c.l.b16 %v4278
    %v4350 = vunpack.c.h.b16 %v4278
    %v4351 = vunpack.c.l.b16 %v4279
    %v4352 = vunpack.c.h.b16 %v4279
    %v4353 = vunpack.c.l.b16 %v4280
    %v4354 = vunpack.c.h.b16 %v4280
    %v4355 = vunpack.c.l.b16 %v4281
    %v4356 = vunpack.c.h.b16 %v4281
    %v4357 = vunpack.c.l.b16 %v4282
    %v4358 = vunpack.c.h.b16 %v4282
    %v4359 = vunpack.c.l.b16 %v4283
    %v4360 = vunpack.c.h.b16 %v4283
    %v4361 = vunpack.c.l.b16 %v4284
    %v4362 = vunpack.c.h.b16 %v4284
    %v4363 = vunpack.c.l.b16 %v4285
    %v4364 = vunpack.c.h.b16 %v4285
    %v4365 = vunpack.c.l.b16 %v4286
    %v4366 = vunpack.c.h.b16 %v4286
    %v4367 = vunpack.c.l.b16 %v4287
    %v4368 = vunpack.c.h.b16 %v4287
    %v4369 = vunpack.c.l.b16 %v4288
    %v4370 = vunpack.c.h.b16 %v4288
    %v4371 = vunpack.c.l.b16 %v4289
    %v4372 = vunpack.c.h.b16 %v4289
    %v4373 = vunpack.c.l.b16 %v4290
    %v4374 = vunpack.c.h.b16 %v4290
    %v4375 = vunpack.c.l.b16 %v4291
    %v4376 = vunpack.c.h.b16 %v4291
    %v4377 = vunpack.c.l.b16 %v4292
    %v4378 = vunpack.c.h.b16 %v4292
    %v4379 = vunpack.c.l.b16 %v4293
    %v4380 = vunpack.c.h.b16 %v4293
    %v4381 = vunpack.c.l.b16 %v4294
    %v4382 = vunpack.c.h.b16 %v4294
    %v4383 = vunpack.c.l.b16 %v4295
    %v4384 = vunpack.c.h.b16 %v4295
    %v4385 = vunpack.c.l.b16 %v4296
    %v4386 = vunpack.c.h.b16 %v4296
    %v4387 = vunpack.c.l.b16 %v4297
    %v4388 = vunpack.c.h.b16 %v4297
    %v4389 = vunpack.c.l.b16 %v4298
    %v4390 = vunpack.c.h.b16 %v4298
    %v4391 = vunpack.c.l.b16 %v4299
    %v4392 = vunpack.c.h.b16 %v4299
    %v4393 = vunpack.c.l.b16 %v4300
    %v4394 = vunpack.c.h.b16 %v4300
    %v4395 = vunpack.c.l.b16 %v4301
    %v4396 = vunpack.c.h.b16 %v4301
    %v4397 = vunpack.c.l.b16 %v4302
    %v4398 = vunpack.c.h.b16 %v4302
    %v4399 = vpack.c.b16 %v4339, %v4335
    %v4400 = vpack.c.b16 %v4340, %v4336
    %v4401 = vpack.c.b16 %v4341, %v4337
    %v4402 = vpack.c.b16 %v4342, %v4338
    %v4403 = vpack.c.b16 %v4347, %v4343
    %v4404 = vpack.c.b16 %v4348, %v4344
    %v4405 = vpack.c.b16 %v4349, %v4345
    %v4406 = vpack.c.b16 %v4350, %v4346
    %v4407 = vpack.c.b16 %v4355, %v4351
    %v4408 = vpack.c.b16 %v4356, %v4352
    %v4409 = vpack.c.b16 %v4357, %v4353
    %v4410 = vpack.c.b16 %v4358, %v4354
    %v4411 = vpack.c.b16 %v4363, %v4359
    %v4412 = vpack.c.b16 %v4364, %v4360
    %v4413 = vpack.c.b16 %v4365, %v4361
    %v4414 = vpack.c.b16 %v4366, %v4362
    %v4415 = vpack.c.b16 %v4371, %v4367
    %v4416 = vpack.c.b16 %v4372, %v4368
    %v4417 = vpack.c.b16 %v4373, %v4369
    %v4418 = vpack.c.b16 %v4374, %v4370
    %v4419 = vpack.c.b16 %v4379, %v4375
    %v4420 = vpack.c.b16 %v4380, %v4376
    %v4421 = vpack.c.b16 %v4381, %v4377
    %v4422 = vpack.c.b16 %v4382, %v4378
    %v4423 = vpack.c.b16 %v4387, %v4383
    %v4424 = vpack.c.b16 %v4388, %v4384
    %v4425 = vpack.c.b16 %v4389, %v4385
    %v4426 = vpack.c.b16 %v4390, %v4386
    %v4427 = vpack.c.b16 %v4395, %v4391
    %v4428 = vpack.c.b16 %v4396, %v4392
    %v4429 = vpack.c.b16 %v4397, %v4393
    %v4430 = vpack.c.b16 %v4398, %v4394
    %4463 = vmatprep.subr.bf16.mxu0 %v4428
    %4464 = vmatpush1.bf16.msra.mxu0 %v4427
    %4465 = vmatprep.subr.bf16.mxu0 %v4424
    %4466 = vmatpush1.bf16.msra.mxu0 %v4423
    %4467 = vmatprep.subr.bf16.mxu0 %v4420
    %4468 = vmatpush1.bf16.msra.mxu0 %v4419
    %4469 = vmatprep.subr.bf16.mxu0 %v4416
    %4470 = vmatpush1.bf16.msra.mxu0 %v4415
    %4471 = vmatprep.subr.bf16.mxu0 %v4412
    %4472 = vmatpush1.bf16.msra.mxu0 %v4411
    %4473 = vmatprep.subr.bf16.mxu0 %v4408
    %4474 = vmatpush1.bf16.msra.mxu0 %v4407
    %4475 = vmatprep.subr.bf16.mxu0 %v4404
    %4476 = vmatpush1.bf16.msra.mxu0 %v4403
    %4477 = vmatprep.subr.bf16.mxu0 %v4400
    %4478 = vmatpush1.bf16.msra.mxu0 %v4399
    %4479 = vmatprep.subr.bf16.mxu0 0
    %4480 = vmatpush2.bf16.msra.mxu0 0
    %4481 = vmatprep.subr.bf16.mxu0 0
    %4482 = vmatpush2.bf16.msra.mxu0 0
    %4483 = vmatprep.subr.bf16.mxu0 0
    %4484 = vmatpush2.bf16.msra.mxu0 0
    %4485 = vmatprep.subr.bf16.mxu0 0
    %4486 = vmatpush2.bf16.msra.mxu0 0
    %4487 = vmatprep.subr.bf16.mxu0 0
    %4488 = vmatpush2.bf16.msra.mxu0 0
    %4489 = vmatprep.subr.bf16.mxu0 0
    %4490 = vmatpush2.bf16.msra.mxu0 0
    %4491 = vmatprep.subr.bf16.mxu0 0
    %4492 = vmatpush2.bf16.msra.mxu0 0
    %4493 = vmatprep.subr.bf16.mxu0 0
    %4494 = vmatpush2.bf16.msra.mxu0 0
    %4495 = vmatprep.mubr.bf16.mxu0 0
    %4496 = vmatmul.mubr.bf16.gmra.mxu0 %v4270
    %v4497 = vpop.f32.mrf.mxu0
    %v4498 = vadd.f32 0.0, %v4497
    %v4499 = vpop.f32.mrf.mxu0
    %v4500 = vadd.f32 0.0, %v4499
    %v4501 = vpop.f32.mrf.mxu0
    %v4502 = vpop.f32.mrf.mxu0
    %4503 = vdwg.mxu0
    %4504 = vmatprep.subr.bf16.mxu0 %v4430
    %4505 = vmatpush1.bf16.msra.mxu0 %v4429
    %4506 = vmatprep.subr.bf16.mxu0 %v4426
    %4507 = vmatpush1.bf16.msra.mxu0 %v4425
    %4508 = vmatprep.subr.bf16.mxu0 %v4422
    %4509 = vmatpush1.bf16.msra.mxu0 %v4421
    %4510 = vmatprep.subr.bf16.mxu0 %v4418
    %4511 = vmatpush1.bf16.msra.mxu0 %v4417
    %4512 = vmatprep.subr.bf16.mxu0 %v4414
    %4513 = vmatpush1.bf16.msra.mxu0 %v4413
    %4514 = vmatprep.subr.bf16.mxu0 %v4410
    %4515 = vmatpush1.bf16.msra.mxu0 %v4409
    %4516 = vmatprep.subr.bf16.mxu0 %v4406
    %4517 = vmatpush1.bf16.msra.mxu0 %v4405
    %4518 = vmatprep.subr.bf16.mxu0 %v4402
    %4519 = vmatpush1.bf16.msra.mxu0 %v4401
    %4520 = vmatprep.subr.bf16.mxu0 0
    %4521 = vmatpush2.bf16.msra.mxu0 0
    %4522 = vmatprep.subr.bf16.mxu0 0
    %4523 = vmatpush2.bf16.msra.mxu0 0
    %4524 = vmatprep.subr.bf16.mxu0 0
    %4525 = vmatpush2.bf16.msra.mxu0 0
    %4526 = vmatprep.subr.bf16.mxu0 0
    %4527 = vmatpush2.bf16.msra.mxu0 0
    %4528 = vmatprep.subr.bf16.mxu0 0
    %4529 = vmatpush2.bf16.msra.mxu0 0
    %4530 = vmatprep.subr.bf16.mxu0 0
    %4531 = vmatpush2.bf16.msra.mxu0 0
    %4532 = vmatprep.subr.bf16.mxu0 0
    %4533 = vmatpush2.bf16.msra.mxu0 0
    %4534 = vmatprep.subr.bf16.mxu0 0
    %4535 = vmatpush2.bf16.msra.mxu0 0
    %4536 = vmatprep.mubr.bf16.mxu0 0
    %4537 = vmatmul.mubr.bf16.gmra.mxu0 %v4270
    %v4538 = vpop.f32.mrf.mxu0
    %v4539 = vadd.f32 0.0, %v4538
    %v4540 = vpop.f32.mrf.mxu0
    %v4541 = vadd.f32 0.0, %v4540
    %v4542 = vpop.f32.mrf.mxu0
    %v4543 = vpop.f32.mrf.mxu0
    %4544 = vdwg.mxu0
    %v4545 = vadd.f32 %v4266, %v4498
    %v4546 = vadd.f32 %v4267, %v4500
    %v4547 = vadd.f32 %v4268, %v4539
    %v4548 = vadd.f32 %v4269, %v4541
    %v4549 = vxor.u32 %v4545, 2147483648
    %v4550 = vmul.f32 %v4549, 1.442695
    %v4551 = vpow.pop %v4550
    %v4552 = vadd.f32 %v4551, 1.0
    %v4553 = vrcp.pop %v4552
    %v4554 = vmul.f32 1.0, %v4553
    %v4555 = vxor.u32 %v4546, 2147483648
    %v4556 = vmul.f32 %v4555, 1.442695
    %v4557 = vpow.pop %v4556
    %v4558 = vadd.f32 %v4557, 1.0
    %v4559 = vrcp.pop %v4558
    %v4560 = vmul.f32 1.0, %v4559
    %v4561 = vtanh.pop %v4547
    %v4562 = vxor.u32 %v4548, 2147483648
    %v4563 = vmul.f32 %v4562, 1.442695
    %v4564 = vpow.pop %v4563
    %v4565 = vadd.f32 %v4564, 1.0
    %v4566 = vrcp.pop %v4565
    %v4567 = vmul.f32 1.0, %v4566
    %v4568 = vmul.f32 %v4560, %v4262
    %v4569 = vmul.f32 %v4554, %v4561
    %v4570 = vadd.f32 %v4568, %v4569
    %v4571 = vtanh.pop %v4570
    %v4572 = vmul.f32 %v4567, %v4571
    %4573 = vst [vmem:[%s1691] sm:$0xff] %v4572
    %v4574 = vld [vmem:[#allocation3 + $0x80] sm:$0xff]
    %v4575 = vld [vmem:[#allocation3 + $0x88] sm:$0xff]
    %v4576 = vld [vmem:[#allocation3 + $0x90] sm:$0xff]
    %v4577 = vld [vmem:[#allocation3 + $0x98] sm:$0xff]
    %v4578 = vpack.c.bf16 %v4572, %v4572
    %v4579 = vld [vmem:[%s3346] sm:$0xff]
    %v4580 = vld [vmem:[%s3346 + $0x8] sm:$0xff]
    %v4581 = vld [vmem:[%s3346 + $0x10] sm:$0xff]
    %v4582 = vld [vmem:[%s3346 + $0x18] sm:$0xff]
    %v4583 = vld [vmem:[%s3346 + $0x20] sm:$0xff]
    %v4584 = vld [vmem:[%s3346 + $0x28] sm:$0xff]
    %v4585 = vld [vmem:[%s3346 + $0x30] sm:$0xff]
    %v4586 = vld [vmem:[%s3346 + $0x38] sm:$0xff]
    %v4587 = vld [vmem:[%s3346 + $0x40] sm:$0xff]
    %v4588 = vld [vmem:[%s3346 + $0x48] sm:$0xff]
    %v4589 = vld [vmem:[%s3346 + $0x50] sm:$0xff]
    %v4590 = vld [vmem:[%s3346 + $0x58] sm:$0xff]
    %v4591 = vld [vmem:[%s3346 + $0x60] sm:$0xff]
    %v4592 = vld [vmem:[%s3346 + $0x68] sm:$0xff]
    %v4593 = vld [vmem:[%s3346 + $0x70] sm:$0xff]
    %v4594 = vld [vmem:[%s3346 + $0x78] sm:$0xff]
    %v4595 = vld [vmem:[%s3346 + $0x80] sm:$0xff]
    %v4596 = vld [vmem:[%s3346 + $0x88] sm:$0xff]
    %v4597 = vld [vmem:[%s3346 + $0x90] sm:$0xff]
    %v4598 = vld [vmem:[%s3346 + $0x98] sm:$0xff]
    %v4599 = vld [vmem:[%s3346 + $0xa0] sm:$0xff]
    %v4600 = vld [vmem:[%s3346 + $0xa8] sm:$0xff]
    %v4601 = vld [vmem:[%s3346 + $0xb0] sm:$0xff]
    %v4602 = vld [vmem:[%s3346 + $0xb8] sm:$0xff]
    %v4603 = vld [vmem:[%s3346 + $0xc0] sm:$0xff]
    %v4604 = vld [vmem:[%s3346 + $0xc8] sm:$0xff]
    %v4605 = vld [vmem:[%s3346 + $0xd0] sm:$0xff]
    %v4606 = vld [vmem:[%s3346 + $0xd8] sm:$0xff]
    %v4607 = vld [vmem:[%s3346 + $0xe0] sm:$0xff]
    %v4608 = vld [vmem:[%s3346 + $0xe8] sm:$0xff]
    %v4609 = vld [vmem:[%s3346 + $0xf0] sm:$0xff]
    %v4610 = vld [vmem:[%s3346 + $0xf8] sm:$0xff]
    %v4643 = vunpack.c.l.b16 %v4579
    %v4644 = vunpack.c.h.b16 %v4579
    %v4645 = vunpack.c.l.b16 %v4580
    %v4646 = vunpack.c.h.b16 %v4580
    %v4647 = vunpack.c.l.b16 %v4581
    %v4648 = vunpack.c.h.b16 %v4581
    %v4649 = vunpack.c.l.b16 %v4582
    %v4650 = vunpack.c.h.b16 %v4582
    %v4651 = vunpack.c.l.b16 %v4583
    %v4652 = vunpack.c.h.b16 %v4583
    %v4653 = vunpack.c.l.b16 %v4584
    %v4654 = vunpack.c.h.b16 %v4584
    %v4655 = vunpack.c.l.b16 %v4585
    %v4656 = vunpack.c.h.b16 %v4585
    %v4657 = vunpack.c.l.b16 %v4586
    %v4658 = vunpack.c.h.b16 %v4586
    %v4659 = vunpack.c.l.b16 %v4587
    %v4660 = vunpack.c.h.b16 %v4587
    %v4661 = vunpack.c.l.b16 %v4588
    %v4662 = vunpack.c.h.b16 %v4588
    %v4663 = vunpack.c.l.b16 %v4589
    %v4664 = vunpack.c.h.b16 %v4589
    %v4665 = vunpack.c.l.b16 %v4590
    %v4666 = vunpack.c.h.b16 %v4590
    %v4667 = vunpack.c.l.b16 %v4591
    %v4668 = vunpack.c.h.b16 %v4591
    %v4669 = vunpack.c.l.b16 %v4592
    %v4670 = vunpack.c.h.b16 %v4592
    %v4671 = vunpack.c.l.b16 %v4593
    %v4672 = vunpack.c.h.b16 %v4593
    %v4673 = vunpack.c.l.b16 %v4594
    %v4674 = vunpack.c.h.b16 %v4594
    %v4675 = vunpack.c.l.b16 %v4595
    %v4676 = vunpack.c.h.b16 %v4595
    %v4677 = vunpack.c.l.b16 %v4596
    %v4678 = vunpack.c.h.b16 %v4596
    %v4679 = vunpack.c.l.b16 %v4597
    %v4680 = vunpack.c.h.b16 %v4597
    %v4681 = vunpack.c.l.b16 %v4598
    %v4682 = vunpack.c.h.b16 %v4598
    %v4683 = vunpack.c.l.b16 %v4599
    %v4684 = vunpack.c.h.b16 %v4599
    %v4685 = vunpack.c.l.b16 %v4600
    %v4686 = vunpack.c.h.b16 %v4600
    %v4687 = vunpack.c.l.b16 %v4601
    %v4688 = vunpack.c.h.b16 %v4601
    %v4689 = vunpack.c.l.b16 %v4602
    %v4690 = vunpack.c.h.b16 %v4602
    %v4691 = vunpack.c.l.b16 %v4603
    %v4692 = vunpack.c.h.b16 %v4603
    %v4693 = vunpack.c.l.b16 %v4604
    %v4694 = vunpack.c.h.b16 %v4604
    %v4695 = vunpack.c.l.b16 %v4605
    %v4696 = vunpack.c.h.b16 %v4605
    %v4697 = vunpack.c.l.b16 %v4606
    %v4698 = vunpack.c.h.b16 %v4606
    %v4699 = vunpack.c.l.b16 %v4607
    %v4700 = vunpack.c.h.b16 %v4607
    %v4701 = vunpack.c.l.b16 %v4608
    %v4702 = vunpack.c.h.b16 %v4608
    %v4703 = vunpack.c.l.b16 %v4609
    %v4704 = vunpack.c.h.b16 %v4609
    %v4705 = vunpack.c.l.b16 %v4610
    %v4706 = vunpack.c.h.b16 %v4610
    %v4707 = vpack.c.b16 %v4647, %v4643
    %v4708 = vpack.c.b16 %v4648, %v4644
    %v4709 = vpack.c.b16 %v4649, %v4645
    %v4710 = vpack.c.b16 %v4650, %v4646
    %v4711 = vpack.c.b16 %v4655, %v4651
    %v4712 = vpack.c.b16 %v4656, %v4652
    %v4713 = vpack.c.b16 %v4657, %v4653
    %v4714 = vpack.c.b16 %v4658, %v4654
    %v4715 = vpack.c.b16 %v4663, %v4659
    %v4716 = vpack.c.b16 %v4664, %v4660
    %v4717 = vpack.c.b16 %v4665, %v4661
    %v4718 = vpack.c.b16 %v4666, %v4662
    %v4719 = vpack.c.b16 %v4671, %v4667
    %v4720 = vpack.c.b16 %v4672, %v4668
    %v4721 = vpack.c.b16 %v4673, %v4669
    %v4722 = vpack.c.b16 %v4674, %v4670
    %v4723 = vpack.c.b16 %v4679, %v4675
    %v4724 = vpack.c.b16 %v4680, %v4676
    %v4725 = vpack.c.b16 %v4681, %v4677
    %v4726 = vpack.c.b16 %v4682, %v4678
    %v4727 = vpack.c.b16 %v4687, %v4683
    %v4728 = vpack.c.b16 %v4688, %v4684
    %v4729 = vpack.c.b16 %v4689, %v4685
    %v4730 = vpack.c.b16 %v4690, %v4686
    %v4731 = vpack.c.b16 %v4695, %v4691
    %v4732 = vpack.c.b16 %v4696, %v4692
    %v4733 = vpack.c.b16 %v4697, %v4693
    %v4734 = vpack.c.b16 %v4698, %v4694
    %v4735 = vpack.c.b16 %v4703, %v4699
    %v4736 = vpack.c.b16 %v4704, %v4700
    %v4737 = vpack.c.b16 %v4705, %v4701
    %v4738 = vpack.c.b16 %v4706, %v4702
    %4771 = vmatprep.subr.bf16.mxu0 %v4736
    %4772 = vmatpush1.bf16.msra.mxu0 %v4735
    %4773 = vmatprep.subr.bf16.mxu0 %v4732
    %4774 = vmatpush1.bf16.msra.mxu0 %v4731
    %4775 = vmatprep.subr.bf16.mxu0 %v4728
    %4776 = vmatpush1.bf16.msra.mxu0 %v4727
    %4777 = vmatprep.subr.bf16.mxu0 %v4724
    %4778 = vmatpush1.bf16.msra.mxu0 %v4723
    %4779 = vmatprep.subr.bf16.mxu0 %v4720
    %4780 = vmatpush1.bf16.msra.mxu0 %v4719
    %4781 = vmatprep.subr.bf16.mxu0 %v4716
    %4782 = vmatpush1.bf16.msra.mxu0 %v4715
    %4783 = vmatprep.subr.bf16.mxu0 %v4712
    %4784 = vmatpush1.bf16.msra.mxu0 %v4711
    %4785 = vmatprep.subr.bf16.mxu0 %v4708
    %4786 = vmatpush1.bf16.msra.mxu0 %v4707
    %4787 = vmatprep.subr.bf16.mxu0 0
    %4788 = vmatpush2.bf16.msra.mxu0 0
    %4789 = vmatprep.subr.bf16.mxu0 0
    %4790 = vmatpush2.bf16.msra.mxu0 0
    %4791 = vmatprep.subr.bf16.mxu0 0
    %4792 = vmatpush2.bf16.msra.mxu0 0
    %4793 = vmatprep.subr.bf16.mxu0 0
    %4794 = vmatpush2.bf16.msra.mxu0 0
    %4795 = vmatprep.subr.bf16.mxu0 0
    %4796 = vmatpush2.bf16.msra.mxu0 0
    %4797 = vmatprep.subr.bf16.mxu0 0
    %4798 = vmatpush2.bf16.msra.mxu0 0
    %4799 = vmatprep.subr.bf16.mxu0 0
    %4800 = vmatpush2.bf16.msra.mxu0 0
    %4801 = vmatprep.subr.bf16.mxu0 0
    %4802 = vmatpush2.bf16.msra.mxu0 0
    %4803 = vmatprep.mubr.bf16.mxu0 0
    %4804 = vmatmul.mubr.bf16.gmra.mxu0 %v4578
    %v4805 = vpop.f32.mrf.mxu0
    %v4806 = vadd.f32 0.0, %v4805
    %v4807 = vpop.f32.mrf.mxu0
    %v4808 = vadd.f32 0.0, %v4807
    %v4809 = vpop.f32.mrf.mxu0
    %v4810 = vpop.f32.mrf.mxu0
    %4811 = vdwg.mxu0
    %4812 = vmatprep.subr.bf16.mxu0 %v4738
    %4813 = vmatpush1.bf16.msra.mxu0 %v4737
    %4814 = vmatprep.subr.bf16.mxu0 %v4734
    %4815 = vmatpush1.bf16.msra.mxu0 %v4733
    %4816 = vmatprep.subr.bf16.mxu0 %v4730
    %4817 = vmatpush1.bf16.msra.mxu0 %v4729
    %4818 = vmatprep.subr.bf16.mxu0 %v4726
    %4819 = vmatpush1.bf16.msra.mxu0 %v4725
    %4820 = vmatprep.subr.bf16.mxu0 %v4722
    %4821 = vmatpush1.bf16.msra.mxu0 %v4721
    %4822 = vmatprep.subr.bf16.mxu0 %v4718
    %4823 = vmatpush1.bf16.msra.mxu0 %v4717
    %4824 = vmatprep.subr.bf16.mxu0 %v4714
    %4825 = vmatpush1.bf16.msra.mxu0 %v4713
    %4826 = vmatprep.subr.bf16.mxu0 %v4710
    %4827 = vmatpush1.bf16.msra.mxu0 %v4709
    %4828 = vmatprep.subr.bf16.mxu0 0
    %4829 = vmatpush2.bf16.msra.mxu0 0
    %4830 = vmatprep.subr.bf16.mxu0 0
    %4831 = vmatpush2.bf16.msra.mxu0 0
    %4832 = vmatprep.subr.bf16.mxu0 0
    %4833 = vmatpush2.bf16.msra.mxu0 0
    %4834 = vmatprep.subr.bf16.mxu0 0
    %4835 = vmatpush2.bf16.msra.mxu0 0
    %4836 = vmatprep.subr.bf16.mxu0 0
    %4837 = vmatpush2.bf16.msra.mxu0 0
    %4838 = vmatprep.subr.bf16.mxu0 0
    %4839 = vmatpush2.bf16.msra.mxu0 0
    %4840 = vmatprep.subr.bf16.mxu0 0
    %4841 = vmatpush2.bf16.msra.mxu0 0
    %4842 = vmatprep.subr.bf16.mxu0 0
    %4843 = vmatpush2.bf16.msra.mxu0 0
    %4844 = vmatprep.mubr.bf16.mxu0 0
    %4845 = vmatmul.mubr.bf16.gmra.mxu0 %v4578
    %v4846 = vpop.f32.mrf.mxu0
    %v4847 = vadd.f32 0.0, %v4846
    %v4848 = vpop.f32.mrf.mxu0
    %v4849 = vadd.f32 0.0, %v4848
    %v4850 = vpop.f32.mrf.mxu0
    %v4851 = vpop.f32.mrf.mxu0
    %4852 = vdwg.mxu0
    %v4853 = vadd.f32 %v4574, %v4806
    %v4854 = vadd.f32 %v4575, %v4808
    %v4855 = vadd.f32 %v4576, %v4847
    %v4856 = vadd.f32 %v4577, %v4849
    %v4857 = vxor.u32 %v4853, 2147483648
    %v4858 = vmul.f32 %v4857, 1.442695
    %v4859 = vpow.pop %v4858
    %v4860 = vadd.f32 %v4859, 1.0
    %v4861 = vrcp.pop %v4860
    %v4862 = vmul.f32 1.0, %v4861
    %v4863 = vxor.u32 %v4854, 2147483648
    %v4864 = vmul.f32 %v4863, 1.442695
    %v4865 = vpow.pop %v4864
    %v4866 = vadd.f32 %v4865, 1.0
    %v4867 = vrcp.pop %v4866
    %v4868 = vmul.f32 1.0, %v4867
    %v4869 = vtanh.pop %v4855
    %v4870 = vxor.u32 %v4856, 2147483648
    %v4871 = vmul.f32 %v4870, 1.442695
    %v4872 = vpow.pop %v4871
    %v4873 = vadd.f32 %v4872, 1.0
    %v4874 = vrcp.pop %v4873
    %v4875 = vmul.f32 1.0, %v4874
    %v4876 = vmul.f32 %v4868, %v4570
    %v4877 = vmul.f32 %v4862, %v4869
    %v4878 = vadd.f32 %v4876, %v4877
    %v4879 = vtanh.pop %v4878
    %v4880 = vmul.f32 %v4875, %v4879
    %4881 = vst [vmem:[%s2000] sm:$0xff] %v4880
    %v4882 = vld [vmem:[#allocation3 + $0xa0] sm:$0xff]
    %v4883 = vld [vmem:[#allocation3 + $0xa8] sm:$0xff]
    %v4884 = vld [vmem:[#allocation3 + $0xb0] sm:$0xff]
    %v4885 = vld [vmem:[#allocation3 + $0xb8] sm:$0xff]
    %v4886 = vpack.c.bf16 %v4880, %v4880
    %v4887 = vld [vmem:[%s3346] sm:$0xff]
    %v4888 = vld [vmem:[%s3346 + $0x8] sm:$0xff]
    %v4889 = vld [vmem:[%s3346 + $0x10] sm:$0xff]
    %v4890 = vld [vmem:[%s3346 + $0x18] sm:$0xff]
    %v4891 = vld [vmem:[%s3346 + $0x20] sm:$0xff]
    %v4892 = vld [vmem:[%s3346 + $0x28] sm:$0xff]
    %v4893 = vld [vmem:[%s3346 + $0x30] sm:$0xff]
    %v4894 = vld [vmem:[%s3346 + $0x38] sm:$0xff]
    %v4895 = vld [vmem:[%s3346 + $0x40] sm:$0xff]
    %v4896 = vld [vmem:[%s3346 + $0x48] sm:$0xff]
    %v4897 = vld [vmem:[%s3346 + $0x50] sm:$0xff]
    %v4898 = vld [vmem:[%s3346 + $0x58] sm:$0xff]
    %v4899 = vld [vmem:[%s3346 + $0x60] sm:$0xff]
    %v4900 = vld [vmem:[%s3346 + $0x68] sm:$0xff]
    %v4901 = vld [vmem:[%s3346 + $0x70] sm:$0xff]
    %v4902 = vld [vmem:[%s3346 + $0x78] sm:$0xff]
    %v4903 = vld [vmem:[%s3346 + $0x80] sm:$0xff]
    %v4904 = vld [vmem:[%s3346 + $0x88] sm:$0xff]
    %v4905 = vld [vmem:[%s3346 + $0x90] sm:$0xff]
    %v4906 = vld [vmem:[%s3346 + $0x98] sm:$0xff]
    %v4907 = vld [vmem:[%s3346 + $0xa0] sm:$0xff]
    %v4908 = vld [vmem:[%s3346 + $0xa8] sm:$0xff]
    %v4909 = vld [vmem:[%s3346 + $0xb0] sm:$0xff]
    %v4910 = vld [vmem:[%s3346 + $0xb8] sm:$0xff]
    %v4911 = vld [vmem:[%s3346 + $0xc0] sm:$0xff]
    %v4912 = vld [vmem:[%s3346 + $0xc8] sm:$0xff]
    %v4913 = vld [vmem:[%s3346 + $0xd0] sm:$0xff]
    %v4914 = vld [vmem:[%s3346 + $0xd8] sm:$0xff]
    %v4915 = vld [vmem:[%s3346 + $0xe0] sm:$0xff]
    %v4916 = vld [vmem:[%s3346 + $0xe8] sm:$0xff]
    %v4917 = vld [vmem:[%s3346 + $0xf0] sm:$0xff]
    %v4918 = vld [vmem:[%s3346 + $0xf8] sm:$0xff]
    %v4951 = vunpack.c.l.b16 %v4887
    %v4952 = vunpack.c.h.b16 %v4887
    %v4953 = vunpack.c.l.b16 %v4888
    %v4954 = vunpack.c.h.b16 %v4888
    %v4955 = vunpack.c.l.b16 %v4889
    %v4956 = vunpack.c.h.b16 %v4889
    %v4957 = vunpack.c.l.b16 %v4890
    %v4958 = vunpack.c.h.b16 %v4890
    %v4959 = vunpack.c.l.b16 %v4891
    %v4960 = vunpack.c.h.b16 %v4891
    %v4961 = vunpack.c.l.b16 %v4892
    %v4962 = vunpack.c.h.b16 %v4892
    %v4963 = vunpack.c.l.b16 %v4893
    %v4964 = vunpack.c.h.b16 %v4893
    %v4965 = vunpack.c.l.b16 %v4894
    %v4966 = vunpack.c.h.b16 %v4894
    %v4967 = vunpack.c.l.b16 %v4895
    %v4968 = vunpack.c.h.b16 %v4895
    %v4969 = vunpack.c.l.b16 %v4896
    %v4970 = vunpack.c.h.b16 %v4896
    %v4971 = vunpack.c.l.b16 %v4897
    %v4972 = vunpack.c.h.b16 %v4897
    %v4973 = vunpack.c.l.b16 %v4898
    %v4974 = vunpack.c.h.b16 %v4898
    %v4975 = vunpack.c.l.b16 %v4899
    %v4976 = vunpack.c.h.b16 %v4899
    %v4977 = vunpack.c.l.b16 %v4900
    %v4978 = vunpack.c.h.b16 %v4900
    %v4979 = vunpack.c.l.b16 %v4901
    %v4980 = vunpack.c.h.b16 %v4901
    %v4981 = vunpack.c.l.b16 %v4902
    %v4982 = vunpack.c.h.b16 %v4902
    %v4983 = vunpack.c.l.b16 %v4903
    %v4984 = vunpack.c.h.b16 %v4903
    %v4985 = vunpack.c.l.b16 %v4904
    %v4986 = vunpack.c.h.b16 %v4904
    %v4987 = vunpack.c.l.b16 %v4905
    %v4988 = vunpack.c.h.b16 %v4905
    %v4989 = vunpack.c.l.b16 %v4906
    %v4990 = vunpack.c.h.b16 %v4906
    %v4991 = vunpack.c.l.b16 %v4907
    %v4992 = vunpack.c.h.b16 %v4907
    %v4993 = vunpack.c.l.b16 %v4908
    %v4994 = vunpack.c.h.b16 %v4908
    %v4995 = vunpack.c.l.b16 %v4909
    %v4996 = vunpack.c.h.b16 %v4909
    %v4997 = vunpack.c.l.b16 %v4910
    %v4998 = vunpack.c.h.b16 %v4910
    %v4999 = vunpack.c.l.b16 %v4911
    %v5000 = vunpack.c.h.b16 %v4911
    %v5001 = vunpack.c.l.b16 %v4912
    %v5002 = vunpack.c.h.b16 %v4912
    %v5003 = vunpack.c.l.b16 %v4913
    %v5004 = vunpack.c.h.b16 %v4913
    %v5005 = vunpack.c.l.b16 %v4914
    %v5006 = vunpack.c.h.b16 %v4914
    %v5007 = vunpack.c.l.b16 %v4915
    %v5008 = vunpack.c.h.b16 %v4915
    %v5009 = vunpack.c.l.b16 %v4916
    %v5010 = vunpack.c.h.b16 %v4916
    %v5011 = vunpack.c.l.b16 %v4917
    %v5012 = vunpack.c.h.b16 %v4917
    %v5013 = vunpack.c.l.b16 %v4918
    %v5014 = vunpack.c.h.b16 %v4918
    %v5015 = vpack.c.b16 %v4955, %v4951
    %v5016 = vpack.c.b16 %v4956, %v4952
    %v5017 = vpack.c.b16 %v4957, %v4953
    %v5018 = vpack.c.b16 %v4958, %v4954
    %v5019 = vpack.c.b16 %v4963, %v4959
    %v5020 = vpack.c.b16 %v4964, %v4960
    %v5021 = vpack.c.b16 %v4965, %v4961
    %v5022 = vpack.c.b16 %v4966, %v4962
    %v5023 = vpack.c.b16 %v4971, %v4967
    %v5024 = vpack.c.b16 %v4972, %v4968
    %v5025 = vpack.c.b16 %v4973, %v4969
    %v5026 = vpack.c.b16 %v4974, %v4970
    %v5027 = vpack.c.b16 %v4979, %v4975
    %v5028 = vpack.c.b16 %v4980, %v4976
    %v5029 = vpack.c.b16 %v4981, %v4977
    %v5030 = vpack.c.b16 %v4982, %v4978
    %v5031 = vpack.c.b16 %v4987, %v4983
    %v5032 = vpack.c.b16 %v4988, %v4984
    %v5033 = vpack.c.b16 %v4989, %v4985
    %v5034 = vpack.c.b16 %v4990, %v4986
    %v5035 = vpack.c.b16 %v4995, %v4991
    %v5036 = vpack.c.b16 %v4996, %v4992
    %v5037 = vpack.c.b16 %v4997, %v4993
    %v5038 = vpack.c.b16 %v4998, %v4994
    %v5039 = vpack.c.b16 %v5003, %v4999
    %v5040 = vpack.c.b16 %v5004, %v5000
    %v5041 = vpack.c.b16 %v5005, %v5001
    %v5042 = vpack.c.b16 %v5006, %v5002
    %v5043 = vpack.c.b16 %v5011, %v5007
    %v5044 = vpack.c.b16 %v5012, %v5008
    %v5045 = vpack.c.b16 %v5013, %v5009
    %v5046 = vpack.c.b16 %v5014, %v5010
    %5079 = vmatprep.subr.bf16.mxu0 %v5044
    %5080 = vmatpush1.bf16.msra.mxu0 %v5043
    %5081 = vmatprep.subr.bf16.mxu0 %v5040
    %5082 = vmatpush1.bf16.msra.mxu0 %v5039
    %5083 = vmatprep.subr.bf16.mxu0 %v5036
    %5084 = vmatpush1.bf16.msra.mxu0 %v5035
    %5085 = vmatprep.subr.bf16.mxu0 %v5032
    %5086 = vmatpush1.bf16.msra.mxu0 %v5031
    %5087 = vmatprep.subr.bf16.mxu0 %v5028
    %5088 = vmatpush1.bf16.msra.mxu0 %v5027
    %5089 = vmatprep.subr.bf16.mxu0 %v5024
    %5090 = vmatpush1.bf16.msra.mxu0 %v5023
    %5091 = vmatprep.subr.bf16.mxu0 %v5020
    %5092 = vmatpush1.bf16.msra.mxu0 %v5019
    %5093 = vmatprep.subr.bf16.mxu0 %v5016
    %5094 = vmatpush1.bf16.msra.mxu0 %v5015
    %5095 = vmatprep.subr.bf16.mxu0 0
    %5096 = vmatpush2.bf16.msra.mxu0 0
    %5097 = vmatprep.subr.bf16.mxu0 0
    %5098 = vmatpush2.bf16.msra.mxu0 0
    %5099 = vmatprep.subr.bf16.mxu0 0
    %5100 = vmatpush2.bf16.msra.mxu0 0
    %5101 = vmatprep.subr.bf16.mxu0 0
    %5102 = vmatpush2.bf16.msra.mxu0 0
    %5103 = vmatprep.subr.bf16.mxu0 0
    %5104 = vmatpush2.bf16.msra.mxu0 0
    %5105 = vmatprep.subr.bf16.mxu0 0
    %5106 = vmatpush2.bf16.msra.mxu0 0
    %5107 = vmatprep.subr.bf16.mxu0 0
    %5108 = vmatpush2.bf16.msra.mxu0 0
    %5109 = vmatprep.subr.bf16.mxu0 0
    %5110 = vmatpush2.bf16.msra.mxu0 0
    %5111 = vmatprep.mubr.bf16.mxu0 0
    %5112 = vmatmul.mubr.bf16.gmra.mxu0 %v4886
    %v5113 = vpop.f32.mrf.mxu0
    %v5114 = vadd.f32 0.0, %v5113
    %v5115 = vpop.f32.mrf.mxu0
    %v5116 = vadd.f32 0.0, %v5115
    %v5117 = vpop.f32.mrf.mxu0
    %v5118 = vpop.f32.mrf.mxu0
    %5119 = vdwg.mxu0
    %5120 = vmatprep.subr.bf16.mxu0 %v5046
    %5121 = vmatpush1.bf16.msra.mxu0 %v5045
    %5122 = vmatprep.subr.bf16.mxu0 %v5042
    %5123 = vmatpush1.bf16.msra.mxu0 %v5041
    %5124 = vmatprep.subr.bf16.mxu0 %v5038
    %5125 = vmatpush1.bf16.msra.mxu0 %v5037
    %5126 = vmatprep.subr.bf16.mxu0 %v5034
    %5127 = vmatpush1.bf16.msra.mxu0 %v5033
    %5128 = vmatprep.subr.bf16.mxu0 %v5030
    %5129 = vmatpush1.bf16.msra.mxu0 %v5029
    %5130 = vmatprep.subr.bf16.mxu0 %v5026
    %5131 = vmatpush1.bf16.msra.mxu0 %v5025
    %5132 = vmatprep.subr.bf16.mxu0 %v5022
    %5133 = vmatpush1.bf16.msra.mxu0 %v5021
    %5134 = vmatprep.subr.bf16.mxu0 %v5018
    %5135 = vmatpush1.bf16.msra.mxu0 %v5017
    %5136 = vmatprep.subr.bf16.mxu0 0
    %5137 = vmatpush2.bf16.msra.mxu0 0
    %5138 = vmatprep.subr.bf16.mxu0 0
    %5139 = vmatpush2.bf16.msra.mxu0 0
    %5140 = vmatprep.subr.bf16.mxu0 0
    %5141 = vmatpush2.bf16.msra.mxu0 0
    %5142 = vmatprep.subr.bf16.mxu0 0
    %5143 = vmatpush2.bf16.msra.mxu0 0
    %5144 = vmatprep.subr.bf16.mxu0 0
    %5145 = vmatpush2.bf16.msra.mxu0 0
    %5146 = vmatprep.subr.bf16.mxu0 0
    %5147 = vmatpush2.bf16.msra.mxu0 0
    %5148 = vmatprep.subr.bf16.mxu0 0
    %5149 = vmatpush2.bf16.msra.mxu0 0
    %5150 = vmatprep.subr.bf16.mxu0 0
    %5151 = vmatpush2.bf16.msra.mxu0 0
    %5152 = vmatprep.mubr.bf16.mxu0 0
    %5153 = vmatmul.mubr.bf16.gmra.mxu0 %v4886
    %v5154 = vpop.f32.mrf.mxu0
    %v5155 = vadd.f32 0.0, %v5154
    %v5156 = vpop.f32.mrf.mxu0
    %v5157 = vadd.f32 0.0, %v5156
    %v5158 = vpop.f32.mrf.mxu0
    %v5159 = vpop.f32.mrf.mxu0
    %5160 = vdwg.mxu0
    %v5161 = vadd.f32 %v4882, %v5114
    %v5162 = vadd.f32 %v4883, %v5116
    %v5163 = vadd.f32 %v4884, %v5155
    %v5164 = vadd.f32 %v4885, %v5157
    %v5165 = vxor.u32 %v5161, 2147483648
    %v5166 = vmul.f32 %v5165, 1.442695
    %v5167 = vpow.pop %v5166
    %v5168 = vadd.f32 %v5167, 1.0
    %v5169 = vrcp.pop %v5168
    %v5170 = vmul.f32 1.0, %v5169
    %v5171 = vxor.u32 %v5162, 2147483648
    %v5172 = vmul.f32 %v5171, 1.442695
    %v5173 = vpow.pop %v5172
    %v5174 = vadd.f32 %v5173, 1.0
    %v5175 = vrcp.pop %v5174
    %v5176 = vmul.f32 1.0, %v5175
    %v5177 = vtanh.pop %v5163
    %v5178 = vxor.u32 %v5164, 2147483648
    %v5179 = vmul.f32 %v5178, 1.442695
    %v5180 = vpow.pop %v5179
    %v5181 = vadd.f32 %v5180, 1.0
    %v5182 = vrcp.pop %v5181
    %v5183 = vmul.f32 1.0, %v5182
    %v5184 = vmul.f32 %v5176, %v4878
    %v5185 = vmul.f32 %v5170, %v5177
    %v5186 = vadd.f32 %v5184, %v5185
    %v5187 = vtanh.pop %v5186
    %v5188 = vmul.f32 %v5183, %v5187
    %5189 = vst [vmem:[%s2309] sm:$0xff] %v5188
    %v5190 = vld [vmem:[#allocation3 + $0xc0] sm:$0xff]
    %v5191 = vld [vmem:[#allocation3 + $0xc8] sm:$0xff]
    %v5192 = vld [vmem:[#allocation3 + $0xd0] sm:$0xff]
    %v5193 = vld [vmem:[#allocation3 + $0xd8] sm:$0xff]
    %v5194 = vpack.c.bf16 %v5188, %v5188
    %v5195 = vld [vmem:[%s3346] sm:$0xff]
    %v5196 = vld [vmem:[%s3346 + $0x8] sm:$0xff]
    %v5197 = vld [vmem:[%s3346 + $0x10] sm:$0xff]
    %v5198 = vld [vmem:[%s3346 + $0x18] sm:$0xff]
    %v5199 = vld [vmem:[%s3346 + $0x20] sm:$0xff]
    %v5200 = vld [vmem:[%s3346 + $0x28] sm:$0xff]
    %v5201 = vld [vmem:[%s3346 + $0x30] sm:$0xff]
    %v5202 = vld [vmem:[%s3346 + $0x38] sm:$0xff]
    %v5203 = vld [vmem:[%s3346 + $0x40] sm:$0xff]
    %v5204 = vld [vmem:[%s3346 + $0x48] sm:$0xff]
    %v5205 = vld [vmem:[%s3346 + $0x50] sm:$0xff]
    %v5206 = vld [vmem:[%s3346 + $0x58] sm:$0xff]
    %v5207 = vld [vmem:[%s3346 + $0x60] sm:$0xff]
    %v5208 = vld [vmem:[%s3346 + $0x68] sm:$0xff]
    %v5209 = vld [vmem:[%s3346 + $0x70] sm:$0xff]
    %v5210 = vld [vmem:[%s3346 + $0x78] sm:$0xff]
    %v5211 = vld [vmem:[%s3346 + $0x80] sm:$0xff]
    %v5212 = vld [vmem:[%s3346 + $0x88] sm:$0xff]
    %v5213 = vld [vmem:[%s3346 + $0x90] sm:$0xff]
    %v5214 = vld [vmem:[%s3346 + $0x98] sm:$0xff]
    %v5215 = vld [vmem:[%s3346 + $0xa0] sm:$0xff]
    %v5216 = vld [vmem:[%s3346 + $0xa8] sm:$0xff]
    %v5217 = vld [vmem:[%s3346 + $0xb0] sm:$0xff]
    %v5218 = vld [vmem:[%s3346 + $0xb8] sm:$0xff]
    %v5219 = vld [vmem:[%s3346 + $0xc0] sm:$0xff]
    %v5220 = vld [vmem:[%s3346 + $0xc8] sm:$0xff]
    %v5221 = vld [vmem:[%s3346 + $0xd0] sm:$0xff]
    %v5222 = vld [vmem:[%s3346 + $0xd8] sm:$0xff]
    %v5223 = vld [vmem:[%s3346 + $0xe0] sm:$0xff]
    %v5224 = vld [vmem:[%s3346 + $0xe8] sm:$0xff]
    %v5225 = vld [vmem:[%s3346 + $0xf0] sm:$0xff]
    %v5226 = vld [vmem:[%s3346 + $0xf8] sm:$0xff]
    %v5259 = vunpack.c.l.b16 %v5195
    %v5260 = vunpack.c.h.b16 %v5195
    %v5261 = vunpack.c.l.b16 %v5196
    %v5262 = vunpack.c.h.b16 %v5196
    %v5263 = vunpack.c.l.b16 %v5197
    %v5264 = vunpack.c.h.b16 %v5197
    %v5265 = vunpack.c.l.b16 %v5198
    %v5266 = vunpack.c.h.b16 %v5198
    %v5267 = vunpack.c.l.b16 %v5199
    %v5268 = vunpack.c.h.b16 %v5199
    %v5269 = vunpack.c.l.b16 %v5200
    %v5270 = vunpack.c.h.b16 %v5200
    %v5271 = vunpack.c.l.b16 %v5201
    %v5272 = vunpack.c.h.b16 %v5201
    %v5273 = vunpack.c.l.b16 %v5202
    %v5274 = vunpack.c.h.b16 %v5202
    %v5275 = vunpack.c.l.b16 %v5203
    %v5276 = vunpack.c.h.b16 %v5203
    %v5277 = vunpack.c.l.b16 %v5204
    %v5278 = vunpack.c.h.b16 %v5204
    %v5279 = vunpack.c.l.b16 %v5205
    %v5280 = vunpack.c.h.b16 %v5205
    %v5281 = vunpack.c.l.b16 %v5206
    %v5282 = vunpack.c.h.b16 %v5206
    %v5283 = vunpack.c.l.b16 %v5207
    %v5284 = vunpack.c.h.b16 %v5207
    %v5285 = vunpack.c.l.b16 %v5208
    %v5286 = vunpack.c.h.b16 %v5208
    %v5287 = vunpack.c.l.b16 %v5209
    %v5288 = vunpack.c.h.b16 %v5209
    %v5289 = vunpack.c.l.b16 %v5210
    %v5290 = vunpack.c.h.b16 %v5210
    %v5291 = vunpack.c.l.b16 %v5211
    %v5292 = vunpack.c.h.b16 %v5211
    %v5293 = vunpack.c.l.b16 %v5212
    %v5294 = vunpack.c.h.b16 %v5212
    %v5295 = vunpack.c.l.b16 %v5213
    %v5296 = vunpack.c.h.b16 %v5213
    %v5297 = vunpack.c.l.b16 %v5214
    %v5298 = vunpack.c.h.b16 %v5214
    %v5299 = vunpack.c.l.b16 %v5215
    %v5300 = vunpack.c.h.b16 %v5215
    %v5301 = vunpack.c.l.b16 %v5216
    %v5302 = vunpack.c.h.b16 %v5216
    %v5303 = vunpack.c.l.b16 %v5217
    %v5304 = vunpack.c.h.b16 %v5217
    %v5305 = vunpack.c.l.b16 %v5218
    %v5306 = vunpack.c.h.b16 %v5218
    %v5307 = vunpack.c.l.b16 %v5219
    %v5308 = vunpack.c.h.b16 %v5219
    %v5309 = vunpack.c.l.b16 %v5220
    %v5310 = vunpack.c.h.b16 %v5220
    %v5311 = vunpack.c.l.b16 %v5221
    %v5312 = vunpack.c.h.b16 %v5221
    %v5313 = vunpack.c.l.b16 %v5222
    %v5314 = vunpack.c.h.b16 %v5222
    %v5315 = vunpack.c.l.b16 %v5223
    %v5316 = vunpack.c.h.b16 %v5223
    %v5317 = vunpack.c.l.b16 %v5224
    %v5318 = vunpack.c.h.b16 %v5224
    %v5319 = vunpack.c.l.b16 %v5225
    %v5320 = vunpack.c.h.b16 %v5225
    %v5321 = vunpack.c.l.b16 %v5226
    %v5322 = vunpack.c.h.b16 %v5226
    %v5323 = vpack.c.b16 %v5263, %v5259
    %v5324 = vpack.c.b16 %v5264, %v5260
    %v5325 = vpack.c.b16 %v5265, %v5261
    %v5326 = vpack.c.b16 %v5266, %v5262
    %v5327 = vpack.c.b16 %v5271, %v5267
    %v5328 = vpack.c.b16 %v5272, %v5268
    %v5329 = vpack.c.b16 %v5273, %v5269
    %v5330 = vpack.c.b16 %v5274, %v5270
    %v5331 = vpack.c.b16 %v5279, %v5275
    %v5332 = vpack.c.b16 %v5280, %v5276
    %v5333 = vpack.c.b16 %v5281, %v5277
    %v5334 = vpack.c.b16 %v5282, %v5278
    %v5335 = vpack.c.b16 %v5287, %v5283
    %v5336 = vpack.c.b16 %v5288, %v5284
    %v5337 = vpack.c.b16 %v5289, %v5285
    %v5338 = vpack.c.b16 %v5290, %v5286
    %v5339 = vpack.c.b16 %v5295, %v5291
    %v5340 = vpack.c.b16 %v5296, %v5292
    %v5341 = vpack.c.b16 %v5297, %v5293
    %v5342 = vpack.c.b16 %v5298, %v5294
    %v5343 = vpack.c.b16 %v5303, %v5299
    %v5344 = vpack.c.b16 %v5304, %v5300
    %v5345 = vpack.c.b16 %v5305, %v5301
    %v5346 = vpack.c.b16 %v5306, %v5302
    %v5347 = vpack.c.b16 %v5311, %v5307
    %v5348 = vpack.c.b16 %v5312, %v5308
    %v5349 = vpack.c.b16 %v5313, %v5309
    %v5350 = vpack.c.b16 %v5314, %v5310
    %v5351 = vpack.c.b16 %v5319, %v5315
    %v5352 = vpack.c.b16 %v5320, %v5316
    %v5353 = vpack.c.b16 %v5321, %v5317
    %v5354 = vpack.c.b16 %v5322, %v5318
    %5387 = vmatprep.subr.bf16.mxu0 %v5352
    %5388 = vmatpush1.bf16.msra.mxu0 %v5351
    %5389 = vmatprep.subr.bf16.mxu0 %v5348
    %5390 = vmatpush1.bf16.msra.mxu0 %v5347
    %5391 = vmatprep.subr.bf16.mxu0 %v5344
    %5392 = vmatpush1.bf16.msra.mxu0 %v5343
    %5393 = vmatprep.subr.bf16.mxu0 %v5340
    %5394 = vmatpush1.bf16.msra.mxu0 %v5339
    %5395 = vmatprep.subr.bf16.mxu0 %v5336
    %5396 = vmatpush1.bf16.msra.mxu0 %v5335
    %5397 = vmatprep.subr.bf16.mxu0 %v5332
    %5398 = vmatpush1.bf16.msra.mxu0 %v5331
    %5399 = vmatprep.subr.bf16.mxu0 %v5328
    %5400 = vmatpush1.bf16.msra.mxu0 %v5327
    %5401 = vmatprep.subr.bf16.mxu0 %v5324
    %5402 = vmatpush1.bf16.msra.mxu0 %v5323
    %5403 = vmatprep.subr.bf16.mxu0 0
    %5404 = vmatpush2.bf16.msra.mxu0 0
    %5405 = vmatprep.subr.bf16.mxu0 0
    %5406 = vmatpush2.bf16.msra.mxu0 0
    %5407 = vmatprep.subr.bf16.mxu0 0
    %5408 = vmatpush2.bf16.msra.mxu0 0
    %5409 = vmatprep.subr.bf16.mxu0 0
    %5410 = vmatpush2.bf16.msra.mxu0 0
    %5411 = vmatprep.subr.bf16.mxu0 0
    %5412 = vmatpush2.bf16.msra.mxu0 0
    %5413 = vmatprep.subr.bf16.mxu0 0
    %5414 = vmatpush2.bf16.msra.mxu0 0
    %5415 = vmatprep.subr.bf16.mxu0 0
    %5416 = vmatpush2.bf16.msra.mxu0 0
    %5417 = vmatprep.subr.bf16.mxu0 0
    %5418 = vmatpush2.bf16.msra.mxu0 0
    %5419 = vmatprep.mubr.bf16.mxu0 0
    %5420 = vmatmul.mubr.bf16.gmra.mxu0 %v5194
    %v5421 = vpop.f32.mrf.mxu0
    %v5422 = vadd.f32 0.0, %v5421
    %v5423 = vpop.f32.mrf.mxu0
    %v5424 = vadd.f32 0.0, %v5423
    %v5425 = vpop.f32.mrf.mxu0
    %v5426 = vpop.f32.mrf.mxu0
    %5427 = vdwg.mxu0
    %5428 = vmatprep.subr.bf16.mxu0 %v5354
    %5429 = vmatpush1.bf16.msra.mxu0 %v5353
    %5430 = vmatprep.subr.bf16.mxu0 %v5350
    %5431 = vmatpush1.bf16.msra.mxu0 %v5349
    %5432 = vmatprep.subr.bf16.mxu0 %v5346
    %5433 = vmatpush1.bf16.msra.mxu0 %v5345
    %5434 = vmatprep.subr.bf16.mxu0 %v5342
    %5435 = vmatpush1.bf16.msra.mxu0 %v5341
    %5436 = vmatprep.subr.bf16.mxu0 %v5338
    %5437 = vmatpush1.bf16.msra.mxu0 %v5337
    %5438 = vmatprep.subr.bf16.mxu0 %v5334
    %5439 = vmatpush1.bf16.msra.mxu0 %v5333
    %5440 = vmatprep.subr.bf16.mxu0 %v5330
    %5441 = vmatpush1.bf16.msra.mxu0 %v5329
    %5442 = vmatprep.subr.bf16.mxu0 %v5326
    %5443 = vmatpush1.bf16.msra.mxu0 %v5325
    %5444 = vmatprep.subr.bf16.mxu0 0
    %5445 = vmatpush2.bf16.msra.mxu0 0
    %5446 = vmatprep.subr.bf16.mxu0 0
    %5447 = vmatpush2.bf16.msra.mxu0 0
    %5448 = vmatprep.subr.bf16.mxu0 0
    %5449 = vmatpush2.bf16.msra.mxu0 0
    %5450 = vmatprep.subr.bf16.mxu0 0
    %5451 = vmatpush2.bf16.msra.mxu0 0
    %5452 = vmatprep.subr.bf16.mxu0 0
    %5453 = vmatpush2.bf16.msra.mxu0 0
    %5454 = vmatprep.subr.bf16.mxu0 0
    %5455 = vmatpush2.bf16.msra.mxu0 0
    %5456 = vmatprep.subr.bf16.mxu0 0
    %5457 = vmatpush2.bf16.msra.mxu0 0
    %5458 = vmatprep.subr.bf16.mxu0 0
    %5459 = vmatpush2.bf16.msra.mxu0 0
    %5460 = vmatprep.mubr.bf16.mxu0 0
    %5461 = vmatmul.mubr.bf16.gmra.mxu0 %v5194
    %v5462 = vpop.f32.mrf.mxu0
    %v5463 = vadd.f32 0.0, %v5462
    %v5464 = vpop.f32.mrf.mxu0
    %v5465 = vadd.f32 0.0, %v5464
    %v5466 = vpop.f32.mrf.mxu0
    %v5467 = vpop.f32.mrf.mxu0
    %5468 = vdwg.mxu0
    %v5469 = vadd.f32 %v5190, %v5422
    %v5470 = vadd.f32 %v5191, %v5424
    %v5471 = vadd.f32 %v5192, %v5463
    %v5472 = vadd.f32 %v5193, %v5465
    %v5473 = vxor.u32 %v5469, 2147483648
    %v5474 = vmul.f32 %v5473, 1.442695
    %v5475 = vpow.pop %v5474
    %v5476 = vadd.f32 %v5475, 1.0
    %v5477 = vrcp.pop %v5476
    %v5478 = vmul.f32 1.0, %v5477
    %v5479 = vxor.u32 %v5470, 2147483648
    %v5480 = vmul.f32 %v5479, 1.442695
    %v5481 = vpow.pop %v5480
    %v5482 = vadd.f32 %v5481, 1.0
    %v5483 = vrcp.pop %v5482
    %v5484 = vmul.f32 1.0, %v5483
    %v5485 = vtanh.pop %v5471
    %v5486 = vxor.u32 %v5472, 2147483648
    %v5487 = vmul.f32 %v5486, 1.442695
    %v5488 = vpow.pop %v5487
    %v5489 = vadd.f32 %v5488, 1.0
    %v5490 = vrcp.pop %v5489
    %v5491 = vmul.f32 1.0, %v5490
    %v5492 = vmul.f32 %v5484, %v5186
    %v5493 = vmul.f32 %v5478, %v5485
    %v5494 = vadd.f32 %v5492, %v5493
    %v5495 = vtanh.pop %v5494
    %v5496 = vmul.f32 %v5491, %v5495
    %5497 = vst [vmem:[%s2618] sm:$0xff] %v5496
    %v5498 = vld [vmem:[#allocation3 + $0xe0] sm:$0xff]
    %v5499 = vld [vmem:[#allocation3 + $0xe8] sm:$0xff]
    %v5500 = vld [vmem:[#allocation3 + $0xf0] sm:$0xff]
    %v5501 = vld [vmem:[#allocation3 + $0xf8] sm:$0xff]
    %v5502 = vpack.c.bf16 %v5496, %v5496
    %v5503 = vld [vmem:[%s3346] sm:$0xff]
    %v5504 = vld [vmem:[%s3346 + $0x8] sm:$0xff]
    %v5505 = vld [vmem:[%s3346 + $0x10] sm:$0xff]
    %v5506 = vld [vmem:[%s3346 + $0x18] sm:$0xff]
    %v5507 = vld [vmem:[%s3346 + $0x20] sm:$0xff]
    %v5508 = vld [vmem:[%s3346 + $0x28] sm:$0xff]
    %v5509 = vld [vmem:[%s3346 + $0x30] sm:$0xff]
    %v5510 = vld [vmem:[%s3346 + $0x38] sm:$0xff]
    %v5511 = vld [vmem:[%s3346 + $0x40] sm:$0xff]
    %v5512 = vld [vmem:[%s3346 + $0x48] sm:$0xff]
    %v5513 = vld [vmem:[%s3346 + $0x50] sm:$0xff]
    %v5514 = vld [vmem:[%s3346 + $0x58] sm:$0xff]
    %v5515 = vld [vmem:[%s3346 + $0x60] sm:$0xff]
    %v5516 = vld [vmem:[%s3346 + $0x68] sm:$0xff]
    %v5517 = vld [vmem:[%s3346 + $0x70] sm:$0xff]
    %v5518 = vld [vmem:[%s3346 + $0x78] sm:$0xff]
    %v5519 = vld [vmem:[%s3346 + $0x80] sm:$0xff]
    %v5520 = vld [vmem:[%s3346 + $0x88] sm:$0xff]
    %v5521 = vld [vmem:[%s3346 + $0x90] sm:$0xff]
    %v5522 = vld [vmem:[%s3346 + $0x98] sm:$0xff]
    %v5523 = vld [vmem:[%s3346 + $0xa0] sm:$0xff]
    %v5524 = vld [vmem:[%s3346 + $0xa8] sm:$0xff]
    %v5525 = vld [vmem:[%s3346 + $0xb0] sm:$0xff]
    %v5526 = vld [vmem:[%s3346 + $0xb8] sm:$0xff]
    %v5527 = vld [vmem:[%s3346 + $0xc0] sm:$0xff]
    %v5528 = vld [vmem:[%s3346 + $0xc8] sm:$0xff]
    %v5529 = vld [vmem:[%s3346 + $0xd0] sm:$0xff]
    %v5530 = vld [vmem:[%s3346 + $0xd8] sm:$0xff]
    %v5531 = vld [vmem:[%s3346 + $0xe0] sm:$0xff]
    %v5532 = vld [vmem:[%s3346 + $0xe8] sm:$0xff]
    %v5533 = vld [vmem:[%s3346 + $0xf0] sm:$0xff]
    %v5534 = vld [vmem:[%s3346 + $0xf8] sm:$0xff]
    %v5567 = vunpack.c.l.b16 %v5503
    %v5568 = vunpack.c.h.b16 %v5503
    %v5569 = vunpack.c.l.b16 %v5504
    %v5570 = vunpack.c.h.b16 %v5504
    %v5571 = vunpack.c.l.b16 %v5505
    %v5572 = vunpack.c.h.b16 %v5505
    %v5573 = vunpack.c.l.b16 %v5506
    %v5574 = vunpack.c.h.b16 %v5506
    %v5575 = vunpack.c.l.b16 %v5507
    %v5576 = vunpack.c.h.b16 %v5507
    %v5577 = vunpack.c.l.b16 %v5508
    %v5578 = vunpack.c.h.b16 %v5508
    %v5579 = vunpack.c.l.b16 %v5509
    %v5580 = vunpack.c.h.b16 %v5509
    %v5581 = vunpack.c.l.b16 %v5510
    %v5582 = vunpack.c.h.b16 %v5510
    %v5583 = vunpack.c.l.b16 %v5511
    %v5584 = vunpack.c.h.b16 %v5511
    %v5585 = vunpack.c.l.b16 %v5512
    %v5586 = vunpack.c.h.b16 %v5512
    %v5587 = vunpack.c.l.b16 %v5513
    %v5588 = vunpack.c.h.b16 %v5513
    %v5589 = vunpack.c.l.b16 %v5514
    %v5590 = vunpack.c.h.b16 %v5514
    %v5591 = vunpack.c.l.b16 %v5515
    %v5592 = vunpack.c.h.b16 %v5515
    %v5593 = vunpack.c.l.b16 %v5516
    %v5594 = vunpack.c.h.b16 %v5516
    %v5595 = vunpack.c.l.b16 %v5517
    %v5596 = vunpack.c.h.b16 %v5517
    %v5597 = vunpack.c.l.b16 %v5518
    %v5598 = vunpack.c.h.b16 %v5518
    %v5599 = vunpack.c.l.b16 %v5519
    %v5600 = vunpack.c.h.b16 %v5519
    %v5601 = vunpack.c.l.b16 %v5520
    %v5602 = vunpack.c.h.b16 %v5520
    %v5603 = vunpack.c.l.b16 %v5521
    %v5604 = vunpack.c.h.b16 %v5521
    %v5605 = vunpack.c.l.b16 %v5522
    %v5606 = vunpack.c.h.b16 %v5522
    %v5607 = vunpack.c.l.b16 %v5523
    %v5608 = vunpack.c.h.b16 %v5523
    %v5609 = vunpack.c.l.b16 %v5524
    %v5610 = vunpack.c.h.b16 %v5524
    %v5611 = vunpack.c.l.b16 %v5525
    %v5612 = vunpack.c.h.b16 %v5525
    %v5613 = vunpack.c.l.b16 %v5526
    %v5614 = vunpack.c.h.b16 %v5526
    %v5615 = vunpack.c.l.b16 %v5527
    %v5616 = vunpack.c.h.b16 %v5527
    %v5617 = vunpack.c.l.b16 %v5528
    %v5618 = vunpack.c.h.b16 %v5528
    %v5619 = vunpack.c.l.b16 %v5529
    %v5620 = vunpack.c.h.b16 %v5529
    %v5621 = vunpack.c.l.b16 %v5530
    %v5622 = vunpack.c.h.b16 %v5530
    %v5623 = vunpack.c.l.b16 %v5531
    %v5624 = vunpack.c.h.b16 %v5531
    %v5625 = vunpack.c.l.b16 %v5532
    %v5626 = vunpack.c.h.b16 %v5532
    %v5627 = vunpack.c.l.b16 %v5533
    %v5628 = vunpack.c.h.b16 %v5533
    %v5629 = vunpack.c.l.b16 %v5534
    %v5630 = vunpack.c.h.b16 %v5534
    %v5631 = vpack.c.b16 %v5571, %v5567
    %v5632 = vpack.c.b16 %v5572, %v5568
    %v5633 = vpack.c.b16 %v5573, %v5569
    %v5634 = vpack.c.b16 %v5574, %v5570
    %v5635 = vpack.c.b16 %v5579, %v5575
    %v5636 = vpack.c.b16 %v5580, %v5576
    %v5637 = vpack.c.b16 %v5581, %v5577
    %v5638 = vpack.c.b16 %v5582, %v5578
    %v5639 = vpack.c.b16 %v5587, %v5583
    %v5640 = vpack.c.b16 %v5588, %v5584
    %v5641 = vpack.c.b16 %v5589, %v5585
    %v5642 = vpack.c.b16 %v5590, %v5586
    %v5643 = vpack.c.b16 %v5595, %v5591
    %v5644 = vpack.c.b16 %v5596, %v5592
    %v5645 = vpack.c.b16 %v5597, %v5593
    %v5646 = vpack.c.b16 %v5598, %v5594
    %v5647 = vpack.c.b16 %v5603, %v5599
    %v5648 = vpack.c.b16 %v5604, %v5600
    %v5649 = vpack.c.b16 %v5605, %v5601
    %v5650 = vpack.c.b16 %v5606, %v5602
    %v5651 = vpack.c.b16 %v5611, %v5607
    %v5652 = vpack.c.b16 %v5612, %v5608
    %v5653 = vpack.c.b16 %v5613, %v5609
    %v5654 = vpack.c.b16 %v5614, %v5610
    %v5655 = vpack.c.b16 %v5619, %v5615
    %v5656 = vpack.c.b16 %v5620, %v5616
    %v5657 = vpack.c.b16 %v5621, %v5617
    %v5658 = vpack.c.b16 %v5622, %v5618
    %v5659 = vpack.c.b16 %v5627, %v5623
    %v5660 = vpack.c.b16 %v5628, %v5624
    %v5661 = vpack.c.b16 %v5629, %v5625
    %v5662 = vpack.c.b16 %v5630, %v5626
    %5695 = vmatprep.subr.bf16.mxu0 %v5660
    %5696 = vmatpush1.bf16.msra.mxu0 %v5659
    %5697 = vmatprep.subr.bf16.mxu0 %v5656
    %5698 = vmatpush1.bf16.msra.mxu0 %v5655
    %5699 = vmatprep.subr.bf16.mxu0 %v5652
    %5700 = vmatpush1.bf16.msra.mxu0 %v5651
    %5701 = vmatprep.subr.bf16.mxu0 %v5648
    %5702 = vmatpush1.bf16.msra.mxu0 %v5647
    %5703 = vmatprep.subr.bf16.mxu0 %v5644
    %5704 = vmatpush1.bf16.msra.mxu0 %v5643
    %5705 = vmatprep.subr.bf16.mxu0 %v5640
    %5706 = vmatpush1.bf16.msra.mxu0 %v5639
    %5707 = vmatprep.subr.bf16.mxu0 %v5636
    %5708 = vmatpush1.bf16.msra.mxu0 %v5635
    %5709 = vmatprep.subr.bf16.mxu0 %v5632
    %5710 = vmatpush1.bf16.msra.mxu0 %v5631
    %5711 = vmatprep.subr.bf16.mxu0 0
    %5712 = vmatpush2.bf16.msra.mxu0 0
    %5713 = vmatprep.subr.bf16.mxu0 0
    %5714 = vmatpush2.bf16.msra.mxu0 0
    %5715 = vmatprep.subr.bf16.mxu0 0
    %5716 = vmatpush2.bf16.msra.mxu0 0
    %5717 = vmatprep.subr.bf16.mxu0 0
    %5718 = vmatpush2.bf16.msra.mxu0 0
    %5719 = vmatprep.subr.bf16.mxu0 0
    %5720 = vmatpush2.bf16.msra.mxu0 0
    %5721 = vmatprep.subr.bf16.mxu0 0
    %5722 = vmatpush2.bf16.msra.mxu0 0
    %5723 = vmatprep.subr.bf16.mxu0 0
    %5724 = vmatpush2.bf16.msra.mxu0 0
    %5725 = vmatprep.subr.bf16.mxu0 0
    %5726 = vmatpush2.bf16.msra.mxu0 0
    %5727 = vmatprep.mubr.bf16.mxu0 0
    %5728 = vmatmul.mubr.bf16.gmra.mxu0 %v5502
    %v5729 = vpop.f32.mrf.mxu0
    %v5730 = vadd.f32 0.0, %v5729
    %v5731 = vpop.f32.mrf.mxu0
    %v5732 = vadd.f32 0.0, %v5731
    %v5733 = vpop.f32.mrf.mxu0
    %v5734 = vpop.f32.mrf.mxu0
    %5735 = vdwg.mxu0
    %5736 = vmatprep.subr.bf16.mxu0 %v5662
    %5737 = vmatpush1.bf16.msra.mxu0 %v5661
    %5738 = vmatprep.subr.bf16.mxu0 %v5658
    %5739 = vmatpush1.bf16.msra.mxu0 %v5657
    %5740 = vmatprep.subr.bf16.mxu0 %v5654
    %5741 = vmatpush1.bf16.msra.mxu0 %v5653
    %5742 = vmatprep.subr.bf16.mxu0 %v5650
    %5743 = vmatpush1.bf16.msra.mxu0 %v5649
    %5744 = vmatprep.subr.bf16.mxu0 %v5646
    %5745 = vmatpush1.bf16.msra.mxu0 %v5645
    %5746 = vmatprep.subr.bf16.mxu0 %v5642
    %5747 = vmatpush1.bf16.msra.mxu0 %v5641
    %5748 = vmatprep.subr.bf16.mxu0 %v5638
    %5749 = vmatpush1.bf16.msra.mxu0 %v5637
    %5750 = vmatprep.subr.bf16.mxu0 %v5634
    %5751 = vmatpush1.bf16.msra.mxu0 %v5633
    %5752 = vmatprep.subr.bf16.mxu0 0
    %5753 = vmatpush2.bf16.msra.mxu0 0
    %5754 = vmatprep.subr.bf16.mxu0 0
    %5755 = vmatpush2.bf16.msra.mxu0 0
    %5756 = vmatprep.subr.bf16.mxu0 0
    %5757 = vmatpush2.bf16.msra.mxu0 0
    %5758 = vmatprep.subr.bf16.mxu0 0
    %5759 = vmatpush2.bf16.msra.mxu0 0
    %5760 = vmatprep.subr.bf16.mxu0 0
    %5761 = vmatpush2.bf16.msra.mxu0 0
    %5762 = vmatprep.subr.bf16.mxu0 0
    %5763 = vmatpush2.bf16.msra.mxu0 0
    %5764 = vmatprep.subr.bf16.mxu0 0
    %5765 = vmatpush2.bf16.msra.mxu0 0
    %5766 = vmatprep.subr.bf16.mxu0 0
    %5767 = vmatpush2.bf16.msra.mxu0 0
    %5768 = vmatprep.mubr.bf16.mxu0 0
    %5769 = vmatmul.mubr.bf16.gmra.mxu0 %v5502
    %v5770 = vpop.f32.mrf.mxu0
    %v5771 = vadd.f32 0.0, %v5770
    %v5772 = vpop.f32.mrf.mxu0
    %v5773 = vadd.f32 0.0, %v5772
    %v5774 = vpop.f32.mrf.mxu0
    %v5775 = vpop.f32.mrf.mxu0
    %5776 = vdwg.mxu0
    %v5777 = vadd.f32 %v5498, %v5730
    %v5778 = vadd.f32 %v5499, %v5732
    %v5779 = vadd.f32 %v5500, %v5771
    %v5780 = vadd.f32 %v5501, %v5773
    %v5781 = vxor.u32 %v5777, 2147483648
    %v5782 = vmul.f32 %v5781, 1.442695
    %v5783 = vpow.pop %v5782
    %v5784 = vadd.f32 %v5783, 1.0
    %v5785 = vrcp.pop %v5784
    %v5786 = vmul.f32 1.0, %v5785
    %v5787 = vxor.u32 %v5778, 2147483648
    %v5788 = vmul.f32 %v5787, 1.442695
    %v5789 = vpow.pop %v5788
    %v5790 = vadd.f32 %v5789, 1.0
    %v5791 = vrcp.pop %v5790
    %v5792 = vmul.f32 1.0, %v5791
    %v5793 = vtanh.pop %v5779
    %v5794 = vxor.u32 %v5780, 2147483648
    %v5795 = vmul.f32 %v5794, 1.442695
    %v5796 = vpow.pop %v5795
    %v5797 = vadd.f32 %v5796, 1.0
    %v5798 = vrcp.pop %v5797
    %v5799 = vmul.f32 1.0, %v5798
    %v5800 = vmul.f32 %v5792, %v5494
    %v5801 = vmul.f32 %v5786, %v5793
    %v5802 = vadd.f32 %v5800, %v5801
    %v5803 = vtanh.pop %v5802
    %v5804 = vmul.f32 %v5799, %v5803
    %5805 = vst [vmem:[%s2927] sm:$0xff] %v5804
    %s5806 = scalar_lea.vmem [#allocation8], 8
    %5807 = vst [vmem:[%s5806] sm:$0xff] %v5804
    %s5808 = scalar_lea.vmem [#allocation10], 8
    %5809 = vst [vmem:[%s5808] sm:$0xff] %v5802
    %v5810 = vld [vmem:[#allocation2] sm:$0xff]
    %v5811 = vld [vmem:[#allocation2 + $0x8] sm:$0xff]
    %v5812 = vld [vmem:[#allocation2 + $0x10] sm:$0xff]
    %v5813 = vld [vmem:[#allocation2 + $0x18] sm:$0xff]
    %v5814 = vld [vmem:[#allocation2 + $0x20] sm:$0xff]
    %v5815 = vld [vmem:[#allocation2 + $0x28] sm:$0xff]
    %v5816 = vld [vmem:[#allocation2 + $0x30] sm:$0xff]
    %v5817 = vld [vmem:[#allocation2 + $0x38] sm:$0xff]
    %v5818 = vld [vmem:[%s6] sm:$0xff]
    %v5819 = vld [vmem:[%s6 + $0x8] sm:$0xff]
    %v5820 = vld [vmem:[%s6 + $0x10] sm:$0xff]
    %v5821 = vld [vmem:[%s6 + $0x18] sm:$0xff]
    %v5822 = vld [vmem:[%s6 + $0x20] sm:$0xff]
    %v5823 = vld [vmem:[%s6 + $0x28] sm:$0xff]
    %v5824 = vld [vmem:[%s6 + $0x30] sm:$0xff]
    %v5825 = vld [vmem:[%s6 + $0x38] sm:$0xff]
    %vm5826 = vcmask 523264
    %v5828 = vsel %vm5826, %v5818, 0
    %v5831 = vsel %vm5826, %v5819, 0
    %v5834 = vsel %vm5826, %v5820, 0
    %v5837 = vsel %vm5826, %v5821, 0
    %v5840 = vsel %vm5826, %v5822, 0
    %v5843 = vsel %vm5826, %v5823, 0
    %v5846 = vsel %vm5826, %v5824, 0
    %v5849 = vsel %vm5826, %v5825, 0
    %5851 = vmatprep.subr.mxu0 0.0
    %5852 = vmatpush1.msra.mxu0 0.0
    %5853 = vmatprep.subr.mxu0 0.0
    %5854 = vmatpush1.msra.mxu0 0.0
    %5855 = vmatprep.subr.mxu0 0.0
    %5856 = vmatpush1.msra.mxu0 0.0
    %5857 = vmatprep.subr.mxu0 0.0
    %5858 = vmatpush1.msra.mxu0 0.0
    %5859 = vmatprep.subr.mxu0 0.0
    %5860 = vmatpush1.msra.mxu0 0.0
    %5861 = vmatprep.subr.mxu0 0.0
    %5862 = vmatpush1.msra.mxu0 0.0
    %5863 = vmatprep.subr.mxu0 0.0
    %5864 = vmatpush1.msra.mxu0 0.0
    %5865 = vmatprep.subr.mxu0 0.0
    %5866 = vmatpush1.msra.mxu0 0.0
    %5867 = vmatprep.subr.mxu0 0.0
    %5868 = vmatpush1.msra.mxu0 %v5817
    %5869 = vmatprep.subr.mxu0 0.0
    %5870 = vmatpush1.msra.mxu0 %v5816
    %5871 = vmatprep.subr.mxu0 0.0
    %5872 = vmatpush1.msra.mxu0 %v5815
    %5873 = vmatprep.subr.mxu0 0.0
    %5874 = vmatpush1.msra.mxu0 %v5814
    %5875 = vmatprep.subr.mxu0 0.0
    %5876 = vmatpush1.msra.mxu0 %v5813
    %5877 = vmatprep.subr.mxu0 0.0
    %5878 = vmatpush1.msra.mxu0 %v5812
    %5879 = vmatprep.subr.mxu0 0.0
    %5880 = vmatpush1.msra.mxu0 %v5811
    %5881 = vmatprep.subr.mxu0 0.0
    %5882 = vmatpush1.msra.mxu0 %v5810
    %5883 = vmatprep.subr.mxu0 0.0
    %5884 = vmatpush2.msra.mxu0 0.0
    %5885 = vmatprep.subr.mxu0 0.0
    %5886 = vmatpush2.msra.mxu0 0.0
    %5887 = vmatprep.subr.mxu0 0.0
    %5888 = vmatpush2.msra.mxu0 0.0
    %5889 = vmatprep.subr.mxu0 0.0
    %5890 = vmatpush2.msra.mxu0 0.0
    %5891 = vmatprep.subr.mxu0 0.0
    %5892 = vmatpush2.msra.mxu0 0.0
    %5893 = vmatprep.subr.mxu0 0.0
    %5894 = vmatpush2.msra.mxu0 0.0
    %5895 = vmatprep.subr.mxu0 0.0
    %5896 = vmatpush2.msra.mxu0 0.0
    %5897 = vmatprep.subr.mxu0 0.0
    %5898 = vmatpush2.msra.mxu0 0.0
    %5899 = vmatprep.subr.mxu0 0.0
    %5900 = vmatpush2.msra.mxu0 0.0
    %5901 = vmatprep.subr.mxu0 0.0
    %5902 = vmatpush2.msra.mxu0 0.0
    %5903 = vmatprep.subr.mxu0 0.0
    %5904 = vmatpush2.msra.mxu0 0.0
    %5905 = vmatprep.subr.mxu0 0.0
    %5906 = vmatpush2.msra.mxu0 0.0
    %5907 = vmatprep.subr.mxu0 0.0
    %5908 = vmatpush2.msra.mxu0 0.0
    %5909 = vmatprep.subr.mxu0 0.0
    %5910 = vmatpush2.msra.mxu0 0.0
    %5911 = vmatprep.subr.mxu0 0.0
    %5912 = vmatpush2.msra.mxu0 0.0
    %5913 = vmatprep.subr.mxu0 0.0
    %5914 = vmatpush2.msra.mxu0 0.0
    %5915 = vmatprep.mubr.f32.mxu0 0.0
    %5916 = vmatmul.mubr.f32.gmra.mxu0 %v5828
    %v5917 = vpop.f32.mrf.mxu0
    %v5918 = vadd.f32 0.0, %v5917
    %v5919 = vpop.f32.mrf.mxu0
    %5920 = vmatprep.mubr.f32.mxu0 0.0
    %5921 = vmatmul.mubr.f32.gmra.mxu0 %v5831
    %v5922 = vpop.f32.mrf.mxu0
    %v5923 = vadd.f32 0.0, %v5922
    %v5924 = vpop.f32.mrf.mxu0
    %5925 = vmatprep.mubr.f32.mxu0 0.0
    %5926 = vmatmul.mubr.f32.gmra.mxu0 %v5834
    %v5927 = vpop.f32.mrf.mxu0
    %v5928 = vadd.f32 0.0, %v5927
    %v5929 = vpop.f32.mrf.mxu0
    %5930 = vmatprep.mubr.f32.mxu0 0.0
    %5931 = vmatmul.mubr.f32.gmra.mxu0 %v5837
    %v5932 = vpop.f32.mrf.mxu0
    %v5933 = vadd.f32 0.0, %v5932
    %v5934 = vpop.f32.mrf.mxu0
    %5935 = vmatprep.mubr.f32.mxu0 0.0
    %5936 = vmatmul.mubr.f32.gmra.mxu0 %v5840
    %v5937 = vpop.f32.mrf.mxu0
    %v5938 = vadd.f32 0.0, %v5937
    %v5939 = vpop.f32.mrf.mxu0
    %5940 = vmatprep.mubr.f32.mxu0 0.0
    %5941 = vmatmul.mubr.f32.gmra.mxu0 %v5843
    %v5942 = vpop.f32.mrf.mxu0
    %v5943 = vadd.f32 0.0, %v5942
    %v5944 = vpop.f32.mrf.mxu0
    %5945 = vmatprep.mubr.f32.mxu0 0.0
    %5946 = vmatmul.mubr.f32.gmra.mxu0 %v5846
    %v5947 = vpop.f32.mrf.mxu0
    %v5948 = vadd.f32 0.0, %v5947
    %v5949 = vpop.f32.mrf.mxu0
    %5950 = vmatprep.mubr.f32.mxu0 0.0
    %5951 = vmatmul.mubr.f32.gmra.mxu0 %v5849
    %v5952 = vpop.f32.mrf.mxu0
    %v5953 = vadd.f32 0.0, %v5952
    %v5954 = vpop.f32.mrf.mxu0
    %5955 = vdwg.mxu0
    %v5956 = vpack.c.bf16 %v5923, %v5918
    %v5957 = vpack.c.bf16 %v5933, %v5928
    %v5958 = vpack.c.bf16 %v5943, %v5938
    %v5959 = vpack.c.bf16 %v5953, %v5948
    %v5960 = vld [vmem:[%s7] sm:$0xff]
    %v5961 = vld [vmem:[%s7 + $0x8] sm:$0xff]
    %v5962 = vld [vmem:[%s7 + $0x10] sm:$0xff]
    %v5963 = vld [vmem:[%s7 + $0x18] sm:$0xff]
    %v5964 = vld [vmem:[%s7 + $0x20] sm:$0xff]
    %v5965 = vld [vmem:[%s7 + $0x28] sm:$0xff]
    %v5966 = vld [vmem:[%s7 + $0x30] sm:$0xff]
    %v5967 = vld [vmem:[%s7 + $0x38] sm:$0xff]
    %v5968 = vld [vmem:[%s7 + $0x40] sm:$0xff]
    %v5969 = vld [vmem:[%s7 + $0x48] sm:$0xff]
    %v5970 = vld [vmem:[%s7 + $0x50] sm:$0xff]
    %v5971 = vld [vmem:[%s7 + $0x58] sm:$0xff]
    %v5972 = vld [vmem:[%s7 + $0x60] sm:$0xff]
    %v5973 = vld [vmem:[%s7 + $0x68] sm:$0xff]
    %v5974 = vld [vmem:[%s7 + $0x70] sm:$0xff]
    %v5975 = vld [vmem:[%s7 + $0x78] sm:$0xff]
    %v5976 = vld [vmem:[%s8] sm:$0x3]
    %v5978 = vlaneseq
    %v5979 = vshrl.u32 %v5978, 7
    %v5980 = vsub.s32 0, %v5979
    %v5981 = vrot.slane %v5976, %v5980
    %v5982 = vlaneseq
    %v5983 = vshrl.u32 %v5982, 7
    %v5984 = vsub.s32 1, %v5983
    %v5985 = vrot.slane %v5976, %v5984
    %v6004 = vunpack.c.l.b16 %v5960
    %v6005 = vunpack.c.h.b16 %v5960
    %v6006 = vunpack.c.l.b16 %v5961
    %v6007 = vunpack.c.h.b16 %v5961
    %v6008 = vunpack.c.l.b16 %v5962
    %v6009 = vunpack.c.h.b16 %v5962
    %v6010 = vunpack.c.l.b16 %v5963
    %v6011 = vunpack.c.h.b16 %v5963
    %v6012 = vunpack.c.l.b16 %v5964
    %v6013 = vunpack.c.h.b16 %v5964
    %v6014 = vunpack.c.l.b16 %v5965
    %v6015 = vunpack.c.h.b16 %v5965
    %v6016 = vunpack.c.l.b16 %v5966
    %v6017 = vunpack.c.h.b16 %v5966
    %v6018 = vunpack.c.l.b16 %v5967
    %v6019 = vunpack.c.h.b16 %v5967
    %v6020 = vunpack.c.l.b16 %v5968
    %v6021 = vunpack.c.h.b16 %v5968
    %v6022 = vunpack.c.l.b16 %v5969
    %v6023 = vunpack.c.h.b16 %v5969
    %v6024 = vunpack.c.l.b16 %v5970
    %v6025 = vunpack.c.h.b16 %v5970
    %v6026 = vunpack.c.l.b16 %v5971
    %v6027 = vunpack.c.h.b16 %v5971
    %v6028 = vunpack.c.l.b16 %v5972
    %v6029 = vunpack.c.h.b16 %v5972
    %v6030 = vunpack.c.l.b16 %v5973
    %v6031 = vunpack.c.h.b16 %v5973
    %v6032 = vunpack.c.l.b16 %v5974
    %v6033 = vunpack.c.h.b16 %v5974
    %v6034 = vunpack.c.l.b16 %v5975
    %v6035 = vunpack.c.h.b16 %v5975
    %v6036 = vpack.c.b16 %v6006, %v6004
    %v6037 = vpack.c.b16 %v6007, %v6005
    %v6038 = vpack.c.b16 %v6010, %v6008
    %v6039 = vpack.c.b16 %v6011, %v6009
    %v6040 = vpack.c.b16 %v6014, %v6012
    %v6041 = vpack.c.b16 %v6015, %v6013
    %v6042 = vpack.c.b16 %v6018, %v6016
    %v6043 = vpack.c.b16 %v6019, %v6017
    %v6044 = vpack.c.b16 %v6022, %v6020
    %v6045 = vpack.c.b16 %v6023, %v6021
    %v6046 = vpack.c.b16 %v6026, %v6024
    %v6047 = vpack.c.b16 %v6027, %v6025
    %v6048 = vpack.c.b16 %v6030, %v6028
    %v6049 = vpack.c.b16 %v6031, %v6029
    %v6050 = vpack.c.b16 %v6034, %v6032
    %v6051 = vpack.c.b16 %v6035, %v6033
    %6068 = vmatprep.subr.bf16.mxu0 %v6051
    %6069 = vmatpush1.bf16.msra.mxu0 %v6050
    %6070 = vmatprep.subr.bf16.mxu0 %v6049
    %6071 = vmatpush1.bf16.msra.mxu0 %v6048
    %6072 = vmatprep.subr.bf16.mxu0 %v6047
    %6073 = vmatpush1.bf16.msra.mxu0 %v6046
    %6074 = vmatprep.subr.bf16.mxu0 %v6045
    %6075 = vmatpush1.bf16.msra.mxu0 %v6044
    %6076 = vmatprep.subr.bf16.mxu0 %v6043
    %6077 = vmatpush1.bf16.msra.mxu0 %v6042
    %6078 = vmatprep.subr.bf16.mxu0 %v6041
    %6079 = vmatpush1.bf16.msra.mxu0 %v6040
    %6080 = vmatprep.subr.bf16.mxu0 %v6039
    %6081 = vmatpush1.bf16.msra.mxu0 %v6038
    %6082 = vmatprep.subr.bf16.mxu0 %v6037
    %6083 = vmatpush1.bf16.msra.mxu0 %v6036
    %6084 = vmatprep.subr.bf16.mxu0 0
    %6085 = vmatpush2.bf16.msra.mxu0 0
    %6086 = vmatprep.subr.bf16.mxu0 0
    %6087 = vmatpush2.bf16.msra.mxu0 0
    %6088 = vmatprep.subr.bf16.mxu0 0
    %6089 = vmatpush2.bf16.msra.mxu0 0
    %6090 = vmatprep.subr.bf16.mxu0 0
    %6091 = vmatpush2.bf16.msra.mxu0 0
    %6092 = vmatprep.subr.bf16.mxu0 0
    %6093 = vmatpush2.bf16.msra.mxu0 0
    %6094 = vmatprep.subr.bf16.mxu0 0
    %6095 = vmatpush2.bf16.msra.mxu0 0
    %6096 = vmatprep.subr.bf16.mxu0 0
    %6097 = vmatpush2.bf16.msra.mxu0 0
    %6098 = vmatprep.subr.bf16.mxu0 0
    %6099 = vmatpush2.bf16.msra.mxu0 0
    %6100 = vmatprep.mubr.bf16.mxu0 0
    %6101 = vmatmul.mubr.bf16.gmra.mxu0 %v5956
    %v6102 = vpop.f32.mrf.mxu0
    %v6103 = vadd.f32 %v5981, %v6102
    %v6104 = vpop.f32.mrf.mxu0
    %v6105 = vadd.f32 %v5985, %v6104
    %v6106 = vpop.f32.mrf.mxu0
    %v6107 = vadd.f32 %v5981, %v6106
    %v6108 = vpop.f32.mrf.mxu0
    %v6109 = vadd.f32 %v5985, %v6108
    %6110 = vmatprep.mubr.bf16.mxu0 0
    %6111 = vmatmul.mubr.bf16.gmra.mxu0 %v5957
    %v6112 = vpop.f32.mrf.mxu0
    %v6113 = vadd.f32 %v5981, %v6112
    %v6114 = vpop.f32.mrf.mxu0
    %v6115 = vadd.f32 %v5985, %v6114
    %v6116 = vpop.f32.mrf.mxu0
    %v6117 = vadd.f32 %v5981, %v6116
    %v6118 = vpop.f32.mrf.mxu0
    %v6119 = vadd.f32 %v5985, %v6118
    %6120 = vmatprep.mubr.bf16.mxu0 0
    %6121 = vmatmul.mubr.bf16.gmra.mxu0 %v5958
    %v6122 = vpop.f32.mrf.mxu0
    %v6123 = vadd.f32 %v5981, %v6122
    %v6124 = vpop.f32.mrf.mxu0
    %v6125 = vadd.f32 %v5985, %v6124
    %v6126 = vpop.f32.mrf.mxu0
    %v6127 = vadd.f32 %v5981, %v6126
    %v6128 = vpop.f32.mrf.mxu0
    %v6129 = vadd.f32 %v5985, %v6128
    %6130 = vmatprep.mubr.bf16.mxu0 0
    %6131 = vmatmul.mubr.bf16.gmra.mxu0 %v5959
    %v6132 = vpop.f32.mrf.mxu0
    %v6133 = vadd.f32 %v5981, %v6132
    %v6134 = vpop.f32.mrf.mxu0
    %v6135 = vadd.f32 %v5985, %v6134
    %v6136 = vpop.f32.mrf.mxu0
    %v6137 = vadd.f32 %v5981, %v6136
    %v6138 = vpop.f32.mrf.mxu0
    %v6139 = vadd.f32 %v5985, %v6138
    %6140 = vdwg.mxu0
    %6141 = vst [vmem:[#allocation7] sm:$0xff] %v6103
    %6142 = vst [vmem:[#allocation7 + $0x8] sm:$0xff] %v6105
    %6143 = vst [vmem:[#allocation7 + $0x10] sm:$0xff] %v6107
    %6144 = vst [vmem:[#allocation7 + $0x18] sm:$0xff] %v6109
    %6145 = vst [vmem:[#allocation7 + $0x20] sm:$0xff] %v6113
    %6146 = vst [vmem:[#allocation7 + $0x28] sm:$0xff] %v6115
    %6147 = vst [vmem:[#allocation7 + $0x30] sm:$0xff] %v6117
    %6148 = vst [vmem:[#allocation7 + $0x38] sm:$0xff] %v6119
    %6149 = vst [vmem:[#allocation7 + $0x40] sm:$0xff] %v6123
    %6150 = vst [vmem:[#allocation7 + $0x48] sm:$0xff] %v6125
    %6151 = vst [vmem:[#allocation7 + $0x50] sm:$0xff] %v6127
    %6152 = vst [vmem:[#allocation7 + $0x58] sm:$0xff] %v6129
    %6153 = vst [vmem:[#allocation7 + $0x60] sm:$0xff] %v6133
    %6154 = vst [vmem:[#allocation7 + $0x68] sm:$0xff] %v6135
    %6155 = vst [vmem:[#allocation7 + $0x70] sm:$0xff] %v6137
    %6156 = vst [vmem:[#allocation7 + $0x78] sm:$0xff] %v6139
    // Predicated region
    $region42: #{lstm_forward.1} parent=1 // pred_check
      _
    $region43: #{lstm_forward.1} parent=1 // pred_check_branch
      %6158 = sbr.rel (0) target = $region45
    $region44: #{lstm_forward.1} parent=1 // pred_region
      %s6160 = ssub.s32 2048, 2048
      %6161 = vsyncadd [#allocation6], %s6160
      %s6162 = sshll.u32 [#allocation7], 4
      %s6163 = int_to_ptr.vmem [resolvable:$true] %s6162
      %6168 = dma.vmem_to_hbm [thread:$0]  %s6163, 2048, %s9, [#allocation6], 256, 256, 16
    $region45: #{lstm_forward.1} parent=1 // pred_fallthru
      _
    // Predicated region
    $region46: #{lstm_forward.1} parent=1 // pred_check
      _
    $region47: #{lstm_forward.1} parent=1 // pred_check_branch
      %6170 = sbr.rel (0) target = $region49
    $region48: #{lstm_forward.1} parent=1 // pred_region
      %s6172 = ssub.s32 256, 256
      %6173 = vsyncadd [#allocation9], %s6172
      %s6174 = sshll.u32 [#allocation8], 4
      %s6175 = int_to_ptr.vmem [resolvable:$true] %s6174
      %6180 = dma.vmem_to_hbm [thread:$0]  %s6175, 256, %s10, [#allocation9], 128, 128, 8
    $region49: #{lstm_forward.1} parent=1 // pred_fallthru
      _
    // Predicated region
    $region50: #{lstm_forward.1} parent=1 // pred_check
      _
    $region51: #{lstm_forward.1} parent=1 // pred_check_branch
      %6182 = sbr.rel (0) target = $region53
    $region52: #{lstm_forward.1} parent=1 // pred_region
      %s6184 = ssub.s32 256, 256
      %6185 = vsyncadd [#allocation9], %s6184
      %s6186 = sshll.u32 [#allocation10], 4
      %s6187 = int_to_ptr.vmem [resolvable:$true] %s6186
      %6192 = dma.vmem_to_hbm [thread:$0]  %s6187, 256, %s11, [#allocation9], 128, 128, 8
    $region53: #{lstm_forward.1} parent=1 // pred_fallthru
      _
    // Predicated region
    $region54: #{lstm_forward.1} parent=1 // pred_check
      _
    $region55: #{lstm_forward.1} parent=1 // pred_check_branch
      %6194 = sbr.rel (0) target = $region57
    $region56: #{lstm_forward.1} parent=1 // pred_region
      %6195 = dma.done [#allocation6], 2048
    $region57: #{lstm_forward.1} parent=1 // pred_fallthru
      _
    // Predicated region
    $region58: #{lstm_forward.1} parent=1 // pred_check
      _
    $region59: #{lstm_forward.1} parent=1 // pred_check_branch
      %6197 = sbr.rel (0) target = $region61
    $region60: #{lstm_forward.1} parent=1 // pred_region
      %6198 = dma.done [#allocation9], 256
    $region61: #{lstm_forward.1} parent=1 // pred_fallthru
      _
    // Predicated region
    $region62: #{lstm_forward.1} parent=1 // pred_check
      _
    $region63: #{lstm_forward.1} parent=1 // pred_check_branch
      %6200 = sbr.rel (0) target = $region65
    $region64: #{lstm_forward.1} parent=1 // pred_region
      %6201 = dma.done [#allocation9], 256
    $region65: #{lstm_forward.1} parent=1 // pred_fallthru
      _
    %6202 = vsyncpa [#allocation5], 1
    %6203 = vsyncpa [#allocation6], 1
    %6204 = vsyncpa [#allocation9], 1

</llo_original>
